<compile_context>
chip_gen: v7x
topology: tpu7x:2x2x1
jax: 0.10.0
libtpu: 0.0.40
codegen_flags: <defaults>
</compile_context>

<pallas_src>
import functools
import numpy as np
import jax
import jax.numpy as jnp
from jax.experimental import pallas as pl
from jax.experimental.pallas import tpu as pltpu

INPUT_DIM = 67 * 68 // 2      # 2278
HIDDEN = INPUT_DIM // 2       # 1139
IMG_H, IMG_W = 17, 67         # 1139 = 17 * 67
K_PAD = 2304                  # 2278 -> 18 * 128
N_PAD = 1152                  # 1139 -> 9 * 128
BLOCK_N = 384                 # 3 * 128 lanes per grid step
BN_EPS = 1e-5
LEAKY_SLOPE = 0.3

# (cin, cout, k, stride, pad, hin, win, act, bn_name)
CONV_CFG = (
    (1,  6, 3, 1, 1, 17, 67, "relu",  "bn1"),
    (6, 16, 3, 2, 1, 17, 67, "relu",  None),    # bn2 unused in reference forward
    (16, 8, 4, 2, 1,  9, 34, "relu",  "bn3"),
    (8,  1, 3, 2, 1,  4, 17, "leaky", "bn5"),
)


def _conv_out(n, k, s, p):
    return (n + 2 * p - k) // s + 1


def _layer_meta():
    return tuple((k, _conv_out(win, k, s, p), act)
                 for (_, _, k, s, p, _, win, act, _) in CONV_CFG)


# ----------------------------------------------------------------------------
# Kernel 1: init_fc  (x @ W + b -> LeakyReLU),  N-tiled, bf16 weight stream
# ----------------------------------------------------------------------------
def _init_fc_kernel(x_ref, w_ref, b_ref, o_ref, *, slope):
    y = jnp.dot(x_ref[...], w_ref[...], preferred_element_type=jnp.float32)
    y = y + b_ref[...]
    o_ref[...] = jnp.where(y >= 0.0, y, slope * y)


def _init_fc(x_pad, w_pad, b_pad):
    m, k = x_pad.shape
    _, n = w_pad.shape
    return pl.pallas_call(
        functools.partial(_init_fc_kernel, slope=LEAKY_SLOPE),
        out_shape=jax.ShapeDtypeStruct((m, n), jnp.float32),
        grid=(n // BLOCK_N,),
        in_specs=[
            pl.BlockSpec((m, k), lambda j: (0, 0)),
            pl.BlockSpec((k, BLOCK_N), lambda j: (0, j)),
            pl.BlockSpec((1, BLOCK_N), lambda j: (0, j)),
        ],
        out_specs=pl.BlockSpec((m, BLOCK_N), lambda j: (0, j)),
        compiler_params=pltpu.CompilerParams(
            dimension_semantics=("parallel",)),
    )(x_pad, w_pad, b_pad)


# ----------------------------------------------------------------------------
# Kernel 2: fused conv1..conv4 + fc2 + fc3 tail, fully VMEM resident
# ----------------------------------------------------------------------------
def _tail_kernel(x0_ref,
                 gw1_ref, a1_ref, p1_ref,
                 gw2_ref, a2_ref, p2_ref,
                 gw3_ref, a3_ref, p3_ref,
                 gw4_ref, a4_ref, p4_ref,
                 w2t_ref, b2_ref, w3t_ref, b3_ref,
                 o_ref, z_ref, *, layer_meta, bsz, slope):
    conv_refs = ((gw1_ref, a1_ref, p1_ref),
                 (gw2_ref, a2_ref, p2_ref),
                 (gw3_ref, a3_ref, p3_ref),
                 (gw4_ref, a4_ref, p4_ref))

    x = x0_ref[...]                                   # (bsz*1*17, 67) f32
    for (gw_ref, a_ref, p_ref), (kw, wo, act) in zip(conv_refs, layer_meta):
        rin = x.shape[0]
        # im2col along W (stride + zero-padding folded into the gather matrix)
        xw = jnp.dot(x, gw_ref[...],
                     preferred_element_type=jnp.float32)   # (rin, kw*wo)
        # H taps + channel contraction; conv weights folded into A blocks
        y = None
        for kj in range(kw):
            t = jnp.dot(a_ref[:, kj * rin:(kj + 1) * rin],
                        xw[:, kj * wo:(kj + 1) * wo],
                        preferred_element_type=jnp.float32)  # (rout, wo)
            y = t if y is None else y + t
        y = y + p_ref[:, 0:1]                         # conv bias (per row)
        if act == "relu":
            y = jnp.maximum(y, 0.0)
        else:
            y = jnp.where(y >= 0.0, y, slope * y)     # LeakyReLU(0.3)
        x = y * p_ref[:, 1:2] + p_ref[:, 2:3]         # eval-mode BN affine

    # x: (bsz * Ho4, Wo4) = (bsz*2, 9); flatten per batch row via scratch
    ho, wo = x.shape[0] // bsz, x.shape[1]
    for b in range(bsz):
        for h in range(ho):
            z_ref[b:b + 1, h * wo:(h + 1) * wo] = x[b * ho + h:b * ho + h + 1, :]
    z = z_ref[...]                                    # (bsz, 18)

    h2 = jnp.dot(z, w2t_ref[...], preferred_element_type=jnp.float32) + b2_ref[...]
    h2 = jnp.where(h2 >= 0.0, h2, slope * h2)         # LeakyReLU(0.3)
    # TODO(synk): Dropout(0.2) train-mode masking not implemented (eval: identity).
    o_ref[...] = (jnp.dot(h2, w3t_ref[...], preferred_element_type=jnp.float32)
                  + b3_ref[...])


def _tail(prep, x0):
    bsz = x0.shape[0] // IMG_H
    meta = _layer_meta()
    flat = meta[-1][1] * (_conv_out(CONV_CFG[-1][5], CONV_CFG[-1][2],
                                    CONV_CFG[-1][3], CONV_CFG[-1][4]))  # 2*9
    ops = [x0]
    for gw, a, p in zip(prep["gw"], prep["a"], prep["p"]):
        ops.extend([gw, a, p])
    ops.extend([prep["w2t"], prep["b2"], prep["w3t"], prep["b3"]])
    return pl.pallas_call(
        functools.partial(_tail_kernel, layer_meta=meta, bsz=bsz,
                          slope=LEAKY_SLOPE),
        out_shape=jax.ShapeDtypeStruct((bsz, 3), jnp.float32),
        scratch_shapes=[pltpu.VMEM((bsz, flat), jnp.float32)],
    )(*ops)


# ----------------------------------------------------------------------------
# Host-side parameter preparation (one-off, outside the hot path)
# ----------------------------------------------------------------------------
def _width_gather(win, wo, kw, stride, pad):
    g = np.zeros((win, kw * wo), np.float32)
    for kj in range(kw):
        for o in range(wo):
            w = o * stride + kj - pad
            if 0 <= w < win:
                g[w, kj * wo + o] = 1.0
    return g


def _height_weight(wconv, bsz, hin, ho, stride, pad):
    cout, cin, kh, kw = wconv.shape
    rin = bsz * cin * hin
    rout = bsz * cout * ho
    a = np.zeros((rout, kw * rin), np.float32)
    for b in range(bsz):
        for co in range(cout):
            for o in range(ho):
                r = (b * cout + co) * ho + o
                for ci in range(cin):
                    for ki in range(kh):
                        h = o * stride + ki - pad
                        if not (0 <= h < hin):
                            continue
                        c = (b * cin + ci) * hin + h
                        for kj in range(kw):
                            a[r, kj * rin + c] = wconv[co, ci, ki, kj]
    return a


def _row_params(bias, scale, shift, bsz, cout, ho):
    p = np.zeros((bsz * cout * ho, 3), np.float32)
    for b in range(bsz):
        for co in range(cout):
            r0 = (b * cout + co) * ho
            p[r0:r0 + ho, 0] = bias[co]
            p[r0:r0 + ho, 1] = scale[co]
            p[r0:r0 + ho, 2] = shift[co]
    return p


def prepare_model(params, bsz):
    # init_fc: pre-transpose + pad + bf16 (streamed weight), f32 bias
    w0, b0 = params["init_fc"]
    w0 = np.asarray(w0, np.float32)
    b0 = np.asarray(b0, np.float32)
    w0p = np.zeros((K_PAD, N_PAD), np.float32)
    w0p[:INPUT_DIM, :HIDDEN] = w0.T
    b0p = np.zeros((1, N_PAD), np.float32)
    b0p[0, :HIDDEN] = b0

    gws, amats, rowps = [], [], []
    for idx, (cin, cout, k, stride, pad, hin, win, act, bn_name) in enumerate(CONV_CFG):
        wconv, bconv = params[f"conv{idx + 1}"]
        wconv = np.asarray(wconv, np.float32)
        bconv = np.asarray(bconv, np.float32)
        ho = _conv_out(hin, k, stride, pad)
        wo = _conv_out(win, k, stride, pad)
        if bn_name is None:
            scale = np.ones((cout,), np.float32)
            shift = np.zeros((cout,), np.float32)
        else:
            bn = params[bn_name]
            scale = np.asarray(bn["gamma"]) / np.sqrt(np.asarray(bn["var"]) + BN_EPS)
            shift = np.asarray(bn["beta"]) - np.asarray(bn["mean"]) * scale
        gws.append(jnp.asarray(_width_gather(win, wo, k, stride, pad)))
        amats.append(jnp.asarray(_height_weight(wconv, bsz, hin, ho, stride, pad)))
        rowps.append(jnp.asarray(_row_params(bconv, scale, shift, bsz, cout, ho)))

    w2, b2 = params["fc2"]
    w3, b3 = params["fc3"]
    return dict(
        w0=jnp.asarray(w0p, jnp.bfloat16),
        b0=jnp.asarray(b0p, jnp.float32),
        gw=gws, a=amats, p=rowps,
        w2t=jnp.asarray(np.asarray(w2, np.float32).T),          # (18, 10)
        b2=jnp.asarray(np.asarray(b2, np.float32).reshape(1, -1)),
        w3t=jnp.asarray(np.asarray(w3, np.float32).T),          # (10, 3)
        b3=jnp.asarray(np.asarray(b3, np.float32).reshape(1, -1)),
    )


# ----------------------------------------------------------------------------
# Forward pass (eval mode)
# ----------------------------------------------------------------------------
def forward(prep, x):
    bsz = x.shape[0]
    xp = jnp.pad(x.astype(jnp.bfloat16), ((0, 0), (0, K_PAD - INPUT_DIM)))
    h = _init_fc(xp, prep["w0"], prep["b0"])                 # (bsz, 1152) f32
    x0 = h[:, :HIDDEN].reshape(bsz * IMG_H, IMG_W)           # tiny glue (9 KB)
    return _tail(prep, x0)                                   # (bsz, 3)


# ----------------------------------------------------------------------------
# Deterministic parameter init (PyTorch-style uniform bounds)
# ----------------------------------------------------------------------------
def _uniform(key, shape, bound):
    return jax.random.uniform(key, shape, jnp.float32, -bound, bound)


def init_params(key):
    keys = jax.random.split(key, 7)

    def lin(k, fin, fout):
        kw_, kb = jax.random.split(k)
        bd = 1.0 / np.sqrt(fin)
        return _uniform(kw_, (fout, fin), bd), _uniform(kb, (fout,), bd)

    def conv(k, cout, cin, kh, kw):
        kw_, kb = jax.random.split(k)
        bd = 1.0 / np.sqrt(cin * kh * kw)
        return _uniform(kw_, (cout, cin, kh, kw), bd), _uniform(kb, (cout,), bd)

    def bn(c):
        return dict(gamma=jnp.ones((c,), jnp.float32),
                    beta=jnp.zeros((c,), jnp.float32),
                    mean=jnp.zeros((c,), jnp.float32),
                    var=jnp.ones((c,), jnp.float32))

    return {
        "init_fc": lin(keys[0], INPUT_DIM, HIDDEN),
        "conv1": conv(keys[1], 6, 1, 3, 3),   "bn1": bn(6),
        "conv2": conv(keys[2], 16, 6, 3, 3),
        "conv3": conv(keys[3], 8, 16, 4, 4),  "bn3": bn(8),
        "conv4": conv(keys[4], 1, 8, 3, 3),   "bn5": bn(1),
        "fc2": lin(keys[5], 18, 10),
        "fc3": lin(keys[6], 10, 3),
    }


# ----------------------------------------------------------------------------
# Pure-JAX reference (for correctness check only)
# ----------------------------------------------------------------------------
def reference_forward(params, x):
    w0, b0 = params["init_fc"]
    h = x @ w0.T + b0
    h = jnp.where(h >= 0, h, LEAKY_SLOPE * h)
    h = h.reshape(x.shape[0], 1, IMG_H, IMG_W)

    def conv(h, w, b, stride, pad):
        y = jax.lax.conv_general_dilated(
            h, w, (stride, stride), [(pad, pad), (pad, pad)],
            dimension_numbers=("NCHW", "OIHW", "NCHW"))
        return y + b.reshape(1, -1, 1, 1)

    def bn(h, p):
        s = p["gamma"] / jnp.sqrt(p["var"] + BN_EPS)
        t = p["beta"] - p["mean"] * s
        return h * s.reshape(1, -1, 1, 1) + t.reshape(1, -1, 1, 1)

    h = bn(jnp.maximum(conv(h, *params["conv1"], 1, 1), 0.0), params["bn1"])
    h = jnp.maximum(conv(h, *params["conv2"], 2, 1), 0.0)
    h = bn(jnp.maximum(conv(h, *params["conv3"], 2, 1), 0.0), params["bn3"])
    h = conv(h, *params["conv4"], 2, 1)
    h = bn(jnp.where(h >= 0, h, LEAKY_SLOPE * h), params["bn5"])
    h = h.reshape(x.shape[0], -1)
    w2, b2 = params["fc2"]
    h = h @ w2.T + b2
    h = jnp.where(h >= 0, h, LEAKY_SLOPE * h)
    w3, b3 = params["fc3"]
    return h @ w3.T + b3


if __name__ == "__main__":
    key = jax.random.PRNGKey(0)
    pkey, xkey = jax.random.split(key)
    params = init_params(pkey)
    bsz = 2
    x = jax.random.normal(xkey, (bsz, INPUT_DIM), jnp.float32)

    prep = prepare_model(params, bsz)
    fwd = jax.jit(forward)
    out = jax.block_until_ready(fwd(prep, x))

    assert out.shape == (bsz, 3), out.shape
    assert bool(jnp.all(jnp.isfinite(out)))

    ref = jax.block_until_ready(reference_forward(params, x))
    assert bool(jnp.allclose(out, ref, rtol=5e-2, atol=5e-2)), \
        f"max abs err {float(jnp.max(jnp.abs(out - ref)))}"

    print("KERNEL_OK")
</pallas_src>

<mosaic_0001>
module attributes {stable_mosaic.version = 11 : i64} {
  func.func @_init_fc_kernel(%arg0: i32, %arg1: memref<2x2304xbf16, #tpu.memory_space<vmem>>, %arg2: memref<2304x384xbf16, #tpu.memory_space<vmem>>, %arg3: memref<1x384xf32, #tpu.memory_space<vmem>>, %arg4: memref<2x384xf32, #tpu.memory_space<vmem>>) attributes {dimension_semantics = [#tpu.dimension_semantics<parallel>], iteration_bounds = array<i64: 3>, scalar_prefetch = 0 : i64, scratch_operands = 0 : i64, tpu.core_type = #tpu.core_type<tc>, window_params = [{pipeline_mode = #tpu.pipeline_mode<synchronous>, transform_indices = @transform_0, window_bounds = array<i64: 2, 2304>}, {transform_indices = @transform_1, window_bounds = array<i64: 2304, 384>}, {transform_indices = @transform_2, window_bounds = array<i64: 1, 384>}, {transform_indices = @transform_3, window_bounds = array<i64: 2, 384>}]} {
    %c0 = arith.constant 0 : index
    %c0_0 = arith.constant 0 : index
    %0 = vector.load %arg1[%c0, %c0_0] : memref<2x2304xbf16, #tpu.memory_space<vmem>>, vector<2x2304xbf16>
    %c0_1 = arith.constant 0 : index
    %c0_2 = arith.constant 0 : index
    %1 = vector.load %arg2[%c0_1, %c0_2] : memref<2304x384xbf16, #tpu.memory_space<vmem>>, vector<2304x384xbf16>
    %cst = arith.constant dense<0.000000e+00> : vector<2x384xf32>
    %2 = tpu.matmul %0, %1, %cst {dimension_numbers = #tpu.dot_dimension_numbers<[1], [0], [0], [1], [0, 0, 1, 1], [], []>} : vector<2x2304xbf16>, vector<2304x384xbf16>, vector<2x384xf32> -> vector<2x384xf32>
    %c0_3 = arith.constant 0 : index
    %c0_4 = arith.constant 0 : index
    %3 = vector.load %arg3[%c0_3, %c0_4] : memref<1x384xf32, #tpu.memory_space<vmem>>, vector<1x384xf32>
    %4 = vector.broadcast %3 : vector<1x384xf32> to vector<2x384xf32>
    %5 = arith.addf %2, %4 : vector<2x384xf32>
    %cst_5 = arith.constant 0.000000e+00 : f32
    %6 = vector.broadcast %cst_5 : f32 to vector<2x384xf32>
    %7 = arith.cmpf oge, %5, %6 : vector<2x384xf32>
    %cst_6 = arith.constant 3.000000e-01 : f32
    %8 = vector.broadcast %cst_6 : f32 to vector<2x384xf32>
    %9 = arith.mulf %8, %5 : vector<2x384xf32>
    %10 = arith.select %7, %5, %9 : vector<2x384xi1>, vector<2x384xf32>
    %c0_7 = arith.constant 0 : index
    %c0_8 = arith.constant 0 : index
    %11 = vector.load %arg4[%c0_7, %c0_8] : memref<2x384xf32, #tpu.memory_space<vmem>>, vector<2x384xf32>
    tpu.vector_store %arg4[%c0_7, %c0_8], %10 {strides = array<i32>} : memref<2x384xf32, #tpu.memory_space<vmem>>, vector<2x384xf32>,
    return
  }
  func.func @transform_0(%arg0: i32) -> (i32, i32) {
    %c0_i32 = arith.constant 0 : i32
    %c0_i32_0 = arith.constant 0 : i32
    %c0_i32_1 = arith.constant 0 : i32
    return %c0_i32, %c0_i32_0 : i32, i32
  }
  func.func @transform_1(%arg0: i32) -> (i32, i32) {
    %c0_i32 = arith.constant 0 : i32
    %c0_i32_0 = arith.constant 0 : i32
    return %c0_i32, %arg0 : i32, i32
  }
  func.func @transform_2(%arg0: i32) -> (i32, i32) {
    %c0_i32 = arith.constant 0 : i32
    %c0_i32_0 = arith.constant 0 : i32
    return %c0_i32, %arg0 : i32, i32
  }
  func.func @transform_3(%arg0: i32) -> (i32, i32) {
    %c0_i32 = arith.constant 0 : i32
    %c0_i32_0 = arith.constant 0 : i32
    return %c0_i32, %arg0 : i32, i32
  }
}

module attributes {stable_mosaic.version = 11 : i64} {
  func.func @_tail_kernel(%arg0: memref<34x67xf32, #tpu.memory_space<vmem>>, %arg1: memref<67x201xf32, #tpu.memory_space<vmem>>, %arg2: memref<204x102xf32, #tpu.memory_space<vmem>>, %arg3: memref<204x3xf32, #tpu.memory_space<vmem>>, %arg4: memref<67x102xf32, #tpu.memory_space<vmem>>, %arg5: memref<288x612xf32, #tpu.memory_space<vmem>>, %arg6: memref<288x3xf32, #tpu.memory_space<vmem>>, %arg7: memref<34x68xf32, #tpu.memory_space<vmem>>, %arg8: memref<64x1152xf32, #tpu.memory_space<vmem>>, %arg9: memref<64x3xf32, #tpu.memory_space<vmem>>, %arg10: memref<17x27xf32, #tpu.memory_space<vmem>>, %arg11: memref<4x192xf32, #tpu.memory_space<vmem>>, %arg12: memref<4x3xf32, #tpu.memory_space<vmem>>, %arg13: memref<18x10xf32, #tpu.memory_space<vmem>>, %arg14: memref<1x10xf32, #tpu.memory_space<vmem>>, %arg15: memref<10x3xf32, #tpu.memory_space<vmem>>, %arg16: memref<1x3xf32, #tpu.memory_space<vmem>>, %arg17: memref<2x3xf32, #tpu.memory_space<vmem>>, %arg18: memref<2x18xf32, #tpu.memory_space<vmem>>) attributes {dimension_semantics = [], scalar_prefetch = 0 : i64, scratch_operands = 1 : i64, tpu.core_type = #tpu.core_type<tc>} {
    %c0 = arith.constant 0 : index
    %c0_0 = arith.constant 0 : index
    %0 = vector.load %arg0[%c0, %c0_0] : memref<34x67xf32, #tpu.memory_space<vmem>>, vector<34x67xf32>
    %c0_1 = arith.constant 0 : index
    %c0_2 = arith.constant 0 : index
    %1 = vector.load %arg1[%c0_1, %c0_2] : memref<67x201xf32, #tpu.memory_space<vmem>>, vector<67x201xf32>
    %cst = arith.constant dense<0.000000e+00> : vector<34x201xf32>
    %2 = tpu.matmul %0, %1, %cst {dimension_numbers = #tpu.dot_dimension_numbers<[1], [0], [0], [1], [0, 0, 1, 1], [], []>} : vector<34x67xf32>, vector<67x201xf32>, vector<34x201xf32> -> vector<34x201xf32>
    %c0_3 = arith.constant 0 : index
    %c0_4 = arith.constant 0 : index
    %3 = vector.load %arg2[%c0_3, %c0_4] : memref<204x102xf32, #tpu.memory_space<vmem>>, vector<204x34xf32>
    %4 = vector.extract_strided_slice %2 {offsets = [0, 0], sizes = [34, 67], strides = [1, 1]} : vector<34x201xf32> to vector<34x67xf32>
    %cst_5 = arith.constant dense<0.000000e+00> : vector<204x67xf32>
    %5 = tpu.matmul %3, %4, %cst_5 {dimension_numbers = #tpu.dot_dimension_numbers<[1], [0], [0], [1], [0, 0, 1, 1], [], []>} : vector<204x34xf32>, vector<34x67xf32>, vector<204x67xf32> -> vector<204x67xf32>
    %c0_6 = arith.constant 0 : index
    %c34 = arith.constant 34 : index
    %6 = vector.load %arg2[%c0_6, %c34] : memref<204x102xf32, #tpu.memory_space<vmem>>, vector<204x34xf32>
    %7 = vector.extract_strided_slice %2 {offsets = [0, 67], sizes = [34, 67], strides = [1, 1]} : vector<34x201xf32> to vector<34x67xf32>
    %cst_7 = arith.constant dense<0.000000e+00> : vector<204x67xf32>
    %8 = tpu.matmul %6, %7, %cst_7 {dimension_numbers = #tpu.dot_dimension_numbers<[1], [0], [0], [1], [0, 0, 1, 1], [], []>} : vector<204x34xf32>, vector<34x67xf32>, vector<204x67xf32> -> vector<204x67xf32>
    %9 = arith.addf %5, %8 : vector<204x67xf32>
    %c0_8 = arith.constant 0 : index
    %c68 = arith.constant 68 : index
    %10 = vector.load %arg2[%c0_8, %c68] : memref<204x102xf32, #tpu.memory_space<vmem>>, vector<204x34xf32>
    %11 = vector.extract_strided_slice %2 {offsets = [0, 134], sizes = [34, 67], strides = [1, 1]} : vector<34x201xf32> to vector<34x67xf32>
    %cst_9 = arith.constant dense<0.000000e+00> : vector<204x67xf32>
    %12 = tpu.matmul %10, %11, %cst_9 {dimension_numbers = #tpu.dot_dimension_numbers<[1], [0], [0], [1], [0, 0, 1, 1], [], []>} : vector<204x34xf32>, vector<34x67xf32>, vector<204x67xf32> -> vector<204x67xf32>
    %13 = arith.addf %9, %12 : vector<204x67xf32>
    %c0_10 = arith.constant 0 : index
    %c0_11 = arith.constant 0 : index
    %14 = vector.load %arg3[%c0_10, %c0_11] : memref<204x3xf32, #tpu.memory_space<vmem>>, vector<204x1xf32>
    %15 = vector.broadcast %14 : vector<204x1xf32> to vector<204x67xf32>
    %16 = arith.addf %13, %15 : vector<204x67xf32>
    %cst_12 = arith.constant 0.000000e+00 : f32
    %17 = vector.broadcast %cst_12 : f32 to vector<204x67xf32>
    %18 = arith.maximumf %16, %17 : vector<204x67xf32>
    %c0_13 = arith.constant 0 : index
    %c1 = arith.constant 1 : index
    %19 = vector.load %arg3[%c0_13, %c1] : memref<204x3xf32, #tpu.memory_space<vmem>>, vector<204x1xf32>
    %20 = vector.broadcast %19 : vector<204x1xf32> to vector<204x67xf32>
    %21 = arith.mulf %18, %20 : vector<204x67xf32>
    %c0_14 = arith.constant 0 : index
    %c2 = arith.constant 2 : index
    %22 = vector.load %arg3[%c0_14, %c2] : memref<204x3xf32, #tpu.memory_space<vmem>>, vector<204x1xf32>
    %23 = vector.broadcast %22 : vector<204x1xf32> to vector<204x67xf32>
    %24 = arith.addf %21, %23 : vector<204x67xf32>
    %c0_15 = arith.constant 0 : index
    %c0_16 = arith.constant 0 : index
    %25 = vector.load %arg4[%c0_15, %c0_16] : memref<67x102xf32, #tpu.memory_space<vmem>>, vector<67x102xf32>
    %cst_17 = arith.constant dense<0.000000e+00> : vector<204x102xf32>
    %26 = tpu.matmul %24, %25, %cst_17 {dimension_numbers = #tpu.dot_dimension_numbers<[1], [0], [0], [1], [0, 0, 1, 1], [], []>} : vector<204x67xf32>, vector<67x102xf32>, vector<204x102xf32> -> vector<204x102xf32>
    %c0_18 = arith.constant 0 : index
    %c0_19 = arith.constant 0 : index
    %27 = vector.load %arg5[%c0_18, %c0_19] : memref<288x612xf32, #tpu.memory_space<vmem>>, vector<288x204xf32>
    %28 = vector.extract_strided_slice %26 {offsets = [0, 0], sizes = [204, 34], strides = [1, 1]} : vector<204x102xf32> to vector<204x34xf32>
    %cst_20 = arith.constant dense<0.000000e+00> : vector<288x34xf32>
    %29 = tpu.matmul %27, %28, %cst_20 {dimension_numbers = #tpu.dot_dimension_numbers<[1], [0], [0], [1], [0, 0, 1, 1], [], []>} : vector<288x204xf32>, vector<204x34xf32>, vector<288x34xf32> -> vector<288x34xf32>
    %c0_21 = arith.constant 0 : index
    %c204 = arith.constant 204 : index
    %30 = vector.load %arg5[%c0_21, %c204] : memref<288x612xf32, #tpu.memory_space<vmem>>, vector<288x204xf32>
    %31 = vector.extract_strided_slice %26 {offsets = [0, 34], sizes = [204, 34], strides = [1, 1]} : vector<204x102xf32> to vector<204x34xf32>
    %cst_22 = arith.constant dense<0.000000e+00> : vector<288x34xf32>
    %32 = tpu.matmul %30, %31, %cst_22 {dimension_numbers = #tpu.dot_dimension_numbers<[1], [0], [0], [1], [0, 0, 1, 1], [], []>} : vector<288x204xf32>, vector<204x34xf32>, vector<288x34xf32> -> vector<288x34xf32>
    %33 = arith.addf %29, %32 : vector<288x34xf32>
    %c0_23 = arith.constant 0 : index
    %c408 = arith.constant 408 : index
    %34 = vector.load %arg5[%c0_23, %c408] : memref<288x612xf32, #tpu.memory_space<vmem>>, vector<288x204xf32>
    %35 = vector.extract_strided_slice %26 {offsets = [0, 68], sizes = [204, 34], strides = [1, 1]} : vector<204x102xf32> to vector<204x34xf32>
    %cst_24 = arith.constant dense<0.000000e+00> : vector<288x34xf32>
    %36 = tpu.matmul %34, %35, %cst_24 {dimension_numbers = #tpu.dot_dimension_numbers<[1], [0], [0], [1], [0, 0, 1, 1], [], []>} : vector<288x204xf32>, vector<204x34xf32>, vector<288x34xf32> -> vector<288x34xf32>
    %37 = arith.addf %33, %36 : vector<288x34xf32>
    %c0_25 = arith.constant 0 : index
    %c0_26 = arith.constant 0 : index
    %38 = vector.load %arg6[%c0_25, %c0_26] : memref<288x3xf32, #tpu.memory_space<vmem>>, vector<288x1xf32>
    %39 = vector.broadcast %38 : vector<288x1xf32> to vector<288x34xf32>
    %40 = arith.addf %37, %39 : vector<288x34xf32>
    %cst_27 = arith.constant 0.000000e+00 : f32
    %41 = vector.broadcast %cst_27 : f32 to vector<288x34xf32>
    %42 = arith.maximumf %40, %41 : vector<288x34xf32>
    %c0_28 = arith.constant 0 : index
    %c1_29 = arith.constant 1 : index
    %43 = vector.load %arg6[%c0_28, %c1_29] : memref<288x3xf32, #tpu.memory_space<vmem>>, vector<288x1xf32>
    %44 = vector.broadcast %43 : vector<288x1xf32> to vector<288x34xf32>
    %45 = arith.mulf %42, %44 : vector<288x34xf32>
    %c0_30 = arith.constant 0 : index
    %c2_31 = arith.constant 2 : index
    %46 = vector.load %arg6[%c0_30, %c2_31] : memref<288x3xf32, #tpu.memory_space<vmem>>, vector<288x1xf32>
    %47 = vector.broadcast %46 : vector<288x1xf32> to vector<288x34xf32>
    %48 = arith.addf %45, %47 : vector<288x34xf32>
    %c0_32 = arith.constant 0 : index
    %c0_33 = arith.constant 0 : index
    %49 = vector.load %arg7[%c0_32, %c0_33] : memref<34x68xf32, #tpu.memory_space<vmem>>, vector<34x68xf32>
    %cst_34 = arith.constant dense<0.000000e+00> : vector<288x68xf32>
    %50 = tpu.matmul %48, %49, %cst_34 {dimension_numbers = #tpu.dot_dimension_numbers<[1], [0], [0], [1], [0, 0, 1, 1], [], []>} : vector<288x34xf32>, vector<34x68xf32>, vector<288x68xf32> -> vector<288x68xf32>
    %c0_35 = arith.constant 0 : index
    %c0_36 = arith.constant 0 : index
    %51 = vector.load %arg8[%c0_35, %c0_36] : memref<64x1152xf32, #tpu.memory_space<vmem>>, vector<64x288xf32>
    %52 = vector.extract_strided_slice %50 {offsets = [0, 0], sizes = [288, 17], strides = [1, 1]} : vector<288x68xf32> to vector<288x17xf32>
    %cst_37 = arith.constant dense<0.000000e+00> : vector<64x17xf32>
    %53 = tpu.matmul %51, %52, %cst_37 {dimension_numbers = #tpu.dot_dimension_numbers<[1], [0], [0], [1], [0, 0, 1, 1], [], []>} : vector<64x288xf32>, vector<288x17xf32>, vector<64x17xf32> -> vector<64x17xf32>
    %c0_38 = arith.constant 0 : index
    %c288 = arith.constant 288 : index
    %54 = vector.load %arg8[%c0_38, %c288] : memref<64x1152xf32, #tpu.memory_space<vmem>>, vector<64x288xf32>
    %55 = vector.extract_strided_slice %50 {offsets = [0, 17], sizes = [288, 17], strides = [1, 1]} : vector<288x68xf32> to vector<288x17xf32>
    %cst_39 = arith.constant dense<0.000000e+00> : vector<64x17xf32>
    %56 = tpu.matmul %54, %55, %cst_39 {dimension_numbers = #tpu.dot_dimension_numbers<[1], [0], [0], [1], [0, 0, 1, 1], [], []>} : vector<64x288xf32>, vector<288x17xf32>, vector<64x17xf32> -> vector<64x17xf32>
    %57 = arith.addf %53, %56 : vector<64x17xf32>
    %c0_40 = arith.constant 0 : index
    %c576 = arith.constant 576 : index
    %58 = vector.load %arg8[%c0_40, %c576] : memref<64x1152xf32, #tpu.memory_space<vmem>>, vector<64x288xf32>
    %59 = vector.extract_strided_slice %50 {offsets = [0, 34], sizes = [288, 17], strides = [1, 1]} : vector<288x68xf32> to vector<288x17xf32>
    %cst_41 = arith.constant dense<0.000000e+00> : vector<64x17xf32>
    %60 = tpu.matmul %58, %59, %cst_41 {dimension_numbers = #tpu.dot_dimension_numbers<[1], [0], [0], [1], [0, 0, 1, 1], [], []>} : vector<64x288xf32>, vector<288x17xf32>, vector<64x17xf32> -> vector<64x17xf32>
    %61 = arith.addf %57, %60 : vector<64x17xf32>
    %c0_42 = arith.constant 0 : index
    %c864 = arith.constant 864 : index
    %62 = vector.load %arg8[%c0_42, %c864] : memref<64x1152xf32, #tpu.memory_space<vmem>>, vector<64x288xf32>
    %63 = vector.extract_strided_slice %50 {offsets = [0, 51], sizes = [288, 17], strides = [1, 1]} : vector<288x68xf32> to vector<288x17xf32>
    %cst_43 = arith.constant dense<0.000000e+00> : vector<64x17xf32>
    %64 = tpu.matmul %62, %63, %cst_43 {dimension_numbers = #tpu.dot_dimension_numbers<[1], [0], [0], [1], [0, 0, 1, 1], [], []>} : vector<64x288xf32>, vector<288x17xf32>, vector<64x17xf32> -> vector<64x17xf32>
    %65 = arith.addf %61, %64 : vector<64x17xf32>
    %c0_44 = arith.constant 0 : index
    %c0_45 = arith.constant 0 : index
    %66 = vector.load %arg9[%c0_44, %c0_45] : memref<64x3xf32, #tpu.memory_space<vmem>>, vector<64x1xf32>
    %67 = vector.broadcast %66 : vector<64x1xf32> to vector<64x17xf32>
    %68 = arith.addf %65, %67 : vector<64x17xf32>
    %cst_46 = arith.constant 0.000000e+00 : f32
    %69 = vector.broadcast %cst_46 : f32 to vector<64x17xf32>
    %70 = arith.maximumf %68, %69 : vector<64x17xf32>
    %c0_47 = arith.constant 0 : index
    %c1_48 = arith.constant 1 : index
    %71 = vector.load %arg9[%c0_47, %c1_48] : memref<64x3xf32, #tpu.memory_space<vmem>>, vector<64x1xf32>
    %72 = vector.broadcast %71 : vector<64x1xf32> to vector<64x17xf32>
    %73 = arith.mulf %70, %72 : vector<64x17xf32>
    %c0_49 = arith.constant 0 : index
    %c2_50 = arith.constant 2 : index
    %74 = vector.load %arg9[%c0_49, %c2_50] : memref<64x3xf32, #tpu.memory_space<vmem>>, vector<64x1xf32>
    %75 = vector.broadcast %74 : vector<64x1xf32> to vector<64x17xf32>
    %76 = arith.addf %73, %75 : vector<64x17xf32>
    %c0_51 = arith.constant 0 : index
    %c0_52 = arith.constant 0 : index
    %77 = vector.load %arg10[%c0_51, %c0_52] : memref<17x27xf32, #tpu.memory_space<vmem>>, vector<17x27xf32>
    %cst_53 = arith.constant dense<0.000000e+00> : vector<64x27xf32>
    %78 = tpu.matmul %76, %77, %cst_53 {dimension_numbers = #tpu.dot_dimension_numbers<[1], [0], [0], [1], [0, 0, 1, 1], [], []>} : vector<64x17xf32>, vector<17x27xf32>, vector<64x27xf32> -> vector<64x27xf32>
    %c0_54 = arith.constant 0 : index
    %c0_55 = arith.constant 0 : index
    %79 = vector.load %arg11[%c0_54, %c0_55] : memref<4x192xf32, #tpu.memory_space<vmem>>, vector<4x64xf32>
    %80 = vector.extract_strided_slice %78 {offsets = [0, 0], sizes = [64, 9], strides = [1, 1]} : vector<64x27xf32> to vector<64x9xf32>
    %cst_56 = arith.constant dense<0.000000e+00> : vector<4x9xf32>
    %81 = tpu.matmul %79, %80, %cst_56 {dimension_numbers = #tpu.dot_dimension_numbers<[1], [0], [0], [1], [0, 0, 1, 1], [], []>} : vector<4x64xf32>, vector<64x9xf32>, vector<4x9xf32> -> vector<4x9xf32>
    %c0_57 = arith.constant 0 : index
    %c64 = arith.constant 64 : index
    %82 = vector.load %arg11[%c0_57, %c64] : memref<4x192xf32, #tpu.memory_space<vmem>>, vector<4x64xf32>
    %83 = vector.extract_strided_slice %78 {offsets = [0, 9], sizes = [64, 9], strides = [1, 1]} : vector<64x27xf32> to vector<64x9xf32>
    %cst_58 = arith.constant dense<0.000000e+00> : vector<4x9xf32>
    %84 = tpu.matmul %82, %83, %cst_58 {dimension_numbers = #tpu.dot_dimension_numbers<[1], [0], [0], [1], [0, 0, 1, 1], [], []>} : vector<4x64xf32>, vector<64x9xf32>, vector<4x9xf32> -> vector<4x9xf32>
    %85 = arith.addf %81, %84 : vector<4x9xf32>
    %c0_59 = arith.constant 0 : index
    %c128 = arith.constant 128 : index
    %86 = vector.load %arg11[%c0_59, %c128] : memref<4x192xf32, #tpu.memory_space<vmem>>, vector<4x64xf32>
    %87 = vector.extract_strided_slice %78 {offsets = [0, 18], sizes = [64, 9], strides = [1, 1]} : vector<64x27xf32> to vector<64x9xf32>
    %cst_60 = arith.constant dense<0.000000e+00> : vector<4x9xf32>
    %88 = tpu.matmul %86, %87, %cst_60 {dimension_numbers = #tpu.dot_dimension_numbers<[1], [0], [0], [1], [0, 0, 1, 1], [], []>} : vector<4x64xf32>, vector<64x9xf32>, vector<4x9xf32> -> vector<4x9xf32>
    %89 = arith.addf %85, %88 : vector<4x9xf32>
    %c0_61 = arith.constant 0 : index
    %c0_62 = arith.constant 0 : index
    %90 = vector.load %arg12[%c0_61, %c0_62] : memref<4x3xf32, #tpu.memory_space<vmem>>, vector<4x1xf32>
    %91 = vector.broadcast %90 : vector<4x1xf32> to vector<4x9xf32>
    %92 = arith.addf %89, %91 : vector<4x9xf32>
    %cst_63 = arith.constant 0.000000e+00 : f32
    %93 = vector.broadcast %cst_63 : f32 to vector<4x9xf32>
    %94 = arith.cmpf oge, %92, %93 : vector<4x9xf32>
    %cst_64 = arith.constant 3.000000e-01 : f32
    %95 = vector.broadcast %cst_64 : f32 to vector<4x9xf32>
    %96 = arith.mulf %95, %92 : vector<4x9xf32>
    %97 = arith.select %94, %92, %96 : vector<4x9xi1>, vector<4x9xf32>
    %c0_65 = arith.constant 0 : index
    %c1_66 = arith.constant 1 : index
    %98 = vector.load %arg12[%c0_65, %c1_66] : memref<4x3xf32, #tpu.memory_space<vmem>>, vector<4x1xf32>
    %99 = vector.broadcast %98 : vector<4x1xf32> to vector<4x9xf32>
    %100 = arith.mulf %97, %99 : vector<4x9xf32>
    %c0_67 = arith.constant 0 : index
    %c2_68 = arith.constant 2 : index
    %101 = vector.load %arg12[%c0_67, %c2_68] : memref<4x3xf32, #tpu.memory_space<vmem>>, vector<4x1xf32>
    %102 = vector.broadcast %101 : vector<4x1xf32> to vector<4x9xf32>
    %103 = arith.addf %100, %102 : vector<4x9xf32>
    %104 = vector.extract_strided_slice %103 {offsets = [0, 0], sizes = [1, 9], strides = [1, 1]} : vector<4x9xf32> to vector<1x9xf32>
    %c0_69 = arith.constant 0 : index
    %c0_70 = arith.constant 0 : index
    %105 = vector.load %arg18[%c0_69, %c0_70] : memref<2x18xf32, #tpu.memory_space<vmem>>, vector<1x9xf32>
    tpu.vector_store %arg18[%c0_69, %c0_70], %104 {strides = array<i32>} : memref<2x18xf32, #tpu.memory_space<vmem>>, vector<1x9xf32>,
    %106 = vector.extract_strided_slice %103 {offsets = [1, 0], sizes = [1, 9], strides = [1, 1]} : vector<4x9xf32> to vector<1x9xf32>
    %c0_71 = arith.constant 0 : index
    %c9 = arith.constant 9 : index
    %107 = vector.load %arg18[%c0_71, %c9] : memref<2x18xf32, #tpu.memory_space<vmem>>, vector<1x9xf32>
    tpu.vector_store %arg18[%c0_71, %c9], %106 {strides = array<i32>} : memref<2x18xf32, #tpu.memory_space<vmem>>, vector<1x9xf32>,
    %108 = vector.extract_strided_slice %103 {offsets = [2, 0], sizes = [1, 9], strides = [1, 1]} : vector<4x9xf32> to vector<1x9xf32>
    %c1_72 = arith.constant 1 : index
    %c0_73 = arith.constant 0 : index
    %109 = vector.load %arg18[%c1_72, %c0_73] : memref<2x18xf32, #tpu.memory_space<vmem>>, vector<1x9xf32>
    tpu.vector_store %arg18[%c1_72, %c0_73], %108 {strides = array<i32>} : memref<2x18xf32, #tpu.memory_space<vmem>>, vector<1x9xf32>,
    %110 = vector.extract_strided_slice %103 {offsets = [3, 0], sizes = [1, 9], strides = [1, 1]} : vector<4x9xf32> to vector<1x9xf32>
    %c1_74 = arith.constant 1 : index
    %c9_75 = arith.constant 9 : index
    %111 = vector.load %arg18[%c1_74, %c9_75] : memref<2x18xf32, #tpu.memory_space<vmem>>, vector<1x9xf32>
    tpu.vector_store %arg18[%c1_74, %c9_75], %110 {strides = array<i32>} : memref<2x18xf32, #tpu.memory_space<vmem>>, vector<1x9xf32>,
    %c0_76 = arith.constant 0 : index
    %c0_77 = arith.constant 0 : index
    %112 = vector.load %arg18[%c0_76, %c0_77] : memref<2x18xf32, #tpu.memory_space<vmem>>, vector<2x18xf32>
    %c0_78 = arith.constant 0 : index
    %c0_79 = arith.constant 0 : index
    %113 = vector.load %arg13[%c0_78, %c0_79] : memref<18x10xf32, #tpu.memory_space<vmem>>, vector<18x10xf32>
    %cst_80 = arith.constant dense<0.000000e+00> : vector<2x10xf32>
    %114 = tpu.matmul %112, %113, %cst_80 {dimension_numbers = #tpu.dot_dimension_numbers<[1], [0], [0], [1], [0, 0, 1, 1], [], []>} : vector<2x18xf32>, vector<18x10xf32>, vector<2x10xf32> -> vector<2x10xf32>
    %c0_81 = arith.constant 0 : index
    %c0_82 = arith.constant 0 : index
    %115 = vector.load %arg14[%c0_81, %c0_82] : memref<1x10xf32, #tpu.memory_space<vmem>>, vector<1x10xf32>
    %116 = vector.broadcast %115 : vector<1x10xf32> to vector<2x10xf32>
    %117 = arith.addf %114, %116 : vector<2x10xf32>
    %cst_83 = arith.constant 0.000000e+00 : f32
    %118 = vector.broadcast %cst_83 : f32 to vector<2x10xf32>
    %119 = arith.cmpf oge, %117, %118 : vector<2x10xf32>
    %cst_84 = arith.constant 3.000000e-01 : f32
    %120 = vector.broadcast %cst_84 : f32 to vector<2x10xf32>
    %121 = arith.mulf %120, %117 : vector<2x10xf32>
    %122 = arith.select %119, %117, %121 : vector<2x10xi1>, vector<2x10xf32>
    %c0_85 = arith.constant 0 : index
    %c0_86 = arith.constant 0 : index
    %123 = vector.load %arg15[%c0_85, %c0_86] : memref<10x3xf32, #tpu.memory_space<vmem>>, vector<10x3xf32>
    %cst_87 = arith.constant dense<0.000000e+00> : vector<2x3xf32>
    %124 = tpu.matmul %122, %123, %cst_87 {dimension_numbers = #tpu.dot_dimension_numbers<[1], [0], [0], [1], [0, 0, 1, 1], [], []>} : vector<2x10xf32>, vector<10x3xf32>, vector<2x3xf32> -> vector<2x3xf32>
    %c0_88 = arith.constant 0 : index
    %c0_89 = arith.constant 0 : index
    %125 = vector.load %arg16[%c0_88, %c0_89] : memref<1x3xf32, #tpu.memory_space<vmem>>, vector<1x3xf32>
    %126 = vector.broadcast %125 : vector<1x3xf32> to vector<2x3xf32>
    %127 = arith.addf %124, %126 : vector<2x3xf32>
    %c0_90 = arith.constant 0 : index
    %c0_91 = arith.constant 0 : index
    %128 = vector.load %arg17[%c0_90, %c0_91] : memref<2x3xf32, #tpu.memory_space<vmem>>, vector<2x3xf32>
    tpu.vector_store %arg17[%c0_90, %c0_91], %127 {strides = array<i32>} : memref<2x3xf32, #tpu.memory_space<vmem>>, vector<2x3xf32>,
    return
  }
}

</mosaic_0001>

<llo_original>
// kernel: forward.2
$region0: #{forward.2}
  #allocation0 [shape = 'u32[]', space=smem, size = 0x4, offset = 0x4, fixed_abs, tag = 'smem constant byte address 0x4 - core index']
  #allocation1 [shape = 'u32[144,128]{1,0:T(1,128)}', space=vmem, size = 0x12000, scoped, tag = 'internal scratch']
  %s0 = inlined_call_operand.vmem [shape: bf16[2,2304], index: 0, kind: input, shape index: {}]
  %s1 = inlined_call_operand.hbm [shape: bf16[2304,1152], index: 1, kind: input, shape index: {}]
  %s2 = inlined_call_operand.hbm [shape: f32[1,1152], index: 2, kind: input, shape index: {}]
  %s3 = inlined_call_operand.vmem [shape: f32[2,1152], index: 3, kind: output, shape index: {}]
  %s4 = sld [smem:[#allocation0]]
  $region53: #{forward.2} parent=0
    _
  %s6 = ssub.s32 1, %s4
  %s7 = scalar_select 0, %s6, %s4
  $region1: #{forward.2} parent=0
    #allocation2 [shape = 'u8[3538944]{0}', space=vmem, size = 0x360000, scoped, tag = 'input window, operand 1']
    #allocation3 [shape = 's32[2]{0}', space=sflag, size = 0x8, scoped, tag = 'scoped memory for forward.2']
    #allocation4 [shape = 'u8[3072]{0}', space=vmem, size = 0xc00, scoped, tag = 'input window, operand 2']
    #allocation5 [shape = 's32[2]{0}', space=sflag, size = 0x8, scoped, tag = 'scoped memory for forward.2']
    %8 = vsyncpa [#allocation3], 0
    %s9 = scalar_lea.sflag [#allocation3], 1
    %10 = vsyncpa %s9, 0
    %11 = vsyncpa [#allocation5], 0
    %s12 = scalar_lea.sflag [#allocation5], 1
    %13 = vsyncpa %s12, 0
    loop: start=0, step=1, limit=5
    $region2: #{forward.2} parent=1 // loop_pre_header
      _
    $region3: #{forward.2} parent=1 // loop_header
      %s15 = sphi 0, %s19
      %p16 = scmp.ge.s32.totalorder %s15, 5
      %s23 = sphi 0, %s23
      %s25 = sphi 0, %s23
      %s26 = sphi 0, %s25
      %s40 = sphi 0, %s26
      %s46 = sphi 0, %s48
      %s49 = sphi 0, %s46
      %s50 = sphi 0, %s49
      %s66 = sphi 0, %s50
      %s72 = sphi 0, %s74
      %s75 = sphi 0, %s72
      %s76 = sphi 0, %s75
      %s92 = sphi 0, %s76
      %s98 = sphi 0, %s100
      %s101 = sphi 0, %s98
      %s102 = sphi 0, %s101
      %s118 = sphi 0, %s102
    $region4: #{forward.2} parent=1 // loop_header_branch
      %18 = sbr.rel (%p16) target = $region8
    $region5: #{forward.2} parent=1 // loop_body
      %s20 = ssub.s32 %s15, 1
      %s21 = ssub.s32 %s15, 2
      %s22 = sadd.s32 %s15, 1
      %s24 = sadd.s32 %s23, 1
      %p27 = scmp.eq.s32.totalorder %s15, 2
      %p28 = scmp.ne.s32.totalorder %s23, %s25
      %p29 = scmp.eq.s32.totalorder %s15, 0
      %p30 = por %p28, %p29
      %p31 = scmp.ne.s32.totalorder %s23, %s25
      %p32 = scmp.eq.s32.totalorder %s20, 2
      %p33 = por %p31, %p32
      %p34 = scmp.ne.s32.totalorder %s25, %s26
      %p35 = scmp.eq.s32.totalorder %s20, 0
      %p36 = por %p34, %p35
      %p37 = scmp.ne.s32.totalorder %s25, %s26
      %p38 = scmp.eq.s32.totalorder %s21, 2
      %p39 = por %p37, %p38
      %p41 = scmp.ne.s32.totalorder %s26, %s40
      %p42 = scmp.eq.s32.totalorder %s21, 0
      %p43 = por %p41, %p42
      %s44 = ssub.s32 %s15, %s22
      %p45 = scmp.eq.s32.totalorder %s44, 0
      %s47 = sadd.s32 %s46, 1
      %s48 = scalar_select %p45, %s46, %s47
      %p51 = pneg %p45
      %p52 = scmp.eq.s32.totalorder %s15, 2
      %p53 = por %p51, %p52
      %p54 = scmp.ne.s32.totalorder %s46, %s49
      %p55 = scmp.eq.s32.totalorder %s15, 0
      %p56 = por %p54, %p55
      %p57 = scmp.ne.s32.totalorder %s46, %s49
      %p58 = scmp.eq.s32.totalorder %s20, 2
      %p59 = por %p57, %p58
      %p60 = scmp.ne.s32.totalorder %s49, %s50
      %p61 = scmp.eq.s32.totalorder %s20, 0
      %p62 = por %p60, %p61
      %p63 = scmp.ne.s32.totalorder %s49, %s50
      %p64 = scmp.eq.s32.totalorder %s21, 2
      %p65 = por %p63, %p64
      %p67 = scmp.ne.s32.totalorder %s50, %s66
      %p68 = scmp.eq.s32.totalorder %s21, 0
      %p69 = por %p67, %p68
      %s70 = ssub.s32 %s15, %s22
      %p71 = scmp.eq.s32.totalorder %s70, 0
      %s73 = sadd.s32 %s72, 1
      %s74 = scalar_select %p71, %s72, %s73
      %p77 = pneg %p71
      %p78 = scmp.eq.s32.totalorder %s15, 2
      %p79 = por %p77, %p78
      %p80 = scmp.ne.s32.totalorder %s72, %s75
      %p81 = scmp.eq.s32.totalorder %s15, 0
      %p82 = por %p80, %p81
      %p83 = scmp.ne.s32.totalorder %s72, %s75
      %p84 = scmp.eq.s32.totalorder %s20, 2
      %p85 = por %p83, %p84
      %p86 = scmp.ne.s32.totalorder %s75, %s76
      %p87 = scmp.eq.s32.totalorder %s20, 0
      %p88 = por %p86, %p87
      %p89 = scmp.ne.s32.totalorder %s75, %s76
      %p90 = scmp.eq.s32.totalorder %s21, 2
      %p91 = por %p89, %p90
      %p93 = scmp.ne.s32.totalorder %s76, %s92
      %p94 = scmp.eq.s32.totalorder %s21, 0
      %p95 = por %p93, %p94
      %s96 = ssub.s32 %s15, %s22
      %p97 = scmp.eq.s32.totalorder %s96, 0
      %s99 = sadd.s32 %s98, 1
      %s100 = scalar_select %p97, %s98, %s99
      %p103 = pneg %p97
      %p104 = scmp.eq.s32.totalorder %s15, 2
      %p105 = por %p103, %p104
      %p106 = scmp.ne.s32.totalorder %s98, %s101
      %p107 = scmp.eq.s32.totalorder %s15, 0
      %p108 = por %p106, %p107
      %p109 = scmp.ne.s32.totalorder %s98, %s101
      %p110 = scmp.eq.s32.totalorder %s20, 2
      %p111 = por %p109, %p110
      %p112 = scmp.ne.s32.totalorder %s101, %s102
      %p113 = scmp.eq.s32.totalorder %s20, 0
      %p114 = por %p112, %p113
      %p115 = scmp.ne.s32.totalorder %s101, %s102
      %p116 = scmp.eq.s32.totalorder %s21, 2
      %p117 = por %p115, %p116
      %p119 = scmp.ne.s32.totalorder %s102, %s118
      %p120 = scmp.eq.s32.totalorder %s21, 0
      %p121 = por %p119, %p120
      %p122 = scmp.le.s32.totalorder 1, %s15
      %p123 = scmp.lt.s32.totalorder %s15, 4
      %p124 = pnand %p122, %p123
      %p125 = pneg %p124
      // Predicated region
      $region9: #{forward.2} parent=5 // pred_check
        _
      $region10: #{forward.2} parent=5 // pred_check_branch
        %127 = sbr.rel (%p124) target = $region12
      $region11: #{forward.2} parent=5 // pred_region
        %s128 = ssub.s32 %s15, 1
        // Predicated region
        $region13: #{forward.2} parent=11 // pred_check
          %p129 = pneg %p36
        $region14: #{forward.2} parent=11 // pred_check_branch
          %131 = sbr.rel (%p129) target = $region16
        $region15: #{forward.2} parent=11 // pred_region
          _
        $region16: #{forward.2} parent=11 // pred_fallthru
          _
      $region12: #{forward.2} parent=5 // pred_fallthru
        _
      %p132 = scmp.lt.s32.totalorder %s15, 3
      // Predicated region
      $region17: #{forward.2} parent=5 // pred_check
        %p133 = pneg %p132
      $region18: #{forward.2} parent=5 // pred_check_branch
        %135 = sbr.rel (%p133) target = $region20
      $region19: #{forward.2} parent=5 // pred_region
        // Predicated region
        $region21: #{forward.2} parent=19 // pred_check
          %p136 = pneg %p56
        $region22: #{forward.2} parent=19 // pred_check_branch
          %138 = sbr.rel (%p136) target = $region24
        $region23: #{forward.2} parent=19 // pred_region
          %s139 = sand.u32 %s46, 1
          %s140 = scalar_lea.sflag [#allocation3], %s139
          %s141 = sand.u32 %s46, 1
          %s142 = smul.addr %s141, 3456
          %s143 = scalar_lea.vmem [#allocation2], %s142
          %s144 = smul.u32 3, %s15
          %s146 = ssub.s32 55296, 55296
          %147 = vsyncadd %s140, %s146
          %s148 = smul.addr %s144, 64
          %s149 = scalar_lea.hbm %s1, %s148
          %s150 = sshll.u32 %s143, 4
          %s151 = int_to_ptr.vmem [resolvable:$true] %s150
          %156 = dma.hbm_to_vmem [thread:$0]  %s149, 55296, %s151, %s140, 576, 192, 12
        $region24: #{forward.2} parent=19 // pred_fallthru
          _
        // Predicated region
        $region25: #{forward.2} parent=19 // pred_check
          %p157 = pneg %p82
        $region26: #{forward.2} parent=19 // pred_check_branch
          %159 = sbr.rel (%p157) target = $region28
        $region27: #{forward.2} parent=19 // pred_region
          %s160 = sand.u32 %s72, 1
          %s161 = scalar_lea.sflag [#allocation5], %s160
          %s162 = sand.u32 %s72, 1
          %s163 = smul.addr %s162, 3
          %s164 = scalar_lea.vmem [#allocation4], %s163
          %s165 = smul.u32 3, %s15
          %s167 = ssub.s32 48, 48
          %168 = vsyncadd %s161, %s167
          %s169 = smul.addr %s165, 16
          %s170 = scalar_lea.hbm %s2, %s169
          %s172 = sshll.u32 %s164, 4
          %s173 = int_to_ptr.vmem [resolvable:$true] %s172
          %175 = dma.hbm_to_vmem [thread:$0]  %s170, 48, %s173, %s161
        $region28: #{forward.2} parent=19 // pred_fallthru
          _
      $region20: #{forward.2} parent=5 // pred_fallthru
        _
      %p176 = scmp.le.s32.totalorder 1, %s15
      %p177 = scmp.lt.s32.totalorder %s15, 4
      %p178 = pnand %p176, %p177
      %p179 = pneg %p178
      // Predicated region
      $region29: #{forward.2} parent=5 // pred_check
        _
      $region30: #{forward.2} parent=5 // pred_check_branch
        %181 = sbr.rel (%p178) target = $region32
      $region31: #{forward.2} parent=5 // pred_region
        %s182 = ssub.s32 %s15, 1
        %s183 = sand.u32 %s49, 1
        %s184 = scalar_lea.sflag [#allocation3], %s183
        %s185 = sand.u32 %s49, 1
        %s186 = smul.addr %s185, 3456
        %s187 = scalar_lea.vmem [#allocation2], %s186
        // Predicated region
        $region33: #{forward.2} parent=31 // pred_check
          %p188 = pneg %p62
        $region34: #{forward.2} parent=31 // pred_check_branch
          %190 = sbr.rel (%p188) target = $region36
        $region35: #{forward.2} parent=31 // pred_region
          %191 = dma.done %s184, 55296
        $region36: #{forward.2} parent=31 // pred_fallthru
          _
        %s192 = sand.u32 %s75, 1
        %s193 = scalar_lea.sflag [#allocation5], %s192
        %s194 = sand.u32 %s75, 1
        %s195 = smul.addr %s194, 3
        %s196 = scalar_lea.vmem [#allocation4], %s195
        // Predicated region
        $region37: #{forward.2} parent=31 // pred_check
          %p197 = pneg %p88
        $region38: #{forward.2} parent=31 // pred_check_branch
          %199 = sbr.rel (%p197) target = $region40
        $region39: #{forward.2} parent=31 // pred_region
          %200 = dma.done %s193, 48
        $region40: #{forward.2} parent=31 // pred_fallthru
          _
        %p201 = pneg %p36
        %p202 = pneg %p33
        %s203 = sand.u32 %s49, 1
        %s204 = scalar_lea.sflag [#allocation3], %s203
        %s205 = sand.u32 %s49, 1
        %s206 = smul.addr %s205, 3456
        %s207 = scalar_lea.vmem [#allocation2], %s206
        %p208 = pneg %p62
        %p209 = pneg %p59
        %s210 = sand.u32 %s75, 1
        %s211 = scalar_lea.sflag [#allocation5], %s210
        %s212 = sand.u32 %s75, 1
        %s213 = smul.addr %s212, 3
        %s214 = scalar_lea.vmem [#allocation4], %s213
        %p215 = pneg %p88
        %p216 = pneg %p85
        %p217 = pneg %p114
        %p218 = pneg %p111
        %s219 = smul.u32 3, %s20
        %p220 = scmp.lt.s32.totalorder %s219, 8
        %s221 = scalar_select %p220, %s219, 8
        %s222 = smul.addr %s221, 2
        %s223 = scalar_lea.vmem %s3, %s222
        %s224 = smul.u32 3, %s20
        %s225 = smul.u32 3, %s20
        %s226 = smul.u32 3, %s20
        %p227 = scmp.lt.s32.totalorder %s226, 8
        %s228 = scalar_select %p227, %s226, 8
        %s229 = smul.addr %s228, 2
        %s230 = scalar_lea.vmem %s3, %s229
        %s231 = smul.u32 3, %s20
        %v233 = vld [vmem:[%s0] sm:$0xff]
        %v234 = vld [vmem:[%s0 + $0x8] sm:$0xff]
        %v235 = vld [vmem:[%s0 + $0x10] sm:$0x3]
        %v236 = vld [vmem:[%s187] sm:$0xff]
        %v237 = vld [vmem:[%s187 + $0x8] sm:$0xf]
        %v238 = vld [vmem:[%s187 + $0xc] sm:$0xff]
        %v239 = vld [vmem:[%s187 + $0x14] sm:$0xf]
        %v240 = vld [vmem:[%s187 + $0x18] sm:$0xff]
        %v241 = vld [vmem:[%s187 + $0x20] sm:$0xf]
        %v242 = vld [vmem:[%s187 + $0x24] sm:$0xff]
        %v243 = vld [vmem:[%s187 + $0x2c] sm:$0xf]
        %v244 = vld [vmem:[%s187 + $0x30] sm:$0xff]
        %v245 = vld [vmem:[%s187 + $0x38] sm:$0xf]
        %v246 = vld [vmem:[%s187 + $0x3c] sm:$0xff]
        %v247 = vld [vmem:[%s187 + $0x44] sm:$0xf]
        %v248 = vld [vmem:[%s187 + $0x48] sm:$0xff]
        %v249 = vld [vmem:[%s187 + $0x50] sm:$0xf]
        %v250 = vld [vmem:[%s187 + $0x54] sm:$0xff]
        %v251 = vld [vmem:[%s187 + $0x5c] sm:$0xf]
        %v252 = vld [vmem:[%s187 + $0x60] sm:$0xff]
        %v253 = vld [vmem:[%s187 + $0x68] sm:$0xf]
        %v254 = vld [vmem:[%s187 + $0x6c] sm:$0xff]
        %v255 = vld [vmem:[%s187 + $0x74] sm:$0xf]
        %v256 = vld [vmem:[%s187 + $0x78] sm:$0xff]
        %v257 = vld [vmem:[%s187 + $0x80] sm:$0xf]
        %v258 = vld [vmem:[%s187 + $0x84] sm:$0xff]
        %v259 = vld [vmem:[%s187 + $0x8c] sm:$0xf]
        %v260 = vld [vmem:[%s187 + $0x90] sm:$0xff]
        %v261 = vld [vmem:[%s187 + $0x98] sm:$0xf]
        %v262 = vld [vmem:[%s187 + $0x9c] sm:$0xff]
        %v263 = vld [vmem:[%s187 + $0xa4] sm:$0xf]
        %v264 = vld [vmem:[%s187 + $0xa8] sm:$0xff]
        %v265 = vld [vmem:[%s187 + $0xb0] sm:$0xf]
        %v266 = vld [vmem:[%s187 + $0xb4] sm:$0xff]
        %v267 = vld [vmem:[%s187 + $0xbc] sm:$0xf]
        %v268 = vld [vmem:[%s187 + $0xc0] sm:$0xff]
        %v269 = vld [vmem:[%s187 + $0xc8] sm:$0xf]
        %v270 = vld [vmem:[%s187 + $0xcc] sm:$0xff]
        %v271 = vld [vmem:[%s187 + $0xd4] sm:$0xf]
        %v272 = vld [vmem:[%s187 + $0xd8] sm:$0xff]
        %v273 = vld [vmem:[%s187 + $0xe0] sm:$0xf]
        %v274 = vld [vmem:[%s187 + $0xe4] sm:$0xff]
        %v275 = vld [vmem:[%s187 + $0xec] sm:$0xf]
        %v276 = vld [vmem:[%s187 + $0xf0] sm:$0xff]
        %v277 = vld [vmem:[%s187 + $0xf8] sm:$0xf]
        %v278 = vld [vmem:[%s187 + $0xfc] sm:$0xff]
        %v279 = vld [vmem:[%s187 + $0x104] sm:$0xf]
        %v280 = vld [vmem:[%s187 + $0x108] sm:$0xff]
        %v281 = vld [vmem:[%s187 + $0x110] sm:$0xf]
        %v282 = vld [vmem:[%s187 + $0x114] sm:$0xff]
        %v283 = vld [vmem:[%s187 + $0x11c] sm:$0xf]
        %v284 = vld [vmem:[%s187 + $0x120] sm:$0xff]
        %v285 = vld [vmem:[%s187 + $0x128] sm:$0xf]
        %v286 = vld [vmem:[%s187 + $0x12c] sm:$0xff]
        %v287 = vld [vmem:[%s187 + $0x134] sm:$0xf]
        %v288 = vld [vmem:[%s187 + $0x138] sm:$0xff]
        %v289 = vld [vmem:[%s187 + $0x140] sm:$0xf]
        %v290 = vld [vmem:[%s187 + $0x144] sm:$0xff]
        %v291 = vld [vmem:[%s187 + $0x14c] sm:$0xf]
        %v292 = vld [vmem:[%s187 + $0x150] sm:$0xff]
        %v293 = vld [vmem:[%s187 + $0x158] sm:$0xf]
        %v294 = vld [vmem:[%s187 + $0x15c] sm:$0xff]
        %v295 = vld [vmem:[%s187 + $0x164] sm:$0xf]
        %v296 = vld [vmem:[%s187 + $0x168] sm:$0xff]
        %v297 = vld [vmem:[%s187 + $0x170] sm:$0xf]
        %v298 = vld [vmem:[%s187 + $0x174] sm:$0xff]
        %v299 = vld [vmem:[%s187 + $0x17c] sm:$0xf]
        %v300 = vld [vmem:[%s187 + $0x180] sm:$0xff]
        %v301 = vld [vmem:[%s187 + $0x188] sm:$0xf]
        %v302 = vld [vmem:[%s187 + $0x18c] sm:$0xff]
        %v303 = vld [vmem:[%s187 + $0x194] sm:$0xf]
        %v304 = vld [vmem:[%s187 + $0x198] sm:$0xff]
        %v305 = vld [vmem:[%s187 + $0x1a0] sm:$0xf]
        %v306 = vld [vmem:[%s187 + $0x1a4] sm:$0xff]
        %v307 = vld [vmem:[%s187 + $0x1ac] sm:$0xf]
        %v308 = vld [vmem:[%s187 + $0x1b0] sm:$0xff]
        %v309 = vld [vmem:[%s187 + $0x1b8] sm:$0xf]
        %v310 = vld [vmem:[%s187 + $0x1bc] sm:$0xff]
        %v311 = vld [vmem:[%s187 + $0x1c4] sm:$0xf]
        %v312 = vld [vmem:[%s187 + $0x1c8] sm:$0xff]
        %v313 = vld [vmem:[%s187 + $0x1d0] sm:$0xf]
        %v314 = vld [vmem:[%s187 + $0x1d4] sm:$0xff]
        %v315 = vld [vmem:[%s187 + $0x1dc] sm:$0xf]
        %v316 = vld [vmem:[%s187 + $0x1e0] sm:$0xff]
        %v317 = vld [vmem:[%s187 + $0x1e8] sm:$0xf]
        %v318 = vld [vmem:[%s187 + $0x1ec] sm:$0xff]
        %v319 = vld [vmem:[%s187 + $0x1f4] sm:$0xf]
        %v320 = vld [vmem:[%s187 + $0x1f8] sm:$0xff]
        %v321 = vld [vmem:[%s187 + $0x200] sm:$0xf]
        %v322 = vld [vmem:[%s187 + $0x204] sm:$0xff]
        %v323 = vld [vmem:[%s187 + $0x20c] sm:$0xf]
        %v324 = vld [vmem:[%s187 + $0x210] sm:$0xff]
        %v325 = vld [vmem:[%s187 + $0x218] sm:$0xf]
        %v326 = vld [vmem:[%s187 + $0x21c] sm:$0xff]
        %v327 = vld [vmem:[%s187 + $0x224] sm:$0xf]
        %v328 = vld [vmem:[%s187 + $0x228] sm:$0xff]
        %v329 = vld [vmem:[%s187 + $0x230] sm:$0xf]
        %v330 = vld [vmem:[%s187 + $0x234] sm:$0xff]
        %v331 = vld [vmem:[%s187 + $0x23c] sm:$0xf]
        %v332 = vld [vmem:[%s187 + $0x240] sm:$0xff]
        %v333 = vld [vmem:[%s187 + $0x248] sm:$0xf]
        %v334 = vld [vmem:[%s187 + $0x24c] sm:$0xff]
        %v335 = vld [vmem:[%s187 + $0x254] sm:$0xf]
        %v336 = vld [vmem:[%s187 + $0x258] sm:$0xff]
        %v337 = vld [vmem:[%s187 + $0x260] sm:$0xf]
        %v338 = vld [vmem:[%s187 + $0x264] sm:$0xff]
        %v339 = vld [vmem:[%s187 + $0x26c] sm:$0xf]
        %v340 = vld [vmem:[%s187 + $0x270] sm:$0xff]
        %v341 = vld [vmem:[%s187 + $0x278] sm:$0xf]
        %v342 = vld [vmem:[%s187 + $0x27c] sm:$0xff]
        %v343 = vld [vmem:[%s187 + $0x284] sm:$0xf]
        %v344 = vld [vmem:[%s187 + $0x288] sm:$0xff]
        %v345 = vld [vmem:[%s187 + $0x290] sm:$0xf]
        %v346 = vld [vmem:[%s187 + $0x294] sm:$0xff]
        %v347 = vld [vmem:[%s187 + $0x29c] sm:$0xf]
        %v348 = vld [vmem:[%s187 + $0x2a0] sm:$0xff]
        %v349 = vld [vmem:[%s187 + $0x2a8] sm:$0xf]
        %v350 = vld [vmem:[%s187 + $0x2ac] sm:$0xff]
        %v351 = vld [vmem:[%s187 + $0x2b4] sm:$0xf]
        %v352 = vld [vmem:[%s187 + $0x2b8] sm:$0xff]
        %v353 = vld [vmem:[%s187 + $0x2c0] sm:$0xf]
        %v354 = vld [vmem:[%s187 + $0x2c4] sm:$0xff]
        %v355 = vld [vmem:[%s187 + $0x2cc] sm:$0xf]
        %v356 = vld [vmem:[%s187 + $0x2d0] sm:$0xff]
        %v357 = vld [vmem:[%s187 + $0x2d8] sm:$0xf]
        %v358 = vld [vmem:[%s187 + $0x2dc] sm:$0xff]
        %v359 = vld [vmem:[%s187 + $0x2e4] sm:$0xf]
        %v360 = vld [vmem:[%s187 + $0x2e8] sm:$0xff]
        %v361 = vld [vmem:[%s187 + $0x2f0] sm:$0xf]
        %v362 = vld [vmem:[%s187 + $0x2f4] sm:$0xff]
        %v363 = vld [vmem:[%s187 + $0x2fc] sm:$0xf]
        %v364 = vld [vmem:[%s187 + $0x300] sm:$0xff]
        %v365 = vld [vmem:[%s187 + $0x308] sm:$0xf]
        %v366 = vld [vmem:[%s187 + $0x30c] sm:$0xff]
        %v367 = vld [vmem:[%s187 + $0x314] sm:$0xf]
        %v368 = vld [vmem:[%s187 + $0x318] sm:$0xff]
        %v369 = vld [vmem:[%s187 + $0x320] sm:$0xf]
        %v370 = vld [vmem:[%s187 + $0x324] sm:$0xff]
        %v371 = vld [vmem:[%s187 + $0x32c] sm:$0xf]
        %v372 = vld [vmem:[%s187 + $0x330] sm:$0xff]
        %v373 = vld [vmem:[%s187 + $0x338] sm:$0xf]
        %v374 = vld [vmem:[%s187 + $0x33c] sm:$0xff]
        %v375 = vld [vmem:[%s187 + $0x344] sm:$0xf]
        %v376 = vld [vmem:[%s187 + $0x348] sm:$0xff]
        %v377 = vld [vmem:[%s187 + $0x350] sm:$0xf]
        %v378 = vld [vmem:[%s187 + $0x354] sm:$0xff]
        %v379 = vld [vmem:[%s187 + $0x35c] sm:$0xf]
        %v380 = vld [vmem:[%s187 + $0x360] sm:$0xff]
        %v381 = vld [vmem:[%s187 + $0x368] sm:$0xf]
        %v382 = vld [vmem:[%s187 + $0x36c] sm:$0xff]
        %v383 = vld [vmem:[%s187 + $0x374] sm:$0xf]
        %v384 = vld [vmem:[%s187 + $0x378] sm:$0xff]
        %v385 = vld [vmem:[%s187 + $0x380] sm:$0xf]
        %v386 = vld [vmem:[%s187 + $0x384] sm:$0xff]
        %v387 = vld [vmem:[%s187 + $0x38c] sm:$0xf]
        %v388 = vld [vmem:[%s187 + $0x390] sm:$0xff]
        %v389 = vld [vmem:[%s187 + $0x398] sm:$0xf]
        %v390 = vld [vmem:[%s187 + $0x39c] sm:$0xff]
        %v391 = vld [vmem:[%s187 + $0x3a4] sm:$0xf]
        %v392 = vld [vmem:[%s187 + $0x3a8] sm:$0xff]
        %v393 = vld [vmem:[%s187 + $0x3b0] sm:$0xf]
        %v394 = vld [vmem:[%s187 + $0x3b4] sm:$0xff]
        %v395 = vld [vmem:[%s187 + $0x3bc] sm:$0xf]
        %v396 = vld [vmem:[%s187 + $0x3c0] sm:$0xff]
        %v397 = vld [vmem:[%s187 + $0x3c8] sm:$0xf]
        %v398 = vld [vmem:[%s187 + $0x3cc] sm:$0xff]
        %v399 = vld [vmem:[%s187 + $0x3d4] sm:$0xf]
        %v400 = vld [vmem:[%s187 + $0x3d8] sm:$0xff]
        %v401 = vld [vmem:[%s187 + $0x3e0] sm:$0xf]
        %v402 = vld [vmem:[%s187 + $0x3e4] sm:$0xff]
        %v403 = vld [vmem:[%s187 + $0x3ec] sm:$0xf]
        %v404 = vld [vmem:[%s187 + $0x3f0] sm:$0xff]
        %v405 = vld [vmem:[%s187 + $0x3f8] sm:$0xf]
        %v406 = vld [vmem:[%s187 + $0x3fc] sm:$0xff]
        %v407 = vld [vmem:[%s187 + $0x404] sm:$0xf]
        %v408 = vld [vmem:[%s187 + $0x408] sm:$0xff]
        %v409 = vld [vmem:[%s187 + $0x410] sm:$0xf]
        %v410 = vld [vmem:[%s187 + $0x414] sm:$0xff]
        %v411 = vld [vmem:[%s187 + $0x41c] sm:$0xf]
        %v412 = vld [vmem:[%s187 + $0x420] sm:$0xff]
        %v413 = vld [vmem:[%s187 + $0x428] sm:$0xf]
        %v414 = vld [vmem:[%s187 + $0x42c] sm:$0xff]
        %v415 = vld [vmem:[%s187 + $0x434] sm:$0xf]
        %v416 = vld [vmem:[%s187 + $0x438] sm:$0xff]
        %v417 = vld [vmem:[%s187 + $0x440] sm:$0xf]
        %v418 = vld [vmem:[%s187 + $0x444] sm:$0xff]
        %v419 = vld [vmem:[%s187 + $0x44c] sm:$0xf]
        %v420 = vld [vmem:[%s187 + $0x450] sm:$0xff]
        %v421 = vld [vmem:[%s187 + $0x458] sm:$0xf]
        %v422 = vld [vmem:[%s187 + $0x45c] sm:$0xff]
        %v423 = vld [vmem:[%s187 + $0x464] sm:$0xf]
        %v424 = vld [vmem:[%s187 + $0x468] sm:$0xff]
        %v425 = vld [vmem:[%s187 + $0x470] sm:$0xf]
        %v426 = vld [vmem:[%s187 + $0x474] sm:$0xff]
        %v427 = vld [vmem:[%s187 + $0x47c] sm:$0xf]
        %v428 = vld [vmem:[%s187 + $0x480] sm:$0xff]
        %v429 = vld [vmem:[%s187 + $0x488] sm:$0xf]
        %v430 = vld [vmem:[%s187 + $0x48c] sm:$0xff]
        %v431 = vld [vmem:[%s187 + $0x494] sm:$0xf]
        %v432 = vld [vmem:[%s187 + $0x498] sm:$0xff]
        %v433 = vld [vmem:[%s187 + $0x4a0] sm:$0xf]
        %v434 = vld [vmem:[%s187 + $0x4a4] sm:$0xff]
        %v435 = vld [vmem:[%s187 + $0x4ac] sm:$0xf]
        %v436 = vld [vmem:[%s187 + $0x4b0] sm:$0xff]
        %v437 = vld [vmem:[%s187 + $0x4b8] sm:$0xf]
        %v438 = vld [vmem:[%s187 + $0x4bc] sm:$0xff]
        %v439 = vld [vmem:[%s187 + $0x4c4] sm:$0xf]
        %v440 = vld [vmem:[%s187 + $0x4c8] sm:$0xff]
        %v441 = vld [vmem:[%s187 + $0x4d0] sm:$0xf]
        %v442 = vld [vmem:[%s187 + $0x4d4] sm:$0xff]
        %v443 = vld [vmem:[%s187 + $0x4dc] sm:$0xf]
        %v444 = vld [vmem:[%s187 + $0x4e0] sm:$0xff]
        %v445 = vld [vmem:[%s187 + $0x4e8] sm:$0xf]
        %v446 = vld [vmem:[%s187 + $0x4ec] sm:$0xff]
        %v447 = vld [vmem:[%s187 + $0x4f4] sm:$0xf]
        %v448 = vld [vmem:[%s187 + $0x4f8] sm:$0xff]
        %v449 = vld [vmem:[%s187 + $0x500] sm:$0xf]
        %v450 = vld [vmem:[%s187 + $0x504] sm:$0xff]
        %v451 = vld [vmem:[%s187 + $0x50c] sm:$0xf]
        %v452 = vld [vmem:[%s187 + $0x510] sm:$0xff]
        %v453 = vld [vmem:[%s187 + $0x518] sm:$0xf]
        %v454 = vld [vmem:[%s187 + $0x51c] sm:$0xff]
        %v455 = vld [vmem:[%s187 + $0x524] sm:$0xf]
        %v456 = vld [vmem:[%s187 + $0x528] sm:$0xff]
        %v457 = vld [vmem:[%s187 + $0x530] sm:$0xf]
        %v458 = vld [vmem:[%s187 + $0x534] sm:$0xff]
        %v459 = vld [vmem:[%s187 + $0x53c] sm:$0xf]
        %v460 = vld [vmem:[%s187 + $0x540] sm:$0xff]
        %v461 = vld [vmem:[%s187 + $0x548] sm:$0xf]
        %v462 = vld [vmem:[%s187 + $0x54c] sm:$0xff]
        %v463 = vld [vmem:[%s187 + $0x554] sm:$0xf]
        %v464 = vld [vmem:[%s187 + $0x558] sm:$0xff]
        %v465 = vld [vmem:[%s187 + $0x560] sm:$0xf]
        %v466 = vld [vmem:[%s187 + $0x564] sm:$0xff]
        %v467 = vld [vmem:[%s187 + $0x56c] sm:$0xf]
        %v468 = vld [vmem:[%s187 + $0x570] sm:$0xff]
        %v469 = vld [vmem:[%s187 + $0x578] sm:$0xf]
        %v470 = vld [vmem:[%s187 + $0x57c] sm:$0xff]
        %v471 = vld [vmem:[%s187 + $0x584] sm:$0xf]
        %v472 = vld [vmem:[%s187 + $0x588] sm:$0xff]
        %v473 = vld [vmem:[%s187 + $0x590] sm:$0xf]
        %v474 = vld [vmem:[%s187 + $0x594] sm:$0xff]
        %v475 = vld [vmem:[%s187 + $0x59c] sm:$0xf]
        %v476 = vld [vmem:[%s187 + $0x5a0] sm:$0xff]
        %v477 = vld [vmem:[%s187 + $0x5a8] sm:$0xf]
        %v478 = vld [vmem:[%s187 + $0x5ac] sm:$0xff]
        %v479 = vld [vmem:[%s187 + $0x5b4] sm:$0xf]
        %v480 = vld [vmem:[%s187 + $0x5b8] sm:$0xff]
        %v481 = vld [vmem:[%s187 + $0x5c0] sm:$0xf]
        %v482 = vld [vmem:[%s187 + $0x5c4] sm:$0xff]
        %v483 = vld [vmem:[%s187 + $0x5cc] sm:$0xf]
        %v484 = vld [vmem:[%s187 + $0x5d0] sm:$0xff]
        %v485 = vld [vmem:[%s187 + $0x5d8] sm:$0xf]
        %v486 = vld [vmem:[%s187 + $0x5dc] sm:$0xff]
        %v487 = vld [vmem:[%s187 + $0x5e4] sm:$0xf]
        %v488 = vld [vmem:[%s187 + $0x5e8] sm:$0xff]
        %v489 = vld [vmem:[%s187 + $0x5f0] sm:$0xf]
        %v490 = vld [vmem:[%s187 + $0x5f4] sm:$0xff]
        %v491 = vld [vmem:[%s187 + $0x5fc] sm:$0xf]
        %v492 = vld [vmem:[%s187 + $0x600] sm:$0xff]
        %v493 = vld [vmem:[%s187 + $0x608] sm:$0xf]
        %v494 = vld [vmem:[%s187 + $0x60c] sm:$0xff]
        %v495 = vld [vmem:[%s187 + $0x614] sm:$0xf]
        %v496 = vld [vmem:[%s187 + $0x618] sm:$0xff]
        %v497 = vld [vmem:[%s187 + $0x620] sm:$0xf]
        %v498 = vld [vmem:[%s187 + $0x624] sm:$0xff]
        %v499 = vld [vmem:[%s187 + $0x62c] sm:$0xf]
        %v500 = vld [vmem:[%s187 + $0x630] sm:$0xff]
        %v501 = vld [vmem:[%s187 + $0x638] sm:$0xf]
        %v502 = vld [vmem:[%s187 + $0x63c] sm:$0xff]
        %v503 = vld [vmem:[%s187 + $0x644] sm:$0xf]
        %v504 = vld [vmem:[%s187 + $0x648] sm:$0xff]
        %v505 = vld [vmem:[%s187 + $0x650] sm:$0xf]
        %v506 = vld [vmem:[%s187 + $0x654] sm:$0xff]
        %v507 = vld [vmem:[%s187 + $0x65c] sm:$0xf]
        %v508 = vld [vmem:[%s187 + $0x660] sm:$0xff]
        %v509 = vld [vmem:[%s187 + $0x668] sm:$0xf]
        %v510 = vld [vmem:[%s187 + $0x66c] sm:$0xff]
        %v511 = vld [vmem:[%s187 + $0x674] sm:$0xf]
        %v512 = vld [vmem:[%s187 + $0x678] sm:$0xff]
        %v513 = vld [vmem:[%s187 + $0x680] sm:$0xf]
        %v514 = vld [vmem:[%s187 + $0x684] sm:$0xff]
        %v515 = vld [vmem:[%s187 + $0x68c] sm:$0xf]
        %v516 = vld [vmem:[%s187 + $0x690] sm:$0xff]
        %v517 = vld [vmem:[%s187 + $0x698] sm:$0xf]
        %v518 = vld [vmem:[%s187 + $0x69c] sm:$0xff]
        %v519 = vld [vmem:[%s187 + $0x6a4] sm:$0xf]
        %v520 = vld [vmem:[%s187 + $0x6a8] sm:$0xff]
        %v521 = vld [vmem:[%s187 + $0x6b0] sm:$0xf]
        %v522 = vld [vmem:[%s187 + $0x6b4] sm:$0xff]
        %v523 = vld [vmem:[%s187 + $0x6bc] sm:$0xf]
        %v524 = vld [vmem:[%s187 + $0x6c0] sm:$0xff]
        %v525 = vld [vmem:[%s187 + $0x6c8] sm:$0xf]
        %v526 = vld [vmem:[%s187 + $0x6cc] sm:$0xff]
        %v527 = vld [vmem:[%s187 + $0x6d4] sm:$0xf]
        %v528 = vld [vmem:[%s187 + $0x6d8] sm:$0xff]
        %v529 = vld [vmem:[%s187 + $0x6e0] sm:$0xf]
        %v530 = vld [vmem:[%s187 + $0x6e4] sm:$0xff]
        %v531 = vld [vmem:[%s187 + $0x6ec] sm:$0xf]
        %v532 = vld [vmem:[%s187 + $0x6f0] sm:$0xff]
        %v533 = vld [vmem:[%s187 + $0x6f8] sm:$0xf]
        %v534 = vld [vmem:[%s187 + $0x6fc] sm:$0xff]
        %v535 = vld [vmem:[%s187 + $0x704] sm:$0xf]
        %v536 = vld [vmem:[%s187 + $0x708] sm:$0xff]
        %v537 = vld [vmem:[%s187 + $0x710] sm:$0xf]
        %v538 = vld [vmem:[%s187 + $0x714] sm:$0xff]
        %v539 = vld [vmem:[%s187 + $0x71c] sm:$0xf]
        %v540 = vld [vmem:[%s187 + $0x720] sm:$0xff]
        %v541 = vld [vmem:[%s187 + $0x728] sm:$0xf]
        %v542 = vld [vmem:[%s187 + $0x72c] sm:$0xff]
        %v543 = vld [vmem:[%s187 + $0x734] sm:$0xf]
        %v544 = vld [vmem:[%s187 + $0x738] sm:$0xff]
        %v545 = vld [vmem:[%s187 + $0x740] sm:$0xf]
        %v546 = vld [vmem:[%s187 + $0x744] sm:$0xff]
        %v547 = vld [vmem:[%s187 + $0x74c] sm:$0xf]
        %v548 = vld [vmem:[%s187 + $0x750] sm:$0xff]
        %v549 = vld [vmem:[%s187 + $0x758] sm:$0xf]
        %v550 = vld [vmem:[%s187 + $0x75c] sm:$0xff]
        %v551 = vld [vmem:[%s187 + $0x764] sm:$0xf]
        %v552 = vld [vmem:[%s187 + $0x768] sm:$0xff]
        %v553 = vld [vmem:[%s187 + $0x770] sm:$0xf]
        %v554 = vld [vmem:[%s187 + $0x774] sm:$0xff]
        %v555 = vld [vmem:[%s187 + $0x77c] sm:$0xf]
        %v556 = vld [vmem:[%s187 + $0x780] sm:$0xff]
        %v557 = vld [vmem:[%s187 + $0x788] sm:$0xf]
        %v558 = vld [vmem:[%s187 + $0x78c] sm:$0xff]
        %v559 = vld [vmem:[%s187 + $0x794] sm:$0xf]
        %v560 = vld [vmem:[%s187 + $0x798] sm:$0xff]
        %v561 = vld [vmem:[%s187 + $0x7a0] sm:$0xf]
        %v562 = vld [vmem:[%s187 + $0x7a4] sm:$0xff]
        %v563 = vld [vmem:[%s187 + $0x7ac] sm:$0xf]
        %v564 = vld [vmem:[%s187 + $0x7b0] sm:$0xff]
        %v565 = vld [vmem:[%s187 + $0x7b8] sm:$0xf]
        %v566 = vld [vmem:[%s187 + $0x7bc] sm:$0xff]
        %v567 = vld [vmem:[%s187 + $0x7c4] sm:$0xf]
        %v568 = vld [vmem:[%s187 + $0x7c8] sm:$0xff]
        %v569 = vld [vmem:[%s187 + $0x7d0] sm:$0xf]
        %v570 = vld [vmem:[%s187 + $0x7d4] sm:$0xff]
        %v571 = vld [vmem:[%s187 + $0x7dc] sm:$0xf]
        %v572 = vld [vmem:[%s187 + $0x7e0] sm:$0xff]
        %v573 = vld [vmem:[%s187 + $0x7e8] sm:$0xf]
        %v574 = vld [vmem:[%s187 + $0x7ec] sm:$0xff]
        %v575 = vld [vmem:[%s187 + $0x7f4] sm:$0xf]
        %v576 = vld [vmem:[%s187 + $0x7f8] sm:$0xff]
        %v577 = vld [vmem:[%s187 + $0x800] sm:$0xf]
        %v578 = vld [vmem:[%s187 + $0x804] sm:$0xff]
        %v579 = vld [vmem:[%s187 + $0x80c] sm:$0xf]
        %v580 = vld [vmem:[%s187 + $0x810] sm:$0xff]
        %v581 = vld [vmem:[%s187 + $0x818] sm:$0xf]
        %v582 = vld [vmem:[%s187 + $0x81c] sm:$0xff]
        %v583 = vld [vmem:[%s187 + $0x824] sm:$0xf]
        %v584 = vld [vmem:[%s187 + $0x828] sm:$0xff]
        %v585 = vld [vmem:[%s187 + $0x830] sm:$0xf]
        %v586 = vld [vmem:[%s187 + $0x834] sm:$0xff]
        %v587 = vld [vmem:[%s187 + $0x83c] sm:$0xf]
        %v588 = vld [vmem:[%s187 + $0x840] sm:$0xff]
        %v589 = vld [vmem:[%s187 + $0x848] sm:$0xf]
        %v590 = vld [vmem:[%s187 + $0x84c] sm:$0xff]
        %v591 = vld [vmem:[%s187 + $0x854] sm:$0xf]
        %v592 = vld [vmem:[%s187 + $0x858] sm:$0xff]
        %v593 = vld [vmem:[%s187 + $0x860] sm:$0xf]
        %v594 = vld [vmem:[%s187 + $0x864] sm:$0xff]
        %v595 = vld [vmem:[%s187 + $0x86c] sm:$0xf]
        %v596 = vld [vmem:[%s187 + $0x870] sm:$0xff]
        %v597 = vld [vmem:[%s187 + $0x878] sm:$0xf]
        %v598 = vld [vmem:[%s187 + $0x87c] sm:$0xff]
        %v599 = vld [vmem:[%s187 + $0x884] sm:$0xf]
        %v600 = vld [vmem:[%s187 + $0x888] sm:$0xff]
        %v601 = vld [vmem:[%s187 + $0x890] sm:$0xf]
        %v602 = vld [vmem:[%s187 + $0x894] sm:$0xff]
        %v603 = vld [vmem:[%s187 + $0x89c] sm:$0xf]
        %v604 = vld [vmem:[%s187 + $0x8a0] sm:$0xff]
        %v605 = vld [vmem:[%s187 + $0x8a8] sm:$0xf]
        %v606 = vld [vmem:[%s187 + $0x8ac] sm:$0xff]
        %v607 = vld [vmem:[%s187 + $0x8b4] sm:$0xf]
        %v608 = vld [vmem:[%s187 + $0x8b8] sm:$0xff]
        %v609 = vld [vmem:[%s187 + $0x8c0] sm:$0xf]
        %v610 = vld [vmem:[%s187 + $0x8c4] sm:$0xff]
        %v611 = vld [vmem:[%s187 + $0x8cc] sm:$0xf]
        %v612 = vld [vmem:[%s187 + $0x8d0] sm:$0xff]
        %v613 = vld [vmem:[%s187 + $0x8d8] sm:$0xf]
        %v614 = vld [vmem:[%s187 + $0x8dc] sm:$0xff]
        %v615 = vld [vmem:[%s187 + $0x8e4] sm:$0xf]
        %v616 = vld [vmem:[%s187 + $0x8e8] sm:$0xff]
        %v617 = vld [vmem:[%s187 + $0x8f0] sm:$0xf]
        %v618 = vld [vmem:[%s187 + $0x8f4] sm:$0xff]
        %v619 = vld [vmem:[%s187 + $0x8fc] sm:$0xf]
        %v620 = vld [vmem:[%s187 + $0x900] sm:$0xff]
        %v621 = vld [vmem:[%s187 + $0x908] sm:$0xf]
        %v622 = vld [vmem:[%s187 + $0x90c] sm:$0xff]
        %v623 = vld [vmem:[%s187 + $0x914] sm:$0xf]
        %v624 = vld [vmem:[%s187 + $0x918] sm:$0xff]
        %v625 = vld [vmem:[%s187 + $0x920] sm:$0xf]
        %v626 = vld [vmem:[%s187 + $0x924] sm:$0xff]
        %v627 = vld [vmem:[%s187 + $0x92c] sm:$0xf]
        %v628 = vld [vmem:[%s187 + $0x930] sm:$0xff]
        %v629 = vld [vmem:[%s187 + $0x938] sm:$0xf]
        %v630 = vld [vmem:[%s187 + $0x93c] sm:$0xff]
        %v631 = vld [vmem:[%s187 + $0x944] sm:$0xf]
        %v632 = vld [vmem:[%s187 + $0x948] sm:$0xff]
        %v633 = vld [vmem:[%s187 + $0x950] sm:$0xf]
        %v634 = vld [vmem:[%s187 + $0x954] sm:$0xff]
        %v635 = vld [vmem:[%s187 + $0x95c] sm:$0xf]
        %v636 = vld [vmem:[%s187 + $0x960] sm:$0xff]
        %v637 = vld [vmem:[%s187 + $0x968] sm:$0xf]
        %v638 = vld [vmem:[%s187 + $0x96c] sm:$0xff]
        %v639 = vld [vmem:[%s187 + $0x974] sm:$0xf]
        %v640 = vld [vmem:[%s187 + $0x978] sm:$0xff]
        %v641 = vld [vmem:[%s187 + $0x980] sm:$0xf]
        %v642 = vld [vmem:[%s187 + $0x984] sm:$0xff]
        %v643 = vld [vmem:[%s187 + $0x98c] sm:$0xf]
        %v644 = vld [vmem:[%s187 + $0x990] sm:$0xff]
        %v645 = vld [vmem:[%s187 + $0x998] sm:$0xf]
        %v646 = vld [vmem:[%s187 + $0x99c] sm:$0xff]
        %v647 = vld [vmem:[%s187 + $0x9a4] sm:$0xf]
        %v648 = vld [vmem:[%s187 + $0x9a8] sm:$0xff]
        %v649 = vld [vmem:[%s187 + $0x9b0] sm:$0xf]
        %v650 = vld [vmem:[%s187 + $0x9b4] sm:$0xff]
        %v651 = vld [vmem:[%s187 + $0x9bc] sm:$0xf]
        %v652 = vld [vmem:[%s187 + $0x9c0] sm:$0xff]
        %v653 = vld [vmem:[%s187 + $0x9c8] sm:$0xf]
        %v654 = vld [vmem:[%s187 + $0x9cc] sm:$0xff]
        %v655 = vld [vmem:[%s187 + $0x9d4] sm:$0xf]
        %v656 = vld [vmem:[%s187 + $0x9d8] sm:$0xff]
        %v657 = vld [vmem:[%s187 + $0x9e0] sm:$0xf]
        %v658 = vld [vmem:[%s187 + $0x9e4] sm:$0xff]
        %v659 = vld [vmem:[%s187 + $0x9ec] sm:$0xf]
        %v660 = vld [vmem:[%s187 + $0x9f0] sm:$0xff]
        %v661 = vld [vmem:[%s187 + $0x9f8] sm:$0xf]
        %v662 = vld [vmem:[%s187 + $0x9fc] sm:$0xff]
        %v663 = vld [vmem:[%s187 + $0xa04] sm:$0xf]
        %v664 = vld [vmem:[%s187 + $0xa08] sm:$0xff]
        %v665 = vld [vmem:[%s187 + $0xa10] sm:$0xf]
        %v666 = vld [vmem:[%s187 + $0xa14] sm:$0xff]
        %v667 = vld [vmem:[%s187 + $0xa1c] sm:$0xf]
        %v668 = vld [vmem:[%s187 + $0xa20] sm:$0xff]
        %v669 = vld [vmem:[%s187 + $0xa28] sm:$0xf]
        %v670 = vld [vmem:[%s187 + $0xa2c] sm:$0xff]
        %v671 = vld [vmem:[%s187 + $0xa34] sm:$0xf]
        %v672 = vld [vmem:[%s187 + $0xa38] sm:$0xff]
        %v673 = vld [vmem:[%s187 + $0xa40] sm:$0xf]
        %v674 = vld [vmem:[%s187 + $0xa44] sm:$0xff]
        %v675 = vld [vmem:[%s187 + $0xa4c] sm:$0xf]
        %v676 = vld [vmem:[%s187 + $0xa50] sm:$0xff]
        %v677 = vld [vmem:[%s187 + $0xa58] sm:$0xf]
        %v678 = vld [vmem:[%s187 + $0xa5c] sm:$0xff]
        %v679 = vld [vmem:[%s187 + $0xa64] sm:$0xf]
        %v680 = vld [vmem:[%s187 + $0xa68] sm:$0xff]
        %v681 = vld [vmem:[%s187 + $0xa70] sm:$0xf]
        %v682 = vld [vmem:[%s187 + $0xa74] sm:$0xff]
        %v683 = vld [vmem:[%s187 + $0xa7c] sm:$0xf]
        %v684 = vld [vmem:[%s187 + $0xa80] sm:$0xff]
        %v685 = vld [vmem:[%s187 + $0xa88] sm:$0xf]
        %v686 = vld [vmem:[%s187 + $0xa8c] sm:$0xff]
        %v687 = vld [vmem:[%s187 + $0xa94] sm:$0xf]
        %v688 = vld [vmem:[%s187 + $0xa98] sm:$0xff]
        %v689 = vld [vmem:[%s187 + $0xaa0] sm:$0xf]
        %v690 = vld [vmem:[%s187 + $0xaa4] sm:$0xff]
        %v691 = vld [vmem:[%s187 + $0xaac] sm:$0xf]
        %v692 = vld [vmem:[%s187 + $0xab0] sm:$0xff]
        %v693 = vld [vmem:[%s187 + $0xab8] sm:$0xf]
        %v694 = vld [vmem:[%s187 + $0xabc] sm:$0xff]
        %v695 = vld [vmem:[%s187 + $0xac4] sm:$0xf]
        %v696 = vld [vmem:[%s187 + $0xac8] sm:$0xff]
        %v697 = vld [vmem:[%s187 + $0xad0] sm:$0xf]
        %v698 = vld [vmem:[%s187 + $0xad4] sm:$0xff]
        %v699 = vld [vmem:[%s187 + $0xadc] sm:$0xf]
        %v700 = vld [vmem:[%s187 + $0xae0] sm:$0xff]
        %v701 = vld [vmem:[%s187 + $0xae8] sm:$0xf]
        %v702 = vld [vmem:[%s187 + $0xaec] sm:$0xff]
        %v703 = vld [vmem:[%s187 + $0xaf4] sm:$0xf]
        %v704 = vld [vmem:[%s187 + $0xaf8] sm:$0xff]
        %v705 = vld [vmem:[%s187 + $0xb00] sm:$0xf]
        %v706 = vld [vmem:[%s187 + $0xb04] sm:$0xff]
        %v707 = vld [vmem:[%s187 + $0xb0c] sm:$0xf]
        %v708 = vld [vmem:[%s187 + $0xb10] sm:$0xff]
        %v709 = vld [vmem:[%s187 + $0xb18] sm:$0xf]
        %v710 = vld [vmem:[%s187 + $0xb1c] sm:$0xff]
        %v711 = vld [vmem:[%s187 + $0xb24] sm:$0xf]
        %v712 = vld [vmem:[%s187 + $0xb28] sm:$0xff]
        %v713 = vld [vmem:[%s187 + $0xb30] sm:$0xf]
        %v714 = vld [vmem:[%s187 + $0xb34] sm:$0xff]
        %v715 = vld [vmem:[%s187 + $0xb3c] sm:$0xf]
        %v716 = vld [vmem:[%s187 + $0xb40] sm:$0xff]
        %v717 = vld [vmem:[%s187 + $0xb48] sm:$0xf]
        %v718 = vld [vmem:[%s187 + $0xb4c] sm:$0xff]
        %v719 = vld [vmem:[%s187 + $0xb54] sm:$0xf]
        %v720 = vld [vmem:[%s187 + $0xb58] sm:$0xff]
        %v721 = vld [vmem:[%s187 + $0xb60] sm:$0xf]
        %v722 = vld [vmem:[%s187 + $0xb64] sm:$0xff]
        %v723 = vld [vmem:[%s187 + $0xb6c] sm:$0xf]
        %v724 = vld [vmem:[%s187 + $0xb70] sm:$0xff]
        %v725 = vld [vmem:[%s187 + $0xb78] sm:$0xf]
        %v726 = vld [vmem:[%s187 + $0xb7c] sm:$0xff]
        %v727 = vld [vmem:[%s187 + $0xb84] sm:$0xf]
        %v728 = vld [vmem:[%s187 + $0xb88] sm:$0xff]
        %v729 = vld [vmem:[%s187 + $0xb90] sm:$0xf]
        %v730 = vld [vmem:[%s187 + $0xb94] sm:$0xff]
        %v731 = vld [vmem:[%s187 + $0xb9c] sm:$0xf]
        %v732 = vld [vmem:[%s187 + $0xba0] sm:$0xff]
        %v733 = vld [vmem:[%s187 + $0xba8] sm:$0xf]
        %v734 = vld [vmem:[%s187 + $0xbac] sm:$0xff]
        %v735 = vld [vmem:[%s187 + $0xbb4] sm:$0xf]
        %v736 = vld [vmem:[%s187 + $0xbb8] sm:$0xff]
        %v737 = vld [vmem:[%s187 + $0xbc0] sm:$0xf]
        %v738 = vld [vmem:[%s187 + $0xbc4] sm:$0xff]
        %v739 = vld [vmem:[%s187 + $0xbcc] sm:$0xf]
        %v740 = vld [vmem:[%s187 + $0xbd0] sm:$0xff]
        %v741 = vld [vmem:[%s187 + $0xbd8] sm:$0xf]
        %v742 = vld [vmem:[%s187 + $0xbdc] sm:$0xff]
        %v743 = vld [vmem:[%s187 + $0xbe4] sm:$0xf]
        %v744 = vld [vmem:[%s187 + $0xbe8] sm:$0xff]
        %v745 = vld [vmem:[%s187 + $0xbf0] sm:$0xf]
        %v746 = vld [vmem:[%s187 + $0xbf4] sm:$0xff]
        %v747 = vld [vmem:[%s187 + $0xbfc] sm:$0xf]
        %v748 = vld [vmem:[%s187 + $0xc00] sm:$0xff]
        %v749 = vld [vmem:[%s187 + $0xc08] sm:$0xf]
        %v750 = vld [vmem:[%s187 + $0xc0c] sm:$0xff]
        %v751 = vld [vmem:[%s187 + $0xc14] sm:$0xf]
        %v752 = vld [vmem:[%s187 + $0xc18] sm:$0xff]
        %v753 = vld [vmem:[%s187 + $0xc20] sm:$0xf]
        %v754 = vld [vmem:[%s187 + $0xc24] sm:$0xff]
        %v755 = vld [vmem:[%s187 + $0xc2c] sm:$0xf]
        %v756 = vld [vmem:[%s187 + $0xc30] sm:$0xff]
        %v757 = vld [vmem:[%s187 + $0xc38] sm:$0xf]
        %v758 = vld [vmem:[%s187 + $0xc3c] sm:$0xff]
        %v759 = vld [vmem:[%s187 + $0xc44] sm:$0xf]
        %v760 = vld [vmem:[%s187 + $0xc48] sm:$0xff]
        %v761 = vld [vmem:[%s187 + $0xc50] sm:$0xf]
        %v762 = vld [vmem:[%s187 + $0xc54] sm:$0xff]
        %v763 = vld [vmem:[%s187 + $0xc5c] sm:$0xf]
        %v764 = vld [vmem:[%s187 + $0xc60] sm:$0xff]
        %v765 = vld [vmem:[%s187 + $0xc68] sm:$0xf]
        %v766 = vld [vmem:[%s187 + $0xc6c] sm:$0xff]
        %v767 = vld [vmem:[%s187 + $0xc74] sm:$0xf]
        %v768 = vld [vmem:[%s187 + $0xc78] sm:$0xff]
        %v769 = vld [vmem:[%s187 + $0xc80] sm:$0xf]
        %v770 = vld [vmem:[%s187 + $0xc84] sm:$0xff]
        %v771 = vld [vmem:[%s187 + $0xc8c] sm:$0xf]
        %v772 = vld [vmem:[%s187 + $0xc90] sm:$0xff]
        %v773 = vld [vmem:[%s187 + $0xc98] sm:$0xf]
        %v774 = vld [vmem:[%s187 + $0xc9c] sm:$0xff]
        %v775 = vld [vmem:[%s187 + $0xca4] sm:$0xf]
        %v776 = vld [vmem:[%s187 + $0xca8] sm:$0xff]
        %v777 = vld [vmem:[%s187 + $0xcb0] sm:$0xf]
        %v778 = vld [vmem:[%s187 + $0xcb4] sm:$0xff]
        %v779 = vld [vmem:[%s187 + $0xcbc] sm:$0xf]
        %v780 = vld [vmem:[%s187 + $0xcc0] sm:$0xff]
        %v781 = vld [vmem:[%s187 + $0xcc8] sm:$0xf]
        %v782 = vld [vmem:[%s187 + $0xccc] sm:$0xff]
        %v783 = vld [vmem:[%s187 + $0xcd4] sm:$0xf]
        %v784 = vld [vmem:[%s187 + $0xcd8] sm:$0xff]
        %v785 = vld [vmem:[%s187 + $0xce0] sm:$0xf]
        %v786 = vld [vmem:[%s187 + $0xce4] sm:$0xff]
        %v787 = vld [vmem:[%s187 + $0xcec] sm:$0xf]
        %v788 = vld [vmem:[%s187 + $0xcf0] sm:$0xff]
        %v789 = vld [vmem:[%s187 + $0xcf8] sm:$0xf]
        %v790 = vld [vmem:[%s187 + $0xcfc] sm:$0xff]
        %v791 = vld [vmem:[%s187 + $0xd04] sm:$0xf]
        %v792 = vld [vmem:[%s187 + $0xd08] sm:$0xff]
        %v793 = vld [vmem:[%s187 + $0xd10] sm:$0xf]
        %v794 = vld [vmem:[%s187 + $0xd14] sm:$0xff]
        %v795 = vld [vmem:[%s187 + $0xd1c] sm:$0xf]
        %v796 = vld [vmem:[%s187 + $0xd20] sm:$0xff]
        %v797 = vld [vmem:[%s187 + $0xd28] sm:$0xf]
        %v798 = vld [vmem:[%s187 + $0xd2c] sm:$0xff]
        %v799 = vld [vmem:[%s187 + $0xd34] sm:$0xf]
        %v800 = vld [vmem:[%s187 + $0xd38] sm:$0xff]
        %v801 = vld [vmem:[%s187 + $0xd40] sm:$0xf]
        %v802 = vld [vmem:[%s187 + $0xd44] sm:$0xff]
        %v803 = vld [vmem:[%s187 + $0xd4c] sm:$0xf]
        %v804 = vld [vmem:[%s187 + $0xd50] sm:$0xff]
        %v805 = vld [vmem:[%s187 + $0xd58] sm:$0xf]
        %v806 = vld [vmem:[%s187 + $0xd5c] sm:$0xff]
        %v807 = vld [vmem:[%s187 + $0xd64] sm:$0xf]
        %v808 = vld [vmem:[%s187 + $0xd68] sm:$0xff]
        %v809 = vld [vmem:[%s187 + $0xd70] sm:$0xf]
        %v810 = vld [vmem:[%s187 + $0xd74] sm:$0xff]
        %v811 = vld [vmem:[%s187 + $0xd7c] sm:$0xf]
        %v812 = vld [vmem:[%s196] sm:$0x7]
        %v814 = vlaneseq
        %v815 = vshrl.u32 %v814, 7
        %v816 = vsub.s32 0, %v815
        %v817 = vrot.slane %v812, %v816
        %v818 = vlaneseq
        %v819 = vshrl.u32 %v818, 7
        %v820 = vsub.s32 1, %v819
        %v821 = vrot.slane %v812, %v820
        %v822 = vlaneseq
        %v823 = vshrl.u32 %v822, 7
        %v824 = vsub.s32 2, %v823
        %v825 = vrot.slane %v812, %v824
        %v832 = vcombine.high %v233, %v233
        %v834 = vunpack.c.l.s4 1966171168
        %v835 = vunpack.c.0.s8 %v834
        %v836 = vlaneseq
        %v837 = vshrl.u32 %v836, 7
        %v838 = vsub.s32 %v835, %v837
        %v839 = vrot.slane %v233, %v838
        %v841 = vunpack.c.l.s4 1966171168
        %v842 = vunpack.c.0.s8 %v841
        %v843 = vlaneseq
        %v844 = vshrl.u32 %v843, 7
        %v845 = vsub.s32 %v842, %v844
        %v846 = vrot.slane %v832, %v845
        %v847 = vcombine.high %v839, %v839
        %v848 = vcombine.high %v846, %v846
        %v850 = vunpack.c.l.s4 1966171168
        %v851 = vunpack.c.0.s8 %v850
        %v852 = vlaneseq
        %v853 = vshrl.u32 %v852, 7
        %v854 = vsub.s32 %v851, %v853
        %v855 = vrot.slane %v839, %v854
        %v857 = vunpack.c.l.s4 1966171168
        %v858 = vunpack.c.0.s8 %v857
        %v859 = vlaneseq
        %v860 = vshrl.u32 %v859, 7
        %v861 = vsub.s32 %v858, %v860
        %v862 = vrot.slane %v846, %v861
        %v864 = vunpack.c.l.s4 1966171168
        %v865 = vunpack.c.0.s8 %v864
        %v866 = vlaneseq
        %v867 = vshrl.u32 %v866, 7
        %v868 = vsub.s32 %v865, %v867
        %v869 = vrot.slane %v847, %v868
        %v871 = vunpack.c.l.s4 1966171168
        %v872 = vunpack.c.0.s8 %v871
        %v873 = vlaneseq
        %v874 = vshrl.u32 %v873, 7
        %v875 = vsub.s32 %v872, %v874
        %v876 = vrot.slane %v848, %v875
        %v877 = vcombine.high %v855, %v855
        %v878 = vcombine.high %v862, %v862
        %v879 = vcombine.high %v869, %v869
        %v880 = vcombine.high %v876, %v876
        %v881 = vcombine.high %v234, %v234
        %v883 = vunpack.c.l.s4 1966171168
        %v884 = vunpack.c.0.s8 %v883
        %v885 = vlaneseq
        %v886 = vshrl.u32 %v885, 7
        %v887 = vsub.s32 %v884, %v886
        %v888 = vrot.slane %v234, %v887
        %v890 = vunpack.c.l.s4 1966171168
        %v891 = vunpack.c.0.s8 %v890
        %v892 = vlaneseq
        %v893 = vshrl.u32 %v892, 7
        %v894 = vsub.s32 %v891, %v893
        %v895 = vrot.slane %v881, %v894
        %v896 = vcombine.high %v888, %v888
        %v897 = vcombine.high %v895, %v895
        %v899 = vunpack.c.l.s4 1966171168
        %v900 = vunpack.c.0.s8 %v899
        %v901 = vlaneseq
        %v902 = vshrl.u32 %v901, 7
        %v903 = vsub.s32 %v900, %v902
        %v904 = vrot.slane %v888, %v903
        %v906 = vunpack.c.l.s4 1966171168
        %v907 = vunpack.c.0.s8 %v906
        %v908 = vlaneseq
        %v909 = vshrl.u32 %v908, 7
        %v910 = vsub.s32 %v907, %v909
        %v911 = vrot.slane %v895, %v910
        %v913 = vunpack.c.l.s4 1966171168
        %v914 = vunpack.c.0.s8 %v913
        %v915 = vlaneseq
        %v916 = vshrl.u32 %v915, 7
        %v917 = vsub.s32 %v914, %v916
        %v918 = vrot.slane %v896, %v917
        %v920 = vunpack.c.l.s4 1966171168
        %v921 = vunpack.c.0.s8 %v920
        %v922 = vlaneseq
        %v923 = vshrl.u32 %v922, 7
        %v924 = vsub.s32 %v921, %v923
        %v925 = vrot.slane %v897, %v924
        %v926 = vcombine.high %v904, %v904
        %v927 = vcombine.high %v911, %v911
        %v928 = vcombine.high %v918, %v918
        %v929 = vcombine.high %v925, %v925
        %v931 = vunpack.c.l.s4 1966171168
        %v932 = vunpack.c.0.s8 %v931
        %v933 = vlaneseq
        %v934 = vshrl.u32 %v933, 7
        %v935 = vsub.s32 %v932, %v934
        %v936 = vrot.slane %v235, %v935
        %v937 = vcombine.high %v936, %v936
        %v939 = vunpack.c.l.s4 1966171168
        %v940 = vunpack.c.0.s8 %v939
        %v941 = vlaneseq
        %v942 = vshrl.u32 %v941, 7
        %v943 = vsub.s32 %v940, %v942
        %v944 = vrot.slane %v936, %v943
        %v946 = vunpack.c.l.s4 1966171168
        %v947 = vunpack.c.0.s8 %v946
        %v948 = vlaneseq
        %v949 = vshrl.u32 %v948, 7
        %v950 = vsub.s32 %v947, %v949
        %v951 = vrot.slane %v937, %v950
        %v1546 = vunpack.c.l.b16 %v236
        %v1547 = vunpack.c.h.b16 %v236
        %v1548 = vunpack.c.l.b16 %v237
        %v1549 = vunpack.c.l.b16 %v238
        %v1550 = vunpack.c.h.b16 %v238
        %v1551 = vunpack.c.l.b16 %v239
        %v1552 = vunpack.c.l.b16 %v240
        %v1553 = vunpack.c.h.b16 %v240
        %v1554 = vunpack.c.l.b16 %v241
        %v1555 = vunpack.c.l.b16 %v242
        %v1556 = vunpack.c.h.b16 %v242
        %v1557 = vunpack.c.l.b16 %v243
        %v1558 = vunpack.c.l.b16 %v244
        %v1559 = vunpack.c.h.b16 %v244
        %v1560 = vunpack.c.l.b16 %v245
        %v1561 = vunpack.c.l.b16 %v246
        %v1562 = vunpack.c.h.b16 %v246
        %v1563 = vunpack.c.l.b16 %v247
        %v1564 = vunpack.c.l.b16 %v248
        %v1565 = vunpack.c.h.b16 %v248
        %v1566 = vunpack.c.l.b16 %v249
        %v1567 = vunpack.c.l.b16 %v250
        %v1568 = vunpack.c.h.b16 %v250
        %v1569 = vunpack.c.l.b16 %v251
        %v1570 = vunpack.c.l.b16 %v252
        %v1571 = vunpack.c.h.b16 %v252
        %v1572 = vunpack.c.l.b16 %v253
        %v1573 = vunpack.c.l.b16 %v254
        %v1574 = vunpack.c.h.b16 %v254
        %v1575 = vunpack.c.l.b16 %v255
        %v1576 = vunpack.c.l.b16 %v256
        %v1577 = vunpack.c.h.b16 %v256
        %v1578 = vunpack.c.l.b16 %v257
        %v1579 = vunpack.c.l.b16 %v258
        %v1580 = vunpack.c.h.b16 %v258
        %v1581 = vunpack.c.l.b16 %v259
        %v1582 = vunpack.c.l.b16 %v260
        %v1583 = vunpack.c.h.b16 %v260
        %v1584 = vunpack.c.l.b16 %v261
        %v1585 = vunpack.c.l.b16 %v262
        %v1586 = vunpack.c.h.b16 %v262
        %v1587 = vunpack.c.l.b16 %v263
        %v1588 = vunpack.c.l.b16 %v264
        %v1589 = vunpack.c.h.b16 %v264
        %v1590 = vunpack.c.l.b16 %v265
        %v1591 = vunpack.c.l.b16 %v266
        %v1592 = vunpack.c.h.b16 %v266
        %v1593 = vunpack.c.l.b16 %v267
        %v1594 = vunpack.c.l.b16 %v268
        %v1595 = vunpack.c.h.b16 %v268
        %v1596 = vunpack.c.l.b16 %v269
        %v1597 = vunpack.c.l.b16 %v270
        %v1598 = vunpack.c.h.b16 %v270
        %v1599 = vunpack.c.l.b16 %v271
        %v1600 = vunpack.c.l.b16 %v272
        %v1601 = vunpack.c.h.b16 %v272
        %v1602 = vunpack.c.l.b16 %v273
        %v1603 = vunpack.c.l.b16 %v274
        %v1604 = vunpack.c.h.b16 %v274
        %v1605 = vunpack.c.l.b16 %v275
        %v1606 = vunpack.c.l.b16 %v276
        %v1607 = vunpack.c.h.b16 %v276
        %v1608 = vunpack.c.l.b16 %v277
        %v1609 = vunpack.c.l.b16 %v278
        %v1610 = vunpack.c.h.b16 %v278
        %v1611 = vunpack.c.l.b16 %v279
        %v1612 = vunpack.c.l.b16 %v280
        %v1613 = vunpack.c.h.b16 %v280
        %v1614 = vunpack.c.l.b16 %v281
        %v1615 = vunpack.c.l.b16 %v282
        %v1616 = vunpack.c.h.b16 %v282
        %v1617 = vunpack.c.l.b16 %v283
        %v1618 = vunpack.c.l.b16 %v284
        %v1619 = vunpack.c.h.b16 %v284
        %v1620 = vunpack.c.l.b16 %v285
        %v1621 = vunpack.c.l.b16 %v286
        %v1622 = vunpack.c.h.b16 %v286
        %v1623 = vunpack.c.l.b16 %v287
        %v1624 = vunpack.c.l.b16 %v288
        %v1625 = vunpack.c.h.b16 %v288
        %v1626 = vunpack.c.l.b16 %v289
        %v1627 = vunpack.c.l.b16 %v290
        %v1628 = vunpack.c.h.b16 %v290
        %v1629 = vunpack.c.l.b16 %v291
        %v1630 = vunpack.c.l.b16 %v292
        %v1631 = vunpack.c.h.b16 %v292
        %v1632 = vunpack.c.l.b16 %v293
        %v1633 = vunpack.c.l.b16 %v294
        %v1634 = vunpack.c.h.b16 %v294
        %v1635 = vunpack.c.l.b16 %v295
        %v1636 = vunpack.c.l.b16 %v296
        %v1637 = vunpack.c.h.b16 %v296
        %v1638 = vunpack.c.l.b16 %v297
        %v1639 = vunpack.c.l.b16 %v298
        %v1640 = vunpack.c.h.b16 %v298
        %v1641 = vunpack.c.l.b16 %v299
        %v1642 = vunpack.c.l.b16 %v300
        %v1643 = vunpack.c.h.b16 %v300
        %v1644 = vunpack.c.l.b16 %v301
        %v1645 = vunpack.c.l.b16 %v302
        %v1646 = vunpack.c.h.b16 %v302
        %v1647 = vunpack.c.l.b16 %v303
        %v1648 = vunpack.c.l.b16 %v304
        %v1649 = vunpack.c.h.b16 %v304
        %v1650 = vunpack.c.l.b16 %v305
        %v1651 = vunpack.c.l.b16 %v306
        %v1652 = vunpack.c.h.b16 %v306
        %v1653 = vunpack.c.l.b16 %v307
        %v1654 = vunpack.c.l.b16 %v308
        %v1655 = vunpack.c.h.b16 %v308
        %v1656 = vunpack.c.l.b16 %v309
        %v1657 = vunpack.c.l.b16 %v310
        %v1658 = vunpack.c.h.b16 %v310
        %v1659 = vunpack.c.l.b16 %v311
        %v1660 = vunpack.c.l.b16 %v312
        %v1661 = vunpack.c.h.b16 %v312
        %v1662 = vunpack.c.l.b16 %v313
        %v1663 = vunpack.c.l.b16 %v314
        %v1664 = vunpack.c.h.b16 %v314
        %v1665 = vunpack.c.l.b16 %v315
        %v1666 = vunpack.c.l.b16 %v316
        %v1667 = vunpack.c.h.b16 %v316
        %v1668 = vunpack.c.l.b16 %v317
        %v1669 = vunpack.c.l.b16 %v318
        %v1670 = vunpack.c.h.b16 %v318
        %v1671 = vunpack.c.l.b16 %v319
        %v1672 = vunpack.c.l.b16 %v320
        %v1673 = vunpack.c.h.b16 %v320
        %v1674 = vunpack.c.l.b16 %v321
        %v1675 = vunpack.c.l.b16 %v322
        %v1676 = vunpack.c.h.b16 %v322
        %v1677 = vunpack.c.l.b16 %v323
        %v1678 = vunpack.c.l.b16 %v324
        %v1679 = vunpack.c.h.b16 %v324
        %v1680 = vunpack.c.l.b16 %v325
        %v1681 = vunpack.c.l.b16 %v326
        %v1682 = vunpack.c.h.b16 %v326
        %v1683 = vunpack.c.l.b16 %v327
        %v1684 = vunpack.c.l.b16 %v328
        %v1685 = vunpack.c.h.b16 %v328
        %v1686 = vunpack.c.l.b16 %v329
        %v1687 = vunpack.c.l.b16 %v330
        %v1688 = vunpack.c.h.b16 %v330
        %v1689 = vunpack.c.l.b16 %v331
        %v1690 = vunpack.c.l.b16 %v332
        %v1691 = vunpack.c.h.b16 %v332
        %v1692 = vunpack.c.l.b16 %v333
        %v1693 = vunpack.c.l.b16 %v334
        %v1694 = vunpack.c.h.b16 %v334
        %v1695 = vunpack.c.l.b16 %v335
        %v1696 = vunpack.c.l.b16 %v336
        %v1697 = vunpack.c.h.b16 %v336
        %v1698 = vunpack.c.l.b16 %v337
        %v1699 = vunpack.c.l.b16 %v338
        %v1700 = vunpack.c.h.b16 %v338
        %v1701 = vunpack.c.l.b16 %v339
        %v1702 = vunpack.c.l.b16 %v340
        %v1703 = vunpack.c.h.b16 %v340
        %v1704 = vunpack.c.l.b16 %v341
        %v1705 = vunpack.c.l.b16 %v342
        %v1706 = vunpack.c.h.b16 %v342
        %v1707 = vunpack.c.l.b16 %v343
        %v1708 = vunpack.c.l.b16 %v344
        %v1709 = vunpack.c.h.b16 %v344
        %v1710 = vunpack.c.l.b16 %v345
        %v1711 = vunpack.c.l.b16 %v346
        %v1712 = vunpack.c.h.b16 %v346
        %v1713 = vunpack.c.l.b16 %v347
        %v1714 = vunpack.c.l.b16 %v348
        %v1715 = vunpack.c.h.b16 %v348
        %v1716 = vunpack.c.l.b16 %v349
        %v1717 = vunpack.c.l.b16 %v350
        %v1718 = vunpack.c.h.b16 %v350
        %v1719 = vunpack.c.l.b16 %v351
        %v1720 = vunpack.c.l.b16 %v352
        %v1721 = vunpack.c.h.b16 %v352
        %v1722 = vunpack.c.l.b16 %v353
        %v1723 = vunpack.c.l.b16 %v354
        %v1724 = vunpack.c.h.b16 %v354
        %v1725 = vunpack.c.l.b16 %v355
        %v1726 = vunpack.c.l.b16 %v356
        %v1727 = vunpack.c.h.b16 %v356
        %v1728 = vunpack.c.l.b16 %v357
        %v1729 = vunpack.c.l.b16 %v358
        %v1730 = vunpack.c.h.b16 %v358
        %v1731 = vunpack.c.l.b16 %v359
        %v1732 = vunpack.c.l.b16 %v360
        %v1733 = vunpack.c.h.b16 %v360
        %v1734 = vunpack.c.l.b16 %v361
        %v1735 = vunpack.c.l.b16 %v362
        %v1736 = vunpack.c.h.b16 %v362
        %v1737 = vunpack.c.l.b16 %v363
        %v1738 = vunpack.c.l.b16 %v364
        %v1739 = vunpack.c.h.b16 %v364
        %v1740 = vunpack.c.l.b16 %v365
        %v1741 = vunpack.c.l.b16 %v366
        %v1742 = vunpack.c.h.b16 %v366
        %v1743 = vunpack.c.l.b16 %v367
        %v1744 = vunpack.c.l.b16 %v368
        %v1745 = vunpack.c.h.b16 %v368
        %v1746 = vunpack.c.l.b16 %v369
        %v1747 = vunpack.c.l.b16 %v370
        %v1748 = vunpack.c.h.b16 %v370
        %v1749 = vunpack.c.l.b16 %v371
        %v1750 = vunpack.c.l.b16 %v372
        %v1751 = vunpack.c.h.b16 %v372
        %v1752 = vunpack.c.l.b16 %v373
        %v1753 = vunpack.c.l.b16 %v374
        %v1754 = vunpack.c.h.b16 %v374
        %v1755 = vunpack.c.l.b16 %v375
        %v1756 = vunpack.c.l.b16 %v376
        %v1757 = vunpack.c.h.b16 %v376
        %v1758 = vunpack.c.l.b16 %v377
        %v1759 = vunpack.c.l.b16 %v378
        %v1760 = vunpack.c.h.b16 %v378
        %v1761 = vunpack.c.l.b16 %v379
        %v1762 = vunpack.c.l.b16 %v380
        %v1763 = vunpack.c.h.b16 %v380
        %v1764 = vunpack.c.l.b16 %v381
        %v1765 = vunpack.c.l.b16 %v382
        %v1766 = vunpack.c.h.b16 %v382
        %v1767 = vunpack.c.l.b16 %v383
        %v1768 = vunpack.c.l.b16 %v384
        %v1769 = vunpack.c.h.b16 %v384
        %v1770 = vunpack.c.l.b16 %v385
        %v1771 = vunpack.c.l.b16 %v386
        %v1772 = vunpack.c.h.b16 %v386
        %v1773 = vunpack.c.l.b16 %v387
        %v1774 = vunpack.c.l.b16 %v388
        %v1775 = vunpack.c.h.b16 %v388
        %v1776 = vunpack.c.l.b16 %v389
        %v1777 = vunpack.c.l.b16 %v390
        %v1778 = vunpack.c.h.b16 %v390
        %v1779 = vunpack.c.l.b16 %v391
        %v1780 = vunpack.c.l.b16 %v392
        %v1781 = vunpack.c.h.b16 %v392
        %v1782 = vunpack.c.l.b16 %v393
        %v1783 = vunpack.c.l.b16 %v394
        %v1784 = vunpack.c.h.b16 %v394
        %v1785 = vunpack.c.l.b16 %v395
        %v1786 = vunpack.c.l.b16 %v396
        %v1787 = vunpack.c.h.b16 %v396
        %v1788 = vunpack.c.l.b16 %v397
        %v1789 = vunpack.c.l.b16 %v398
        %v1790 = vunpack.c.h.b16 %v398
        %v1791 = vunpack.c.l.b16 %v399
        %v1792 = vunpack.c.l.b16 %v400
        %v1793 = vunpack.c.h.b16 %v400
        %v1794 = vunpack.c.l.b16 %v401
        %v1795 = vunpack.c.l.b16 %v402
        %v1796 = vunpack.c.h.b16 %v402
        %v1797 = vunpack.c.l.b16 %v403
        %v1798 = vunpack.c.l.b16 %v404
        %v1799 = vunpack.c.h.b16 %v404
        %v1800 = vunpack.c.l.b16 %v405
        %v1801 = vunpack.c.l.b16 %v406
        %v1802 = vunpack.c.h.b16 %v406
        %v1803 = vunpack.c.l.b16 %v407
        %v1804 = vunpack.c.l.b16 %v408
        %v1805 = vunpack.c.h.b16 %v408
        %v1806 = vunpack.c.l.b16 %v409
        %v1807 = vunpack.c.l.b16 %v410
        %v1808 = vunpack.c.h.b16 %v410
        %v1809 = vunpack.c.l.b16 %v411
        %v1810 = vunpack.c.l.b16 %v412
        %v1811 = vunpack.c.h.b16 %v412
        %v1812 = vunpack.c.l.b16 %v413
        %v1813 = vunpack.c.l.b16 %v414
        %v1814 = vunpack.c.h.b16 %v414
        %v1815 = vunpack.c.l.b16 %v415
        %v1816 = vunpack.c.l.b16 %v416
        %v1817 = vunpack.c.h.b16 %v416
        %v1818 = vunpack.c.l.b16 %v417
        %v1819 = vunpack.c.l.b16 %v418
        %v1820 = vunpack.c.h.b16 %v418
        %v1821 = vunpack.c.l.b16 %v419
        %v1822 = vunpack.c.l.b16 %v420
        %v1823 = vunpack.c.h.b16 %v420
        %v1824 = vunpack.c.l.b16 %v421
        %v1825 = vunpack.c.l.b16 %v422
        %v1826 = vunpack.c.h.b16 %v422
        %v1827 = vunpack.c.l.b16 %v423
        %v1828 = vunpack.c.l.b16 %v424
        %v1829 = vunpack.c.h.b16 %v424
        %v1830 = vunpack.c.l.b16 %v425
        %v1831 = vunpack.c.l.b16 %v426
        %v1832 = vunpack.c.h.b16 %v426
        %v1833 = vunpack.c.l.b16 %v427
        %v1834 = vunpack.c.l.b16 %v428
        %v1835 = vunpack.c.h.b16 %v428
        %v1836 = vunpack.c.l.b16 %v429
        %v1837 = vunpack.c.l.b16 %v430
        %v1838 = vunpack.c.h.b16 %v430
        %v1839 = vunpack.c.l.b16 %v431
        %v1840 = vunpack.c.l.b16 %v432
        %v1841 = vunpack.c.h.b16 %v432
        %v1842 = vunpack.c.l.b16 %v433
        %v1843 = vunpack.c.l.b16 %v434
        %v1844 = vunpack.c.h.b16 %v434
        %v1845 = vunpack.c.l.b16 %v435
        %v1846 = vunpack.c.l.b16 %v436
        %v1847 = vunpack.c.h.b16 %v436
        %v1848 = vunpack.c.l.b16 %v437
        %v1849 = vunpack.c.l.b16 %v438
        %v1850 = vunpack.c.h.b16 %v438
        %v1851 = vunpack.c.l.b16 %v439
        %v1852 = vunpack.c.l.b16 %v440
        %v1853 = vunpack.c.h.b16 %v440
        %v1854 = vunpack.c.l.b16 %v441
        %v1855 = vunpack.c.l.b16 %v442
        %v1856 = vunpack.c.h.b16 %v442
        %v1857 = vunpack.c.l.b16 %v443
        %v1858 = vunpack.c.l.b16 %v444
        %v1859 = vunpack.c.h.b16 %v444
        %v1860 = vunpack.c.l.b16 %v445
        %v1861 = vunpack.c.l.b16 %v446
        %v1862 = vunpack.c.h.b16 %v446
        %v1863 = vunpack.c.l.b16 %v447
        %v1864 = vunpack.c.l.b16 %v448
        %v1865 = vunpack.c.h.b16 %v448
        %v1866 = vunpack.c.l.b16 %v449
        %v1867 = vunpack.c.l.b16 %v450
        %v1868 = vunpack.c.h.b16 %v450
        %v1869 = vunpack.c.l.b16 %v451
        %v1870 = vunpack.c.l.b16 %v452
        %v1871 = vunpack.c.h.b16 %v452
        %v1872 = vunpack.c.l.b16 %v453
        %v1873 = vunpack.c.l.b16 %v454
        %v1874 = vunpack.c.h.b16 %v454
        %v1875 = vunpack.c.l.b16 %v455
        %v1876 = vunpack.c.l.b16 %v456
        %v1877 = vunpack.c.h.b16 %v456
        %v1878 = vunpack.c.l.b16 %v457
        %v1879 = vunpack.c.l.b16 %v458
        %v1880 = vunpack.c.h.b16 %v458
        %v1881 = vunpack.c.l.b16 %v459
        %v1882 = vunpack.c.l.b16 %v460
        %v1883 = vunpack.c.h.b16 %v460
        %v1884 = vunpack.c.l.b16 %v461
        %v1885 = vunpack.c.l.b16 %v462
        %v1886 = vunpack.c.h.b16 %v462
        %v1887 = vunpack.c.l.b16 %v463
        %v1888 = vunpack.c.l.b16 %v464
        %v1889 = vunpack.c.h.b16 %v464
        %v1890 = vunpack.c.l.b16 %v465
        %v1891 = vunpack.c.l.b16 %v466
        %v1892 = vunpack.c.h.b16 %v466
        %v1893 = vunpack.c.l.b16 %v467
        %v1894 = vunpack.c.l.b16 %v468
        %v1895 = vunpack.c.h.b16 %v468
        %v1896 = vunpack.c.l.b16 %v469
        %v1897 = vunpack.c.l.b16 %v470
        %v1898 = vunpack.c.h.b16 %v470
        %v1899 = vunpack.c.l.b16 %v471
        %v1900 = vunpack.c.l.b16 %v472
        %v1901 = vunpack.c.h.b16 %v472
        %v1902 = vunpack.c.l.b16 %v473
        %v1903 = vunpack.c.l.b16 %v474
        %v1904 = vunpack.c.h.b16 %v474
        %v1905 = vunpack.c.l.b16 %v475
        %v1906 = vunpack.c.l.b16 %v476
        %v1907 = vunpack.c.h.b16 %v476
        %v1908 = vunpack.c.l.b16 %v477
        %v1909 = vunpack.c.l.b16 %v478
        %v1910 = vunpack.c.h.b16 %v478
        %v1911 = vunpack.c.l.b16 %v479
        %v1912 = vunpack.c.l.b16 %v480
        %v1913 = vunpack.c.h.b16 %v480
        %v1914 = vunpack.c.l.b16 %v481
        %v1915 = vunpack.c.l.b16 %v482
        %v1916 = vunpack.c.h.b16 %v482
        %v1917 = vunpack.c.l.b16 %v483
        %v1918 = vunpack.c.l.b16 %v484
        %v1919 = vunpack.c.h.b16 %v484
        %v1920 = vunpack.c.l.b16 %v485
        %v1921 = vunpack.c.l.b16 %v486
        %v1922 = vunpack.c.h.b16 %v486
        %v1923 = vunpack.c.l.b16 %v487
        %v1924 = vunpack.c.l.b16 %v488
        %v1925 = vunpack.c.h.b16 %v488
        %v1926 = vunpack.c.l.b16 %v489
        %v1927 = vunpack.c.l.b16 %v490
        %v1928 = vunpack.c.h.b16 %v490
        %v1929 = vunpack.c.l.b16 %v491
        %v1930 = vunpack.c.l.b16 %v492
        %v1931 = vunpack.c.h.b16 %v492
        %v1932 = vunpack.c.l.b16 %v493
        %v1933 = vunpack.c.l.b16 %v494
        %v1934 = vunpack.c.h.b16 %v494
        %v1935 = vunpack.c.l.b16 %v495
        %v1936 = vunpack.c.l.b16 %v496
        %v1937 = vunpack.c.h.b16 %v496
        %v1938 = vunpack.c.l.b16 %v497
        %v1939 = vunpack.c.l.b16 %v498
        %v1940 = vunpack.c.h.b16 %v498
        %v1941 = vunpack.c.l.b16 %v499
        %v1942 = vunpack.c.l.b16 %v500
        %v1943 = vunpack.c.h.b16 %v500
        %v1944 = vunpack.c.l.b16 %v501
        %v1945 = vunpack.c.l.b16 %v502
        %v1946 = vunpack.c.h.b16 %v502
        %v1947 = vunpack.c.l.b16 %v503
        %v1948 = vunpack.c.l.b16 %v504
        %v1949 = vunpack.c.h.b16 %v504
        %v1950 = vunpack.c.l.b16 %v505
        %v1951 = vunpack.c.l.b16 %v506
        %v1952 = vunpack.c.h.b16 %v506
        %v1953 = vunpack.c.l.b16 %v507
        %v1954 = vunpack.c.l.b16 %v508
        %v1955 = vunpack.c.h.b16 %v508
        %v1956 = vunpack.c.l.b16 %v509
        %v1957 = vunpack.c.l.b16 %v510
        %v1958 = vunpack.c.h.b16 %v510
        %v1959 = vunpack.c.l.b16 %v511
        %v1960 = vunpack.c.l.b16 %v512
        %v1961 = vunpack.c.h.b16 %v512
        %v1962 = vunpack.c.l.b16 %v513
        %v1963 = vunpack.c.l.b16 %v514
        %v1964 = vunpack.c.h.b16 %v514
        %v1965 = vunpack.c.l.b16 %v515
        %v1966 = vunpack.c.l.b16 %v516
        %v1967 = vunpack.c.h.b16 %v516
        %v1968 = vunpack.c.l.b16 %v517
        %v1969 = vunpack.c.l.b16 %v518
        %v1970 = vunpack.c.h.b16 %v518
        %v1971 = vunpack.c.l.b16 %v519
        %v1972 = vunpack.c.l.b16 %v520
        %v1973 = vunpack.c.h.b16 %v520
        %v1974 = vunpack.c.l.b16 %v521
        %v1975 = vunpack.c.l.b16 %v522
        %v1976 = vunpack.c.h.b16 %v522
        %v1977 = vunpack.c.l.b16 %v523
        %v1978 = vunpack.c.l.b16 %v524
        %v1979 = vunpack.c.h.b16 %v524
        %v1980 = vunpack.c.l.b16 %v525
        %v1981 = vunpack.c.l.b16 %v526
        %v1982 = vunpack.c.h.b16 %v526
        %v1983 = vunpack.c.l.b16 %v527
        %v1984 = vunpack.c.l.b16 %v528
        %v1985 = vunpack.c.h.b16 %v528
        %v1986 = vunpack.c.l.b16 %v529
        %v1987 = vunpack.c.l.b16 %v530
        %v1988 = vunpack.c.h.b16 %v530
        %v1989 = vunpack.c.l.b16 %v531
        %v1990 = vunpack.c.l.b16 %v532
        %v1991 = vunpack.c.h.b16 %v532
        %v1992 = vunpack.c.l.b16 %v533
        %v1993 = vunpack.c.l.b16 %v534
        %v1994 = vunpack.c.h.b16 %v534
        %v1995 = vunpack.c.l.b16 %v535
        %v1996 = vunpack.c.l.b16 %v536
        %v1997 = vunpack.c.h.b16 %v536
        %v1998 = vunpack.c.l.b16 %v537
        %v1999 = vunpack.c.l.b16 %v538
        %v2000 = vunpack.c.h.b16 %v538
        %v2001 = vunpack.c.l.b16 %v539
        %v2002 = vunpack.c.l.b16 %v540
        %v2003 = vunpack.c.h.b16 %v540
        %v2004 = vunpack.c.l.b16 %v541
        %v2005 = vunpack.c.l.b16 %v542
        %v2006 = vunpack.c.h.b16 %v542
        %v2007 = vunpack.c.l.b16 %v543
        %v2008 = vunpack.c.l.b16 %v544
        %v2009 = vunpack.c.h.b16 %v544
        %v2010 = vunpack.c.l.b16 %v545
        %v2011 = vunpack.c.l.b16 %v546
        %v2012 = vunpack.c.h.b16 %v546
        %v2013 = vunpack.c.l.b16 %v547
        %v2014 = vunpack.c.l.b16 %v548
        %v2015 = vunpack.c.h.b16 %v548
        %v2016 = vunpack.c.l.b16 %v549
        %v2017 = vunpack.c.l.b16 %v550
        %v2018 = vunpack.c.h.b16 %v550
        %v2019 = vunpack.c.l.b16 %v551
        %v2020 = vunpack.c.l.b16 %v552
        %v2021 = vunpack.c.h.b16 %v552
        %v2022 = vunpack.c.l.b16 %v553
        %v2023 = vunpack.c.l.b16 %v554
        %v2024 = vunpack.c.h.b16 %v554
        %v2025 = vunpack.c.l.b16 %v555
        %v2026 = vunpack.c.l.b16 %v556
        %v2027 = vunpack.c.h.b16 %v556
        %v2028 = vunpack.c.l.b16 %v557
        %v2029 = vunpack.c.l.b16 %v558
        %v2030 = vunpack.c.h.b16 %v558
        %v2031 = vunpack.c.l.b16 %v559
        %v2032 = vunpack.c.l.b16 %v560
        %v2033 = vunpack.c.h.b16 %v560
        %v2034 = vunpack.c.l.b16 %v561
        %v2035 = vunpack.c.l.b16 %v562
        %v2036 = vunpack.c.h.b16 %v562
        %v2037 = vunpack.c.l.b16 %v563
        %v2038 = vunpack.c.l.b16 %v564
        %v2039 = vunpack.c.h.b16 %v564
        %v2040 = vunpack.c.l.b16 %v565
        %v2041 = vunpack.c.l.b16 %v566
        %v2042 = vunpack.c.h.b16 %v566
        %v2043 = vunpack.c.l.b16 %v567
        %v2044 = vunpack.c.l.b16 %v568
        %v2045 = vunpack.c.h.b16 %v568
        %v2046 = vunpack.c.l.b16 %v569
        %v2047 = vunpack.c.l.b16 %v570
        %v2048 = vunpack.c.h.b16 %v570
        %v2049 = vunpack.c.l.b16 %v571
        %v2050 = vunpack.c.l.b16 %v572
        %v2051 = vunpack.c.h.b16 %v572
        %v2052 = vunpack.c.l.b16 %v573
        %v2053 = vunpack.c.l.b16 %v574
        %v2054 = vunpack.c.h.b16 %v574
        %v2055 = vunpack.c.l.b16 %v575
        %v2056 = vunpack.c.l.b16 %v576
        %v2057 = vunpack.c.h.b16 %v576
        %v2058 = vunpack.c.l.b16 %v577
        %v2059 = vunpack.c.l.b16 %v578
        %v2060 = vunpack.c.h.b16 %v578
        %v2061 = vunpack.c.l.b16 %v579
        %v2062 = vunpack.c.l.b16 %v580
        %v2063 = vunpack.c.h.b16 %v580
        %v2064 = vunpack.c.l.b16 %v581
        %v2065 = vunpack.c.l.b16 %v582
        %v2066 = vunpack.c.h.b16 %v582
        %v2067 = vunpack.c.l.b16 %v583
        %v2068 = vunpack.c.l.b16 %v584
        %v2069 = vunpack.c.h.b16 %v584
        %v2070 = vunpack.c.l.b16 %v585
        %v2071 = vunpack.c.l.b16 %v586
        %v2072 = vunpack.c.h.b16 %v586
        %v2073 = vunpack.c.l.b16 %v587
        %v2074 = vunpack.c.l.b16 %v588
        %v2075 = vunpack.c.h.b16 %v588
        %v2076 = vunpack.c.l.b16 %v589
        %v2077 = vunpack.c.l.b16 %v590
        %v2078 = vunpack.c.h.b16 %v590
        %v2079 = vunpack.c.l.b16 %v591
        %v2080 = vunpack.c.l.b16 %v592
        %v2081 = vunpack.c.h.b16 %v592
        %v2082 = vunpack.c.l.b16 %v593
        %v2083 = vunpack.c.l.b16 %v594
        %v2084 = vunpack.c.h.b16 %v594
        %v2085 = vunpack.c.l.b16 %v595
        %v2086 = vunpack.c.l.b16 %v596
        %v2087 = vunpack.c.h.b16 %v596
        %v2088 = vunpack.c.l.b16 %v597
        %v2089 = vunpack.c.l.b16 %v598
        %v2090 = vunpack.c.h.b16 %v598
        %v2091 = vunpack.c.l.b16 %v599
        %v2092 = vunpack.c.l.b16 %v600
        %v2093 = vunpack.c.h.b16 %v600
        %v2094 = vunpack.c.l.b16 %v601
        %v2095 = vunpack.c.l.b16 %v602
        %v2096 = vunpack.c.h.b16 %v602
        %v2097 = vunpack.c.l.b16 %v603
        %v2098 = vunpack.c.l.b16 %v604
        %v2099 = vunpack.c.h.b16 %v604
        %v2100 = vunpack.c.l.b16 %v605
        %v2101 = vunpack.c.l.b16 %v606
        %v2102 = vunpack.c.h.b16 %v606
        %v2103 = vunpack.c.l.b16 %v607
        %v2104 = vunpack.c.l.b16 %v608
        %v2105 = vunpack.c.h.b16 %v608
        %v2106 = vunpack.c.l.b16 %v609
        %v2107 = vunpack.c.l.b16 %v610
        %v2108 = vunpack.c.h.b16 %v610
        %v2109 = vunpack.c.l.b16 %v611
        %v2110 = vunpack.c.l.b16 %v612
        %v2111 = vunpack.c.h.b16 %v612
        %v2112 = vunpack.c.l.b16 %v613
        %v2113 = vunpack.c.l.b16 %v614
        %v2114 = vunpack.c.h.b16 %v614
        %v2115 = vunpack.c.l.b16 %v615
        %v2116 = vunpack.c.l.b16 %v616
        %v2117 = vunpack.c.h.b16 %v616
        %v2118 = vunpack.c.l.b16 %v617
        %v2119 = vunpack.c.l.b16 %v618
        %v2120 = vunpack.c.h.b16 %v618
        %v2121 = vunpack.c.l.b16 %v619
        %v2122 = vunpack.c.l.b16 %v620
        %v2123 = vunpack.c.h.b16 %v620
        %v2124 = vunpack.c.l.b16 %v621
        %v2125 = vunpack.c.l.b16 %v622
        %v2126 = vunpack.c.h.b16 %v622
        %v2127 = vunpack.c.l.b16 %v623
        %v2128 = vunpack.c.l.b16 %v624
        %v2129 = vunpack.c.h.b16 %v624
        %v2130 = vunpack.c.l.b16 %v625
        %v2131 = vunpack.c.l.b16 %v626
        %v2132 = vunpack.c.h.b16 %v626
        %v2133 = vunpack.c.l.b16 %v627
        %v2134 = vunpack.c.l.b16 %v628
        %v2135 = vunpack.c.h.b16 %v628
        %v2136 = vunpack.c.l.b16 %v629
        %v2137 = vunpack.c.l.b16 %v630
        %v2138 = vunpack.c.h.b16 %v630
        %v2139 = vunpack.c.l.b16 %v631
        %v2140 = vunpack.c.l.b16 %v632
        %v2141 = vunpack.c.h.b16 %v632
        %v2142 = vunpack.c.l.b16 %v633
        %v2143 = vunpack.c.l.b16 %v634
        %v2144 = vunpack.c.h.b16 %v634
        %v2145 = vunpack.c.l.b16 %v635
        %v2146 = vunpack.c.l.b16 %v636
        %v2147 = vunpack.c.h.b16 %v636
        %v2148 = vunpack.c.l.b16 %v637
        %v2149 = vunpack.c.l.b16 %v638
        %v2150 = vunpack.c.h.b16 %v638
        %v2151 = vunpack.c.l.b16 %v639
        %v2152 = vunpack.c.l.b16 %v640
        %v2153 = vunpack.c.h.b16 %v640
        %v2154 = vunpack.c.l.b16 %v641
        %v2155 = vunpack.c.l.b16 %v642
        %v2156 = vunpack.c.h.b16 %v642
        %v2157 = vunpack.c.l.b16 %v643
        %v2158 = vunpack.c.l.b16 %v644
        %v2159 = vunpack.c.h.b16 %v644
        %v2160 = vunpack.c.l.b16 %v645
        %v2161 = vunpack.c.l.b16 %v646
        %v2162 = vunpack.c.h.b16 %v646
        %v2163 = vunpack.c.l.b16 %v647
        %v2164 = vunpack.c.l.b16 %v648
        %v2165 = vunpack.c.h.b16 %v648
        %v2166 = vunpack.c.l.b16 %v649
        %v2167 = vunpack.c.l.b16 %v650
        %v2168 = vunpack.c.h.b16 %v650
        %v2169 = vunpack.c.l.b16 %v651
        %v2170 = vunpack.c.l.b16 %v652
        %v2171 = vunpack.c.h.b16 %v652
        %v2172 = vunpack.c.l.b16 %v653
        %v2173 = vunpack.c.l.b16 %v654
        %v2174 = vunpack.c.h.b16 %v654
        %v2175 = vunpack.c.l.b16 %v655
        %v2176 = vunpack.c.l.b16 %v656
        %v2177 = vunpack.c.h.b16 %v656
        %v2178 = vunpack.c.l.b16 %v657
        %v2179 = vunpack.c.l.b16 %v658
        %v2180 = vunpack.c.h.b16 %v658
        %v2181 = vunpack.c.l.b16 %v659
        %v2182 = vunpack.c.l.b16 %v660
        %v2183 = vunpack.c.h.b16 %v660
        %v2184 = vunpack.c.l.b16 %v661
        %v2185 = vunpack.c.l.b16 %v662
        %v2186 = vunpack.c.h.b16 %v662
        %v2187 = vunpack.c.l.b16 %v663
        %v2188 = vunpack.c.l.b16 %v664
        %v2189 = vunpack.c.h.b16 %v664
        %v2190 = vunpack.c.l.b16 %v665
        %v2191 = vunpack.c.l.b16 %v666
        %v2192 = vunpack.c.h.b16 %v666
        %v2193 = vunpack.c.l.b16 %v667
        %v2194 = vunpack.c.l.b16 %v668
        %v2195 = vunpack.c.h.b16 %v668
        %v2196 = vunpack.c.l.b16 %v669
        %v2197 = vunpack.c.l.b16 %v670
        %v2198 = vunpack.c.h.b16 %v670
        %v2199 = vunpack.c.l.b16 %v671
        %v2200 = vunpack.c.l.b16 %v672
        %v2201 = vunpack.c.h.b16 %v672
        %v2202 = vunpack.c.l.b16 %v673
        %v2203 = vunpack.c.l.b16 %v674
        %v2204 = vunpack.c.h.b16 %v674
        %v2205 = vunpack.c.l.b16 %v675
        %v2206 = vunpack.c.l.b16 %v676
        %v2207 = vunpack.c.h.b16 %v676
        %v2208 = vunpack.c.l.b16 %v677
        %v2209 = vunpack.c.l.b16 %v678
        %v2210 = vunpack.c.h.b16 %v678
        %v2211 = vunpack.c.l.b16 %v679
        %v2212 = vunpack.c.l.b16 %v680
        %v2213 = vunpack.c.h.b16 %v680
        %v2214 = vunpack.c.l.b16 %v681
        %v2215 = vunpack.c.l.b16 %v682
        %v2216 = vunpack.c.h.b16 %v682
        %v2217 = vunpack.c.l.b16 %v683
        %v2218 = vunpack.c.l.b16 %v684
        %v2219 = vunpack.c.h.b16 %v684
        %v2220 = vunpack.c.l.b16 %v685
        %v2221 = vunpack.c.l.b16 %v686
        %v2222 = vunpack.c.h.b16 %v686
        %v2223 = vunpack.c.l.b16 %v687
        %v2224 = vunpack.c.l.b16 %v688
        %v2225 = vunpack.c.h.b16 %v688
        %v2226 = vunpack.c.l.b16 %v689
        %v2227 = vunpack.c.l.b16 %v690
        %v2228 = vunpack.c.h.b16 %v690
        %v2229 = vunpack.c.l.b16 %v691
        %v2230 = vunpack.c.l.b16 %v692
        %v2231 = vunpack.c.h.b16 %v692
        %v2232 = vunpack.c.l.b16 %v693
        %v2233 = vunpack.c.l.b16 %v694
        %v2234 = vunpack.c.h.b16 %v694
        %v2235 = vunpack.c.l.b16 %v695
        %v2236 = vunpack.c.l.b16 %v696
        %v2237 = vunpack.c.h.b16 %v696
        %v2238 = vunpack.c.l.b16 %v697
        %v2239 = vunpack.c.l.b16 %v698
        %v2240 = vunpack.c.h.b16 %v698
        %v2241 = vunpack.c.l.b16 %v699
        %v2242 = vunpack.c.l.b16 %v700
        %v2243 = vunpack.c.h.b16 %v700
        %v2244 = vunpack.c.l.b16 %v701
        %v2245 = vunpack.c.l.b16 %v702
        %v2246 = vunpack.c.h.b16 %v702
        %v2247 = vunpack.c.l.b16 %v703
        %v2248 = vunpack.c.l.b16 %v704
        %v2249 = vunpack.c.h.b16 %v704
        %v2250 = vunpack.c.l.b16 %v705
        %v2251 = vunpack.c.l.b16 %v706
        %v2252 = vunpack.c.h.b16 %v706
        %v2253 = vunpack.c.l.b16 %v707
        %v2254 = vunpack.c.l.b16 %v708
        %v2255 = vunpack.c.h.b16 %v708
        %v2256 = vunpack.c.l.b16 %v709
        %v2257 = vunpack.c.l.b16 %v710
        %v2258 = vunpack.c.h.b16 %v710
        %v2259 = vunpack.c.l.b16 %v711
        %v2260 = vunpack.c.l.b16 %v712
        %v2261 = vunpack.c.h.b16 %v712
        %v2262 = vunpack.c.l.b16 %v713
        %v2263 = vunpack.c.l.b16 %v714
        %v2264 = vunpack.c.h.b16 %v714
        %v2265 = vunpack.c.l.b16 %v715
        %v2266 = vunpack.c.l.b16 %v716
        %v2267 = vunpack.c.h.b16 %v716
        %v2268 = vunpack.c.l.b16 %v717
        %v2269 = vunpack.c.l.b16 %v718
        %v2270 = vunpack.c.h.b16 %v718
        %v2271 = vunpack.c.l.b16 %v719
        %v2272 = vunpack.c.l.b16 %v720
        %v2273 = vunpack.c.h.b16 %v720
        %v2274 = vunpack.c.l.b16 %v721
        %v2275 = vunpack.c.l.b16 %v722
        %v2276 = vunpack.c.h.b16 %v722
        %v2277 = vunpack.c.l.b16 %v723
        %v2278 = vunpack.c.l.b16 %v724
        %v2279 = vunpack.c.h.b16 %v724
        %v2280 = vunpack.c.l.b16 %v725
        %v2281 = vunpack.c.l.b16 %v726
        %v2282 = vunpack.c.h.b16 %v726
        %v2283 = vunpack.c.l.b16 %v727
        %v2284 = vunpack.c.l.b16 %v728
        %v2285 = vunpack.c.h.b16 %v728
        %v2286 = vunpack.c.l.b16 %v729
        %v2287 = vunpack.c.l.b16 %v730
        %v2288 = vunpack.c.h.b16 %v730
        %v2289 = vunpack.c.l.b16 %v731
        %v2290 = vunpack.c.l.b16 %v732
        %v2291 = vunpack.c.h.b16 %v732
        %v2292 = vunpack.c.l.b16 %v733
        %v2293 = vunpack.c.l.b16 %v734
        %v2294 = vunpack.c.h.b16 %v734
        %v2295 = vunpack.c.l.b16 %v735
        %v2296 = vunpack.c.l.b16 %v736
        %v2297 = vunpack.c.h.b16 %v736
        %v2298 = vunpack.c.l.b16 %v737
        %v2299 = vunpack.c.l.b16 %v738
        %v2300 = vunpack.c.h.b16 %v738
        %v2301 = vunpack.c.l.b16 %v739
        %v2302 = vunpack.c.l.b16 %v740
        %v2303 = vunpack.c.h.b16 %v740
        %v2304 = vunpack.c.l.b16 %v741
        %v2305 = vunpack.c.l.b16 %v742
        %v2306 = vunpack.c.h.b16 %v742
        %v2307 = vunpack.c.l.b16 %v743
        %v2308 = vunpack.c.l.b16 %v744
        %v2309 = vunpack.c.h.b16 %v744
        %v2310 = vunpack.c.l.b16 %v745
        %v2311 = vunpack.c.l.b16 %v746
        %v2312 = vunpack.c.h.b16 %v746
        %v2313 = vunpack.c.l.b16 %v747
        %v2314 = vunpack.c.l.b16 %v748
        %v2315 = vunpack.c.h.b16 %v748
        %v2316 = vunpack.c.l.b16 %v749
        %v2317 = vunpack.c.l.b16 %v750
        %v2318 = vunpack.c.h.b16 %v750
        %v2319 = vunpack.c.l.b16 %v751
        %v2320 = vunpack.c.l.b16 %v752
        %v2321 = vunpack.c.h.b16 %v752
        %v2322 = vunpack.c.l.b16 %v753
        %v2323 = vunpack.c.l.b16 %v754
        %v2324 = vunpack.c.h.b16 %v754
        %v2325 = vunpack.c.l.b16 %v755
        %v2326 = vunpack.c.l.b16 %v756
        %v2327 = vunpack.c.h.b16 %v756
        %v2328 = vunpack.c.l.b16 %v757
        %v2329 = vunpack.c.l.b16 %v758
        %v2330 = vunpack.c.h.b16 %v758
        %v2331 = vunpack.c.l.b16 %v759
        %v2332 = vunpack.c.l.b16 %v760
        %v2333 = vunpack.c.h.b16 %v760
        %v2334 = vunpack.c.l.b16 %v761
        %v2335 = vunpack.c.l.b16 %v762
        %v2336 = vunpack.c.h.b16 %v762
        %v2337 = vunpack.c.l.b16 %v763
        %v2338 = vunpack.c.l.b16 %v764
        %v2339 = vunpack.c.h.b16 %v764
        %v2340 = vunpack.c.l.b16 %v765
        %v2341 = vunpack.c.l.b16 %v766
        %v2342 = vunpack.c.h.b16 %v766
        %v2343 = vunpack.c.l.b16 %v767
        %v2344 = vunpack.c.l.b16 %v768
        %v2345 = vunpack.c.h.b16 %v768
        %v2346 = vunpack.c.l.b16 %v769
        %v2347 = vunpack.c.l.b16 %v770
        %v2348 = vunpack.c.h.b16 %v770
        %v2349 = vunpack.c.l.b16 %v771
        %v2350 = vunpack.c.l.b16 %v772
        %v2351 = vunpack.c.h.b16 %v772
        %v2352 = vunpack.c.l.b16 %v773
        %v2353 = vunpack.c.l.b16 %v774
        %v2354 = vunpack.c.h.b16 %v774
        %v2355 = vunpack.c.l.b16 %v775
        %v2356 = vunpack.c.l.b16 %v776
        %v2357 = vunpack.c.h.b16 %v776
        %v2358 = vunpack.c.l.b16 %v777
        %v2359 = vunpack.c.l.b16 %v778
        %v2360 = vunpack.c.h.b16 %v778
        %v2361 = vunpack.c.l.b16 %v779
        %v2362 = vunpack.c.l.b16 %v780
        %v2363 = vunpack.c.h.b16 %v780
        %v2364 = vunpack.c.l.b16 %v781
        %v2365 = vunpack.c.l.b16 %v782
        %v2366 = vunpack.c.h.b16 %v782
        %v2367 = vunpack.c.l.b16 %v783
        %v2368 = vunpack.c.l.b16 %v784
        %v2369 = vunpack.c.h.b16 %v784
        %v2370 = vunpack.c.l.b16 %v785
        %v2371 = vunpack.c.l.b16 %v786
        %v2372 = vunpack.c.h.b16 %v786
        %v2373 = vunpack.c.l.b16 %v787
        %v2374 = vunpack.c.l.b16 %v788
        %v2375 = vunpack.c.h.b16 %v788
        %v2376 = vunpack.c.l.b16 %v789
        %v2377 = vunpack.c.l.b16 %v790
        %v2378 = vunpack.c.h.b16 %v790
        %v2379 = vunpack.c.l.b16 %v791
        %v2380 = vunpack.c.l.b16 %v792
        %v2381 = vunpack.c.h.b16 %v792
        %v2382 = vunpack.c.l.b16 %v793
        %v2383 = vunpack.c.l.b16 %v794
        %v2384 = vunpack.c.h.b16 %v794
        %v2385 = vunpack.c.l.b16 %v795
        %v2386 = vunpack.c.l.b16 %v796
        %v2387 = vunpack.c.h.b16 %v796
        %v2388 = vunpack.c.l.b16 %v797
        %v2389 = vunpack.c.l.b16 %v798
        %v2390 = vunpack.c.h.b16 %v798
        %v2391 = vunpack.c.l.b16 %v799
        %v2392 = vunpack.c.l.b16 %v800
        %v2393 = vunpack.c.h.b16 %v800
        %v2394 = vunpack.c.l.b16 %v801
        %v2395 = vunpack.c.l.b16 %v802
        %v2396 = vunpack.c.h.b16 %v802
        %v2397 = vunpack.c.l.b16 %v803
        %v2398 = vunpack.c.l.b16 %v804
        %v2399 = vunpack.c.h.b16 %v804
        %v2400 = vunpack.c.l.b16 %v805
        %v2401 = vunpack.c.l.b16 %v806
        %v2402 = vunpack.c.h.b16 %v806
        %v2403 = vunpack.c.l.b16 %v807
        %v2404 = vunpack.c.l.b16 %v808
        %v2405 = vunpack.c.h.b16 %v808
        %v2406 = vunpack.c.l.b16 %v809
        %v2407 = vunpack.c.l.b16 %v810
        %v2408 = vunpack.c.h.b16 %v810
        %v2409 = vunpack.c.l.b16 %v811
        %v2410 = vpack.c.b16 %v1549, %v1546
        %v2411 = vpack.c.b16 %v1550, %v1547
        %v2412 = vpack.c.b16 %v1551, %v1548
        %v2413 = vpack.c.b16 %v1555, %v1552
        %v2414 = vpack.c.b16 %v1556, %v1553
        %v2415 = vpack.c.b16 %v1557, %v1554
        %v2416 = vpack.c.b16 %v1561, %v1558
        %v2417 = vpack.c.b16 %v1562, %v1559
        %v2418 = vpack.c.b16 %v1563, %v1560
        %v2419 = vpack.c.b16 %v1567, %v1564
        %v2420 = vpack.c.b16 %v1568, %v1565
        %v2421 = vpack.c.b16 %v1569, %v1566
        %v2422 = vpack.c.b16 %v1573, %v1570
        %v2423 = vpack.c.b16 %v1574, %v1571
        %v2424 = vpack.c.b16 %v1575, %v1572
        %v2425 = vpack.c.b16 %v1579, %v1576
        %v2426 = vpack.c.b16 %v1580, %v1577
        %v2427 = vpack.c.b16 %v1581, %v1578
        %v2428 = vpack.c.b16 %v1585, %v1582
        %v2429 = vpack.c.b16 %v1586, %v1583
        %v2430 = vpack.c.b16 %v1587, %v1584
        %v2431 = vpack.c.b16 %v1591, %v1588
        %v2432 = vpack.c.b16 %v1592, %v1589
        %v2433 = vpack.c.b16 %v1593, %v1590
        %v2434 = vpack.c.b16 %v1597, %v1594
        %v2435 = vpack.c.b16 %v1598, %v1595
        %v2436 = vpack.c.b16 %v1599, %v1596
        %v2437 = vpack.c.b16 %v1603, %v1600
        %v2438 = vpack.c.b16 %v1604, %v1601
        %v2439 = vpack.c.b16 %v1605, %v1602
        %v2440 = vpack.c.b16 %v1609, %v1606
        %v2441 = vpack.c.b16 %v1610, %v1607
        %v2442 = vpack.c.b16 %v1611, %v1608
        %v2443 = vpack.c.b16 %v1615, %v1612
        %v2444 = vpack.c.b16 %v1616, %v1613
        %v2445 = vpack.c.b16 %v1617, %v1614
        %v2446 = vpack.c.b16 %v1621, %v1618
        %v2447 = vpack.c.b16 %v1622, %v1619
        %v2448 = vpack.c.b16 %v1623, %v1620
        %v2449 = vpack.c.b16 %v1627, %v1624
        %v2450 = vpack.c.b16 %v1628, %v1625
        %v2451 = vpack.c.b16 %v1629, %v1626
        %v2452 = vpack.c.b16 %v1633, %v1630
        %v2453 = vpack.c.b16 %v1634, %v1631
        %v2454 = vpack.c.b16 %v1635, %v1632
        %v2455 = vpack.c.b16 %v1639, %v1636
        %v2456 = vpack.c.b16 %v1640, %v1637
        %v2457 = vpack.c.b16 %v1641, %v1638
        %v2458 = vpack.c.b16 %v1645, %v1642
        %v2459 = vpack.c.b16 %v1646, %v1643
        %v2460 = vpack.c.b16 %v1647, %v1644
        %v2461 = vpack.c.b16 %v1651, %v1648
        %v2462 = vpack.c.b16 %v1652, %v1649
        %v2463 = vpack.c.b16 %v1653, %v1650
        %v2464 = vpack.c.b16 %v1657, %v1654
        %v2465 = vpack.c.b16 %v1658, %v1655
        %v2466 = vpack.c.b16 %v1659, %v1656
        %v2467 = vpack.c.b16 %v1663, %v1660
        %v2468 = vpack.c.b16 %v1664, %v1661
        %v2469 = vpack.c.b16 %v1665, %v1662
        %v2470 = vpack.c.b16 %v1669, %v1666
        %v2471 = vpack.c.b16 %v1670, %v1667
        %v2472 = vpack.c.b16 %v1671, %v1668
        %v2473 = vpack.c.b16 %v1675, %v1672
        %v2474 = vpack.c.b16 %v1676, %v1673
        %v2475 = vpack.c.b16 %v1677, %v1674
        %v2476 = vpack.c.b16 %v1681, %v1678
        %v2477 = vpack.c.b16 %v1682, %v1679
        %v2478 = vpack.c.b16 %v1683, %v1680
        %v2479 = vpack.c.b16 %v1687, %v1684
        %v2480 = vpack.c.b16 %v1688, %v1685
        %v2481 = vpack.c.b16 %v1689, %v1686
        %v2482 = vpack.c.b16 %v1693, %v1690
        %v2483 = vpack.c.b16 %v1694, %v1691
        %v2484 = vpack.c.b16 %v1695, %v1692
        %v2485 = vpack.c.b16 %v1699, %v1696
        %v2486 = vpack.c.b16 %v1700, %v1697
        %v2487 = vpack.c.b16 %v1701, %v1698
        %v2488 = vpack.c.b16 %v1705, %v1702
        %v2489 = vpack.c.b16 %v1706, %v1703
        %v2490 = vpack.c.b16 %v1707, %v1704
        %v2491 = vpack.c.b16 %v1711, %v1708
        %v2492 = vpack.c.b16 %v1712, %v1709
        %v2493 = vpack.c.b16 %v1713, %v1710
        %v2494 = vpack.c.b16 %v1717, %v1714
        %v2495 = vpack.c.b16 %v1718, %v1715
        %v2496 = vpack.c.b16 %v1719, %v1716
        %v2497 = vpack.c.b16 %v1723, %v1720
        %v2498 = vpack.c.b16 %v1724, %v1721
        %v2499 = vpack.c.b16 %v1725, %v1722
        %v2500 = vpack.c.b16 %v1729, %v1726
        %v2501 = vpack.c.b16 %v1730, %v1727
        %v2502 = vpack.c.b16 %v1731, %v1728
        %v2503 = vpack.c.b16 %v1735, %v1732
        %v2504 = vpack.c.b16 %v1736, %v1733
        %v2505 = vpack.c.b16 %v1737, %v1734
        %v2506 = vpack.c.b16 %v1741, %v1738
        %v2507 = vpack.c.b16 %v1742, %v1739
        %v2508 = vpack.c.b16 %v1743, %v1740
        %v2509 = vpack.c.b16 %v1747, %v1744
        %v2510 = vpack.c.b16 %v1748, %v1745
        %v2511 = vpack.c.b16 %v1749, %v1746
        %v2512 = vpack.c.b16 %v1753, %v1750
        %v2513 = vpack.c.b16 %v1754, %v1751
        %v2514 = vpack.c.b16 %v1755, %v1752
        %v2515 = vpack.c.b16 %v1759, %v1756
        %v2516 = vpack.c.b16 %v1760, %v1757
        %v2517 = vpack.c.b16 %v1761, %v1758
        %v2518 = vpack.c.b16 %v1765, %v1762
        %v2519 = vpack.c.b16 %v1766, %v1763
        %v2520 = vpack.c.b16 %v1767, %v1764
        %v2521 = vpack.c.b16 %v1771, %v1768
        %v2522 = vpack.c.b16 %v1772, %v1769
        %v2523 = vpack.c.b16 %v1773, %v1770
        %v2524 = vpack.c.b16 %v1777, %v1774
        %v2525 = vpack.c.b16 %v1778, %v1775
        %v2526 = vpack.c.b16 %v1779, %v1776
        %v2527 = vpack.c.b16 %v1783, %v1780
        %v2528 = vpack.c.b16 %v1784, %v1781
        %v2529 = vpack.c.b16 %v1785, %v1782
        %v2530 = vpack.c.b16 %v1789, %v1786
        %v2531 = vpack.c.b16 %v1790, %v1787
        %v2532 = vpack.c.b16 %v1791, %v1788
        %v2533 = vpack.c.b16 %v1795, %v1792
        %v2534 = vpack.c.b16 %v1796, %v1793
        %v2535 = vpack.c.b16 %v1797, %v1794
        %v2536 = vpack.c.b16 %v1801, %v1798
        %v2537 = vpack.c.b16 %v1802, %v1799
        %v2538 = vpack.c.b16 %v1803, %v1800
        %v2539 = vpack.c.b16 %v1807, %v1804
        %v2540 = vpack.c.b16 %v1808, %v1805
        %v2541 = vpack.c.b16 %v1809, %v1806
        %v2542 = vpack.c.b16 %v1813, %v1810
        %v2543 = vpack.c.b16 %v1814, %v1811
        %v2544 = vpack.c.b16 %v1815, %v1812
        %v2545 = vpack.c.b16 %v1819, %v1816
        %v2546 = vpack.c.b16 %v1820, %v1817
        %v2547 = vpack.c.b16 %v1821, %v1818
        %v2548 = vpack.c.b16 %v1825, %v1822
        %v2549 = vpack.c.b16 %v1826, %v1823
        %v2550 = vpack.c.b16 %v1827, %v1824
        %v2551 = vpack.c.b16 %v1831, %v1828
        %v2552 = vpack.c.b16 %v1832, %v1829
        %v2553 = vpack.c.b16 %v1833, %v1830
        %v2554 = vpack.c.b16 %v1837, %v1834
        %v2555 = vpack.c.b16 %v1838, %v1835
        %v2556 = vpack.c.b16 %v1839, %v1836
        %v2557 = vpack.c.b16 %v1843, %v1840
        %v2558 = vpack.c.b16 %v1844, %v1841
        %v2559 = vpack.c.b16 %v1845, %v1842
        %v2560 = vpack.c.b16 %v1849, %v1846
        %v2561 = vpack.c.b16 %v1850, %v1847
        %v2562 = vpack.c.b16 %v1851, %v1848
        %v2563 = vpack.c.b16 %v1855, %v1852
        %v2564 = vpack.c.b16 %v1856, %v1853
        %v2565 = vpack.c.b16 %v1857, %v1854
        %v2566 = vpack.c.b16 %v1861, %v1858
        %v2567 = vpack.c.b16 %v1862, %v1859
        %v2568 = vpack.c.b16 %v1863, %v1860
        %v2569 = vpack.c.b16 %v1867, %v1864
        %v2570 = vpack.c.b16 %v1868, %v1865
        %v2571 = vpack.c.b16 %v1869, %v1866
        %v2572 = vpack.c.b16 %v1873, %v1870
        %v2573 = vpack.c.b16 %v1874, %v1871
        %v2574 = vpack.c.b16 %v1875, %v1872
        %v2575 = vpack.c.b16 %v1879, %v1876
        %v2576 = vpack.c.b16 %v1880, %v1877
        %v2577 = vpack.c.b16 %v1881, %v1878
        %v2578 = vpack.c.b16 %v1885, %v1882
        %v2579 = vpack.c.b16 %v1886, %v1883
        %v2580 = vpack.c.b16 %v1887, %v1884
        %v2581 = vpack.c.b16 %v1891, %v1888
        %v2582 = vpack.c.b16 %v1892, %v1889
        %v2583 = vpack.c.b16 %v1893, %v1890
        %v2584 = vpack.c.b16 %v1897, %v1894
        %v2585 = vpack.c.b16 %v1898, %v1895
        %v2586 = vpack.c.b16 %v1899, %v1896
        %v2587 = vpack.c.b16 %v1903, %v1900
        %v2588 = vpack.c.b16 %v1904, %v1901
        %v2589 = vpack.c.b16 %v1905, %v1902
        %v2590 = vpack.c.b16 %v1909, %v1906
        %v2591 = vpack.c.b16 %v1910, %v1907
        %v2592 = vpack.c.b16 %v1911, %v1908
        %v2593 = vpack.c.b16 %v1915, %v1912
        %v2594 = vpack.c.b16 %v1916, %v1913
        %v2595 = vpack.c.b16 %v1917, %v1914
        %v2596 = vpack.c.b16 %v1921, %v1918
        %v2597 = vpack.c.b16 %v1922, %v1919
        %v2598 = vpack.c.b16 %v1923, %v1920
        %v2599 = vpack.c.b16 %v1927, %v1924
        %v2600 = vpack.c.b16 %v1928, %v1925
        %v2601 = vpack.c.b16 %v1929, %v1926
        %v2602 = vpack.c.b16 %v1933, %v1930
        %v2603 = vpack.c.b16 %v1934, %v1931
        %v2604 = vpack.c.b16 %v1935, %v1932
        %v2605 = vpack.c.b16 %v1939, %v1936
        %v2606 = vpack.c.b16 %v1940, %v1937
        %v2607 = vpack.c.b16 %v1941, %v1938
        %v2608 = vpack.c.b16 %v1945, %v1942
        %v2609 = vpack.c.b16 %v1946, %v1943
        %v2610 = vpack.c.b16 %v1947, %v1944
        %v2611 = vpack.c.b16 %v1951, %v1948
        %v2612 = vpack.c.b16 %v1952, %v1949
        %v2613 = vpack.c.b16 %v1953, %v1950
        %v2614 = vpack.c.b16 %v1957, %v1954
        %v2615 = vpack.c.b16 %v1958, %v1955
        %v2616 = vpack.c.b16 %v1959, %v1956
        %v2617 = vpack.c.b16 %v1963, %v1960
        %v2618 = vpack.c.b16 %v1964, %v1961
        %v2619 = vpack.c.b16 %v1965, %v1962
        %v2620 = vpack.c.b16 %v1969, %v1966
        %v2621 = vpack.c.b16 %v1970, %v1967
        %v2622 = vpack.c.b16 %v1971, %v1968
        %v2623 = vpack.c.b16 %v1975, %v1972
        %v2624 = vpack.c.b16 %v1976, %v1973
        %v2625 = vpack.c.b16 %v1977, %v1974
        %v2626 = vpack.c.b16 %v1981, %v1978
        %v2627 = vpack.c.b16 %v1982, %v1979
        %v2628 = vpack.c.b16 %v1983, %v1980
        %v2629 = vpack.c.b16 %v1987, %v1984
        %v2630 = vpack.c.b16 %v1988, %v1985
        %v2631 = vpack.c.b16 %v1989, %v1986
        %v2632 = vpack.c.b16 %v1993, %v1990
        %v2633 = vpack.c.b16 %v1994, %v1991
        %v2634 = vpack.c.b16 %v1995, %v1992
        %v2635 = vpack.c.b16 %v1999, %v1996
        %v2636 = vpack.c.b16 %v2000, %v1997
        %v2637 = vpack.c.b16 %v2001, %v1998
        %v2638 = vpack.c.b16 %v2005, %v2002
        %v2639 = vpack.c.b16 %v2006, %v2003
        %v2640 = vpack.c.b16 %v2007, %v2004
        %v2641 = vpack.c.b16 %v2011, %v2008
        %v2642 = vpack.c.b16 %v2012, %v2009
        %v2643 = vpack.c.b16 %v2013, %v2010
        %v2644 = vpack.c.b16 %v2017, %v2014
        %v2645 = vpack.c.b16 %v2018, %v2015
        %v2646 = vpack.c.b16 %v2019, %v2016
        %v2647 = vpack.c.b16 %v2023, %v2020
        %v2648 = vpack.c.b16 %v2024, %v2021
        %v2649 = vpack.c.b16 %v2025, %v2022
        %v2650 = vpack.c.b16 %v2029, %v2026
        %v2651 = vpack.c.b16 %v2030, %v2027
        %v2652 = vpack.c.b16 %v2031, %v2028
        %v2653 = vpack.c.b16 %v2035, %v2032
        %v2654 = vpack.c.b16 %v2036, %v2033
        %v2655 = vpack.c.b16 %v2037, %v2034
        %v2656 = vpack.c.b16 %v2041, %v2038
        %v2657 = vpack.c.b16 %v2042, %v2039
        %v2658 = vpack.c.b16 %v2043, %v2040
        %v2659 = vpack.c.b16 %v2047, %v2044
        %v2660 = vpack.c.b16 %v2048, %v2045
        %v2661 = vpack.c.b16 %v2049, %v2046
        %v2662 = vpack.c.b16 %v2053, %v2050
        %v2663 = vpack.c.b16 %v2054, %v2051
        %v2664 = vpack.c.b16 %v2055, %v2052
        %v2665 = vpack.c.b16 %v2059, %v2056
        %v2666 = vpack.c.b16 %v2060, %v2057
        %v2667 = vpack.c.b16 %v2061, %v2058
        %v2668 = vpack.c.b16 %v2065, %v2062
        %v2669 = vpack.c.b16 %v2066, %v2063
        %v2670 = vpack.c.b16 %v2067, %v2064
        %v2671 = vpack.c.b16 %v2071, %v2068
        %v2672 = vpack.c.b16 %v2072, %v2069
        %v2673 = vpack.c.b16 %v2073, %v2070
        %v2674 = vpack.c.b16 %v2077, %v2074
        %v2675 = vpack.c.b16 %v2078, %v2075
        %v2676 = vpack.c.b16 %v2079, %v2076
        %v2677 = vpack.c.b16 %v2083, %v2080
        %v2678 = vpack.c.b16 %v2084, %v2081
        %v2679 = vpack.c.b16 %v2085, %v2082
        %v2680 = vpack.c.b16 %v2089, %v2086
        %v2681 = vpack.c.b16 %v2090, %v2087
        %v2682 = vpack.c.b16 %v2091, %v2088
        %v2683 = vpack.c.b16 %v2095, %v2092
        %v2684 = vpack.c.b16 %v2096, %v2093
        %v2685 = vpack.c.b16 %v2097, %v2094
        %v2686 = vpack.c.b16 %v2101, %v2098
        %v2687 = vpack.c.b16 %v2102, %v2099
        %v2688 = vpack.c.b16 %v2103, %v2100
        %v2689 = vpack.c.b16 %v2107, %v2104
        %v2690 = vpack.c.b16 %v2108, %v2105
        %v2691 = vpack.c.b16 %v2109, %v2106
        %v2692 = vpack.c.b16 %v2113, %v2110
        %v2693 = vpack.c.b16 %v2114, %v2111
        %v2694 = vpack.c.b16 %v2115, %v2112
        %v2695 = vpack.c.b16 %v2119, %v2116
        %v2696 = vpack.c.b16 %v2120, %v2117
        %v2697 = vpack.c.b16 %v2121, %v2118
        %v2698 = vpack.c.b16 %v2125, %v2122
        %v2699 = vpack.c.b16 %v2126, %v2123
        %v2700 = vpack.c.b16 %v2127, %v2124
        %v2701 = vpack.c.b16 %v2131, %v2128
        %v2702 = vpack.c.b16 %v2132, %v2129
        %v2703 = vpack.c.b16 %v2133, %v2130
        %v2704 = vpack.c.b16 %v2137, %v2134
        %v2705 = vpack.c.b16 %v2138, %v2135
        %v2706 = vpack.c.b16 %v2139, %v2136
        %v2707 = vpack.c.b16 %v2143, %v2140
        %v2708 = vpack.c.b16 %v2144, %v2141
        %v2709 = vpack.c.b16 %v2145, %v2142
        %v2710 = vpack.c.b16 %v2149, %v2146
        %v2711 = vpack.c.b16 %v2150, %v2147
        %v2712 = vpack.c.b16 %v2151, %v2148
        %v2713 = vpack.c.b16 %v2155, %v2152
        %v2714 = vpack.c.b16 %v2156, %v2153
        %v2715 = vpack.c.b16 %v2157, %v2154
        %v2716 = vpack.c.b16 %v2161, %v2158
        %v2717 = vpack.c.b16 %v2162, %v2159
        %v2718 = vpack.c.b16 %v2163, %v2160
        %v2719 = vpack.c.b16 %v2167, %v2164
        %v2720 = vpack.c.b16 %v2168, %v2165
        %v2721 = vpack.c.b16 %v2169, %v2166
        %v2722 = vpack.c.b16 %v2173, %v2170
        %v2723 = vpack.c.b16 %v2174, %v2171
        %v2724 = vpack.c.b16 %v2175, %v2172
        %v2725 = vpack.c.b16 %v2179, %v2176
        %v2726 = vpack.c.b16 %v2180, %v2177
        %v2727 = vpack.c.b16 %v2181, %v2178
        %v2728 = vpack.c.b16 %v2185, %v2182
        %v2729 = vpack.c.b16 %v2186, %v2183
        %v2730 = vpack.c.b16 %v2187, %v2184
        %v2731 = vpack.c.b16 %v2191, %v2188
        %v2732 = vpack.c.b16 %v2192, %v2189
        %v2733 = vpack.c.b16 %v2193, %v2190
        %v2734 = vpack.c.b16 %v2197, %v2194
        %v2735 = vpack.c.b16 %v2198, %v2195
        %v2736 = vpack.c.b16 %v2199, %v2196
        %v2737 = vpack.c.b16 %v2203, %v2200
        %v2738 = vpack.c.b16 %v2204, %v2201
        %v2739 = vpack.c.b16 %v2205, %v2202
        %v2740 = vpack.c.b16 %v2209, %v2206
        %v2741 = vpack.c.b16 %v2210, %v2207
        %v2742 = vpack.c.b16 %v2211, %v2208
        %v2743 = vpack.c.b16 %v2215, %v2212
        %v2744 = vpack.c.b16 %v2216, %v2213
        %v2745 = vpack.c.b16 %v2217, %v2214
        %v2746 = vpack.c.b16 %v2221, %v2218
        %v2747 = vpack.c.b16 %v2222, %v2219
        %v2748 = vpack.c.b16 %v2223, %v2220
        %v2749 = vpack.c.b16 %v2227, %v2224
        %v2750 = vpack.c.b16 %v2228, %v2225
        %v2751 = vpack.c.b16 %v2229, %v2226
        %v2752 = vpack.c.b16 %v2233, %v2230
        %v2753 = vpack.c.b16 %v2234, %v2231
        %v2754 = vpack.c.b16 %v2235, %v2232
        %v2755 = vpack.c.b16 %v2239, %v2236
        %v2756 = vpack.c.b16 %v2240, %v2237
        %v2757 = vpack.c.b16 %v2241, %v2238
        %v2758 = vpack.c.b16 %v2245, %v2242
        %v2759 = vpack.c.b16 %v2246, %v2243
        %v2760 = vpack.c.b16 %v2247, %v2244
        %v2761 = vpack.c.b16 %v2251, %v2248
        %v2762 = vpack.c.b16 %v2252, %v2249
        %v2763 = vpack.c.b16 %v2253, %v2250
        %v2764 = vpack.c.b16 %v2257, %v2254
        %v2765 = vpack.c.b16 %v2258, %v2255
        %v2766 = vpack.c.b16 %v2259, %v2256
        %v2767 = vpack.c.b16 %v2263, %v2260
        %v2768 = vpack.c.b16 %v2264, %v2261
        %v2769 = vpack.c.b16 %v2265, %v2262
        %v2770 = vpack.c.b16 %v2269, %v2266
        %v2771 = vpack.c.b16 %v2270, %v2267
        %v2772 = vpack.c.b16 %v2271, %v2268
        %v2773 = vpack.c.b16 %v2275, %v2272
        %v2774 = vpack.c.b16 %v2276, %v2273
        %v2775 = vpack.c.b16 %v2277, %v2274
        %v2776 = vpack.c.b16 %v2281, %v2278
        %v2777 = vpack.c.b16 %v2282, %v2279
        %v2778 = vpack.c.b16 %v2283, %v2280
        %v2779 = vpack.c.b16 %v2287, %v2284
        %v2780 = vpack.c.b16 %v2288, %v2285
        %v2781 = vpack.c.b16 %v2289, %v2286
        %v2782 = vpack.c.b16 %v2293, %v2290
        %v2783 = vpack.c.b16 %v2294, %v2291
        %v2784 = vpack.c.b16 %v2295, %v2292
        %v2785 = vpack.c.b16 %v2299, %v2296
        %v2786 = vpack.c.b16 %v2300, %v2297
        %v2787 = vpack.c.b16 %v2301, %v2298
        %v2788 = vpack.c.b16 %v2305, %v2302
        %v2789 = vpack.c.b16 %v2306, %v2303
        %v2790 = vpack.c.b16 %v2307, %v2304
        %v2791 = vpack.c.b16 %v2311, %v2308
        %v2792 = vpack.c.b16 %v2312, %v2309
        %v2793 = vpack.c.b16 %v2313, %v2310
        %v2794 = vpack.c.b16 %v2317, %v2314
        %v2795 = vpack.c.b16 %v2318, %v2315
        %v2796 = vpack.c.b16 %v2319, %v2316
        %v2797 = vpack.c.b16 %v2323, %v2320
        %v2798 = vpack.c.b16 %v2324, %v2321
        %v2799 = vpack.c.b16 %v2325, %v2322
        %v2800 = vpack.c.b16 %v2329, %v2326
        %v2801 = vpack.c.b16 %v2330, %v2327
        %v2802 = vpack.c.b16 %v2331, %v2328
        %v2803 = vpack.c.b16 %v2335, %v2332
        %v2804 = vpack.c.b16 %v2336, %v2333
        %v2805 = vpack.c.b16 %v2337, %v2334
        %v2806 = vpack.c.b16 %v2341, %v2338
        %v2807 = vpack.c.b16 %v2342, %v2339
        %v2808 = vpack.c.b16 %v2343, %v2340
        %v2809 = vpack.c.b16 %v2347, %v2344
        %v2810 = vpack.c.b16 %v2348, %v2345
        %v2811 = vpack.c.b16 %v2349, %v2346
        %v2812 = vpack.c.b16 %v2353, %v2350
        %v2813 = vpack.c.b16 %v2354, %v2351
        %v2814 = vpack.c.b16 %v2355, %v2352
        %v2815 = vpack.c.b16 %v2359, %v2356
        %v2816 = vpack.c.b16 %v2360, %v2357
        %v2817 = vpack.c.b16 %v2361, %v2358
        %v2818 = vpack.c.b16 %v2365, %v2362
        %v2819 = vpack.c.b16 %v2366, %v2363
        %v2820 = vpack.c.b16 %v2367, %v2364
        %v2821 = vpack.c.b16 %v2371, %v2368
        %v2822 = vpack.c.b16 %v2372, %v2369
        %v2823 = vpack.c.b16 %v2373, %v2370
        %v2824 = vpack.c.b16 %v2377, %v2374
        %v2825 = vpack.c.b16 %v2378, %v2375
        %v2826 = vpack.c.b16 %v2379, %v2376
        %v2827 = vpack.c.b16 %v2383, %v2380
        %v2828 = vpack.c.b16 %v2384, %v2381
        %v2829 = vpack.c.b16 %v2385, %v2382
        %v2830 = vpack.c.b16 %v2389, %v2386
        %v2831 = vpack.c.b16 %v2390, %v2387
        %v2832 = vpack.c.b16 %v2391, %v2388
        %v2833 = vpack.c.b16 %v2395, %v2392
        %v2834 = vpack.c.b16 %v2396, %v2393
        %v2835 = vpack.c.b16 %v2397, %v2394
        %v2836 = vpack.c.b16 %v2401, %v2398
        %v2837 = vpack.c.b16 %v2402, %v2399
        %v2838 = vpack.c.b16 %v2403, %v2400
        %v2839 = vpack.c.b16 %v2407, %v2404
        %v2840 = vpack.c.b16 %v2408, %v2405
        %v2841 = vpack.c.b16 %v2409, %v2406
        %3274 = vmatprep.subr.bf16.mxu0 %v2411
        %3275 = vmatpush1.bf16.msra.mxu0 %v2410
        %3276 = vmatprep.subr.bf16.mxu0 %v2414
        %3277 = vmatpush1.bf16.msra.mxu0 %v2413
        %3278 = vmatprep.subr.bf16.mxu0 %v2417
        %3279 = vmatpush1.bf16.msra.mxu0 %v2416
        %3280 = vmatprep.subr.bf16.mxu0 %v2420
        %3281 = vmatpush1.bf16.msra.mxu0 %v2419
        %3282 = vmatprep.subr.bf16.mxu0 %v2423
        %3283 = vmatpush1.bf16.msra.mxu0 %v2422
        %3284 = vmatprep.subr.bf16.mxu0 %v2426
        %3285 = vmatpush1.bf16.msra.mxu0 %v2425
        %3286 = vmatprep.subr.bf16.mxu0 %v2429
        %3287 = vmatpush1.bf16.msra.mxu0 %v2428
        %3288 = vmatprep.subr.bf16.mxu0 %v2432
        %3289 = vmatpush1.bf16.msra.mxu0 %v2431
        %3290 = vmatprep.subr.bf16.mxu0 %v2435
        %3291 = vmatpush1.bf16.msra.mxu0 %v2434
        %3292 = vmatprep.subr.bf16.mxu0 %v2438
        %3293 = vmatpush1.bf16.msra.mxu0 %v2437
        %3294 = vmatprep.subr.bf16.mxu0 %v2441
        %3295 = vmatpush1.bf16.msra.mxu0 %v2440
        %3296 = vmatprep.subr.bf16.mxu0 %v2444
        %3297 = vmatpush1.bf16.msra.mxu0 %v2443
        %3298 = vmatprep.subr.bf16.mxu0 %v2447
        %3299 = vmatpush1.bf16.msra.mxu0 %v2446
        %3300 = vmatprep.subr.bf16.mxu0 %v2450
        %3301 = vmatpush1.bf16.msra.mxu0 %v2449
        %3302 = vmatprep.subr.bf16.mxu0 %v2453
        %3303 = vmatpush1.bf16.msra.mxu0 %v2452
        %3304 = vmatprep.subr.bf16.mxu0 %v2456
        %3305 = vmatpush1.bf16.msra.mxu0 %v2455
        %3306 = vmatprep.mubr.bf16.mxu0 %v869
        %3307 = vmatmul.mubr.bf16.gmra.mrb[0].mxu0 %v855
        %v3308 = vpop.f32.mrb[0].mxu0
        %v3309 = vadd.f32 %v817, %v3308
        %v3310 = vpop.f32.mrb[0].mxu0
        %v3311 = vadd.f32 %v821, %v3310
        %v3312 = vpop.f32.mrb[0].mxu0
        %v3313 = vpop.f32.mrb[0].mxu0
        %3314 = vdwg.mxu0
        %3315 = vmatprep.subr.bf16.mxu0 %v2459
        %3316 = vmatpush1.bf16.msra.mxu0 %v2458
        %3317 = vmatprep.subr.bf16.mxu0 %v2462
        %3318 = vmatpush1.bf16.msra.mxu0 %v2461
        %3319 = vmatprep.subr.bf16.mxu0 %v2465
        %3320 = vmatpush1.bf16.msra.mxu0 %v2464
        %3321 = vmatprep.subr.bf16.mxu0 %v2468
        %3322 = vmatpush1.bf16.msra.mxu0 %v2467
        %3323 = vmatprep.subr.bf16.mxu0 %v2471
        %3324 = vmatpush1.bf16.msra.mxu0 %v2470
        %3325 = vmatprep.subr.bf16.mxu0 %v2474
        %3326 = vmatpush1.bf16.msra.mxu0 %v2473
        %3327 = vmatprep.subr.bf16.mxu0 %v2477
        %3328 = vmatpush1.bf16.msra.mxu0 %v2476
        %3329 = vmatprep.subr.bf16.mxu0 %v2480
        %3330 = vmatpush1.bf16.msra.mxu0 %v2479
        %3331 = vmatprep.subr.bf16.mxu0 %v2483
        %3332 = vmatpush1.bf16.msra.mxu0 %v2482
        %3333 = vmatprep.subr.bf16.mxu0 %v2486
        %3334 = vmatpush1.bf16.msra.mxu0 %v2485
        %3335 = vmatprep.subr.bf16.mxu0 %v2489
        %3336 = vmatpush1.bf16.msra.mxu0 %v2488
        %3337 = vmatprep.subr.bf16.mxu0 %v2492
        %3338 = vmatpush1.bf16.msra.mxu0 %v2491
        %3339 = vmatprep.subr.bf16.mxu0 %v2495
        %3340 = vmatpush1.bf16.msra.mxu0 %v2494
        %3341 = vmatprep.subr.bf16.mxu0 %v2498
        %3342 = vmatpush1.bf16.msra.mxu0 %v2497
        %3343 = vmatprep.subr.bf16.mxu0 %v2501
        %3344 = vmatpush1.bf16.msra.mxu0 %v2500
        %3345 = vmatprep.subr.bf16.mxu0 %v2504
        %3346 = vmatpush1.bf16.msra.mxu0 %v2503
        %3347 = vmatprep.mubr.bf16.mxu0 %v879
        %3348 = vmatmul.mubr.bf16.gmra.mrb[0].mxu0 %v877
        %v3349 = vpop.f32.mrb[0].mxu0
        %v3350 = vadd.f32 %v3309, %v3349
        %v3351 = vpop.f32.mrb[0].mxu0
        %v3352 = vadd.f32 %v3311, %v3351
        %v3353 = vpop.f32.mrb[0].mxu0
        %v3354 = vpop.f32.mrb[0].mxu0
        %3355 = vdwg.mxu0
        %3356 = vmatprep.subr.bf16.mxu0 %v2507
        %3357 = vmatpush1.bf16.msra.mxu0 %v2506
        %3358 = vmatprep.subr.bf16.mxu0 %v2510
        %3359 = vmatpush1.bf16.msra.mxu0 %v2509
        %3360 = vmatprep.subr.bf16.mxu0 %v2513
        %3361 = vmatpush1.bf16.msra.mxu0 %v2512
        %3362 = vmatprep.subr.bf16.mxu0 %v2516
        %3363 = vmatpush1.bf16.msra.mxu0 %v2515
        %3364 = vmatprep.subr.bf16.mxu0 %v2519
        %3365 = vmatpush1.bf16.msra.mxu0 %v2518
        %3366 = vmatprep.subr.bf16.mxu0 %v2522
        %3367 = vmatpush1.bf16.msra.mxu0 %v2521
        %3368 = vmatprep.subr.bf16.mxu0 %v2525
        %3369 = vmatpush1.bf16.msra.mxu0 %v2524
        %3370 = vmatprep.subr.bf16.mxu0 %v2528
        %3371 = vmatpush1.bf16.msra.mxu0 %v2527
        %3372 = vmatprep.subr.bf16.mxu0 %v2531
        %3373 = vmatpush1.bf16.msra.mxu0 %v2530
        %3374 = vmatprep.subr.bf16.mxu0 %v2534
        %3375 = vmatpush1.bf16.msra.mxu0 %v2533
        %3376 = vmatprep.subr.bf16.mxu0 %v2537
        %3377 = vmatpush1.bf16.msra.mxu0 %v2536
        %3378 = vmatprep.subr.bf16.mxu0 %v2540
        %3379 = vmatpush1.bf16.msra.mxu0 %v2539
        %3380 = vmatprep.subr.bf16.mxu0 %v2543
        %3381 = vmatpush1.bf16.msra.mxu0 %v2542
        %3382 = vmatprep.subr.bf16.mxu0 %v2546
        %3383 = vmatpush1.bf16.msra.mxu0 %v2545
        %3384 = vmatprep.subr.bf16.mxu0 %v2549
        %3385 = vmatpush1.bf16.msra.mxu0 %v2548
        %3386 = vmatprep.subr.bf16.mxu0 %v2552
        %3387 = vmatpush1.bf16.msra.mxu0 %v2551
        %3388 = vmatprep.mubr.bf16.mxu0 %v876
        %3389 = vmatmul.mubr.bf16.gmra.mrb[0].mxu0 %v862
        %v3390 = vpop.f32.mrb[0].mxu0
        %v3391 = vadd.f32 %v3350, %v3390
        %v3392 = vpop.f32.mrb[0].mxu0
        %v3393 = vadd.f32 %v3352, %v3392
        %v3394 = vpop.f32.mrb[0].mxu0
        %v3395 = vpop.f32.mrb[0].mxu0
        %3396 = vdwg.mxu0
        %3397 = vmatprep.subr.bf16.mxu0 %v2555
        %3398 = vmatpush1.bf16.msra.mxu0 %v2554
        %3399 = vmatprep.subr.bf16.mxu0 %v2558
        %3400 = vmatpush1.bf16.msra.mxu0 %v2557
        %3401 = vmatprep.subr.bf16.mxu0 %v2561
        %3402 = vmatpush1.bf16.msra.mxu0 %v2560
        %3403 = vmatprep.subr.bf16.mxu0 %v2564
        %3404 = vmatpush1.bf16.msra.mxu0 %v2563
        %3405 = vmatprep.subr.bf16.mxu0 %v2567
        %3406 = vmatpush1.bf16.msra.mxu0 %v2566
        %3407 = vmatprep.subr.bf16.mxu0 %v2570
        %3408 = vmatpush1.bf16.msra.mxu0 %v2569
        %3409 = vmatprep.subr.bf16.mxu0 %v2573
        %3410 = vmatpush1.bf16.msra.mxu0 %v2572
        %3411 = vmatprep.subr.bf16.mxu0 %v2576
        %3412 = vmatpush1.bf16.msra.mxu0 %v2575
        %3413 = vmatprep.subr.bf16.mxu0 %v2579
        %3414 = vmatpush1.bf16.msra.mxu0 %v2578
        %3415 = vmatprep.subr.bf16.mxu0 %v2582
        %3416 = vmatpush1.bf16.msra.mxu0 %v2581
        %3417 = vmatprep.subr.bf16.mxu0 %v2585
        %3418 = vmatpush1.bf16.msra.mxu0 %v2584
        %3419 = vmatprep.subr.bf16.mxu0 %v2588
        %3420 = vmatpush1.bf16.msra.mxu0 %v2587
        %3421 = vmatprep.subr.bf16.mxu0 %v2591
        %3422 = vmatpush1.bf16.msra.mxu0 %v2590
        %3423 = vmatprep.subr.bf16.mxu0 %v2594
        %3424 = vmatpush1.bf16.msra.mxu0 %v2593
        %3425 = vmatprep.subr.bf16.mxu0 %v2597
        %3426 = vmatpush1.bf16.msra.mxu0 %v2596
        %3427 = vmatprep.subr.bf16.mxu0 %v2600
        %3428 = vmatpush1.bf16.msra.mxu0 %v2599
        %3429 = vmatprep.mubr.bf16.mxu0 %v880
        %3430 = vmatmul.mubr.bf16.gmra.mrb[0].mxu0 %v878
        %v3431 = vpop.f32.mrb[0].mxu0
        %v3432 = vadd.f32 %v3391, %v3431
        %v3433 = vpop.f32.mrb[0].mxu0
        %v3434 = vadd.f32 %v3393, %v3433
        %v3435 = vpop.f32.mrb[0].mxu0
        %v3436 = vpop.f32.mrb[0].mxu0
        %3437 = vdwg.mxu0
        %3438 = vmatprep.subr.bf16.mxu0 %v2603
        %3439 = vmatpush1.bf16.msra.mxu0 %v2602
        %3440 = vmatprep.subr.bf16.mxu0 %v2606
        %3441 = vmatpush1.bf16.msra.mxu0 %v2605
        %3442 = vmatprep.subr.bf16.mxu0 %v2609
        %3443 = vmatpush1.bf16.msra.mxu0 %v2608
        %3444 = vmatprep.subr.bf16.mxu0 %v2612
        %3445 = vmatpush1.bf16.msra.mxu0 %v2611
        %3446 = vmatprep.subr.bf16.mxu0 %v2615
        %3447 = vmatpush1.bf16.msra.mxu0 %v2614
        %3448 = vmatprep.subr.bf16.mxu0 %v2618
        %3449 = vmatpush1.bf16.msra.mxu0 %v2617
        %3450 = vmatprep.subr.bf16.mxu0 %v2621
        %3451 = vmatpush1.bf16.msra.mxu0 %v2620
        %3452 = vmatprep.subr.bf16.mxu0 %v2624
        %3453 = vmatpush1.bf16.msra.mxu0 %v2623
        %3454 = vmatprep.subr.bf16.mxu0 %v2627
        %3455 = vmatpush1.bf16.msra.mxu0 %v2626
        %3456 = vmatprep.subr.bf16.mxu0 %v2630
        %3457 = vmatpush1.bf16.msra.mxu0 %v2629
        %3458 = vmatprep.subr.bf16.mxu0 %v2633
        %3459 = vmatpush1.bf16.msra.mxu0 %v2632
        %3460 = vmatprep.subr.bf16.mxu0 %v2636
        %3461 = vmatpush1.bf16.msra.mxu0 %v2635
        %3462 = vmatprep.subr.bf16.mxu0 %v2639
        %3463 = vmatpush1.bf16.msra.mxu0 %v2638
        %3464 = vmatprep.subr.bf16.mxu0 %v2642
        %3465 = vmatpush1.bf16.msra.mxu0 %v2641
        %3466 = vmatprep.subr.bf16.mxu0 %v2645
        %3467 = vmatpush1.bf16.msra.mxu0 %v2644
        %3468 = vmatprep.subr.bf16.mxu0 %v2648
        %3469 = vmatpush1.bf16.msra.mxu0 %v2647
        %3470 = vmatprep.mubr.bf16.mxu0 %v918
        %3471 = vmatmul.mubr.bf16.gmra.mrb[0].mxu0 %v904
        %v3472 = vpop.f32.mrb[0].mxu0
        %v3473 = vadd.f32 %v3432, %v3472
        %v3474 = vpop.f32.mrb[0].mxu0
        %v3475 = vadd.f32 %v3434, %v3474
        %v3476 = vpop.f32.mrb[0].mxu0
        %v3477 = vpop.f32.mrb[0].mxu0
        %3478 = vdwg.mxu0
        %3479 = vmatprep.subr.bf16.mxu0 %v2651
        %3480 = vmatpush1.bf16.msra.mxu0 %v2650
        %3481 = vmatprep.subr.bf16.mxu0 %v2654
        %3482 = vmatpush1.bf16.msra.mxu0 %v2653
        %3483 = vmatprep.subr.bf16.mxu0 %v2657
        %3484 = vmatpush1.bf16.msra.mxu0 %v2656
        %3485 = vmatprep.subr.bf16.mxu0 %v2660
        %3486 = vmatpush1.bf16.msra.mxu0 %v2659
        %3487 = vmatprep.subr.bf16.mxu0 %v2663
        %3488 = vmatpush1.bf16.msra.mxu0 %v2662
        %3489 = vmatprep.subr.bf16.mxu0 %v2666
        %3490 = vmatpush1.bf16.msra.mxu0 %v2665
        %3491 = vmatprep.subr.bf16.mxu0 %v2669
        %3492 = vmatpush1.bf16.msra.mxu0 %v2668
        %3493 = vmatprep.subr.bf16.mxu0 %v2672
        %3494 = vmatpush1.bf16.msra.mxu0 %v2671
        %3495 = vmatprep.subr.bf16.mxu0 %v2675
        %3496 = vmatpush1.bf16.msra.mxu0 %v2674
        %3497 = vmatprep.subr.bf16.mxu0 %v2678
        %3498 = vmatpush1.bf16.msra.mxu0 %v2677
        %3499 = vmatprep.subr.bf16.mxu0 %v2681
        %3500 = vmatpush1.bf16.msra.mxu0 %v2680
        %3501 = vmatprep.subr.bf16.mxu0 %v2684
        %3502 = vmatpush1.bf16.msra.mxu0 %v2683
        %3503 = vmatprep.subr.bf16.mxu0 %v2687
        %3504 = vmatpush1.bf16.msra.mxu0 %v2686
        %3505 = vmatprep.subr.bf16.mxu0 %v2690
        %3506 = vmatpush1.bf16.msra.mxu0 %v2689
        %3507 = vmatprep.subr.bf16.mxu0 %v2693
        %3508 = vmatpush1.bf16.msra.mxu0 %v2692
        %3509 = vmatprep.subr.bf16.mxu0 %v2696
        %3510 = vmatpush1.bf16.msra.mxu0 %v2695
        %3511 = vmatprep.mubr.bf16.mxu0 %v928
        %3512 = vmatmul.mubr.bf16.gmra.mrb[0].mxu0 %v926
        %v3513 = vpop.f32.mrb[0].mxu0
        %v3514 = vadd.f32 %v3473, %v3513
        %v3515 = vpop.f32.mrb[0].mxu0
        %v3516 = vadd.f32 %v3475, %v3515
        %v3517 = vpop.f32.mrb[0].mxu0
        %v3518 = vpop.f32.mrb[0].mxu0
        %3519 = vdwg.mxu0
        %3520 = vmatprep.subr.bf16.mxu0 %v2699
        %3521 = vmatpush1.bf16.msra.mxu0 %v2698
        %3522 = vmatprep.subr.bf16.mxu0 %v2702
        %3523 = vmatpush1.bf16.msra.mxu0 %v2701
        %3524 = vmatprep.subr.bf16.mxu0 %v2705
        %3525 = vmatpush1.bf16.msra.mxu0 %v2704
        %3526 = vmatprep.subr.bf16.mxu0 %v2708
        %3527 = vmatpush1.bf16.msra.mxu0 %v2707
        %3528 = vmatprep.subr.bf16.mxu0 %v2711
        %3529 = vmatpush1.bf16.msra.mxu0 %v2710
        %3530 = vmatprep.subr.bf16.mxu0 %v2714
        %3531 = vmatpush1.bf16.msra.mxu0 %v2713
        %3532 = vmatprep.subr.bf16.mxu0 %v2717
        %3533 = vmatpush1.bf16.msra.mxu0 %v2716
        %3534 = vmatprep.subr.bf16.mxu0 %v2720
        %3535 = vmatpush1.bf16.msra.mxu0 %v2719
        %3536 = vmatprep.subr.bf16.mxu0 %v2723
        %3537 = vmatpush1.bf16.msra.mxu0 %v2722
        %3538 = vmatprep.subr.bf16.mxu0 %v2726
        %3539 = vmatpush1.bf16.msra.mxu0 %v2725
        %3540 = vmatprep.subr.bf16.mxu0 %v2729
        %3541 = vmatpush1.bf16.msra.mxu0 %v2728
        %3542 = vmatprep.subr.bf16.mxu0 %v2732
        %3543 = vmatpush1.bf16.msra.mxu0 %v2731
        %3544 = vmatprep.subr.bf16.mxu0 %v2735
        %3545 = vmatpush1.bf16.msra.mxu0 %v2734
        %3546 = vmatprep.subr.bf16.mxu0 %v2738
        %3547 = vmatpush1.bf16.msra.mxu0 %v2737
        %3548 = vmatprep.subr.bf16.mxu0 %v2741
        %3549 = vmatpush1.bf16.msra.mxu0 %v2740
        %3550 = vmatprep.subr.bf16.mxu0 %v2744
        %3551 = vmatpush1.bf16.msra.mxu0 %v2743
        %3552 = vmatprep.mubr.bf16.mxu0 %v925
        %3553 = vmatmul.mubr.bf16.gmra.mrb[0].mxu0 %v911
        %v3554 = vpop.f32.mrb[0].mxu0
        %v3555 = vadd.f32 %v3514, %v3554
        %v3556 = vpop.f32.mrb[0].mxu0
        %v3557 = vadd.f32 %v3516, %v3556
        %v3558 = vpop.f32.mrb[0].mxu0
        %v3559 = vpop.f32.mrb[0].mxu0
        %3560 = vdwg.mxu0
        %3561 = vmatprep.subr.bf16.mxu0 %v2747
        %3562 = vmatpush1.bf16.msra.mxu0 %v2746
        %3563 = vmatprep.subr.bf16.mxu0 %v2750
        %3564 = vmatpush1.bf16.msra.mxu0 %v2749
        %3565 = vmatprep.subr.bf16.mxu0 %v2753
        %3566 = vmatpush1.bf16.msra.mxu0 %v2752
        %3567 = vmatprep.subr.bf16.mxu0 %v2756
        %3568 = vmatpush1.bf16.msra.mxu0 %v2755
        %3569 = vmatprep.subr.bf16.mxu0 %v2759
        %3570 = vmatpush1.bf16.msra.mxu0 %v2758
        %3571 = vmatprep.subr.bf16.mxu0 %v2762
        %3572 = vmatpush1.bf16.msra.mxu0 %v2761
        %3573 = vmatprep.subr.bf16.mxu0 %v2765
        %3574 = vmatpush1.bf16.msra.mxu0 %v2764
        %3575 = vmatprep.subr.bf16.mxu0 %v2768
        %3576 = vmatpush1.bf16.msra.mxu0 %v2767
        %3577 = vmatprep.subr.bf16.mxu0 %v2771
        %3578 = vmatpush1.bf16.msra.mxu0 %v2770
        %3579 = vmatprep.subr.bf16.mxu0 %v2774
        %3580 = vmatpush1.bf16.msra.mxu0 %v2773
        %3581 = vmatprep.subr.bf16.mxu0 %v2777
        %3582 = vmatpush1.bf16.msra.mxu0 %v2776
        %3583 = vmatprep.subr.bf16.mxu0 %v2780
        %3584 = vmatpush1.bf16.msra.mxu0 %v2779
        %3585 = vmatprep.subr.bf16.mxu0 %v2783
        %3586 = vmatpush1.bf16.msra.mxu0 %v2782
        %3587 = vmatprep.subr.bf16.mxu0 %v2786
        %3588 = vmatpush1.bf16.msra.mxu0 %v2785
        %3589 = vmatprep.subr.bf16.mxu0 %v2789
        %3590 = vmatpush1.bf16.msra.mxu0 %v2788
        %3591 = vmatprep.subr.bf16.mxu0 %v2792
        %3592 = vmatpush1.bf16.msra.mxu0 %v2791
        %3593 = vmatprep.mubr.bf16.mxu0 %v929
        %3594 = vmatmul.mubr.bf16.gmra.mrb[0].mxu0 %v927
        %v3595 = vpop.f32.mrb[0].mxu0
        %v3596 = vadd.f32 %v3555, %v3595
        %v3597 = vpop.f32.mrb[0].mxu0
        %v3598 = vadd.f32 %v3557, %v3597
        %v3599 = vpop.f32.mrb[0].mxu0
        %v3600 = vpop.f32.mrb[0].mxu0
        %3601 = vdwg.mxu0
        %3602 = vmatprep.subr.bf16.mxu0 %v2795
        %3603 = vmatpush1.bf16.msra.mxu0 %v2794
        %3604 = vmatprep.subr.bf16.mxu0 %v2798
        %3605 = vmatpush1.bf16.msra.mxu0 %v2797
        %3606 = vmatprep.subr.bf16.mxu0 %v2801
        %3607 = vmatpush1.bf16.msra.mxu0 %v2800
        %3608 = vmatprep.subr.bf16.mxu0 %v2804
        %3609 = vmatpush1.bf16.msra.mxu0 %v2803
        %3610 = vmatprep.subr.bf16.mxu0 %v2807
        %3611 = vmatpush1.bf16.msra.mxu0 %v2806
        %3612 = vmatprep.subr.bf16.mxu0 %v2810
        %3613 = vmatpush1.bf16.msra.mxu0 %v2809
        %3614 = vmatprep.subr.bf16.mxu0 %v2813
        %3615 = vmatpush1.bf16.msra.mxu0 %v2812
        %3616 = vmatprep.subr.bf16.mxu0 %v2816
        %3617 = vmatpush1.bf16.msra.mxu0 %v2815
        %3618 = vmatprep.subr.bf16.mxu0 %v2819
        %3619 = vmatpush1.bf16.msra.mxu0 %v2818
        %3620 = vmatprep.subr.bf16.mxu0 %v2822
        %3621 = vmatpush1.bf16.msra.mxu0 %v2821
        %3622 = vmatprep.subr.bf16.mxu0 %v2825
        %3623 = vmatpush1.bf16.msra.mxu0 %v2824
        %3624 = vmatprep.subr.bf16.mxu0 %v2828
        %3625 = vmatpush1.bf16.msra.mxu0 %v2827
        %3626 = vmatprep.subr.bf16.mxu0 %v2831
        %3627 = vmatpush1.bf16.msra.mxu0 %v2830
        %3628 = vmatprep.subr.bf16.mxu0 %v2834
        %3629 = vmatpush1.bf16.msra.mxu0 %v2833
        %3630 = vmatprep.subr.bf16.mxu0 %v2837
        %3631 = vmatpush1.bf16.msra.mxu0 %v2836
        %3632 = vmatprep.subr.bf16.mxu0 %v2840
        %3633 = vmatpush1.bf16.msra.mxu0 %v2839
        %3634 = vmatprep.mubr.bf16.mxu0 %v951
        %3635 = vmatmul.mubr.bf16.gmra.mrb[0].mxu0 %v944
        %v3636 = vpop.f32.mrb[0].mxu0
        %v3637 = vadd.f32 %v3596, %v3636
        %v3638 = vpop.f32.mrb[0].mxu0
        %v3639 = vadd.f32 %v3598, %v3638
        %v3640 = vpop.f32.mrb[0].mxu0
        %v3641 = vpop.f32.mrb[0].mxu0
        %3642 = vdwg.mxu0
        %3643 = vmatprep.subr.bf16.mxu0 0
        %3644 = vmatpush1.bf16.msra.mxu0 %v2412
        %3645 = vmatprep.subr.bf16.mxu0 0
        %3646 = vmatpush1.bf16.msra.mxu0 %v2415
        %3647 = vmatprep.subr.bf16.mxu0 0
        %3648 = vmatpush1.bf16.msra.mxu0 %v2418
        %3649 = vmatprep.subr.bf16.mxu0 0
        %3650 = vmatpush1.bf16.msra.mxu0 %v2421
        %3651 = vmatprep.subr.bf16.mxu0 0
        %3652 = vmatpush1.bf16.msra.mxu0 %v2424
        %3653 = vmatprep.subr.bf16.mxu0 0
        %3654 = vmatpush1.bf16.msra.mxu0 %v2427
        %3655 = vmatprep.subr.bf16.mxu0 0
        %3656 = vmatpush1.bf16.msra.mxu0 %v2430
        %3657 = vmatprep.subr.bf16.mxu0 0
        %3658 = vmatpush1.bf16.msra.mxu0 %v2433
        %3659 = vmatprep.subr.bf16.mxu0 0
        %3660 = vmatpush1.bf16.msra.mxu0 %v2436
        %3661 = vmatprep.subr.bf16.mxu0 0
        %3662 = vmatpush1.bf16.msra.mxu0 %v2439
        %3663 = vmatprep.subr.bf16.mxu0 0
        %3664 = vmatpush1.bf16.msra.mxu0 %v2442
        %3665 = vmatprep.subr.bf16.mxu0 0
        %3666 = vmatpush1.bf16.msra.mxu0 %v2445
        %3667 = vmatprep.subr.bf16.mxu0 0
        %3668 = vmatpush1.bf16.msra.mxu0 %v2448
        %3669 = vmatprep.subr.bf16.mxu0 0
        %3670 = vmatpush1.bf16.msra.mxu0 %v2451
        %3671 = vmatprep.subr.bf16.mxu0 0
        %3672 = vmatpush1.bf16.msra.mxu0 %v2454
        %3673 = vmatprep.subr.bf16.mxu0 0
        %3674 = vmatpush1.bf16.msra.mxu0 %v2457
        %3675 = vmatprep.mubr.bf16.mxu0 %v869
        %3676 = vmatmul.mubr.bf16.gmra.mrb[0].mxu0 %v855
        %v3677 = vpop.f32.mrb[0].mxu0
        %v3678 = vadd.f32 %v825, %v3677
        %v3679 = vpop.f32.mrb[0].mxu0
        %v3680 = vpop.f32.mrb[0].mxu0
        %v3681 = vpop.f32.mrb[0].mxu0
        %3682 = vdwg.mxu0
        %3683 = vmatprep.subr.bf16.mxu0 0
        %3684 = vmatpush1.bf16.msra.mxu0 %v2460
        %3685 = vmatprep.subr.bf16.mxu0 0
        %3686 = vmatpush1.bf16.msra.mxu0 %v2463
        %3687 = vmatprep.subr.bf16.mxu0 0
        %3688 = vmatpush1.bf16.msra.mxu0 %v2466
        %3689 = vmatprep.subr.bf16.mxu0 0
        %3690 = vmatpush1.bf16.msra.mxu0 %v2469
        %3691 = vmatprep.subr.bf16.mxu0 0
        %3692 = vmatpush1.bf16.msra.mxu0 %v2472
        %3693 = vmatprep.subr.bf16.mxu0 0
        %3694 = vmatpush1.bf16.msra.mxu0 %v2475
        %3695 = vmatprep.subr.bf16.mxu0 0
        %3696 = vmatpush1.bf16.msra.mxu0 %v2478
        %3697 = vmatprep.subr.bf16.mxu0 0
        %3698 = vmatpush1.bf16.msra.mxu0 %v2481
        %3699 = vmatprep.subr.bf16.mxu0 0
        %3700 = vmatpush1.bf16.msra.mxu0 %v2484
        %3701 = vmatprep.subr.bf16.mxu0 0
        %3702 = vmatpush1.bf16.msra.mxu0 %v2487
        %3703 = vmatprep.subr.bf16.mxu0 0
        %3704 = vmatpush1.bf16.msra.mxu0 %v2490
        %3705 = vmatprep.subr.bf16.mxu0 0
        %3706 = vmatpush1.bf16.msra.mxu0 %v2493
        %3707 = vmatprep.subr.bf16.mxu0 0
        %3708 = vmatpush1.bf16.msra.mxu0 %v2496
        %3709 = vmatprep.subr.bf16.mxu0 0
        %3710 = vmatpush1.bf16.msra.mxu0 %v2499
        %3711 = vmatprep.subr.bf16.mxu0 0
        %3712 = vmatpush1.bf16.msra.mxu0 %v2502
        %3713 = vmatprep.subr.bf16.mxu0 0
        %3714 = vmatpush1.bf16.msra.mxu0 %v2505
        %3715 = vmatprep.mubr.bf16.mxu0 %v879
        %3716 = vmatmul.mubr.bf16.gmra.mrb[0].mxu0 %v877
        %v3717 = vpop.f32.mrb[0].mxu0
        %v3718 = vadd.f32 %v3678, %v3717
        %v3719 = vpop.f32.mrb[0].mxu0
        %v3720 = vpop.f32.mrb[0].mxu0
        %v3721 = vpop.f32.mrb[0].mxu0
        %3722 = vdwg.mxu0
        %3723 = vmatprep.subr.bf16.mxu0 0
        %3724 = vmatpush1.bf16.msra.mxu0 %v2508
        %3725 = vmatprep.subr.bf16.mxu0 0
        %3726 = vmatpush1.bf16.msra.mxu0 %v2511
        %3727 = vmatprep.subr.bf16.mxu0 0
        %3728 = vmatpush1.bf16.msra.mxu0 %v2514
        %3729 = vmatprep.subr.bf16.mxu0 0
        %3730 = vmatpush1.bf16.msra.mxu0 %v2517
        %3731 = vmatprep.subr.bf16.mxu0 0
        %3732 = vmatpush1.bf16.msra.mxu0 %v2520
        %3733 = vmatprep.subr.bf16.mxu0 0
        %3734 = vmatpush1.bf16.msra.mxu0 %v2523
        %3735 = vmatprep.subr.bf16.mxu0 0
        %3736 = vmatpush1.bf16.msra.mxu0 %v2526
        %3737 = vmatprep.subr.bf16.mxu0 0
        %3738 = vmatpush1.bf16.msra.mxu0 %v2529
        %3739 = vmatprep.subr.bf16.mxu0 0
        %3740 = vmatpush1.bf16.msra.mxu0 %v2532
        %3741 = vmatprep.subr.bf16.mxu0 0
        %3742 = vmatpush1.bf16.msra.mxu0 %v2535
        %3743 = vmatprep.subr.bf16.mxu0 0
        %3744 = vmatpush1.bf16.msra.mxu0 %v2538
        %3745 = vmatprep.subr.bf16.mxu0 0
        %3746 = vmatpush1.bf16.msra.mxu0 %v2541
        %3747 = vmatprep.subr.bf16.mxu0 0
        %3748 = vmatpush1.bf16.msra.mxu0 %v2544
        %3749 = vmatprep.subr.bf16.mxu0 0
        %3750 = vmatpush1.bf16.msra.mxu0 %v2547
        %3751 = vmatprep.subr.bf16.mxu0 0
        %3752 = vmatpush1.bf16.msra.mxu0 %v2550
        %3753 = vmatprep.subr.bf16.mxu0 0
        %3754 = vmatpush1.bf16.msra.mxu0 %v2553
        %3755 = vmatprep.mubr.bf16.mxu0 %v876
        %3756 = vmatmul.mubr.bf16.gmra.mrb[0].mxu0 %v862
        %v3757 = vpop.f32.mrb[0].mxu0
        %v3758 = vadd.f32 %v3718, %v3757
        %v3759 = vpop.f32.mrb[0].mxu0
        %v3760 = vpop.f32.mrb[0].mxu0
        %v3761 = vpop.f32.mrb[0].mxu0
        %3762 = vdwg.mxu0
        %3763 = vmatprep.subr.bf16.mxu0 0
        %3764 = vmatpush1.bf16.msra.mxu0 %v2556
        %3765 = vmatprep.subr.bf16.mxu0 0
        %3766 = vmatpush1.bf16.msra.mxu0 %v2559
        %3767 = vmatprep.subr.bf16.mxu0 0
        %3768 = vmatpush1.bf16.msra.mxu0 %v2562
        %3769 = vmatprep.subr.bf16.mxu0 0
        %3770 = vmatpush1.bf16.msra.mxu0 %v2565
        %3771 = vmatprep.subr.bf16.mxu0 0
        %3772 = vmatpush1.bf16.msra.mxu0 %v2568
        %3773 = vmatprep.subr.bf16.mxu0 0
        %3774 = vmatpush1.bf16.msra.mxu0 %v2571
        %3775 = vmatprep.subr.bf16.mxu0 0
        %3776 = vmatpush1.bf16.msra.mxu0 %v2574
        %3777 = vmatprep.subr.bf16.mxu0 0
        %3778 = vmatpush1.bf16.msra.mxu0 %v2577
        %3779 = vmatprep.subr.bf16.mxu0 0
        %3780 = vmatpush1.bf16.msra.mxu0 %v2580
        %3781 = vmatprep.subr.bf16.mxu0 0
        %3782 = vmatpush1.bf16.msra.mxu0 %v2583
        %3783 = vmatprep.subr.bf16.mxu0 0
        %3784 = vmatpush1.bf16.msra.mxu0 %v2586
        %3785 = vmatprep.subr.bf16.mxu0 0
        %3786 = vmatpush1.bf16.msra.mxu0 %v2589
        %3787 = vmatprep.subr.bf16.mxu0 0
        %3788 = vmatpush1.bf16.msra.mxu0 %v2592
        %3789 = vmatprep.subr.bf16.mxu0 0
        %3790 = vmatpush1.bf16.msra.mxu0 %v2595
        %3791 = vmatprep.subr.bf16.mxu0 0
        %3792 = vmatpush1.bf16.msra.mxu0 %v2598
        %3793 = vmatprep.subr.bf16.mxu0 0
        %3794 = vmatpush1.bf16.msra.mxu0 %v2601
        %3795 = vmatprep.mubr.bf16.mxu0 %v880
        %3796 = vmatmul.mubr.bf16.gmra.mrb[0].mxu0 %v878
        %v3797 = vpop.f32.mrb[0].mxu0
        %v3798 = vadd.f32 %v3758, %v3797
        %v3799 = vpop.f32.mrb[0].mxu0
        %v3800 = vpop.f32.mrb[0].mxu0
        %v3801 = vpop.f32.mrb[0].mxu0
        %3802 = vdwg.mxu0
        %3803 = vmatprep.subr.bf16.mxu0 0
        %3804 = vmatpush1.bf16.msra.mxu0 %v2604
        %3805 = vmatprep.subr.bf16.mxu0 0
        %3806 = vmatpush1.bf16.msra.mxu0 %v2607
        %3807 = vmatprep.subr.bf16.mxu0 0
        %3808 = vmatpush1.bf16.msra.mxu0 %v2610
        %3809 = vmatprep.subr.bf16.mxu0 0
        %3810 = vmatpush1.bf16.msra.mxu0 %v2613
        %3811 = vmatprep.subr.bf16.mxu0 0
        %3812 = vmatpush1.bf16.msra.mxu0 %v2616
        %3813 = vmatprep.subr.bf16.mxu0 0
        %3814 = vmatpush1.bf16.msra.mxu0 %v2619
        %3815 = vmatprep.subr.bf16.mxu0 0
        %3816 = vmatpush1.bf16.msra.mxu0 %v2622
        %3817 = vmatprep.subr.bf16.mxu0 0
        %3818 = vmatpush1.bf16.msra.mxu0 %v2625
        %3819 = vmatprep.subr.bf16.mxu0 0
        %3820 = vmatpush1.bf16.msra.mxu0 %v2628
        %3821 = vmatprep.subr.bf16.mxu0 0
        %3822 = vmatpush1.bf16.msra.mxu0 %v2631
        %3823 = vmatprep.subr.bf16.mxu0 0
        %3824 = vmatpush1.bf16.msra.mxu0 %v2634
        %3825 = vmatprep.subr.bf16.mxu0 0
        %3826 = vmatpush1.bf16.msra.mxu0 %v2637
        %3827 = vmatprep.subr.bf16.mxu0 0
        %3828 = vmatpush1.bf16.msra.mxu0 %v2640
        %3829 = vmatprep.subr.bf16.mxu0 0
        %3830 = vmatpush1.bf16.msra.mxu0 %v2643
        %3831 = vmatprep.subr.bf16.mxu0 0
        %3832 = vmatpush1.bf16.msra.mxu0 %v2646
        %3833 = vmatprep.subr.bf16.mxu0 0
        %3834 = vmatpush1.bf16.msra.mxu0 %v2649
        %3835 = vmatprep.mubr.bf16.mxu0 %v918
        %3836 = vmatmul.mubr.bf16.gmra.mrb[0].mxu0 %v904
        %v3837 = vpop.f32.mrb[0].mxu0
        %v3838 = vadd.f32 %v3798, %v3837
        %v3839 = vpop.f32.mrb[0].mxu0
        %v3840 = vpop.f32.mrb[0].mxu0
        %v3841 = vpop.f32.mrb[0].mxu0
        %3842 = vdwg.mxu0
        %3843 = vmatprep.subr.bf16.mxu0 0
        %3844 = vmatpush1.bf16.msra.mxu0 %v2652
        %3845 = vmatprep.subr.bf16.mxu0 0
        %3846 = vmatpush1.bf16.msra.mxu0 %v2655
        %3847 = vmatprep.subr.bf16.mxu0 0
        %3848 = vmatpush1.bf16.msra.mxu0 %v2658
        %3849 = vmatprep.subr.bf16.mxu0 0
        %3850 = vmatpush1.bf16.msra.mxu0 %v2661
        %3851 = vmatprep.subr.bf16.mxu0 0
        %3852 = vmatpush1.bf16.msra.mxu0 %v2664
        %3853 = vmatprep.subr.bf16.mxu0 0
        %3854 = vmatpush1.bf16.msra.mxu0 %v2667
        %3855 = vmatprep.subr.bf16.mxu0 0
        %3856 = vmatpush1.bf16.msra.mxu0 %v2670
        %3857 = vmatprep.subr.bf16.mxu0 0
        %3858 = vmatpush1.bf16.msra.mxu0 %v2673
        %3859 = vmatprep.subr.bf16.mxu0 0
        %3860 = vmatpush1.bf16.msra.mxu0 %v2676
        %3861 = vmatprep.subr.bf16.mxu0 0
        %3862 = vmatpush1.bf16.msra.mxu0 %v2679
        %3863 = vmatprep.subr.bf16.mxu0 0
        %3864 = vmatpush1.bf16.msra.mxu0 %v2682
        %3865 = vmatprep.subr.bf16.mxu0 0
        %3866 = vmatpush1.bf16.msra.mxu0 %v2685
        %3867 = vmatprep.subr.bf16.mxu0 0
        %3868 = vmatpush1.bf16.msra.mxu0 %v2688
        %3869 = vmatprep.subr.bf16.mxu0 0
        %3870 = vmatpush1.bf16.msra.mxu0 %v2691
        %3871 = vmatprep.subr.bf16.mxu0 0
        %3872 = vmatpush1.bf16.msra.mxu0 %v2694
        %3873 = vmatprep.subr.bf16.mxu0 0
        %3874 = vmatpush1.bf16.msra.mxu0 %v2697
        %3875 = vmatprep.mubr.bf16.mxu0 %v928
        %3876 = vmatmul.mubr.bf16.gmra.mrb[0].mxu0 %v926
        %v3877 = vpop.f32.mrb[0].mxu0
        %v3878 = vadd.f32 %v3838, %v3877
        %v3879 = vpop.f32.mrb[0].mxu0
        %v3880 = vpop.f32.mrb[0].mxu0
        %v3881 = vpop.f32.mrb[0].mxu0
        %3882 = vdwg.mxu0
        %3883 = vmatprep.subr.bf16.mxu0 0
        %3884 = vmatpush1.bf16.msra.mxu0 %v2700
        %3885 = vmatprep.subr.bf16.mxu0 0
        %3886 = vmatpush1.bf16.msra.mxu0 %v2703
        %3887 = vmatprep.subr.bf16.mxu0 0
        %3888 = vmatpush1.bf16.msra.mxu0 %v2706
        %3889 = vmatprep.subr.bf16.mxu0 0
        %3890 = vmatpush1.bf16.msra.mxu0 %v2709
        %3891 = vmatprep.subr.bf16.mxu0 0
        %3892 = vmatpush1.bf16.msra.mxu0 %v2712
        %3893 = vmatprep.subr.bf16.mxu0 0
        %3894 = vmatpush1.bf16.msra.mxu0 %v2715
        %3895 = vmatprep.subr.bf16.mxu0 0
        %3896 = vmatpush1.bf16.msra.mxu0 %v2718
        %3897 = vmatprep.subr.bf16.mxu0 0
        %3898 = vmatpush1.bf16.msra.mxu0 %v2721
        %3899 = vmatprep.subr.bf16.mxu0 0
        %3900 = vmatpush1.bf16.msra.mxu0 %v2724
        %3901 = vmatprep.subr.bf16.mxu0 0
        %3902 = vmatpush1.bf16.msra.mxu0 %v2727
        %3903 = vmatprep.subr.bf16.mxu0 0
        %3904 = vmatpush1.bf16.msra.mxu0 %v2730
        %3905 = vmatprep.subr.bf16.mxu0 0
        %3906 = vmatpush1.bf16.msra.mxu0 %v2733
        %3907 = vmatprep.subr.bf16.mxu0 0
        %3908 = vmatpush1.bf16.msra.mxu0 %v2736
        %3909 = vmatprep.subr.bf16.mxu0 0
        %3910 = vmatpush1.bf16.msra.mxu0 %v2739
        %3911 = vmatprep.subr.bf16.mxu0 0
        %3912 = vmatpush1.bf16.msra.mxu0 %v2742
        %3913 = vmatprep.subr.bf16.mxu0 0
        %3914 = vmatpush1.bf16.msra.mxu0 %v2745
        %3915 = vmatprep.mubr.bf16.mxu0 %v925
        %3916 = vmatmul.mubr.bf16.gmra.mrb[0].mxu0 %v911
        %v3917 = vpop.f32.mrb[0].mxu0
        %v3918 = vadd.f32 %v3878, %v3917
        %v3919 = vpop.f32.mrb[0].mxu0
        %v3920 = vpop.f32.mrb[0].mxu0
        %v3921 = vpop.f32.mrb[0].mxu0
        %3922 = vdwg.mxu0
        %3923 = vmatprep.subr.bf16.mxu0 0
        %3924 = vmatpush1.bf16.msra.mxu0 %v2748
        %3925 = vmatprep.subr.bf16.mxu0 0
        %3926 = vmatpush1.bf16.msra.mxu0 %v2751
        %3927 = vmatprep.subr.bf16.mxu0 0
        %3928 = vmatpush1.bf16.msra.mxu0 %v2754
        %3929 = vmatprep.subr.bf16.mxu0 0
        %3930 = vmatpush1.bf16.msra.mxu0 %v2757
        %3931 = vmatprep.subr.bf16.mxu0 0
        %3932 = vmatpush1.bf16.msra.mxu0 %v2760
        %3933 = vmatprep.subr.bf16.mxu0 0
        %3934 = vmatpush1.bf16.msra.mxu0 %v2763
        %3935 = vmatprep.subr.bf16.mxu0 0
        %3936 = vmatpush1.bf16.msra.mxu0 %v2766
        %3937 = vmatprep.subr.bf16.mxu0 0
        %3938 = vmatpush1.bf16.msra.mxu0 %v2769
        %3939 = vmatprep.subr.bf16.mxu0 0
        %3940 = vmatpush1.bf16.msra.mxu0 %v2772
        %3941 = vmatprep.subr.bf16.mxu0 0
        %3942 = vmatpush1.bf16.msra.mxu0 %v2775
        %3943 = vmatprep.subr.bf16.mxu0 0
        %3944 = vmatpush1.bf16.msra.mxu0 %v2778
        %3945 = vmatprep.subr.bf16.mxu0 0
        %3946 = vmatpush1.bf16.msra.mxu0 %v2781
        %3947 = vmatprep.subr.bf16.mxu0 0
        %3948 = vmatpush1.bf16.msra.mxu0 %v2784
        %3949 = vmatprep.subr.bf16.mxu0 0
        %3950 = vmatpush1.bf16.msra.mxu0 %v2787
        %3951 = vmatprep.subr.bf16.mxu0 0
        %3952 = vmatpush1.bf16.msra.mxu0 %v2790
        %3953 = vmatprep.subr.bf16.mxu0 0
        %3954 = vmatpush1.bf16.msra.mxu0 %v2793
        %3955 = vmatprep.mubr.bf16.mxu0 %v929
        %3956 = vmatmul.mubr.bf16.gmra.mrb[0].mxu0 %v927
        %v3957 = vpop.f32.mrb[0].mxu0
        %v3958 = vadd.f32 %v3918, %v3957
        %v3959 = vpop.f32.mrb[0].mxu0
        %v3960 = vpop.f32.mrb[0].mxu0
        %v3961 = vpop.f32.mrb[0].mxu0
        %3962 = vdwg.mxu0
        %3963 = vmatprep.subr.bf16.mxu0 0
        %3964 = vmatpush1.bf16.msra.mxu0 %v2796
        %3965 = vmatprep.subr.bf16.mxu0 0
        %3966 = vmatpush1.bf16.msra.mxu0 %v2799
        %3967 = vmatprep.subr.bf16.mxu0 0
        %3968 = vmatpush1.bf16.msra.mxu0 %v2802
        %3969 = vmatprep.subr.bf16.mxu0 0
        %3970 = vmatpush1.bf16.msra.mxu0 %v2805
        %3971 = vmatprep.subr.bf16.mxu0 0
        %3972 = vmatpush1.bf16.msra.mxu0 %v2808
        %3973 = vmatprep.subr.bf16.mxu0 0
        %3974 = vmatpush1.bf16.msra.mxu0 %v2811
        %3975 = vmatprep.subr.bf16.mxu0 0
        %3976 = vmatpush1.bf16.msra.mxu0 %v2814
        %3977 = vmatprep.subr.bf16.mxu0 0
        %3978 = vmatpush1.bf16.msra.mxu0 %v2817
        %3979 = vmatprep.subr.bf16.mxu0 0
        %3980 = vmatpush1.bf16.msra.mxu0 %v2820
        %3981 = vmatprep.subr.bf16.mxu0 0
        %3982 = vmatpush1.bf16.msra.mxu0 %v2823
        %3983 = vmatprep.subr.bf16.mxu0 0
        %3984 = vmatpush1.bf16.msra.mxu0 %v2826
        %3985 = vmatprep.subr.bf16.mxu0 0
        %3986 = vmatpush1.bf16.msra.mxu0 %v2829
        %3987 = vmatprep.subr.bf16.mxu0 0
        %3988 = vmatpush1.bf16.msra.mxu0 %v2832
        %3989 = vmatprep.subr.bf16.mxu0 0
        %3990 = vmatpush1.bf16.msra.mxu0 %v2835
        %3991 = vmatprep.subr.bf16.mxu0 0
        %3992 = vmatpush1.bf16.msra.mxu0 %v2838
        %3993 = vmatprep.subr.bf16.mxu0 0
        %3994 = vmatpush1.bf16.msra.mxu0 %v2841
        %3995 = vmatprep.mubr.bf16.mxu0 %v951
        %3996 = vmatmul.mubr.bf16.gmra.mrb[0].mxu0 %v944
        %v3997 = vpop.f32.mrb[0].mxu0
        %v3998 = vadd.f32 %v3958, %v3997
        %v3999 = vpop.f32.mrb[0].mxu0
        %v4000 = vpop.f32.mrb[0].mxu0
        %v4001 = vpop.f32.mrb[0].mxu0
        %4002 = vdwg.mxu0
        %vm4003 = vcmp.ge.f32.partialorder %v3637, 0.0
        %vm4004 = vcmp.ge.f32.partialorder %v3639, 0.0
        %vm4005 = vcmp.ge.f32.partialorder %v3998, 0.0
        %v4006 = vmul.f32 %v3637, 0.3
        %v4007 = vmul.f32 %v3639, 0.3
        %v4008 = vmul.f32 %v3998, 0.3
        %v4009 = vsel %vm4003, %v3637, %v4006
        %v4010 = vsel %vm4004, %v3639, %v4007
        %v4011 = vsel %vm4005, %v3998, %v4008
        %v4015 = vcombine.low %v4009, %v4010
        %v4017 = vunpack.c.l.s4 1983009808
        %v4018 = vunpack.c.0.s8 %v4017
        %v4019 = vlaneseq
        %v4020 = vshrl.u32 %v4019, 7
        %v4021 = vsub.s32 %v4018, %v4020
        %v4022 = vrot.slane %v4015, %v4021
        %v4024 = vunpack.c.l.s4 1983009808
        %v4025 = vunpack.c.0.s8 %v4024
        %v4026 = vlaneseq
        %v4027 = vshrl.u32 %v4026, 7
        %v4028 = vsub.s32 %v4025, %v4027
        %v4029 = vrot.slane %v4011, %v4028
        %v4030 = vcombine.low %v4022, %v4029
        %4032 = vst [vmem:[%s230] sm:$0x3f] %v4030
        %s4033 = smul.u32 3, %s20
        %p4034 = scmp.lt.s32.totalorder %s4033, 8
        %s4035 = scalar_select %p4034, %s4033, 8
        %s4036 = smul.addr %s4035, 2
        %s4037 = scalar_lea.vmem %s3, %s4036
        // Predicated region
        $region41: #{forward.2} parent=31 // pred_check
          %p4038 = pneg %p111
        $region42: #{forward.2} parent=31 // pred_check_branch
          %4040 = sbr.rel (%p4038) target = $region44
        $region43: #{forward.2} parent=31 // pred_region
          %s4041 = smul.u32 3, %s20
        $region44: #{forward.2} parent=31 // pred_fallthru
          _
      $region32: #{forward.2} parent=5 // pred_fallthru
        _
      %p4042 = scmp.le.s32.totalorder 2, %s15
      // Predicated region
      $region45: #{forward.2} parent=5 // pred_check
        %p4043 = pneg %p4042
      $region46: #{forward.2} parent=5 // pred_check_branch
        %4045 = sbr.rel (%p4043) target = $region48
      $region47: #{forward.2} parent=5 // pred_region
        %s4046 = ssub.s32 %s15, 2
        // Predicated region
        $region49: #{forward.2} parent=47 // pred_check
          %p4047 = pneg %p117
        $region50: #{forward.2} parent=47 // pred_check_branch
          %4049 = sbr.rel (%p4047) target = $region52
        $region51: #{forward.2} parent=47 // pred_region
          %s4050 = smul.u32 3, %s21
          %p4051 = scmp.lt.s32.totalorder %s4050, 8
          %s4052 = scalar_select %p4051, %s4050, 8
          %s4053 = smul.addr %s4052, 2
          %s4054 = scalar_lea.vmem %s3, %s4053
        $region52: #{forward.2} parent=47 // pred_fallthru
          _
      $region48: #{forward.2} parent=5 // pred_fallthru
        _
    $region6: #{forward.2} parent=1 // loop_footer
      %s19 = sadd.s32 1, %s15
    $region7: #{forward.2} parent=1 // loop_footer_branch
      %14 = sbr.rel target = $region3
    $region8: #{forward.2} parent=1 // loop_exit
      _
    %4055 = vsyncpa [#allocation3], 1
    %s4056 = scalar_lea.sflag [#allocation3], 1
    %4057 = vsyncpa %s4056, 1
    %4058 = vsyncpa [#allocation5], 1
    %s4059 = scalar_lea.sflag [#allocation5], 1
    %4060 = vsyncpa %s4059, 1

// kernel: forward.3
$region0: #{forward.3}
  #allocation0 [shape = 'u32[]', space=smem, size = 0x4, offset = 0x4, fixed_abs, tag = 'smem constant byte address 0x4 - core index']
  #allocation1 [shape = 'u32[144,128]{1,0:T(1,128)}', space=vmem, size = 0x12000, scoped, tag = 'internal scratch']
  #allocation2 [shape = 'f32[2,18]{1,0:T(2,128)}', space=vmem, size = 0x400, scoped, tag = 'scratch operand']
  %s0 = inlined_call_operand.vmem [shape: f32[34,67], index: 0, kind: input, shape index: {}]
  %s1 = inlined_call_operand.vmem [shape: f32[67,201], index: 1, kind: input, shape index: {}]
  %s2 = inlined_call_operand.vmem [shape: f32[204,102], index: 2, kind: input, shape index: {}]
  %s3 = inlined_call_operand.vmem [shape: f32[204,3], index: 3, kind: input, shape index: {}]
  %s4 = inlined_call_operand.vmem [shape: f32[67,102], index: 4, kind: input, shape index: {}]
  %s5 = inlined_call_operand.vmem [shape: f32[288,612], index: 5, kind: input, shape index: {}]
  %s6 = inlined_call_operand.vmem [shape: f32[288,3], index: 6, kind: input, shape index: {}]
  %s7 = inlined_call_operand.vmem [shape: f32[34,68], index: 7, kind: input, shape index: {}]
  %s8 = inlined_call_operand.vmem [shape: f32[64,1152], index: 8, kind: input, shape index: {}]
  %s9 = inlined_call_operand.vmem [shape: f32[64,3], index: 9, kind: input, shape index: {}]
  %s10 = inlined_call_operand.vmem [shape: f32[17,27], index: 10, kind: input, shape index: {}]
  %s11 = inlined_call_operand.vmem [shape: f32[4,192], index: 11, kind: input, shape index: {}]
  %s12 = inlined_call_operand.vmem [shape: f32[4,3], index: 12, kind: input, shape index: {}]
  %s13 = inlined_call_operand.vmem [shape: f32[18,10], index: 13, kind: input, shape index: {}]
  %s14 = inlined_call_operand.vmem [shape: f32[1,10], index: 14, kind: input, shape index: {}]
  %s15 = inlined_call_operand.vmem [shape: f32[10,3], index: 15, kind: input, shape index: {}]
  %s16 = inlined_call_operand.vmem [shape: f32[1,3], index: 16, kind: input, shape index: {}]
  %s17 = inlined_call_operand.hbm [shape: f32[2,3], index: 17, kind: output, shape index: {}]
  %s18 = sld [smem:[#allocation0]]
  $region78: #{forward.3} parent=0
    _
  %s20 = ssub.s32 1, %s18
  %s21 = scalar_select 0, %s20, %s18
  $region1: #{forward.3} parent=0
    #allocation3 [shape = 'u8[1024]{0}', space=vmem, size = 0x400, scoped, tag = 'output window, operand 0, single buffered']
    #allocation4 [shape = 's32[1]{0}', space=sflag, size = 0x4, scoped, tag = 'scoped memory for forward.3']
    %22 = vsyncpa [#allocation4], 0
    // Predicated region
    $region2: #{forward.3} parent=1 // pred_check
      _
    $region3: #{forward.3} parent=1 // pred_check_branch
      %24 = sbr.rel (0) target = $region5
    $region4: #{forward.3} parent=1 // pred_region
      _
    $region5: #{forward.3} parent=1 // pred_fallthru
      _
    // Predicated region
    $region6: #{forward.3} parent=1 // pred_check
      _
    $region7: #{forward.3} parent=1 // pred_check_branch
      %26 = sbr.rel (0) target = $region9
    $region8: #{forward.3} parent=1 // pred_region
      _
    $region9: #{forward.3} parent=1 // pred_fallthru
      _
    // Predicated region
    $region10: #{forward.3} parent=1 // pred_check
      _
    $region11: #{forward.3} parent=1 // pred_check_branch
      %28 = sbr.rel (0) target = $region13
    $region12: #{forward.3} parent=1 // pred_region
      _
    $region13: #{forward.3} parent=1 // pred_fallthru
      _
    // Predicated region
    $region14: #{forward.3} parent=1 // pred_check
      _
    $region15: #{forward.3} parent=1 // pred_check_branch
      %30 = sbr.rel (0) target = $region17
    $region16: #{forward.3} parent=1 // pred_region
      _
    $region17: #{forward.3} parent=1 // pred_fallthru
      _
    // Predicated region
    $region18: #{forward.3} parent=1 // pred_check
      _
    $region19: #{forward.3} parent=1 // pred_check_branch
      %32 = sbr.rel (0) target = $region21
    $region20: #{forward.3} parent=1 // pred_region
      _
    $region21: #{forward.3} parent=1 // pred_fallthru
      _
    // Predicated region
    $region22: #{forward.3} parent=1 // pred_check
      _
    $region23: #{forward.3} parent=1 // pred_check_branch
      %34 = sbr.rel (0) target = $region25
    $region24: #{forward.3} parent=1 // pred_region
      _
    $region25: #{forward.3} parent=1 // pred_fallthru
      _
    // Predicated region
    $region26: #{forward.3} parent=1 // pred_check
      _
    $region27: #{forward.3} parent=1 // pred_check_branch
      %36 = sbr.rel (0) target = $region29
    $region28: #{forward.3} parent=1 // pred_region
      _
    $region29: #{forward.3} parent=1 // pred_fallthru
      _
    // Predicated region
    $region30: #{forward.3} parent=1 // pred_check
      _
    $region31: #{forward.3} parent=1 // pred_check_branch
      %38 = sbr.rel (0) target = $region33
    $region32: #{forward.3} parent=1 // pred_region
      _
    $region33: #{forward.3} parent=1 // pred_fallthru
      _
    // Predicated region
    $region34: #{forward.3} parent=1 // pred_check
      _
    $region35: #{forward.3} parent=1 // pred_check_branch
      %40 = sbr.rel (0) target = $region37
    $region36: #{forward.3} parent=1 // pred_region
      _
    $region37: #{forward.3} parent=1 // pred_fallthru
      _
    // Predicated region
    $region38: #{forward.3} parent=1 // pred_check
      _
    $region39: #{forward.3} parent=1 // pred_check_branch
      %42 = sbr.rel (0) target = $region41
    $region40: #{forward.3} parent=1 // pred_region
      _
    $region41: #{forward.3} parent=1 // pred_fallthru
      _
    // Predicated region
    $region42: #{forward.3} parent=1 // pred_check
      _
    $region43: #{forward.3} parent=1 // pred_check_branch
      %44 = sbr.rel (0) target = $region45
    $region44: #{forward.3} parent=1 // pred_region
      _
    $region45: #{forward.3} parent=1 // pred_fallthru
      _
    // Predicated region
    $region46: #{forward.3} parent=1 // pred_check
      _
    $region47: #{forward.3} parent=1 // pred_check_branch
      %46 = sbr.rel (0) target = $region49
    $region48: #{forward.3} parent=1 // pred_region
      _
    $region49: #{forward.3} parent=1 // pred_fallthru
      _
    // Predicated region
    $region50: #{forward.3} parent=1 // pred_check
      _
    $region51: #{forward.3} parent=1 // pred_check_branch
      %48 = sbr.rel (0) target = $region53
    $region52: #{forward.3} parent=1 // pred_region
      _
    $region53: #{forward.3} parent=1 // pred_fallthru
      _
    // Predicated region
    $region54: #{forward.3} parent=1 // pred_check
      _
    $region55: #{forward.3} parent=1 // pred_check_branch
      %50 = sbr.rel (0) target = $region57
    $region56: #{forward.3} parent=1 // pred_region
      _
    $region57: #{forward.3} parent=1 // pred_fallthru
      _
    // Predicated region
    $region58: #{forward.3} parent=1 // pred_check
      _
    $region59: #{forward.3} parent=1 // pred_check_branch
      %52 = sbr.rel (0) target = $region61
    $region60: #{forward.3} parent=1 // pred_region
      _
    $region61: #{forward.3} parent=1 // pred_fallthru
      _
    // Predicated region
    $region62: #{forward.3} parent=1 // pred_check
      _
    $region63: #{forward.3} parent=1 // pred_check_branch
      %54 = sbr.rel (0) target = $region65
    $region64: #{forward.3} parent=1 // pred_region
      _
    $region65: #{forward.3} parent=1 // pred_fallthru
      _
    // Predicated region
    $region66: #{forward.3} parent=1 // pred_check
      _
    $region67: #{forward.3} parent=1 // pred_check_branch
      %56 = sbr.rel (0) target = $region69
    $region68: #{forward.3} parent=1 // pred_region
      _
    $region69: #{forward.3} parent=1 // pred_fallthru
      _
    %v57 = vld [vmem:[%s0] sm:$0xff]
    %v58 = vld [vmem:[%s0 + $0x8] sm:$0xff]
    %v59 = vld [vmem:[%s0 + $0x10] sm:$0xff]
    %v60 = vld [vmem:[%s0 + $0x18] sm:$0xff]
    %v61 = vld [vmem:[%s0 + $0x20] sm:$0x3]
    %v62 = vld [vmem:[%s1] sm:$0xff]
    %v63 = vld [vmem:[%s1 + $0x8] sm:$0xff]
    %v64 = vld [vmem:[%s1 + $0x10] sm:$0xff]
    %v65 = vld [vmem:[%s1 + $0x18] sm:$0xff]
    %v66 = vld [vmem:[%s1 + $0x20] sm:$0xff]
    %v67 = vld [vmem:[%s1 + $0x28] sm:$0xff]
    %v68 = vld [vmem:[%s1 + $0x30] sm:$0xff]
    %v69 = vld [vmem:[%s1 + $0x38] sm:$0xff]
    %v70 = vld [vmem:[%s1 + $0x40] sm:$0xff]
    %v71 = vld [vmem:[%s1 + $0x48] sm:$0xff]
    %v72 = vld [vmem:[%s1 + $0x50] sm:$0xff]
    %v73 = vld [vmem:[%s1 + $0x58] sm:$0xff]
    %v74 = vld [vmem:[%s1 + $0x60] sm:$0xff]
    %v75 = vld [vmem:[%s1 + $0x68] sm:$0xff]
    %v76 = vld [vmem:[%s1 + $0x70] sm:$0xff]
    %v77 = vld [vmem:[%s1 + $0x78] sm:$0xff]
    %v78 = vld [vmem:[%s1 + $0x80] sm:$0x7]
    %v79 = vld [vmem:[%s1 + $0x88] sm:$0x7]
    %vm80 = vcmask 547840
    %v82 = vsel %vm80, %v57, 0
    %v85 = vsel %vm80, %v58, 0
    %v88 = vsel %vm80, %v59, 0
    %v91 = vsel %vm80, %v60, 0
    %v94 = vsel %vm80, %v61, 0
    %vm96 = vcmask 1042432
    %v98 = vsel %vm96, %v78, 0
    %v101 = vsel %vm96, %v79, 0
    %103 = vmatprep.subr.mxu0 %v63
    %104 = vmatpush1.msra.mxu0 %v62
    %105 = vmatprep.subr.mxu0 %v65
    %106 = vmatpush1.msra.mxu0 %v64
    %107 = vmatprep.subr.mxu0 %v67
    %108 = vmatpush1.msra.mxu0 %v66
    %109 = vmatprep.subr.mxu0 %v69
    %110 = vmatpush1.msra.mxu0 %v68
    %111 = vmatprep.subr.mxu0 %v71
    %112 = vmatpush1.msra.mxu0 %v70
    %113 = vmatprep.subr.mxu0 %v73
    %114 = vmatpush1.msra.mxu0 %v72
    %115 = vmatprep.subr.mxu0 %v75
    %116 = vmatpush1.msra.mxu0 %v74
    %117 = vmatprep.subr.mxu0 %v77
    %118 = vmatpush1.msra.mxu0 %v76
    %119 = vmatprep.subr.mxu0 %v101
    %120 = vmatpush1.msra.mxu0 %v98
    %121 = vmatprep.subr.mxu0 0.0
    %122 = vmatpush1.msra.mxu0 0.0
    %123 = vmatprep.subr.mxu0 0.0
    %124 = vmatpush1.msra.mxu0 0.0
    %125 = vmatprep.subr.mxu0 0.0
    %126 = vmatpush1.msra.mxu0 0.0
    %127 = vmatprep.subr.mxu0 0.0
    %128 = vmatpush1.msra.mxu0 0.0
    %129 = vmatprep.subr.mxu0 0.0
    %130 = vmatpush1.msra.mxu0 0.0
    %131 = vmatprep.subr.mxu0 0.0
    %132 = vmatpush1.msra.mxu0 0.0
    %133 = vmatprep.subr.mxu0 0.0
    %134 = vmatpush1.msra.mxu0 0.0
    %135 = vmatprep.subr.mxu0 0.0
    %136 = vmatpush1.msra.mxu0 0.0
    %137 = vmatprep.subr.mxu0 0.0
    %138 = vmatpush1.msra.mxu0 0.0
    %139 = vmatprep.subr.mxu0 0.0
    %140 = vmatpush1.msra.mxu0 0.0
    %141 = vmatprep.subr.mxu0 0.0
    %142 = vmatpush1.msra.mxu0 0.0
    %143 = vmatprep.subr.mxu0 0.0
    %144 = vmatpush1.msra.mxu0 0.0
    %145 = vmatprep.subr.mxu0 0.0
    %146 = vmatpush1.msra.mxu0 0.0
    %147 = vmatprep.subr.mxu0 0.0
    %148 = vmatpush1.msra.mxu0 0.0
    %149 = vmatprep.subr.mxu0 0.0
    %150 = vmatpush1.msra.mxu0 0.0
    %151 = vmatprep.subr.mxu0 0.0
    %152 = vmatpush1.msra.mxu0 0.0
    %153 = vmatprep.subr.mxu0 0.0
    %154 = vmatpush1.msra.mxu0 0.0
    %155 = vmatprep.subr.mxu0 0.0
    %156 = vmatpush1.msra.mxu0 0.0
    %157 = vmatprep.subr.mxu0 0.0
    %158 = vmatpush1.msra.mxu0 0.0
    %159 = vmatprep.subr.mxu0 0.0
    %160 = vmatpush1.msra.mxu0 0.0
    %161 = vmatprep.subr.mxu0 0.0
    %162 = vmatpush1.msra.mxu0 0.0
    %163 = vmatprep.subr.mxu0 0.0
    %164 = vmatpush1.msra.mxu0 0.0
    %165 = vmatprep.subr.mxu0 0.0
    %166 = vmatpush1.msra.mxu0 0.0
    %167 = vmatprep.mubr.f32.mxu0 0.0
    %168 = vmatmul.mubr.f32.gmra.mrb[0].mxu0 %v82
    %v169 = vpop.f32.mrb[0].mxu0
    %v170 = vadd.f32 0.0, %v169
    %v171 = vpop.f32.mrb[0].mxu0
    %v172 = vadd.f32 0.0, %v171
    %173 = vmatprep.mubr.f32.mxu0 0.0
    %174 = vmatmul.mubr.f32.gmra.mrb[0].mxu0 %v85
    %v175 = vpop.f32.mrb[0].mxu0
    %v176 = vadd.f32 0.0, %v175
    %v177 = vpop.f32.mrb[0].mxu0
    %v178 = vadd.f32 0.0, %v177
    %179 = vmatprep.mubr.f32.mxu0 0.0
    %180 = vmatmul.mubr.f32.gmra.mrb[0].mxu0 %v88
    %v181 = vpop.f32.mrb[0].mxu0
    %v182 = vadd.f32 0.0, %v181
    %v183 = vpop.f32.mrb[0].mxu0
    %v184 = vadd.f32 0.0, %v183
    %185 = vmatprep.mubr.f32.mxu0 0.0
    %186 = vmatmul.mubr.f32.gmra.mrb[0].mxu0 %v91
    %v187 = vpop.f32.mrb[0].mxu0
    %v188 = vadd.f32 0.0, %v187
    %v189 = vpop.f32.mrb[0].mxu0
    %v190 = vadd.f32 0.0, %v189
    %191 = vmatprep.mubr.f32.mxu0 0.0
    %192 = vmatmul.mubr.f32.gmra.mrb[0].mxu0 %v94
    %v193 = vpop.f32.mrb[0].mxu0
    %v194 = vadd.f32 0.0, %v193
    %v195 = vpop.f32.mrb[0].mxu0
    %v196 = vadd.f32 0.0, %v195
    %197 = vdwg.mxu0
    %v198 = vld [vmem:[%s2] sm:$0xff]
    %v199 = vld [vmem:[%s2 + $0x8] sm:$0xff]
    %v200 = vld [vmem:[%s2 + $0x10] sm:$0xff]
    %v201 = vld [vmem:[%s2 + $0x18] sm:$0xff]
    %v202 = vld [vmem:[%s2 + $0x20] sm:$0xff]
    %v203 = vld [vmem:[%s2 + $0x28] sm:$0xff]
    %v204 = vld [vmem:[%s2 + $0x30] sm:$0xff]
    %v205 = vld [vmem:[%s2 + $0x38] sm:$0xff]
    %v206 = vld [vmem:[%s2 + $0x40] sm:$0xff]
    %v207 = vld [vmem:[%s2 + $0x48] sm:$0xff]
    %v208 = vld [vmem:[%s2 + $0x50] sm:$0xff]
    %v209 = vld [vmem:[%s2 + $0x58] sm:$0xff]
    %v210 = vld [vmem:[%s2 + $0x60] sm:$0xff]
    %v211 = vld [vmem:[%s2 + $0x68] sm:$0xff]
    %v212 = vld [vmem:[%s2 + $0x70] sm:$0xff]
    %v213 = vld [vmem:[%s2 + $0x78] sm:$0xff]
    %v214 = vld [vmem:[%s2 + $0x80] sm:$0xff]
    %v215 = vld [vmem:[%s2 + $0x88] sm:$0xff]
    %v216 = vld [vmem:[%s2 + $0x90] sm:$0xff]
    %v217 = vld [vmem:[%s2 + $0x98] sm:$0xff]
    %v218 = vld [vmem:[%s2 + $0xa0] sm:$0xff]
    %v219 = vld [vmem:[%s2 + $0xa8] sm:$0xff]
    %v220 = vld [vmem:[%s2 + $0xb0] sm:$0xff]
    %v221 = vld [vmem:[%s2 + $0xb8] sm:$0xff]
    %v222 = vld [vmem:[%s2 + $0xc0] sm:$0xff]
    %v223 = vld [vmem:[%s2 + $0xc8] sm:$0xf]
    %250 = vrot.lane.b32.xlu0 %v198, 94
    %v251 = vpop.permute.xlu0 %250
    %252 = vrot.lane.b32.xlu0 %v199, 94
    %v253 = vpop.permute.xlu0 %252
    %254 = vrot.lane.b32.xlu0 %v200, 94
    %v255 = vpop.permute.xlu0 %254
    %256 = vrot.lane.b32.xlu0 %v201, 94
    %v257 = vpop.permute.xlu0 %256
    %258 = vrot.lane.b32.xlu0 %v202, 94
    %v259 = vpop.permute.xlu0 %258
    %260 = vrot.lane.b32.xlu0 %v203, 94
    %v261 = vpop.permute.xlu0 %260
    %262 = vrot.lane.b32.xlu0 %v204, 94
    %v263 = vpop.permute.xlu0 %262
    %264 = vrot.lane.b32.xlu0 %v205, 94
    %v265 = vpop.permute.xlu0 %264
    %266 = vrot.lane.b32.xlu0 %v206, 94
    %v267 = vpop.permute.xlu0 %266
    %268 = vrot.lane.b32.xlu0 %v207, 94
    %v269 = vpop.permute.xlu0 %268
    %270 = vrot.lane.b32.xlu0 %v208, 94
    %v271 = vpop.permute.xlu0 %270
    %272 = vrot.lane.b32.xlu0 %v209, 94
    %v273 = vpop.permute.xlu0 %272
    %274 = vrot.lane.b32.xlu0 %v210, 94
    %v275 = vpop.permute.xlu0 %274
    %276 = vrot.lane.b32.xlu0 %v211, 94
    %v277 = vpop.permute.xlu0 %276
    %278 = vrot.lane.b32.xlu0 %v212, 94
    %v279 = vpop.permute.xlu0 %278
    %280 = vrot.lane.b32.xlu0 %v213, 94
    %v281 = vpop.permute.xlu0 %280
    %282 = vrot.lane.b32.xlu0 %v214, 94
    %v283 = vpop.permute.xlu0 %282
    %284 = vrot.lane.b32.xlu0 %v215, 94
    %v285 = vpop.permute.xlu0 %284
    %286 = vrot.lane.b32.xlu0 %v216, 94
    %v287 = vpop.permute.xlu0 %286
    %288 = vrot.lane.b32.xlu0 %v217, 94
    %v289 = vpop.permute.xlu0 %288
    %290 = vrot.lane.b32.xlu0 %v218, 94
    %v291 = vpop.permute.xlu0 %290
    %292 = vrot.lane.b32.xlu0 %v219, 94
    %v293 = vpop.permute.xlu0 %292
    %294 = vrot.lane.b32.xlu0 %v220, 94
    %v295 = vpop.permute.xlu0 %294
    %296 = vrot.lane.b32.xlu0 %v221, 94
    %v297 = vpop.permute.xlu0 %296
    %298 = vrot.lane.b32.xlu0 %v222, 94
    %v299 = vpop.permute.xlu0 %298
    %300 = vrot.lane.b32.xlu0 %v223, 94
    %v301 = vpop.permute.xlu0 %300
    %312 = vrot.lane.b32.xlu0 %v170, 61
    %v313 = vpop.permute.xlu0 %312
    %314 = vrot.lane.b32.xlu0 %v172, 61
    %v315 = vpop.permute.xlu0 %314
    %316 = vrot.lane.b32.xlu0 %v176, 61
    %v317 = vpop.permute.xlu0 %316
    %318 = vrot.lane.b32.xlu0 %v178, 61
    %v319 = vpop.permute.xlu0 %318
    %320 = vrot.lane.b32.xlu0 %v182, 61
    %v321 = vpop.permute.xlu0 %320
    %322 = vrot.lane.b32.xlu0 %v184, 61
    %v323 = vpop.permute.xlu0 %322
    %324 = vrot.lane.b32.xlu0 %v188, 61
    %v325 = vpop.permute.xlu0 %324
    %326 = vrot.lane.b32.xlu0 %v190, 61
    %v327 = vpop.permute.xlu0 %326
    %328 = vrot.lane.b32.xlu0 %v194, 61
    %v329 = vpop.permute.xlu0 %328
    %330 = vrot.lane.b32.xlu0 %v196, 61
    %v331 = vpop.permute.xlu0 %330
    %vm332 = vcmask 498688
    %v333 = vsel %vm332, %v313, %v315
    %v334 = vsel %vm332, %v317, %v319
    %v335 = vsel %vm332, %v321, %v323
    %v336 = vsel %vm332, %v325, %v327
    %v337 = vsel %vm332, %v329, %v331
    %vm342 = vcmask 277504
    %v343 = vsel %vm342, %v251, 0
    %v345 = vsel %vm342, %v253, 0
    %v347 = vsel %vm342, %v255, 0
    %v349 = vsel %vm342, %v257, 0
    %v351 = vsel %vm342, %v259, 0
    %v353 = vsel %vm342, %v261, 0
    %v355 = vsel %vm342, %v263, 0
    %v357 = vsel %vm342, %v265, 0
    %v359 = vsel %vm342, %v267, 0
    %v361 = vsel %vm342, %v269, 0
    %v363 = vsel %vm342, %v271, 0
    %v365 = vsel %vm342, %v273, 0
    %v367 = vsel %vm342, %v275, 0
    %v369 = vsel %vm342, %v277, 0
    %v371 = vsel %vm342, %v279, 0
    %v373 = vsel %vm342, %v281, 0
    %v375 = vsel %vm342, %v283, 0
    %v377 = vsel %vm342, %v285, 0
    %v379 = vsel %vm342, %v287, 0
    %v381 = vsel %vm342, %v289, 0
    %v383 = vsel %vm342, %v291, 0
    %v385 = vsel %vm342, %v293, 0
    %v387 = vsel %vm342, %v295, 0
    %v389 = vsel %vm342, %v297, 0
    %v391 = vsel %vm342, %v299, 0
    %v393 = vsel %vm342, %v301, 0
    %vm395 = vcmask 1041408
    %v396 = vsel %vm395, %v337, 0
    %398 = vmatprep.subr.mxu0 0.0
    %399 = vmatpush1.msra.mxu0 %v333
    %400 = vmatprep.subr.mxu0 0.0
    %401 = vmatpush1.msra.mxu0 %v334
    %402 = vmatprep.subr.mxu0 0.0
    %403 = vmatpush1.msra.mxu0 %v335
    %404 = vmatprep.subr.mxu0 0.0
    %405 = vmatpush1.msra.mxu0 %v336
    %406 = vmatprep.subr.mxu0 0.0
    %407 = vmatpush1.msra.mxu0 %v396
    %408 = vmatprep.subr.mxu0 0.0
    %409 = vmatpush1.msra.mxu0 0.0
    %410 = vmatprep.subr.mxu0 0.0
    %411 = vmatpush1.msra.mxu0 0.0
    %412 = vmatprep.subr.mxu0 0.0
    %413 = vmatpush1.msra.mxu0 0.0
    %414 = vmatprep.subr.mxu0 0.0
    %415 = vmatpush1.msra.mxu0 0.0
    %416 = vmatprep.subr.mxu0 0.0
    %417 = vmatpush1.msra.mxu0 0.0
    %418 = vmatprep.subr.mxu0 0.0
    %419 = vmatpush1.msra.mxu0 0.0
    %420 = vmatprep.subr.mxu0 0.0
    %421 = vmatpush1.msra.mxu0 0.0
    %422 = vmatprep.subr.mxu0 0.0
    %423 = vmatpush1.msra.mxu0 0.0
    %424 = vmatprep.subr.mxu0 0.0
    %425 = vmatpush1.msra.mxu0 0.0
    %426 = vmatprep.subr.mxu0 0.0
    %427 = vmatpush1.msra.mxu0 0.0
    %428 = vmatprep.subr.mxu0 0.0
    %429 = vmatpush1.msra.mxu0 0.0
    %430 = vmatprep.subr.mxu0 0.0
    %431 = vmatpush1.msra.mxu0 0.0
    %432 = vmatprep.subr.mxu0 0.0
    %433 = vmatpush1.msra.mxu0 0.0
    %434 = vmatprep.subr.mxu0 0.0
    %435 = vmatpush1.msra.mxu0 0.0
    %436 = vmatprep.subr.mxu0 0.0
    %437 = vmatpush1.msra.mxu0 0.0
    %438 = vmatprep.subr.mxu0 0.0
    %439 = vmatpush1.msra.mxu0 0.0
    %440 = vmatprep.subr.mxu0 0.0
    %441 = vmatpush1.msra.mxu0 0.0
    %442 = vmatprep.subr.mxu0 0.0
    %443 = vmatpush1.msra.mxu0 0.0
    %444 = vmatprep.subr.mxu0 0.0
    %445 = vmatpush1.msra.mxu0 0.0
    %446 = vmatprep.subr.mxu0 0.0
    %447 = vmatpush1.msra.mxu0 0.0
    %448 = vmatprep.subr.mxu0 0.0
    %449 = vmatpush1.msra.mxu0 0.0
    %450 = vmatprep.subr.mxu0 0.0
    %451 = vmatpush1.msra.mxu0 0.0
    %452 = vmatprep.subr.mxu0 0.0
    %453 = vmatpush1.msra.mxu0 0.0
    %454 = vmatprep.subr.mxu0 0.0
    %455 = vmatpush1.msra.mxu0 0.0
    %456 = vmatprep.subr.mxu0 0.0
    %457 = vmatpush1.msra.mxu0 0.0
    %458 = vmatprep.subr.mxu0 0.0
    %459 = vmatpush1.msra.mxu0 0.0
    %460 = vmatprep.subr.mxu0 0.0
    %461 = vmatpush1.msra.mxu0 0.0
    %462 = vmatprep.mubr.f32.mxu0 0.0
    %463 = vmatmul.mubr.f32.gmra.mrb[0].mxu0 %v343
    %v464 = vpop.f32.mrb[0].mxu0
    %v465 = vadd.f32 0.0, %v464
    %v466 = vpop.f32.mrb[0].mxu0
    %467 = vmatprep.mubr.f32.mxu0 0.0
    %468 = vmatmul.mubr.f32.gmra.mrb[0].mxu0 %v345
    %v469 = vpop.f32.mrb[0].mxu0
    %v470 = vadd.f32 0.0, %v469
    %v471 = vpop.f32.mrb[0].mxu0
    %472 = vmatprep.mubr.f32.mxu0 0.0
    %473 = vmatmul.mubr.f32.gmra.mrb[0].mxu0 %v347
    %v474 = vpop.f32.mrb[0].mxu0
    %v475 = vadd.f32 0.0, %v474
    %v476 = vpop.f32.mrb[0].mxu0
    %477 = vmatprep.mubr.f32.mxu0 0.0
    %478 = vmatmul.mubr.f32.gmra.mrb[0].mxu0 %v349
    %v479 = vpop.f32.mrb[0].mxu0
    %v480 = vadd.f32 0.0, %v479
    %v481 = vpop.f32.mrb[0].mxu0
    %482 = vmatprep.mubr.f32.mxu0 0.0
    %483 = vmatmul.mubr.f32.gmra.mrb[0].mxu0 %v351
    %v484 = vpop.f32.mrb[0].mxu0
    %v485 = vadd.f32 0.0, %v484
    %v486 = vpop.f32.mrb[0].mxu0
    %487 = vmatprep.mubr.f32.mxu0 0.0
    %488 = vmatmul.mubr.f32.gmra.mrb[0].mxu0 %v353
    %v489 = vpop.f32.mrb[0].mxu0
    %v490 = vadd.f32 0.0, %v489
    %v491 = vpop.f32.mrb[0].mxu0
    %492 = vmatprep.mubr.f32.mxu0 0.0
    %493 = vmatmul.mubr.f32.gmra.mrb[0].mxu0 %v355
    %v494 = vpop.f32.mrb[0].mxu0
    %v495 = vadd.f32 0.0, %v494
    %v496 = vpop.f32.mrb[0].mxu0
    %497 = vmatprep.mubr.f32.mxu0 0.0
    %498 = vmatmul.mubr.f32.gmra.mrb[0].mxu0 %v357
    %v499 = vpop.f32.mrb[0].mxu0
    %v500 = vadd.f32 0.0, %v499
    %v501 = vpop.f32.mrb[0].mxu0
    %502 = vmatprep.mubr.f32.mxu0 0.0
    %503 = vmatmul.mubr.f32.gmra.mrb[0].mxu0 %v359
    %v504 = vpop.f32.mrb[0].mxu0
    %v505 = vadd.f32 0.0, %v504
    %v506 = vpop.f32.mrb[0].mxu0
    %507 = vmatprep.mubr.f32.mxu0 0.0
    %508 = vmatmul.mubr.f32.gmra.mrb[0].mxu0 %v361
    %v509 = vpop.f32.mrb[0].mxu0
    %v510 = vadd.f32 0.0, %v509
    %v511 = vpop.f32.mrb[0].mxu0
    %512 = vmatprep.mubr.f32.mxu0 0.0
    %513 = vmatmul.mubr.f32.gmra.mrb[0].mxu0 %v363
    %v514 = vpop.f32.mrb[0].mxu0
    %v515 = vadd.f32 0.0, %v514
    %v516 = vpop.f32.mrb[0].mxu0
    %517 = vmatprep.mubr.f32.mxu0 0.0
    %518 = vmatmul.mubr.f32.gmra.mrb[0].mxu0 %v365
    %v519 = vpop.f32.mrb[0].mxu0
    %v520 = vadd.f32 0.0, %v519
    %v521 = vpop.f32.mrb[0].mxu0
    %522 = vmatprep.mubr.f32.mxu0 0.0
    %523 = vmatmul.mubr.f32.gmra.mrb[0].mxu0 %v367
    %v524 = vpop.f32.mrb[0].mxu0
    %v525 = vadd.f32 0.0, %v524
    %v526 = vpop.f32.mrb[0].mxu0
    %527 = vmatprep.mubr.f32.mxu0 0.0
    %528 = vmatmul.mubr.f32.gmra.mrb[0].mxu0 %v369
    %v529 = vpop.f32.mrb[0].mxu0
    %v530 = vadd.f32 0.0, %v529
    %v531 = vpop.f32.mrb[0].mxu0
    %532 = vmatprep.mubr.f32.mxu0 0.0
    %533 = vmatmul.mubr.f32.gmra.mrb[0].mxu0 %v371
    %v534 = vpop.f32.mrb[0].mxu0
    %v535 = vadd.f32 0.0, %v534
    %v536 = vpop.f32.mrb[0].mxu0
    %537 = vmatprep.mubr.f32.mxu0 0.0
    %538 = vmatmul.mubr.f32.gmra.mrb[0].mxu0 %v373
    %v539 = vpop.f32.mrb[0].mxu0
    %v540 = vadd.f32 0.0, %v539
    %v541 = vpop.f32.mrb[0].mxu0
    %542 = vmatprep.mubr.f32.mxu0 0.0
    %543 = vmatmul.mubr.f32.gmra.mrb[0].mxu0 %v375
    %v544 = vpop.f32.mrb[0].mxu0
    %v545 = vadd.f32 0.0, %v544
    %v546 = vpop.f32.mrb[0].mxu0
    %547 = vmatprep.mubr.f32.mxu0 0.0
    %548 = vmatmul.mubr.f32.gmra.mrb[0].mxu0 %v377
    %v549 = vpop.f32.mrb[0].mxu0
    %v550 = vadd.f32 0.0, %v549
    %v551 = vpop.f32.mrb[0].mxu0
    %552 = vmatprep.mubr.f32.mxu0 0.0
    %553 = vmatmul.mubr.f32.gmra.mrb[0].mxu0 %v379
    %v554 = vpop.f32.mrb[0].mxu0
    %v555 = vadd.f32 0.0, %v554
    %v556 = vpop.f32.mrb[0].mxu0
    %557 = vmatprep.mubr.f32.mxu0 0.0
    %558 = vmatmul.mubr.f32.gmra.mrb[0].mxu0 %v381
    %v559 = vpop.f32.mrb[0].mxu0
    %v560 = vadd.f32 0.0, %v559
    %v561 = vpop.f32.mrb[0].mxu0
    %562 = vmatprep.mubr.f32.mxu0 0.0
    %563 = vmatmul.mubr.f32.gmra.mrb[0].mxu0 %v383
    %v564 = vpop.f32.mrb[0].mxu0
    %v565 = vadd.f32 0.0, %v564
    %v566 = vpop.f32.mrb[0].mxu0
    %567 = vmatprep.mubr.f32.mxu0 0.0
    %568 = vmatmul.mubr.f32.gmra.mrb[0].mxu0 %v385
    %v569 = vpop.f32.mrb[0].mxu0
    %v570 = vadd.f32 0.0, %v569
    %v571 = vpop.f32.mrb[0].mxu0
    %572 = vmatprep.mubr.f32.mxu0 0.0
    %573 = vmatmul.mubr.f32.gmra.mrb[0].mxu0 %v387
    %v574 = vpop.f32.mrb[0].mxu0
    %v575 = vadd.f32 0.0, %v574
    %v576 = vpop.f32.mrb[0].mxu0
    %577 = vmatprep.mubr.f32.mxu0 0.0
    %578 = vmatmul.mubr.f32.gmra.mrb[0].mxu0 %v389
    %v579 = vpop.f32.mrb[0].mxu0
    %v580 = vadd.f32 0.0, %v579
    %v581 = vpop.f32.mrb[0].mxu0
    %582 = vmatprep.mubr.f32.mxu0 0.0
    %583 = vmatmul.mubr.f32.gmra.mrb[0].mxu0 %v391
    %v584 = vpop.f32.mrb[0].mxu0
    %v585 = vadd.f32 0.0, %v584
    %v586 = vpop.f32.mrb[0].mxu0
    %587 = vmatprep.mubr.f32.mxu0 0.0
    %588 = vmatmul.mubr.f32.gmra.mrb[0].mxu0 %v393
    %v589 = vpop.f32.mrb[0].mxu0
    %v590 = vadd.f32 0.0, %v589
    %v591 = vpop.f32.mrb[0].mxu0
    %592 = vdwg.mxu0
    %v593 = vsel %vm342, %v198, 0
    %v595 = vsel %vm342, %v199, 0
    %v597 = vsel %vm342, %v200, 0
    %v599 = vsel %vm342, %v201, 0
    %v601 = vsel %vm342, %v202, 0
    %v603 = vsel %vm342, %v203, 0
    %v605 = vsel %vm342, %v204, 0
    %v607 = vsel %vm342, %v205, 0
    %v609 = vsel %vm342, %v206, 0
    %v611 = vsel %vm342, %v207, 0
    %v613 = vsel %vm342, %v208, 0
    %v615 = vsel %vm342, %v209, 0
    %v617 = vsel %vm342, %v210, 0
    %v619 = vsel %vm342, %v211, 0
    %v621 = vsel %vm342, %v212, 0
    %v623 = vsel %vm342, %v213, 0
    %v625 = vsel %vm342, %v214, 0
    %v627 = vsel %vm342, %v215, 0
    %v629 = vsel %vm342, %v216, 0
    %v631 = vsel %vm342, %v217, 0
    %v633 = vsel %vm342, %v218, 0
    %v635 = vsel %vm342, %v219, 0
    %v637 = vsel %vm342, %v220, 0
    %v639 = vsel %vm342, %v221, 0
    %v641 = vsel %vm342, %v222, 0
    %v643 = vsel %vm342, %v223, 0
    %v645 = vsel %vm395, %v194, 0
    %647 = vmatprep.subr.mxu0 0.0
    %648 = vmatpush1.msra.mxu0 %v170
    %649 = vmatprep.subr.mxu0 0.0
    %650 = vmatpush1.msra.mxu0 %v176
    %651 = vmatprep.subr.mxu0 0.0
    %652 = vmatpush1.msra.mxu0 %v182
    %653 = vmatprep.subr.mxu0 0.0
    %654 = vmatpush1.msra.mxu0 %v188
    %655 = vmatprep.subr.mxu0 0.0
    %656 = vmatpush1.msra.mxu0 %v645
    %657 = vmatprep.subr.mxu0 0.0
    %658 = vmatpush1.msra.mxu0 0.0
    %659 = vmatprep.subr.mxu0 0.0
    %660 = vmatpush1.msra.mxu0 0.0
    %661 = vmatprep.subr.mxu0 0.0
    %662 = vmatpush1.msra.mxu0 0.0
    %663 = vmatprep.subr.mxu0 0.0
    %664 = vmatpush1.msra.mxu0 0.0
    %665 = vmatprep.subr.mxu0 0.0
    %666 = vmatpush1.msra.mxu0 0.0
    %667 = vmatprep.subr.mxu0 0.0
    %668 = vmatpush1.msra.mxu0 0.0
    %669 = vmatprep.subr.mxu0 0.0
    %670 = vmatpush1.msra.mxu0 0.0
    %671 = vmatprep.subr.mxu0 0.0
    %672 = vmatpush1.msra.mxu0 0.0
    %673 = vmatprep.subr.mxu0 0.0
    %674 = vmatpush1.msra.mxu0 0.0
    %675 = vmatprep.subr.mxu0 0.0
    %676 = vmatpush1.msra.mxu0 0.0
    %677 = vmatprep.subr.mxu0 0.0
    %678 = vmatpush1.msra.mxu0 0.0
    %679 = vmatprep.subr.mxu0 0.0
    %680 = vmatpush1.msra.mxu0 0.0
    %681 = vmatprep.subr.mxu0 0.0
    %682 = vmatpush1.msra.mxu0 0.0
    %683 = vmatprep.subr.mxu0 0.0
    %684 = vmatpush1.msra.mxu0 0.0
    %685 = vmatprep.subr.mxu0 0.0
    %686 = vmatpush1.msra.mxu0 0.0
    %687 = vmatprep.subr.mxu0 0.0
    %688 = vmatpush1.msra.mxu0 0.0
    %689 = vmatprep.subr.mxu0 0.0
    %690 = vmatpush1.msra.mxu0 0.0
    %691 = vmatprep.subr.mxu0 0.0
    %692 = vmatpush1.msra.mxu0 0.0
    %693 = vmatprep.subr.mxu0 0.0
    %694 = vmatpush1.msra.mxu0 0.0
    %695 = vmatprep.subr.mxu0 0.0
    %696 = vmatpush1.msra.mxu0 0.0
    %697 = vmatprep.subr.mxu0 0.0
    %698 = vmatpush1.msra.mxu0 0.0
    %699 = vmatprep.subr.mxu0 0.0
    %700 = vmatpush1.msra.mxu0 0.0
    %701 = vmatprep.subr.mxu0 0.0
    %702 = vmatpush1.msra.mxu0 0.0
    %703 = vmatprep.subr.mxu0 0.0
    %704 = vmatpush1.msra.mxu0 0.0
    %705 = vmatprep.subr.mxu0 0.0
    %706 = vmatpush1.msra.mxu0 0.0
    %707 = vmatprep.subr.mxu0 0.0
    %708 = vmatpush1.msra.mxu0 0.0
    %709 = vmatprep.subr.mxu0 0.0
    %710 = vmatpush1.msra.mxu0 0.0
    %711 = vmatprep.mubr.f32.mxu0 0.0
    %712 = vmatmul.mubr.f32.gmra.mrb[0].mxu0 %v593
    %v713 = vpop.f32.mrb[0].mxu0
    %v714 = vadd.f32 %v465, %v713
    %v715 = vpop.f32.mrb[0].mxu0
    %716 = vmatprep.mubr.f32.mxu0 0.0
    %717 = vmatmul.mubr.f32.gmra.mrb[0].mxu0 %v595
    %v718 = vpop.f32.mrb[0].mxu0
    %v719 = vadd.f32 %v470, %v718
    %v720 = vpop.f32.mrb[0].mxu0
    %721 = vmatprep.mubr.f32.mxu0 0.0
    %722 = vmatmul.mubr.f32.gmra.mrb[0].mxu0 %v597
    %v723 = vpop.f32.mrb[0].mxu0
    %v724 = vadd.f32 %v475, %v723
    %v725 = vpop.f32.mrb[0].mxu0
    %726 = vmatprep.mubr.f32.mxu0 0.0
    %727 = vmatmul.mubr.f32.gmra.mrb[0].mxu0 %v599
    %v728 = vpop.f32.mrb[0].mxu0
    %v729 = vadd.f32 %v480, %v728
    %v730 = vpop.f32.mrb[0].mxu0
    %731 = vmatprep.mubr.f32.mxu0 0.0
    %732 = vmatmul.mubr.f32.gmra.mrb[0].mxu0 %v601
    %v733 = vpop.f32.mrb[0].mxu0
    %v734 = vadd.f32 %v485, %v733
    %v735 = vpop.f32.mrb[0].mxu0
    %736 = vmatprep.mubr.f32.mxu0 0.0
    %737 = vmatmul.mubr.f32.gmra.mrb[0].mxu0 %v603
    %v738 = vpop.f32.mrb[0].mxu0
    %v739 = vadd.f32 %v490, %v738
    %v740 = vpop.f32.mrb[0].mxu0
    %741 = vmatprep.mubr.f32.mxu0 0.0
    %742 = vmatmul.mubr.f32.gmra.mrb[0].mxu0 %v605
    %v743 = vpop.f32.mrb[0].mxu0
    %v744 = vadd.f32 %v495, %v743
    %v745 = vpop.f32.mrb[0].mxu0
    %746 = vmatprep.mubr.f32.mxu0 0.0
    %747 = vmatmul.mubr.f32.gmra.mrb[0].mxu0 %v607
    %v748 = vpop.f32.mrb[0].mxu0
    %v749 = vadd.f32 %v500, %v748
    %v750 = vpop.f32.mrb[0].mxu0
    %751 = vmatprep.mubr.f32.mxu0 0.0
    %752 = vmatmul.mubr.f32.gmra.mrb[0].mxu0 %v609
    %v753 = vpop.f32.mrb[0].mxu0
    %v754 = vadd.f32 %v505, %v753
    %v755 = vpop.f32.mrb[0].mxu0
    %756 = vmatprep.mubr.f32.mxu0 0.0
    %757 = vmatmul.mubr.f32.gmra.mrb[0].mxu0 %v611
    %v758 = vpop.f32.mrb[0].mxu0
    %v759 = vadd.f32 %v510, %v758
    %v760 = vpop.f32.mrb[0].mxu0
    %761 = vmatprep.mubr.f32.mxu0 0.0
    %762 = vmatmul.mubr.f32.gmra.mrb[0].mxu0 %v613
    %v763 = vpop.f32.mrb[0].mxu0
    %v764 = vadd.f32 %v515, %v763
    %v765 = vpop.f32.mrb[0].mxu0
    %766 = vmatprep.mubr.f32.mxu0 0.0
    %767 = vmatmul.mubr.f32.gmra.mrb[0].mxu0 %v615
    %v768 = vpop.f32.mrb[0].mxu0
    %v769 = vadd.f32 %v520, %v768
    %v770 = vpop.f32.mrb[0].mxu0
    %771 = vmatprep.mubr.f32.mxu0 0.0
    %772 = vmatmul.mubr.f32.gmra.mrb[0].mxu0 %v617
    %v773 = vpop.f32.mrb[0].mxu0
    %v774 = vadd.f32 %v525, %v773
    %v775 = vpop.f32.mrb[0].mxu0
    %776 = vmatprep.mubr.f32.mxu0 0.0
    %777 = vmatmul.mubr.f32.gmra.mrb[0].mxu0 %v619
    %v778 = vpop.f32.mrb[0].mxu0
    %v779 = vadd.f32 %v530, %v778
    %v780 = vpop.f32.mrb[0].mxu0
    %781 = vmatprep.mubr.f32.mxu0 0.0
    %782 = vmatmul.mubr.f32.gmra.mrb[0].mxu0 %v621
    %v783 = vpop.f32.mrb[0].mxu0
    %v784 = vadd.f32 %v535, %v783
    %v785 = vpop.f32.mrb[0].mxu0
    %786 = vmatprep.mubr.f32.mxu0 0.0
    %787 = vmatmul.mubr.f32.gmra.mrb[0].mxu0 %v623
    %v788 = vpop.f32.mrb[0].mxu0
    %v789 = vadd.f32 %v540, %v788
    %v790 = vpop.f32.mrb[0].mxu0
    %791 = vmatprep.mubr.f32.mxu0 0.0
    %792 = vmatmul.mubr.f32.gmra.mrb[0].mxu0 %v625
    %v793 = vpop.f32.mrb[0].mxu0
    %v794 = vadd.f32 %v545, %v793
    %v795 = vpop.f32.mrb[0].mxu0
    %796 = vmatprep.mubr.f32.mxu0 0.0
    %797 = vmatmul.mubr.f32.gmra.mrb[0].mxu0 %v627
    %v798 = vpop.f32.mrb[0].mxu0
    %v799 = vadd.f32 %v550, %v798
    %v800 = vpop.f32.mrb[0].mxu0
    %801 = vmatprep.mubr.f32.mxu0 0.0
    %802 = vmatmul.mubr.f32.gmra.mrb[0].mxu0 %v629
    %v803 = vpop.f32.mrb[0].mxu0
    %v804 = vadd.f32 %v555, %v803
    %v805 = vpop.f32.mrb[0].mxu0
    %806 = vmatprep.mubr.f32.mxu0 0.0
    %807 = vmatmul.mubr.f32.gmra.mrb[0].mxu0 %v631
    %v808 = vpop.f32.mrb[0].mxu0
    %v809 = vadd.f32 %v560, %v808
    %v810 = vpop.f32.mrb[0].mxu0
    %811 = vmatprep.mubr.f32.mxu0 0.0
    %812 = vmatmul.mubr.f32.gmra.mrb[0].mxu0 %v633
    %v813 = vpop.f32.mrb[0].mxu0
    %v814 = vadd.f32 %v565, %v813
    %v815 = vpop.f32.mrb[0].mxu0
    %816 = vmatprep.mubr.f32.mxu0 0.0
    %817 = vmatmul.mubr.f32.gmra.mrb[0].mxu0 %v635
    %v818 = vpop.f32.mrb[0].mxu0
    %v819 = vadd.f32 %v570, %v818
    %v820 = vpop.f32.mrb[0].mxu0
    %821 = vmatprep.mubr.f32.mxu0 0.0
    %822 = vmatmul.mubr.f32.gmra.mrb[0].mxu0 %v637
    %v823 = vpop.f32.mrb[0].mxu0
    %v824 = vadd.f32 %v575, %v823
    %v825 = vpop.f32.mrb[0].mxu0
    %826 = vmatprep.mubr.f32.mxu0 0.0
    %827 = vmatmul.mubr.f32.gmra.mrb[0].mxu0 %v639
    %v828 = vpop.f32.mrb[0].mxu0
    %v829 = vadd.f32 %v580, %v828
    %v830 = vpop.f32.mrb[0].mxu0
    %831 = vmatprep.mubr.f32.mxu0 0.0
    %832 = vmatmul.mubr.f32.gmra.mrb[0].mxu0 %v641
    %v833 = vpop.f32.mrb[0].mxu0
    %v834 = vadd.f32 %v585, %v833
    %v835 = vpop.f32.mrb[0].mxu0
    %836 = vmatprep.mubr.f32.mxu0 0.0
    %837 = vmatmul.mubr.f32.gmra.mrb[0].mxu0 %v643
    %v838 = vpop.f32.mrb[0].mxu0
    %v839 = vadd.f32 %v590, %v838
    %v840 = vpop.f32.mrb[0].mxu0
    %841 = vdwg.mxu0
    %842 = vrot.lane.b32.xlu0 %v198, 60
    %v843 = vpop.permute.xlu0 %842
    %844 = vrot.lane.b32.xlu0 %v199, 60
    %v845 = vpop.permute.xlu0 %844
    %846 = vrot.lane.b32.xlu0 %v200, 60
    %v847 = vpop.permute.xlu0 %846
    %848 = vrot.lane.b32.xlu0 %v201, 60
    %v849 = vpop.permute.xlu0 %848
    %850 = vrot.lane.b32.xlu0 %v202, 60
    %v851 = vpop.permute.xlu0 %850
    %852 = vrot.lane.b32.xlu0 %v203, 60
    %v853 = vpop.permute.xlu0 %852
    %854 = vrot.lane.b32.xlu0 %v204, 60
    %v855 = vpop.permute.xlu0 %854
    %856 = vrot.lane.b32.xlu0 %v205, 60
    %v857 = vpop.permute.xlu0 %856
    %858 = vrot.lane.b32.xlu0 %v206, 60
    %v859 = vpop.permute.xlu0 %858
    %860 = vrot.lane.b32.xlu0 %v207, 60
    %v861 = vpop.permute.xlu0 %860
    %862 = vrot.lane.b32.xlu0 %v208, 60
    %v863 = vpop.permute.xlu0 %862
    %864 = vrot.lane.b32.xlu0 %v209, 60
    %v865 = vpop.permute.xlu0 %864
    %866 = vrot.lane.b32.xlu0 %v210, 60
    %v867 = vpop.permute.xlu0 %866
    %868 = vrot.lane.b32.xlu0 %v211, 60
    %v869 = vpop.permute.xlu0 %868
    %870 = vrot.lane.b32.xlu0 %v212, 60
    %v871 = vpop.permute.xlu0 %870
    %872 = vrot.lane.b32.xlu0 %v213, 60
    %v873 = vpop.permute.xlu0 %872
    %874 = vrot.lane.b32.xlu0 %v214, 60
    %v875 = vpop.permute.xlu0 %874
    %876 = vrot.lane.b32.xlu0 %v215, 60
    %v877 = vpop.permute.xlu0 %876
    %878 = vrot.lane.b32.xlu0 %v216, 60
    %v879 = vpop.permute.xlu0 %878
    %880 = vrot.lane.b32.xlu0 %v217, 60
    %v881 = vpop.permute.xlu0 %880
    %882 = vrot.lane.b32.xlu0 %v218, 60
    %v883 = vpop.permute.xlu0 %882
    %884 = vrot.lane.b32.xlu0 %v219, 60
    %v885 = vpop.permute.xlu0 %884
    %886 = vrot.lane.b32.xlu0 %v220, 60
    %v887 = vpop.permute.xlu0 %886
    %888 = vrot.lane.b32.xlu0 %v221, 60
    %v889 = vpop.permute.xlu0 %888
    %890 = vrot.lane.b32.xlu0 %v222, 60
    %v891 = vpop.permute.xlu0 %890
    %892 = vrot.lane.b32.xlu0 %v223, 60
    %v893 = vpop.permute.xlu0 %892
    %894 = vrot.lane.b32.xlu0 %v172, 122
    %v895 = vpop.permute.xlu0 %894
    %896 = vrot.lane.b32.xlu0 %v178, 122
    %v897 = vpop.permute.xlu0 %896
    %898 = vrot.lane.b32.xlu0 %v184, 122
    %v899 = vpop.permute.xlu0 %898
    %900 = vrot.lane.b32.xlu0 %v190, 122
    %v901 = vpop.permute.xlu0 %900
    %902 = vrot.lane.b32.xlu0 %v196, 122
    %v903 = vpop.permute.xlu0 %902
    %v908 = vsel %vm342, %v843, 0
    %v910 = vsel %vm342, %v845, 0
    %v912 = vsel %vm342, %v847, 0
    %v914 = vsel %vm342, %v849, 0
    %v916 = vsel %vm342, %v851, 0
    %v918 = vsel %vm342, %v853, 0
    %v920 = vsel %vm342, %v855, 0
    %v922 = vsel %vm342, %v857, 0
    %v924 = vsel %vm342, %v859, 0
    %v926 = vsel %vm342, %v861, 0
    %v928 = vsel %vm342, %v863, 0
    %v930 = vsel %vm342, %v865, 0
    %v932 = vsel %vm342, %v867, 0
    %v934 = vsel %vm342, %v869, 0
    %v936 = vsel %vm342, %v871, 0
    %v938 = vsel %vm342, %v873, 0
    %v940 = vsel %vm342, %v875, 0
    %v942 = vsel %vm342, %v877, 0
    %v944 = vsel %vm342, %v879, 0
    %v946 = vsel %vm342, %v881, 0
    %v948 = vsel %vm342, %v883, 0
    %v950 = vsel %vm342, %v885, 0
    %v952 = vsel %vm342, %v887, 0
    %v954 = vsel %vm342, %v889, 0
    %v956 = vsel %vm342, %v891, 0
    %v958 = vsel %vm342, %v893, 0
    %v960 = vsel %vm395, %v903, 0
    %962 = vmatprep.subr.mxu0 0.0
    %963 = vmatpush1.msra.mxu0 %v895
    %964 = vmatprep.subr.mxu0 0.0
    %965 = vmatpush1.msra.mxu0 %v897
    %966 = vmatprep.subr.mxu0 0.0
    %967 = vmatpush1.msra.mxu0 %v899
    %968 = vmatprep.subr.mxu0 0.0
    %969 = vmatpush1.msra.mxu0 %v901
    %970 = vmatprep.subr.mxu0 0.0
    %971 = vmatpush1.msra.mxu0 %v960
    %972 = vmatprep.subr.mxu0 0.0
    %973 = vmatpush1.msra.mxu0 0.0
    %974 = vmatprep.subr.mxu0 0.0
    %975 = vmatpush1.msra.mxu0 0.0
    %976 = vmatprep.subr.mxu0 0.0
    %977 = vmatpush1.msra.mxu0 0.0
    %978 = vmatprep.subr.mxu0 0.0
    %979 = vmatpush1.msra.mxu0 0.0
    %980 = vmatprep.subr.mxu0 0.0
    %981 = vmatpush1.msra.mxu0 0.0
    %982 = vmatprep.subr.mxu0 0.0
    %983 = vmatpush1.msra.mxu0 0.0
    %984 = vmatprep.subr.mxu0 0.0
    %985 = vmatpush1.msra.mxu0 0.0
    %986 = vmatprep.subr.mxu0 0.0
    %987 = vmatpush1.msra.mxu0 0.0
    %988 = vmatprep.subr.mxu0 0.0
    %989 = vmatpush1.msra.mxu0 0.0
    %990 = vmatprep.subr.mxu0 0.0
    %991 = vmatpush1.msra.mxu0 0.0
    %992 = vmatprep.subr.mxu0 0.0
    %993 = vmatpush1.msra.mxu0 0.0
    %994 = vmatprep.subr.mxu0 0.0
    %995 = vmatpush1.msra.mxu0 0.0
    %996 = vmatprep.subr.mxu0 0.0
    %997 = vmatpush1.msra.mxu0 0.0
    %998 = vmatprep.subr.mxu0 0.0
    %999 = vmatpush1.msra.mxu0 0.0
    %1000 = vmatprep.subr.mxu0 0.0
    %1001 = vmatpush1.msra.mxu0 0.0
    %1002 = vmatprep.subr.mxu0 0.0
    %1003 = vmatpush1.msra.mxu0 0.0
    %1004 = vmatprep.subr.mxu0 0.0
    %1005 = vmatpush1.msra.mxu0 0.0
    %1006 = vmatprep.subr.mxu0 0.0
    %1007 = vmatpush1.msra.mxu0 0.0
    %1008 = vmatprep.subr.mxu0 0.0
    %1009 = vmatpush1.msra.mxu0 0.0
    %1010 = vmatprep.subr.mxu0 0.0
    %1011 = vmatpush1.msra.mxu0 0.0
    %1012 = vmatprep.subr.mxu0 0.0
    %1013 = vmatpush1.msra.mxu0 0.0
    %1014 = vmatprep.subr.mxu0 0.0
    %1015 = vmatpush1.msra.mxu0 0.0
    %1016 = vmatprep.subr.mxu0 0.0
    %1017 = vmatpush1.msra.mxu0 0.0
    %1018 = vmatprep.subr.mxu0 0.0
    %1019 = vmatpush1.msra.mxu0 0.0
    %1020 = vmatprep.subr.mxu0 0.0
    %1021 = vmatpush1.msra.mxu0 0.0
    %1022 = vmatprep.subr.mxu0 0.0
    %1023 = vmatpush1.msra.mxu0 0.0
    %1024 = vmatprep.subr.mxu0 0.0
    %1025 = vmatpush1.msra.mxu0 0.0
    %1026 = vmatprep.mubr.f32.mxu0 0.0
    %1027 = vmatmul.mubr.f32.gmra.mrb[0].mxu0 %v908
    %v1028 = vpop.f32.mrb[0].mxu0
    %v1029 = vadd.f32 0.0, %v1028
    %v1030 = vpop.f32.mrb[0].mxu0
    %1031 = vmatprep.mubr.f32.mxu0 0.0
    %1032 = vmatmul.mubr.f32.gmra.mrb[0].mxu0 %v910
    %v1033 = vpop.f32.mrb[0].mxu0
    %v1034 = vadd.f32 0.0, %v1033
    %v1035 = vpop.f32.mrb[0].mxu0
    %1036 = vmatprep.mubr.f32.mxu0 0.0
    %1037 = vmatmul.mubr.f32.gmra.mrb[0].mxu0 %v912
    %v1038 = vpop.f32.mrb[0].mxu0
    %v1039 = vadd.f32 0.0, %v1038
    %v1040 = vpop.f32.mrb[0].mxu0
    %1041 = vmatprep.mubr.f32.mxu0 0.0
    %1042 = vmatmul.mubr.f32.gmra.mrb[0].mxu0 %v914
    %v1043 = vpop.f32.mrb[0].mxu0
    %v1044 = vadd.f32 0.0, %v1043
    %v1045 = vpop.f32.mrb[0].mxu0
    %1046 = vmatprep.mubr.f32.mxu0 0.0
    %1047 = vmatmul.mubr.f32.gmra.mrb[0].mxu0 %v916
    %v1048 = vpop.f32.mrb[0].mxu0
    %v1049 = vadd.f32 0.0, %v1048
    %v1050 = vpop.f32.mrb[0].mxu0
    %1051 = vmatprep.mubr.f32.mxu0 0.0
    %1052 = vmatmul.mubr.f32.gmra.mrb[0].mxu0 %v918
    %v1053 = vpop.f32.mrb[0].mxu0
    %v1054 = vadd.f32 0.0, %v1053
    %v1055 = vpop.f32.mrb[0].mxu0
    %1056 = vmatprep.mubr.f32.mxu0 0.0
    %1057 = vmatmul.mubr.f32.gmra.mrb[0].mxu0 %v920
    %v1058 = vpop.f32.mrb[0].mxu0
    %v1059 = vadd.f32 0.0, %v1058
    %v1060 = vpop.f32.mrb[0].mxu0
    %1061 = vmatprep.mubr.f32.mxu0 0.0
    %1062 = vmatmul.mubr.f32.gmra.mrb[0].mxu0 %v922
    %v1063 = vpop.f32.mrb[0].mxu0
    %v1064 = vadd.f32 0.0, %v1063
    %v1065 = vpop.f32.mrb[0].mxu0
    %1066 = vmatprep.mubr.f32.mxu0 0.0
    %1067 = vmatmul.mubr.f32.gmra.mrb[0].mxu0 %v924
    %v1068 = vpop.f32.mrb[0].mxu0
    %v1069 = vadd.f32 0.0, %v1068
    %v1070 = vpop.f32.mrb[0].mxu0
    %1071 = vmatprep.mubr.f32.mxu0 0.0
    %1072 = vmatmul.mubr.f32.gmra.mrb[0].mxu0 %v926
    %v1073 = vpop.f32.mrb[0].mxu0
    %v1074 = vadd.f32 0.0, %v1073
    %v1075 = vpop.f32.mrb[0].mxu0
    %1076 = vmatprep.mubr.f32.mxu0 0.0
    %1077 = vmatmul.mubr.f32.gmra.mrb[0].mxu0 %v928
    %v1078 = vpop.f32.mrb[0].mxu0
    %v1079 = vadd.f32 0.0, %v1078
    %v1080 = vpop.f32.mrb[0].mxu0
    %1081 = vmatprep.mubr.f32.mxu0 0.0
    %1082 = vmatmul.mubr.f32.gmra.mrb[0].mxu0 %v930
    %v1083 = vpop.f32.mrb[0].mxu0
    %v1084 = vadd.f32 0.0, %v1083
    %v1085 = vpop.f32.mrb[0].mxu0
    %1086 = vmatprep.mubr.f32.mxu0 0.0
    %1087 = vmatmul.mubr.f32.gmra.mrb[0].mxu0 %v932
    %v1088 = vpop.f32.mrb[0].mxu0
    %v1089 = vadd.f32 0.0, %v1088
    %v1090 = vpop.f32.mrb[0].mxu0
    %1091 = vmatprep.mubr.f32.mxu0 0.0
    %1092 = vmatmul.mubr.f32.gmra.mrb[0].mxu0 %v934
    %v1093 = vpop.f32.mrb[0].mxu0
    %v1094 = vadd.f32 0.0, %v1093
    %v1095 = vpop.f32.mrb[0].mxu0
    %1096 = vmatprep.mubr.f32.mxu0 0.0
    %1097 = vmatmul.mubr.f32.gmra.mrb[0].mxu0 %v936
    %v1098 = vpop.f32.mrb[0].mxu0
    %v1099 = vadd.f32 0.0, %v1098
    %v1100 = vpop.f32.mrb[0].mxu0
    %1101 = vmatprep.mubr.f32.mxu0 0.0
    %1102 = vmatmul.mubr.f32.gmra.mrb[0].mxu0 %v938
    %v1103 = vpop.f32.mrb[0].mxu0
    %v1104 = vadd.f32 0.0, %v1103
    %v1105 = vpop.f32.mrb[0].mxu0
    %1106 = vmatprep.mubr.f32.mxu0 0.0
    %1107 = vmatmul.mubr.f32.gmra.mrb[0].mxu0 %v940
    %v1108 = vpop.f32.mrb[0].mxu0
    %v1109 = vadd.f32 0.0, %v1108
    %v1110 = vpop.f32.mrb[0].mxu0
    %1111 = vmatprep.mubr.f32.mxu0 0.0
    %1112 = vmatmul.mubr.f32.gmra.mrb[0].mxu0 %v942
    %v1113 = vpop.f32.mrb[0].mxu0
    %v1114 = vadd.f32 0.0, %v1113
    %v1115 = vpop.f32.mrb[0].mxu0
    %1116 = vmatprep.mubr.f32.mxu0 0.0
    %1117 = vmatmul.mubr.f32.gmra.mrb[0].mxu0 %v944
    %v1118 = vpop.f32.mrb[0].mxu0
    %v1119 = vadd.f32 0.0, %v1118
    %v1120 = vpop.f32.mrb[0].mxu0
    %1121 = vmatprep.mubr.f32.mxu0 0.0
    %1122 = vmatmul.mubr.f32.gmra.mrb[0].mxu0 %v946
    %v1123 = vpop.f32.mrb[0].mxu0
    %v1124 = vadd.f32 0.0, %v1123
    %v1125 = vpop.f32.mrb[0].mxu0
    %1126 = vmatprep.mubr.f32.mxu0 0.0
    %1127 = vmatmul.mubr.f32.gmra.mrb[0].mxu0 %v948
    %v1128 = vpop.f32.mrb[0].mxu0
    %v1129 = vadd.f32 0.0, %v1128
    %v1130 = vpop.f32.mrb[0].mxu0
    %1131 = vmatprep.mubr.f32.mxu0 0.0
    %1132 = vmatmul.mubr.f32.gmra.mrb[0].mxu0 %v950
    %v1133 = vpop.f32.mrb[0].mxu0
    %v1134 = vadd.f32 0.0, %v1133
    %v1135 = vpop.f32.mrb[0].mxu0
    %1136 = vmatprep.mubr.f32.mxu0 0.0
    %1137 = vmatmul.mubr.f32.gmra.mrb[0].mxu0 %v952
    %v1138 = vpop.f32.mrb[0].mxu0
    %v1139 = vadd.f32 0.0, %v1138
    %v1140 = vpop.f32.mrb[0].mxu0
    %1141 = vmatprep.mubr.f32.mxu0 0.0
    %1142 = vmatmul.mubr.f32.gmra.mrb[0].mxu0 %v954
    %v1143 = vpop.f32.mrb[0].mxu0
    %v1144 = vadd.f32 0.0, %v1143
    %v1145 = vpop.f32.mrb[0].mxu0
    %1146 = vmatprep.mubr.f32.mxu0 0.0
    %1147 = vmatmul.mubr.f32.gmra.mrb[0].mxu0 %v956
    %v1148 = vpop.f32.mrb[0].mxu0
    %v1149 = vadd.f32 0.0, %v1148
    %v1150 = vpop.f32.mrb[0].mxu0
    %1151 = vmatprep.mubr.f32.mxu0 0.0
    %1152 = vmatmul.mubr.f32.gmra.mrb[0].mxu0 %v958
    %v1153 = vpop.f32.mrb[0].mxu0
    %v1154 = vadd.f32 0.0, %v1153
    %v1155 = vpop.f32.mrb[0].mxu0
    %1156 = vdwg.mxu0
    %v1157 = vadd.f32 %v714, %v1029
    %v1158 = vadd.f32 %v719, %v1034
    %v1159 = vadd.f32 %v724, %v1039
    %v1160 = vadd.f32 %v729, %v1044
    %v1161 = vadd.f32 %v734, %v1049
    %v1162 = vadd.f32 %v739, %v1054
    %v1163 = vadd.f32 %v744, %v1059
    %v1164 = vadd.f32 %v749, %v1064
    %v1165 = vadd.f32 %v754, %v1069
    %v1166 = vadd.f32 %v759, %v1074
    %v1167 = vadd.f32 %v764, %v1079
    %v1168 = vadd.f32 %v769, %v1084
    %v1169 = vadd.f32 %v774, %v1089
    %v1170 = vadd.f32 %v779, %v1094
    %v1171 = vadd.f32 %v784, %v1099
    %v1172 = vadd.f32 %v789, %v1104
    %v1173 = vadd.f32 %v794, %v1109
    %v1174 = vadd.f32 %v799, %v1114
    %v1175 = vadd.f32 %v804, %v1119
    %v1176 = vadd.f32 %v809, %v1124
    %v1177 = vadd.f32 %v814, %v1129
    %v1178 = vadd.f32 %v819, %v1134
    %v1179 = vadd.f32 %v824, %v1139
    %v1180 = vadd.f32 %v829, %v1144
    %v1181 = vadd.f32 %v834, %v1149
    %v1182 = vadd.f32 %v839, %v1154
    %v1183 = vld [vmem:[%s3] sm:$0xff]
    %v1184 = vld [vmem:[%s3 + $0x8] sm:$0xff]
    %v1185 = vld [vmem:[%s3 + $0x10] sm:$0xff]
    %v1186 = vld [vmem:[%s3 + $0x18] sm:$0xff]
    %v1187 = vld [vmem:[%s3 + $0x20] sm:$0xff]
    %v1188 = vld [vmem:[%s3 + $0x28] sm:$0xff]
    %v1189 = vld [vmem:[%s3 + $0x30] sm:$0xff]
    %v1190 = vld [vmem:[%s3 + $0x38] sm:$0xff]
    %v1191 = vld [vmem:[%s3 + $0x40] sm:$0xff]
    %v1192 = vld [vmem:[%s3 + $0x48] sm:$0xff]
    %v1193 = vld [vmem:[%s3 + $0x50] sm:$0xff]
    %v1194 = vld [vmem:[%s3 + $0x58] sm:$0xff]
    %v1195 = vld [vmem:[%s3 + $0x60] sm:$0xff]
    %v1196 = vld [vmem:[%s3 + $0x68] sm:$0xff]
    %v1197 = vld [vmem:[%s3 + $0x70] sm:$0xff]
    %v1198 = vld [vmem:[%s3 + $0x78] sm:$0xff]
    %v1199 = vld [vmem:[%s3 + $0x80] sm:$0xff]
    %v1200 = vld [vmem:[%s3 + $0x88] sm:$0xff]
    %v1201 = vld [vmem:[%s3 + $0x90] sm:$0xff]
    %v1202 = vld [vmem:[%s3 + $0x98] sm:$0xff]
    %v1203 = vld [vmem:[%s3 + $0xa0] sm:$0xff]
    %v1204 = vld [vmem:[%s3 + $0xa8] sm:$0xff]
    %v1205 = vld [vmem:[%s3 + $0xb0] sm:$0xff]
    %v1206 = vld [vmem:[%s3 + $0xb8] sm:$0xff]
    %v1207 = vld [vmem:[%s3 + $0xc0] sm:$0xff]
    %v1208 = vld [vmem:[%s3 + $0xc8] sm:$0xf]
    %1210 = vset.pattern.permute.xlu0 0
    %1211 = vperm.xlu0 %1210, %v1183
    %v1212 = vpop.permute.xlu0 %1211
    %1215 = vset.pattern.permute.xlu0 0
    %1216 = vperm.xlu0 %1215, %v1184
    %v1217 = vpop.permute.xlu0 %1216
    %1220 = vset.pattern.permute.xlu0 0
    %1221 = vperm.xlu0 %1220, %v1185
    %v1222 = vpop.permute.xlu0 %1221
    %1225 = vset.pattern.permute.xlu0 0
    %1226 = vperm.xlu0 %1225, %v1186
    %v1227 = vpop.permute.xlu0 %1226
    %1230 = vset.pattern.permute.xlu0 0
    %1231 = vperm.xlu0 %1230, %v1187
    %v1232 = vpop.permute.xlu0 %1231
    %1235 = vset.pattern.permute.xlu0 0
    %1236 = vperm.xlu0 %1235, %v1188
    %v1237 = vpop.permute.xlu0 %1236
    %1240 = vset.pattern.permute.xlu0 0
    %1241 = vperm.xlu0 %1240, %v1189
    %v1242 = vpop.permute.xlu0 %1241
    %1245 = vset.pattern.permute.xlu0 0
    %1246 = vperm.xlu0 %1245, %v1190
    %v1247 = vpop.permute.xlu0 %1246
    %1250 = vset.pattern.permute.xlu0 0
    %1251 = vperm.xlu0 %1250, %v1191
    %v1252 = vpop.permute.xlu0 %1251
    %1255 = vset.pattern.permute.xlu0 0
    %1256 = vperm.xlu0 %1255, %v1192
    %v1257 = vpop.permute.xlu0 %1256
    %1260 = vset.pattern.permute.xlu0 0
    %1261 = vperm.xlu0 %1260, %v1193
    %v1262 = vpop.permute.xlu0 %1261
    %1265 = vset.pattern.permute.xlu0 0
    %1266 = vperm.xlu0 %1265, %v1194
    %v1267 = vpop.permute.xlu0 %1266
    %1270 = vset.pattern.permute.xlu0 0
    %1271 = vperm.xlu0 %1270, %v1195
    %v1272 = vpop.permute.xlu0 %1271
    %1275 = vset.pattern.permute.xlu0 0
    %1276 = vperm.xlu0 %1275, %v1196
    %v1277 = vpop.permute.xlu0 %1276
    %1280 = vset.pattern.permute.xlu0 0
    %1281 = vperm.xlu0 %1280, %v1197
    %v1282 = vpop.permute.xlu0 %1281
    %1285 = vset.pattern.permute.xlu0 0
    %1286 = vperm.xlu0 %1285, %v1198
    %v1287 = vpop.permute.xlu0 %1286
    %1290 = vset.pattern.permute.xlu0 0
    %1291 = vperm.xlu0 %1290, %v1199
    %v1292 = vpop.permute.xlu0 %1291
    %1295 = vset.pattern.permute.xlu0 0
    %1296 = vperm.xlu0 %1295, %v1200
    %v1297 = vpop.permute.xlu0 %1296
    %1300 = vset.pattern.permute.xlu0 0
    %1301 = vperm.xlu0 %1300, %v1201
    %v1302 = vpop.permute.xlu0 %1301
    %1305 = vset.pattern.permute.xlu0 0
    %1306 = vperm.xlu0 %1305, %v1202
    %v1307 = vpop.permute.xlu0 %1306
    %1310 = vset.pattern.permute.xlu0 0
    %1311 = vperm.xlu0 %1310, %v1203
    %v1312 = vpop.permute.xlu0 %1311
    %1315 = vset.pattern.permute.xlu0 0
    %1316 = vperm.xlu0 %1315, %v1204
    %v1317 = vpop.permute.xlu0 %1316
    %1320 = vset.pattern.permute.xlu0 0
    %1321 = vperm.xlu0 %1320, %v1205
    %v1322 = vpop.permute.xlu0 %1321
    %1325 = vset.pattern.permute.xlu0 0
    %1326 = vperm.xlu0 %1325, %v1206
    %v1327 = vpop.permute.xlu0 %1326
    %1330 = vset.pattern.permute.xlu0 0
    %1331 = vperm.xlu0 %1330, %v1207
    %v1332 = vpop.permute.xlu0 %1331
    %1335 = vset.pattern.permute.xlu0 0
    %1336 = vperm.xlu0 %1335, %v1208
    %v1337 = vpop.permute.xlu0 %1336
    %v1339 = vadd.f32 %v1157, %v1212
    %v1340 = vadd.f32 %v1158, %v1217
    %v1341 = vadd.f32 %v1159, %v1222
    %v1342 = vadd.f32 %v1160, %v1227
    %v1343 = vadd.f32 %v1161, %v1232
    %v1344 = vadd.f32 %v1162, %v1237
    %v1345 = vadd.f32 %v1163, %v1242
    %v1346 = vadd.f32 %v1164, %v1247
    %v1347 = vadd.f32 %v1165, %v1252
    %v1348 = vadd.f32 %v1166, %v1257
    %v1349 = vadd.f32 %v1167, %v1262
    %v1350 = vadd.f32 %v1168, %v1267
    %v1351 = vadd.f32 %v1169, %v1272
    %v1352 = vadd.f32 %v1170, %v1277
    %v1353 = vadd.f32 %v1171, %v1282
    %v1354 = vadd.f32 %v1172, %v1287
    %v1355 = vadd.f32 %v1173, %v1292
    %v1356 = vadd.f32 %v1174, %v1297
    %v1357 = vadd.f32 %v1175, %v1302
    %v1358 = vadd.f32 %v1176, %v1307
    %v1359 = vadd.f32 %v1177, %v1312
    %v1360 = vadd.f32 %v1178, %v1317
    %v1361 = vadd.f32 %v1179, %v1322
    %v1362 = vadd.f32 %v1180, %v1327
    %v1363 = vadd.f32 %v1181, %v1332
    %v1364 = vadd.f32 %v1182, %v1337
    %v1365 = vmax.f32 %v1339, 0.0
    %v1366 = vmax.f32 %v1340, 0.0
    %v1367 = vmax.f32 %v1341, 0.0
    %v1368 = vmax.f32 %v1342, 0.0
    %v1369 = vmax.f32 %v1343, 0.0
    %v1370 = vmax.f32 %v1344, 0.0
    %v1371 = vmax.f32 %v1345, 0.0
    %v1372 = vmax.f32 %v1346, 0.0
    %v1373 = vmax.f32 %v1347, 0.0
    %v1374 = vmax.f32 %v1348, 0.0
    %v1375 = vmax.f32 %v1349, 0.0
    %v1376 = vmax.f32 %v1350, 0.0
    %v1377 = vmax.f32 %v1351, 0.0
    %v1378 = vmax.f32 %v1352, 0.0
    %v1379 = vmax.f32 %v1353, 0.0
    %v1380 = vmax.f32 %v1354, 0.0
    %v1381 = vmax.f32 %v1355, 0.0
    %v1382 = vmax.f32 %v1356, 0.0
    %v1383 = vmax.f32 %v1357, 0.0
    %v1384 = vmax.f32 %v1358, 0.0
    %v1385 = vmax.f32 %v1359, 0.0
    %v1386 = vmax.f32 %v1360, 0.0
    %v1387 = vmax.f32 %v1361, 0.0
    %v1388 = vmax.f32 %v1362, 0.0
    %v1389 = vmax.f32 %v1363, 0.0
    %v1390 = vmax.f32 %v1364, 0.0
    %1391 = vset.pattern.permute.xlu0 1
    %1392 = vperm.xlu0 %1391, %v1183
    %v1393 = vpop.permute.xlu0 %1392
    %1395 = vset.pattern.permute.xlu0 1
    %1396 = vperm.xlu0 %1395, %v1184
    %v1397 = vpop.permute.xlu0 %1396
    %1399 = vset.pattern.permute.xlu0 1
    %1400 = vperm.xlu0 %1399, %v1185
    %v1401 = vpop.permute.xlu0 %1400
    %1403 = vset.pattern.permute.xlu0 1
    %1404 = vperm.xlu0 %1403, %v1186
    %v1405 = vpop.permute.xlu0 %1404
    %1407 = vset.pattern.permute.xlu0 1
    %1408 = vperm.xlu0 %1407, %v1187
    %v1409 = vpop.permute.xlu0 %1408
    %1411 = vset.pattern.permute.xlu0 1
    %1412 = vperm.xlu0 %1411, %v1188
    %v1413 = vpop.permute.xlu0 %1412
    %1415 = vset.pattern.permute.xlu0 1
    %1416 = vperm.xlu0 %1415, %v1189
    %v1417 = vpop.permute.xlu0 %1416
    %1419 = vset.pattern.permute.xlu0 1
    %1420 = vperm.xlu0 %1419, %v1190
    %v1421 = vpop.permute.xlu0 %1420
    %1423 = vset.pattern.permute.xlu0 1
    %1424 = vperm.xlu0 %1423, %v1191
    %v1425 = vpop.permute.xlu0 %1424
    %1427 = vset.pattern.permute.xlu0 1
    %1428 = vperm.xlu0 %1427, %v1192
    %v1429 = vpop.permute.xlu0 %1428
    %1431 = vset.pattern.permute.xlu0 1
    %1432 = vperm.xlu0 %1431, %v1193
    %v1433 = vpop.permute.xlu0 %1432
    %1435 = vset.pattern.permute.xlu0 1
    %1436 = vperm.xlu0 %1435, %v1194
    %v1437 = vpop.permute.xlu0 %1436
    %1439 = vset.pattern.permute.xlu0 1
    %1440 = vperm.xlu0 %1439, %v1195
    %v1441 = vpop.permute.xlu0 %1440
    %1443 = vset.pattern.permute.xlu0 1
    %1444 = vperm.xlu0 %1443, %v1196
    %v1445 = vpop.permute.xlu0 %1444
    %1447 = vset.pattern.permute.xlu0 1
    %1448 = vperm.xlu0 %1447, %v1197
    %v1449 = vpop.permute.xlu0 %1448
    %1451 = vset.pattern.permute.xlu0 1
    %1452 = vperm.xlu0 %1451, %v1198
    %v1453 = vpop.permute.xlu0 %1452
    %1455 = vset.pattern.permute.xlu0 1
    %1456 = vperm.xlu0 %1455, %v1199
    %v1457 = vpop.permute.xlu0 %1456
    %1459 = vset.pattern.permute.xlu0 1
    %1460 = vperm.xlu0 %1459, %v1200
    %v1461 = vpop.permute.xlu0 %1460
    %1463 = vset.pattern.permute.xlu0 1
    %1464 = vperm.xlu0 %1463, %v1201
    %v1465 = vpop.permute.xlu0 %1464
    %1467 = vset.pattern.permute.xlu0 1
    %1468 = vperm.xlu0 %1467, %v1202
    %v1469 = vpop.permute.xlu0 %1468
    %1471 = vset.pattern.permute.xlu0 1
    %1472 = vperm.xlu0 %1471, %v1203
    %v1473 = vpop.permute.xlu0 %1472
    %1475 = vset.pattern.permute.xlu0 1
    %1476 = vperm.xlu0 %1475, %v1204
    %v1477 = vpop.permute.xlu0 %1476
    %1479 = vset.pattern.permute.xlu0 1
    %1480 = vperm.xlu0 %1479, %v1205
    %v1481 = vpop.permute.xlu0 %1480
    %1483 = vset.pattern.permute.xlu0 1
    %1484 = vperm.xlu0 %1483, %v1206
    %v1485 = vpop.permute.xlu0 %1484
    %1487 = vset.pattern.permute.xlu0 1
    %1488 = vperm.xlu0 %1487, %v1207
    %v1489 = vpop.permute.xlu0 %1488
    %1491 = vset.pattern.permute.xlu0 1
    %1492 = vperm.xlu0 %1491, %v1208
    %v1493 = vpop.permute.xlu0 %1492
    %v1495 = vmul.f32 %v1365, %v1393
    %v1496 = vmul.f32 %v1366, %v1397
    %v1497 = vmul.f32 %v1367, %v1401
    %v1498 = vmul.f32 %v1368, %v1405
    %v1499 = vmul.f32 %v1369, %v1409
    %v1500 = vmul.f32 %v1370, %v1413
    %v1501 = vmul.f32 %v1371, %v1417
    %v1502 = vmul.f32 %v1372, %v1421
    %v1503 = vmul.f32 %v1373, %v1425
    %v1504 = vmul.f32 %v1374, %v1429
    %v1505 = vmul.f32 %v1375, %v1433
    %v1506 = vmul.f32 %v1376, %v1437
    %v1507 = vmul.f32 %v1377, %v1441
    %v1508 = vmul.f32 %v1378, %v1445
    %v1509 = vmul.f32 %v1379, %v1449
    %v1510 = vmul.f32 %v1380, %v1453
    %v1511 = vmul.f32 %v1381, %v1457
    %v1512 = vmul.f32 %v1382, %v1461
    %v1513 = vmul.f32 %v1383, %v1465
    %v1514 = vmul.f32 %v1384, %v1469
    %v1515 = vmul.f32 %v1385, %v1473
    %v1516 = vmul.f32 %v1386, %v1477
    %v1517 = vmul.f32 %v1387, %v1481
    %v1518 = vmul.f32 %v1388, %v1485
    %v1519 = vmul.f32 %v1389, %v1489
    %v1520 = vmul.f32 %v1390, %v1493
    %1521 = vset.pattern.permute.xlu0 2
    %1522 = vperm.xlu0 %1521, %v1183
    %v1523 = vpop.permute.xlu0 %1522
    %1525 = vset.pattern.permute.xlu0 2
    %1526 = vperm.xlu0 %1525, %v1184
    %v1527 = vpop.permute.xlu0 %1526
    %1529 = vset.pattern.permute.xlu0 2
    %1530 = vperm.xlu0 %1529, %v1185
    %v1531 = vpop.permute.xlu0 %1530
    %1533 = vset.pattern.permute.xlu0 2
    %1534 = vperm.xlu0 %1533, %v1186
    %v1535 = vpop.permute.xlu0 %1534
    %1537 = vset.pattern.permute.xlu0 2
    %1538 = vperm.xlu0 %1537, %v1187
    %v1539 = vpop.permute.xlu0 %1538
    %1541 = vset.pattern.permute.xlu0 2
    %1542 = vperm.xlu0 %1541, %v1188
    %v1543 = vpop.permute.xlu0 %1542
    %1545 = vset.pattern.permute.xlu0 2
    %1546 = vperm.xlu0 %1545, %v1189
    %v1547 = vpop.permute.xlu0 %1546
    %1549 = vset.pattern.permute.xlu0 2
    %1550 = vperm.xlu0 %1549, %v1190
    %v1551 = vpop.permute.xlu0 %1550
    %1553 = vset.pattern.permute.xlu0 2
    %1554 = vperm.xlu0 %1553, %v1191
    %v1555 = vpop.permute.xlu0 %1554
    %1557 = vset.pattern.permute.xlu0 2
    %1558 = vperm.xlu0 %1557, %v1192
    %v1559 = vpop.permute.xlu0 %1558
    %1561 = vset.pattern.permute.xlu0 2
    %1562 = vperm.xlu0 %1561, %v1193
    %v1563 = vpop.permute.xlu0 %1562
    %1565 = vset.pattern.permute.xlu0 2
    %1566 = vperm.xlu0 %1565, %v1194
    %v1567 = vpop.permute.xlu0 %1566
    %1569 = vset.pattern.permute.xlu0 2
    %1570 = vperm.xlu0 %1569, %v1195
    %v1571 = vpop.permute.xlu0 %1570
    %1573 = vset.pattern.permute.xlu0 2
    %1574 = vperm.xlu0 %1573, %v1196
    %v1575 = vpop.permute.xlu0 %1574
    %1577 = vset.pattern.permute.xlu0 2
    %1578 = vperm.xlu0 %1577, %v1197
    %v1579 = vpop.permute.xlu0 %1578
    %1581 = vset.pattern.permute.xlu0 2
    %1582 = vperm.xlu0 %1581, %v1198
    %v1583 = vpop.permute.xlu0 %1582
    %1585 = vset.pattern.permute.xlu0 2
    %1586 = vperm.xlu0 %1585, %v1199
    %v1587 = vpop.permute.xlu0 %1586
    %1589 = vset.pattern.permute.xlu0 2
    %1590 = vperm.xlu0 %1589, %v1200
    %v1591 = vpop.permute.xlu0 %1590
    %1593 = vset.pattern.permute.xlu0 2
    %1594 = vperm.xlu0 %1593, %v1201
    %v1595 = vpop.permute.xlu0 %1594
    %1597 = vset.pattern.permute.xlu0 2
    %1598 = vperm.xlu0 %1597, %v1202
    %v1599 = vpop.permute.xlu0 %1598
    %1601 = vset.pattern.permute.xlu0 2
    %1602 = vperm.xlu0 %1601, %v1203
    %v1603 = vpop.permute.xlu0 %1602
    %1605 = vset.pattern.permute.xlu0 2
    %1606 = vperm.xlu0 %1605, %v1204
    %v1607 = vpop.permute.xlu0 %1606
    %1609 = vset.pattern.permute.xlu0 2
    %1610 = vperm.xlu0 %1609, %v1205
    %v1611 = vpop.permute.xlu0 %1610
    %1613 = vset.pattern.permute.xlu0 2
    %1614 = vperm.xlu0 %1613, %v1206
    %v1615 = vpop.permute.xlu0 %1614
    %1617 = vset.pattern.permute.xlu0 2
    %1618 = vperm.xlu0 %1617, %v1207
    %v1619 = vpop.permute.xlu0 %1618
    %1621 = vset.pattern.permute.xlu0 2
    %1622 = vperm.xlu0 %1621, %v1208
    %v1623 = vpop.permute.xlu0 %1622
    %v1625 = vadd.f32 %v1495, %v1523
    %v1626 = vadd.f32 %v1496, %v1527
    %v1627 = vadd.f32 %v1497, %v1531
    %v1628 = vadd.f32 %v1498, %v1535
    %v1629 = vadd.f32 %v1499, %v1539
    %v1630 = vadd.f32 %v1500, %v1543
    %v1631 = vadd.f32 %v1501, %v1547
    %v1632 = vadd.f32 %v1502, %v1551
    %v1633 = vadd.f32 %v1503, %v1555
    %v1634 = vadd.f32 %v1504, %v1559
    %v1635 = vadd.f32 %v1505, %v1563
    %v1636 = vadd.f32 %v1506, %v1567
    %v1637 = vadd.f32 %v1507, %v1571
    %v1638 = vadd.f32 %v1508, %v1575
    %v1639 = vadd.f32 %v1509, %v1579
    %v1640 = vadd.f32 %v1510, %v1583
    %v1641 = vadd.f32 %v1511, %v1587
    %v1642 = vadd.f32 %v1512, %v1591
    %v1643 = vadd.f32 %v1513, %v1595
    %v1644 = vadd.f32 %v1514, %v1599
    %v1645 = vadd.f32 %v1515, %v1603
    %v1646 = vadd.f32 %v1516, %v1607
    %v1647 = vadd.f32 %v1517, %v1611
    %v1648 = vadd.f32 %v1518, %v1615
    %v1649 = vadd.f32 %v1519, %v1619
    %v1650 = vadd.f32 %v1520, %v1623
    %v1651 = vld [vmem:[%s4] sm:$0xff]
    %v1652 = vld [vmem:[%s4 + $0x8] sm:$0xff]
    %v1653 = vld [vmem:[%s4 + $0x10] sm:$0xff]
    %v1654 = vld [vmem:[%s4 + $0x18] sm:$0xff]
    %v1655 = vld [vmem:[%s4 + $0x20] sm:$0xff]
    %v1656 = vld [vmem:[%s4 + $0x28] sm:$0xff]
    %v1657 = vld [vmem:[%s4 + $0x30] sm:$0xff]
    %v1658 = vld [vmem:[%s4 + $0x38] sm:$0xff]
    %v1659 = vld [vmem:[%s4 + $0x40] sm:$0x7]
    %v1661 = vsel %vm80, %v1625, 0
    %v1664 = vsel %vm80, %v1626, 0
    %v1667 = vsel %vm80, %v1627, 0
    %v1670 = vsel %vm80, %v1628, 0
    %v1673 = vsel %vm80, %v1629, 0
    %v1676 = vsel %vm80, %v1630, 0
    %v1679 = vsel %vm80, %v1631, 0
    %v1682 = vsel %vm80, %v1632, 0
    %v1685 = vsel %vm80, %v1633, 0
    %v1688 = vsel %vm80, %v1634, 0
    %v1691 = vsel %vm80, %v1635, 0
    %v1694 = vsel %vm80, %v1636, 0
    %v1697 = vsel %vm80, %v1637, 0
    %v1700 = vsel %vm80, %v1638, 0
    %v1703 = vsel %vm80, %v1639, 0
    %v1706 = vsel %vm80, %v1640, 0
    %v1709 = vsel %vm80, %v1641, 0
    %v1712 = vsel %vm80, %v1642, 0
    %v1715 = vsel %vm80, %v1643, 0
    %v1718 = vsel %vm80, %v1644, 0
    %v1721 = vsel %vm80, %v1645, 0
    %v1724 = vsel %vm80, %v1646, 0
    %v1727 = vsel %vm80, %v1647, 0
    %v1730 = vsel %vm80, %v1648, 0
    %v1733 = vsel %vm80, %v1649, 0
    %v1736 = vsel %vm80, %v1650, 0
    %v1739 = vsel %vm96, %v1659, 0
    %1741 = vmatprep.subr.mxu0 0.0
    %1742 = vmatpush1.msra.mxu0 %v1651
    %1743 = vmatprep.subr.mxu0 0.0
    %1744 = vmatpush1.msra.mxu0 %v1652
    %1745 = vmatprep.subr.mxu0 0.0
    %1746 = vmatpush1.msra.mxu0 %v1653
    %1747 = vmatprep.subr.mxu0 0.0
    %1748 = vmatpush1.msra.mxu0 %v1654
    %1749 = vmatprep.subr.mxu0 0.0
    %1750 = vmatpush1.msra.mxu0 %v1655
    %1751 = vmatprep.subr.mxu0 0.0
    %1752 = vmatpush1.msra.mxu0 %v1656
    %1753 = vmatprep.subr.mxu0 0.0
    %1754 = vmatpush1.msra.mxu0 %v1657
    %1755 = vmatprep.subr.mxu0 0.0
    %1756 = vmatpush1.msra.mxu0 %v1658
    %1757 = vmatprep.subr.mxu0 0.0
    %1758 = vmatpush1.msra.mxu0 %v1739
    %1759 = vmatprep.subr.mxu0 0.0
    %1760 = vmatpush1.msra.mxu0 0.0
    %1761 = vmatprep.subr.mxu0 0.0
    %1762 = vmatpush1.msra.mxu0 0.0
    %1763 = vmatprep.subr.mxu0 0.0
    %1764 = vmatpush1.msra.mxu0 0.0
    %1765 = vmatprep.subr.mxu0 0.0
    %1766 = vmatpush1.msra.mxu0 0.0
    %1767 = vmatprep.subr.mxu0 0.0
    %1768 = vmatpush1.msra.mxu0 0.0
    %1769 = vmatprep.subr.mxu0 0.0
    %1770 = vmatpush1.msra.mxu0 0.0
    %1771 = vmatprep.subr.mxu0 0.0
    %1772 = vmatpush1.msra.mxu0 0.0
    %1773 = vmatprep.subr.mxu0 0.0
    %1774 = vmatpush1.msra.mxu0 0.0
    %1775 = vmatprep.subr.mxu0 0.0
    %1776 = vmatpush1.msra.mxu0 0.0
    %1777 = vmatprep.subr.mxu0 0.0
    %1778 = vmatpush1.msra.mxu0 0.0
    %1779 = vmatprep.subr.mxu0 0.0
    %1780 = vmatpush1.msra.mxu0 0.0
    %1781 = vmatprep.subr.mxu0 0.0
    %1782 = vmatpush1.msra.mxu0 0.0
    %1783 = vmatprep.subr.mxu0 0.0
    %1784 = vmatpush1.msra.mxu0 0.0
    %1785 = vmatprep.subr.mxu0 0.0
    %1786 = vmatpush1.msra.mxu0 0.0
    %1787 = vmatprep.subr.mxu0 0.0
    %1788 = vmatpush1.msra.mxu0 0.0
    %1789 = vmatprep.subr.mxu0 0.0
    %1790 = vmatpush1.msra.mxu0 0.0
    %1791 = vmatprep.subr.mxu0 0.0
    %1792 = vmatpush1.msra.mxu0 0.0
    %1793 = vmatprep.subr.mxu0 0.0
    %1794 = vmatpush1.msra.mxu0 0.0
    %1795 = vmatprep.subr.mxu0 0.0
    %1796 = vmatpush1.msra.mxu0 0.0
    %1797 = vmatprep.subr.mxu0 0.0
    %1798 = vmatpush1.msra.mxu0 0.0
    %1799 = vmatprep.subr.mxu0 0.0
    %1800 = vmatpush1.msra.mxu0 0.0
    %1801 = vmatprep.subr.mxu0 0.0
    %1802 = vmatpush1.msra.mxu0 0.0
    %1803 = vmatprep.subr.mxu0 0.0
    %1804 = vmatpush1.msra.mxu0 0.0
    %1805 = vmatprep.mubr.f32.mxu0 0.0
    %1806 = vmatmul.mubr.f32.gmra.mrb[0].mxu0 %v1661
    %v1807 = vpop.f32.mrb[0].mxu0
    %v1808 = vadd.f32 0.0, %v1807
    %v1809 = vpop.f32.mrb[0].mxu0
    %1810 = vmatprep.mubr.f32.mxu0 0.0
    %1811 = vmatmul.mubr.f32.gmra.mrb[0].mxu0 %v1664
    %v1812 = vpop.f32.mrb[0].mxu0
    %v1813 = vadd.f32 0.0, %v1812
    %v1814 = vpop.f32.mrb[0].mxu0
    %1815 = vmatprep.mubr.f32.mxu0 0.0
    %1816 = vmatmul.mubr.f32.gmra.mrb[0].mxu0 %v1667
    %v1817 = vpop.f32.mrb[0].mxu0
    %v1818 = vadd.f32 0.0, %v1817
    %v1819 = vpop.f32.mrb[0].mxu0
    %1820 = vmatprep.mubr.f32.mxu0 0.0
    %1821 = vmatmul.mubr.f32.gmra.mrb[0].mxu0 %v1670
    %v1822 = vpop.f32.mrb[0].mxu0
    %v1823 = vadd.f32 0.0, %v1822
    %v1824 = vpop.f32.mrb[0].mxu0
    %1825 = vmatprep.mubr.f32.mxu0 0.0
    %1826 = vmatmul.mubr.f32.gmra.mrb[0].mxu0 %v1673
    %v1827 = vpop.f32.mrb[0].mxu0
    %v1828 = vadd.f32 0.0, %v1827
    %v1829 = vpop.f32.mrb[0].mxu0
    %1830 = vmatprep.mubr.f32.mxu0 0.0
    %1831 = vmatmul.mubr.f32.gmra.mrb[0].mxu0 %v1676
    %v1832 = vpop.f32.mrb[0].mxu0
    %v1833 = vadd.f32 0.0, %v1832
    %v1834 = vpop.f32.mrb[0].mxu0
    %1835 = vmatprep.mubr.f32.mxu0 0.0
    %1836 = vmatmul.mubr.f32.gmra.mrb[0].mxu0 %v1679
    %v1837 = vpop.f32.mrb[0].mxu0
    %v1838 = vadd.f32 0.0, %v1837
    %v1839 = vpop.f32.mrb[0].mxu0
    %1840 = vmatprep.mubr.f32.mxu0 0.0
    %1841 = vmatmul.mubr.f32.gmra.mrb[0].mxu0 %v1682
    %v1842 = vpop.f32.mrb[0].mxu0
    %v1843 = vadd.f32 0.0, %v1842
    %v1844 = vpop.f32.mrb[0].mxu0
    %1845 = vmatprep.mubr.f32.mxu0 0.0
    %1846 = vmatmul.mubr.f32.gmra.mrb[0].mxu0 %v1685
    %v1847 = vpop.f32.mrb[0].mxu0
    %v1848 = vadd.f32 0.0, %v1847
    %v1849 = vpop.f32.mrb[0].mxu0
    %1850 = vmatprep.mubr.f32.mxu0 0.0
    %1851 = vmatmul.mubr.f32.gmra.mrb[0].mxu0 %v1688
    %v1852 = vpop.f32.mrb[0].mxu0
    %v1853 = vadd.f32 0.0, %v1852
    %v1854 = vpop.f32.mrb[0].mxu0
    %1855 = vmatprep.mubr.f32.mxu0 0.0
    %1856 = vmatmul.mubr.f32.gmra.mrb[0].mxu0 %v1691
    %v1857 = vpop.f32.mrb[0].mxu0
    %v1858 = vadd.f32 0.0, %v1857
    %v1859 = vpop.f32.mrb[0].mxu0
    %1860 = vmatprep.mubr.f32.mxu0 0.0
    %1861 = vmatmul.mubr.f32.gmra.mrb[0].mxu0 %v1694
    %v1862 = vpop.f32.mrb[0].mxu0
    %v1863 = vadd.f32 0.0, %v1862
    %v1864 = vpop.f32.mrb[0].mxu0
    %1865 = vmatprep.mubr.f32.mxu0 0.0
    %1866 = vmatmul.mubr.f32.gmra.mrb[0].mxu0 %v1697
    %v1867 = vpop.f32.mrb[0].mxu0
    %v1868 = vadd.f32 0.0, %v1867
    %v1869 = vpop.f32.mrb[0].mxu0
    %1870 = vmatprep.mubr.f32.mxu0 0.0
    %1871 = vmatmul.mubr.f32.gmra.mrb[0].mxu0 %v1700
    %v1872 = vpop.f32.mrb[0].mxu0
    %v1873 = vadd.f32 0.0, %v1872
    %v1874 = vpop.f32.mrb[0].mxu0
    %1875 = vmatprep.mubr.f32.mxu0 0.0
    %1876 = vmatmul.mubr.f32.gmra.mrb[0].mxu0 %v1703
    %v1877 = vpop.f32.mrb[0].mxu0
    %v1878 = vadd.f32 0.0, %v1877
    %v1879 = vpop.f32.mrb[0].mxu0
    %1880 = vmatprep.mubr.f32.mxu0 0.0
    %1881 = vmatmul.mubr.f32.gmra.mrb[0].mxu0 %v1706
    %v1882 = vpop.f32.mrb[0].mxu0
    %v1883 = vadd.f32 0.0, %v1882
    %v1884 = vpop.f32.mrb[0].mxu0
    %1885 = vmatprep.mubr.f32.mxu0 0.0
    %1886 = vmatmul.mubr.f32.gmra.mrb[0].mxu0 %v1709
    %v1887 = vpop.f32.mrb[0].mxu0
    %v1888 = vadd.f32 0.0, %v1887
    %v1889 = vpop.f32.mrb[0].mxu0
    %1890 = vmatprep.mubr.f32.mxu0 0.0
    %1891 = vmatmul.mubr.f32.gmra.mrb[0].mxu0 %v1712
    %v1892 = vpop.f32.mrb[0].mxu0
    %v1893 = vadd.f32 0.0, %v1892
    %v1894 = vpop.f32.mrb[0].mxu0
    %1895 = vmatprep.mubr.f32.mxu0 0.0
    %1896 = vmatmul.mubr.f32.gmra.mrb[0].mxu0 %v1715
    %v1897 = vpop.f32.mrb[0].mxu0
    %v1898 = vadd.f32 0.0, %v1897
    %v1899 = vpop.f32.mrb[0].mxu0
    %1900 = vmatprep.mubr.f32.mxu0 0.0
    %1901 = vmatmul.mubr.f32.gmra.mrb[0].mxu0 %v1718
    %v1902 = vpop.f32.mrb[0].mxu0
    %v1903 = vadd.f32 0.0, %v1902
    %v1904 = vpop.f32.mrb[0].mxu0
    %1905 = vmatprep.mubr.f32.mxu0 0.0
    %1906 = vmatmul.mubr.f32.gmra.mrb[0].mxu0 %v1721
    %v1907 = vpop.f32.mrb[0].mxu0
    %v1908 = vadd.f32 0.0, %v1907
    %v1909 = vpop.f32.mrb[0].mxu0
    %1910 = vmatprep.mubr.f32.mxu0 0.0
    %1911 = vmatmul.mubr.f32.gmra.mrb[0].mxu0 %v1724
    %v1912 = vpop.f32.mrb[0].mxu0
    %v1913 = vadd.f32 0.0, %v1912
    %v1914 = vpop.f32.mrb[0].mxu0
    %1915 = vmatprep.mubr.f32.mxu0 0.0
    %1916 = vmatmul.mubr.f32.gmra.mrb[0].mxu0 %v1727
    %v1917 = vpop.f32.mrb[0].mxu0
    %v1918 = vadd.f32 0.0, %v1917
    %v1919 = vpop.f32.mrb[0].mxu0
    %1920 = vmatprep.mubr.f32.mxu0 0.0
    %1921 = vmatmul.mubr.f32.gmra.mrb[0].mxu0 %v1730
    %v1922 = vpop.f32.mrb[0].mxu0
    %v1923 = vadd.f32 0.0, %v1922
    %v1924 = vpop.f32.mrb[0].mxu0
    %1925 = vmatprep.mubr.f32.mxu0 0.0
    %1926 = vmatmul.mubr.f32.gmra.mrb[0].mxu0 %v1733
    %v1927 = vpop.f32.mrb[0].mxu0
    %v1928 = vadd.f32 0.0, %v1927
    %v1929 = vpop.f32.mrb[0].mxu0
    %1930 = vmatprep.mubr.f32.mxu0 0.0
    %1931 = vmatmul.mubr.f32.gmra.mrb[0].mxu0 %v1736
    %v1932 = vpop.f32.mrb[0].mxu0
    %v1933 = vadd.f32 0.0, %v1932
    %v1934 = vpop.f32.mrb[0].mxu0
    %1935 = vdwg.mxu0
    %v1936 = vld [vmem:[%s5] sm:$0xff]
    %v1937 = vld [vmem:[%s5 + $0x8] sm:$0xff]
    %v1938 = vld [vmem:[%s5 + $0x28] sm:$0xff]
    %v1939 = vld [vmem:[%s5 + $0x30] sm:$0xff]
    %v1940 = vld [vmem:[%s5 + $0x50] sm:$0xff]
    %v1941 = vld [vmem:[%s5 + $0x58] sm:$0xff]
    %v1942 = vld [vmem:[%s5 + $0x78] sm:$0xff]
    %v1943 = vld [vmem:[%s5 + $0x80] sm:$0xff]
    %v1944 = vld [vmem:[%s5 + $0xa0] sm:$0xff]
    %v1945 = vld [vmem:[%s5 + $0xa8] sm:$0xff]
    %v1946 = vld [vmem:[%s5 + $0xc8] sm:$0xff]
    %v1947 = vld [vmem:[%s5 + $0xd0] sm:$0xff]
    %v1948 = vld [vmem:[%s5 + $0xf0] sm:$0xff]
    %v1949 = vld [vmem:[%s5 + $0xf8] sm:$0xff]
    %v1950 = vld [vmem:[%s5 + $0x118] sm:$0xff]
    %v1951 = vld [vmem:[%s5 + $0x120] sm:$0xff]
    %v1952 = vld [vmem:[%s5 + $0x140] sm:$0xff]
    %v1953 = vld [vmem:[%s5 + $0x148] sm:$0xff]
    %v1954 = vld [vmem:[%s5 + $0x168] sm:$0xff]
    %v1955 = vld [vmem:[%s5 + $0x170] sm:$0xff]
    %v1956 = vld [vmem:[%s5 + $0x190] sm:$0xff]
    %v1957 = vld [vmem:[%s5 + $0x198] sm:$0xff]
    %v1958 = vld [vmem:[%s5 + $0x1b8] sm:$0xff]
    %v1959 = vld [vmem:[%s5 + $0x1c0] sm:$0xff]
    %v1960 = vld [vmem:[%s5 + $0x1e0] sm:$0xff]
    %v1961 = vld [vmem:[%s5 + $0x1e8] sm:$0xff]
    %v1962 = vld [vmem:[%s5 + $0x208] sm:$0xff]
    %v1963 = vld [vmem:[%s5 + $0x210] sm:$0xff]
    %v1964 = vld [vmem:[%s5 + $0x230] sm:$0xff]
    %v1965 = vld [vmem:[%s5 + $0x238] sm:$0xff]
    %v1966 = vld [vmem:[%s5 + $0x258] sm:$0xff]
    %v1967 = vld [vmem:[%s5 + $0x260] sm:$0xff]
    %v1968 = vld [vmem:[%s5 + $0x280] sm:$0xff]
    %v1969 = vld [vmem:[%s5 + $0x288] sm:$0xff]
    %v1970 = vld [vmem:[%s5 + $0x2a8] sm:$0xff]
    %v1971 = vld [vmem:[%s5 + $0x2b0] sm:$0xff]
    %v1972 = vld [vmem:[%s5 + $0x2d0] sm:$0xff]
    %v1973 = vld [vmem:[%s5 + $0x2d8] sm:$0xff]
    %v1974 = vld [vmem:[%s5 + $0x2f8] sm:$0xff]
    %v1975 = vld [vmem:[%s5 + $0x300] sm:$0xff]
    %v1976 = vld [vmem:[%s5 + $0x320] sm:$0xff]
    %v1977 = vld [vmem:[%s5 + $0x328] sm:$0xff]
    %v1978 = vld [vmem:[%s5 + $0x348] sm:$0xff]
    %v1979 = vld [vmem:[%s5 + $0x350] sm:$0xff]
    %v1980 = vld [vmem:[%s5 + $0x370] sm:$0xff]
    %v1981 = vld [vmem:[%s5 + $0x378] sm:$0xff]
    %v1982 = vld [vmem:[%s5 + $0x398] sm:$0xff]
    %v1983 = vld [vmem:[%s5 + $0x3a0] sm:$0xff]
    %v1984 = vld [vmem:[%s5 + $0x3c0] sm:$0xff]
    %v1985 = vld [vmem:[%s5 + $0x3c8] sm:$0xff]
    %v1986 = vld [vmem:[%s5 + $0x3e8] sm:$0xff]
    %v1987 = vld [vmem:[%s5 + $0x3f0] sm:$0xff]
    %v1988 = vld [vmem:[%s5 + $0x410] sm:$0xff]
    %v1989 = vld [vmem:[%s5 + $0x418] sm:$0xff]
    %v1990 = vld [vmem:[%s5 + $0x438] sm:$0xff]
    %v1991 = vld [vmem:[%s5 + $0x440] sm:$0xff]
    %v1992 = vld [vmem:[%s5 + $0x460] sm:$0xff]
    %v1993 = vld [vmem:[%s5 + $0x468] sm:$0xff]
    %v1994 = vld [vmem:[%s5 + $0x488] sm:$0xff]
    %v1995 = vld [vmem:[%s5 + $0x490] sm:$0xff]
    %v1996 = vld [vmem:[%s5 + $0x4b0] sm:$0xff]
    %v1997 = vld [vmem:[%s5 + $0x4b8] sm:$0xff]
    %v1998 = vld [vmem:[%s5 + $0x4d8] sm:$0xff]
    %v1999 = vld [vmem:[%s5 + $0x4e0] sm:$0xff]
    %v2000 = vld [vmem:[%s5 + $0x500] sm:$0xff]
    %v2001 = vld [vmem:[%s5 + $0x508] sm:$0xff]
    %v2002 = vld [vmem:[%s5 + $0x528] sm:$0xff]
    %v2003 = vld [vmem:[%s5 + $0x530] sm:$0xff]
    %v2004 = vld [vmem:[%s5 + $0x550] sm:$0xff]
    %v2005 = vld [vmem:[%s5 + $0x558] sm:$0xff]
    %v2006 = vld [vmem:[%s5 + $0x578] sm:$0xff]
    %v2007 = vld [vmem:[%s5 + $0x580] sm:$0xff]
    %v2008 = vld [vmem:[%s5 + $0x10] sm:$0xff]
    %v2009 = vld [vmem:[%s5 + $0x18] sm:$0xff]
    %v2010 = vld [vmem:[%s5 + $0x38] sm:$0xff]
    %v2011 = vld [vmem:[%s5 + $0x40] sm:$0xff]
    %v2012 = vld [vmem:[%s5 + $0x60] sm:$0xff]
    %v2013 = vld [vmem:[%s5 + $0x68] sm:$0xff]
    %v2014 = vld [vmem:[%s5 + $0x88] sm:$0xff]
    %v2015 = vld [vmem:[%s5 + $0x90] sm:$0xff]
    %v2016 = vld [vmem:[%s5 + $0xb0] sm:$0xff]
    %v2017 = vld [vmem:[%s5 + $0xb8] sm:$0xff]
    %v2018 = vld [vmem:[%s5 + $0xd8] sm:$0xff]
    %v2019 = vld [vmem:[%s5 + $0xe0] sm:$0xff]
    %v2020 = vld [vmem:[%s5 + $0x100] sm:$0xff]
    %v2021 = vld [vmem:[%s5 + $0x108] sm:$0xff]
    %v2022 = vld [vmem:[%s5 + $0x128] sm:$0xff]
    %v2023 = vld [vmem:[%s5 + $0x130] sm:$0xff]
    %v2024 = vld [vmem:[%s5 + $0x150] sm:$0xff]
    %v2025 = vld [vmem:[%s5 + $0x158] sm:$0xff]
    %v2026 = vld [vmem:[%s5 + $0x178] sm:$0xff]
    %v2027 = vld [vmem:[%s5 + $0x180] sm:$0xff]
    %v2028 = vld [vmem:[%s5 + $0x1a0] sm:$0xff]
    %v2029 = vld [vmem:[%s5 + $0x1a8] sm:$0xff]
    %v2030 = vld [vmem:[%s5 + $0x1c8] sm:$0xff]
    %v2031 = vld [vmem:[%s5 + $0x1d0] sm:$0xff]
    %v2032 = vld [vmem:[%s5 + $0x1f0] sm:$0xff]
    %v2033 = vld [vmem:[%s5 + $0x1f8] sm:$0xff]
    %v2034 = vld [vmem:[%s5 + $0x218] sm:$0xff]
    %v2035 = vld [vmem:[%s5 + $0x220] sm:$0xff]
    %v2036 = vld [vmem:[%s5 + $0x240] sm:$0xff]
    %v2037 = vld [vmem:[%s5 + $0x248] sm:$0xff]
    %v2038 = vld [vmem:[%s5 + $0x268] sm:$0xff]
    %v2039 = vld [vmem:[%s5 + $0x270] sm:$0xff]
    %v2040 = vld [vmem:[%s5 + $0x290] sm:$0xff]
    %v2041 = vld [vmem:[%s5 + $0x298] sm:$0xff]
    %v2042 = vld [vmem:[%s5 + $0x2b8] sm:$0xff]
    %v2043 = vld [vmem:[%s5 + $0x2c0] sm:$0xff]
    %v2044 = vld [vmem:[%s5 + $0x2e0] sm:$0xff]
    %v2045 = vld [vmem:[%s5 + $0x2e8] sm:$0xff]
    %v2046 = vld [vmem:[%s5 + $0x308] sm:$0xff]
    %v2047 = vld [vmem:[%s5 + $0x310] sm:$0xff]
    %v2048 = vld [vmem:[%s5 + $0x330] sm:$0xff]
    %v2049 = vld [vmem:[%s5 + $0x338] sm:$0xff]
    %v2050 = vld [vmem:[%s5 + $0x358] sm:$0xff]
    %v2051 = vld [vmem:[%s5 + $0x360] sm:$0xff]
    %v2052 = vld [vmem:[%s5 + $0x380] sm:$0xff]
    %v2053 = vld [vmem:[%s5 + $0x388] sm:$0xff]
    %v2054 = vld [vmem:[%s5 + $0x3a8] sm:$0xff]
    %v2055 = vld [vmem:[%s5 + $0x3b0] sm:$0xff]
    %v2056 = vld [vmem:[%s5 + $0x3d0] sm:$0xff]
    %v2057 = vld [vmem:[%s5 + $0x3d8] sm:$0xff]
    %v2058 = vld [vmem:[%s5 + $0x3f8] sm:$0xff]
    %v2059 = vld [vmem:[%s5 + $0x400] sm:$0xff]
    %v2060 = vld [vmem:[%s5 + $0x420] sm:$0xff]
    %v2061 = vld [vmem:[%s5 + $0x428] sm:$0xff]
    %v2062 = vld [vmem:[%s5 + $0x448] sm:$0xff]
    %v2063 = vld [vmem:[%s5 + $0x450] sm:$0xff]
    %v2064 = vld [vmem:[%s5 + $0x470] sm:$0xff]
    %v2065 = vld [vmem:[%s5 + $0x478] sm:$0xff]
    %v2066 = vld [vmem:[%s5 + $0x498] sm:$0xff]
    %v2067 = vld [vmem:[%s5 + $0x4a0] sm:$0xff]
    %v2068 = vld [vmem:[%s5 + $0x4c0] sm:$0xff]
    %v2069 = vld [vmem:[%s5 + $0x4c8] sm:$0xff]
    %v2070 = vld [vmem:[%s5 + $0x4e8] sm:$0xff]
    %v2071 = vld [vmem:[%s5 + $0x4f0] sm:$0xff]
    %v2072 = vld [vmem:[%s5 + $0x510] sm:$0xff]
    %v2073 = vld [vmem:[%s5 + $0x518] sm:$0xff]
    %v2074 = vld [vmem:[%s5 + $0x538] sm:$0xff]
    %v2075 = vld [vmem:[%s5 + $0x540] sm:$0xff]
    %v2076 = vld [vmem:[%s5 + $0x560] sm:$0xff]
    %v2077 = vld [vmem:[%s5 + $0x568] sm:$0xff]
    %v2078 = vld [vmem:[%s5 + $0x588] sm:$0xff]
    %v2079 = vld [vmem:[%s5 + $0x590] sm:$0xff]
    %2188 = vrot.lane.b32.xlu0 %v1937, 52
    %v2189 = vpop.permute.xlu0 %2188
    %2190 = vrot.lane.b32.xlu0 %v2008, 52
    %v2191 = vpop.permute.xlu0 %2190
    %2192 = vrot.lane.b32.xlu0 %v2009, 52
    %v2193 = vpop.permute.xlu0 %2192
    %2194 = vrot.lane.b32.xlu0 %v1939, 52
    %v2195 = vpop.permute.xlu0 %2194
    %2196 = vrot.lane.b32.xlu0 %v2010, 52
    %v2197 = vpop.permute.xlu0 %2196
    %2198 = vrot.lane.b32.xlu0 %v2011, 52
    %v2199 = vpop.permute.xlu0 %2198
    %2200 = vrot.lane.b32.xlu0 %v1941, 52
    %v2201 = vpop.permute.xlu0 %2200
    %2202 = vrot.lane.b32.xlu0 %v2012, 52
    %v2203 = vpop.permute.xlu0 %2202
    %2204 = vrot.lane.b32.xlu0 %v2013, 52
    %v2205 = vpop.permute.xlu0 %2204
    %2206 = vrot.lane.b32.xlu0 %v1943, 52
    %v2207 = vpop.permute.xlu0 %2206
    %2208 = vrot.lane.b32.xlu0 %v2014, 52
    %v2209 = vpop.permute.xlu0 %2208
    %2210 = vrot.lane.b32.xlu0 %v2015, 52
    %v2211 = vpop.permute.xlu0 %2210
    %2212 = vrot.lane.b32.xlu0 %v1945, 52
    %v2213 = vpop.permute.xlu0 %2212
    %2214 = vrot.lane.b32.xlu0 %v2016, 52
    %v2215 = vpop.permute.xlu0 %2214
    %2216 = vrot.lane.b32.xlu0 %v2017, 52
    %v2217 = vpop.permute.xlu0 %2216
    %2218 = vrot.lane.b32.xlu0 %v1947, 52
    %v2219 = vpop.permute.xlu0 %2218
    %2220 = vrot.lane.b32.xlu0 %v2018, 52
    %v2221 = vpop.permute.xlu0 %2220
    %2222 = vrot.lane.b32.xlu0 %v2019, 52
    %v2223 = vpop.permute.xlu0 %2222
    %2224 = vrot.lane.b32.xlu0 %v1949, 52
    %v2225 = vpop.permute.xlu0 %2224
    %2226 = vrot.lane.b32.xlu0 %v2020, 52
    %v2227 = vpop.permute.xlu0 %2226
    %2228 = vrot.lane.b32.xlu0 %v2021, 52
    %v2229 = vpop.permute.xlu0 %2228
    %2230 = vrot.lane.b32.xlu0 %v1951, 52
    %v2231 = vpop.permute.xlu0 %2230
    %2232 = vrot.lane.b32.xlu0 %v2022, 52
    %v2233 = vpop.permute.xlu0 %2232
    %2234 = vrot.lane.b32.xlu0 %v2023, 52
    %v2235 = vpop.permute.xlu0 %2234
    %2236 = vrot.lane.b32.xlu0 %v1953, 52
    %v2237 = vpop.permute.xlu0 %2236
    %2238 = vrot.lane.b32.xlu0 %v2024, 52
    %v2239 = vpop.permute.xlu0 %2238
    %2240 = vrot.lane.b32.xlu0 %v2025, 52
    %v2241 = vpop.permute.xlu0 %2240
    %2242 = vrot.lane.b32.xlu0 %v1955, 52
    %v2243 = vpop.permute.xlu0 %2242
    %2244 = vrot.lane.b32.xlu0 %v2026, 52
    %v2245 = vpop.permute.xlu0 %2244
    %2246 = vrot.lane.b32.xlu0 %v2027, 52
    %v2247 = vpop.permute.xlu0 %2246
    %2248 = vrot.lane.b32.xlu0 %v1957, 52
    %v2249 = vpop.permute.xlu0 %2248
    %2250 = vrot.lane.b32.xlu0 %v2028, 52
    %v2251 = vpop.permute.xlu0 %2250
    %2252 = vrot.lane.b32.xlu0 %v2029, 52
    %v2253 = vpop.permute.xlu0 %2252
    %2254 = vrot.lane.b32.xlu0 %v1959, 52
    %v2255 = vpop.permute.xlu0 %2254
    %2256 = vrot.lane.b32.xlu0 %v2030, 52
    %v2257 = vpop.permute.xlu0 %2256
    %2258 = vrot.lane.b32.xlu0 %v2031, 52
    %v2259 = vpop.permute.xlu0 %2258
    %2260 = vrot.lane.b32.xlu0 %v1961, 52
    %v2261 = vpop.permute.xlu0 %2260
    %2262 = vrot.lane.b32.xlu0 %v2032, 52
    %v2263 = vpop.permute.xlu0 %2262
    %2264 = vrot.lane.b32.xlu0 %v2033, 52
    %v2265 = vpop.permute.xlu0 %2264
    %2266 = vrot.lane.b32.xlu0 %v1963, 52
    %v2267 = vpop.permute.xlu0 %2266
    %2268 = vrot.lane.b32.xlu0 %v2034, 52
    %v2269 = vpop.permute.xlu0 %2268
    %2270 = vrot.lane.b32.xlu0 %v2035, 52
    %v2271 = vpop.permute.xlu0 %2270
    %2272 = vrot.lane.b32.xlu0 %v1965, 52
    %v2273 = vpop.permute.xlu0 %2272
    %2274 = vrot.lane.b32.xlu0 %v2036, 52
    %v2275 = vpop.permute.xlu0 %2274
    %2276 = vrot.lane.b32.xlu0 %v2037, 52
    %v2277 = vpop.permute.xlu0 %2276
    %2278 = vrot.lane.b32.xlu0 %v1967, 52
    %v2279 = vpop.permute.xlu0 %2278
    %2280 = vrot.lane.b32.xlu0 %v2038, 52
    %v2281 = vpop.permute.xlu0 %2280
    %2282 = vrot.lane.b32.xlu0 %v2039, 52
    %v2283 = vpop.permute.xlu0 %2282
    %2284 = vrot.lane.b32.xlu0 %v1969, 52
    %v2285 = vpop.permute.xlu0 %2284
    %2286 = vrot.lane.b32.xlu0 %v2040, 52
    %v2287 = vpop.permute.xlu0 %2286
    %2288 = vrot.lane.b32.xlu0 %v2041, 52
    %v2289 = vpop.permute.xlu0 %2288
    %2290 = vrot.lane.b32.xlu0 %v1971, 52
    %v2291 = vpop.permute.xlu0 %2290
    %2292 = vrot.lane.b32.xlu0 %v2042, 52
    %v2293 = vpop.permute.xlu0 %2292
    %2294 = vrot.lane.b32.xlu0 %v2043, 52
    %v2295 = vpop.permute.xlu0 %2294
    %2296 = vrot.lane.b32.xlu0 %v1973, 52
    %v2297 = vpop.permute.xlu0 %2296
    %2298 = vrot.lane.b32.xlu0 %v2044, 52
    %v2299 = vpop.permute.xlu0 %2298
    %2300 = vrot.lane.b32.xlu0 %v2045, 52
    %v2301 = vpop.permute.xlu0 %2300
    %2302 = vrot.lane.b32.xlu0 %v1975, 52
    %v2303 = vpop.permute.xlu0 %2302
    %2304 = vrot.lane.b32.xlu0 %v2046, 52
    %v2305 = vpop.permute.xlu0 %2304
    %2306 = vrot.lane.b32.xlu0 %v2047, 52
    %v2307 = vpop.permute.xlu0 %2306
    %2308 = vrot.lane.b32.xlu0 %v1977, 52
    %v2309 = vpop.permute.xlu0 %2308
    %2310 = vrot.lane.b32.xlu0 %v2048, 52
    %v2311 = vpop.permute.xlu0 %2310
    %2312 = vrot.lane.b32.xlu0 %v2049, 52
    %v2313 = vpop.permute.xlu0 %2312
    %2314 = vrot.lane.b32.xlu0 %v1979, 52
    %v2315 = vpop.permute.xlu0 %2314
    %2316 = vrot.lane.b32.xlu0 %v2050, 52
    %v2317 = vpop.permute.xlu0 %2316
    %2318 = vrot.lane.b32.xlu0 %v2051, 52
    %v2319 = vpop.permute.xlu0 %2318
    %2320 = vrot.lane.b32.xlu0 %v1981, 52
    %v2321 = vpop.permute.xlu0 %2320
    %2322 = vrot.lane.b32.xlu0 %v2052, 52
    %v2323 = vpop.permute.xlu0 %2322
    %2324 = vrot.lane.b32.xlu0 %v2053, 52
    %v2325 = vpop.permute.xlu0 %2324
    %2326 = vrot.lane.b32.xlu0 %v1983, 52
    %v2327 = vpop.permute.xlu0 %2326
    %2328 = vrot.lane.b32.xlu0 %v2054, 52
    %v2329 = vpop.permute.xlu0 %2328
    %2330 = vrot.lane.b32.xlu0 %v2055, 52
    %v2331 = vpop.permute.xlu0 %2330
    %2332 = vrot.lane.b32.xlu0 %v1985, 52
    %v2333 = vpop.permute.xlu0 %2332
    %2334 = vrot.lane.b32.xlu0 %v2056, 52
    %v2335 = vpop.permute.xlu0 %2334
    %2336 = vrot.lane.b32.xlu0 %v2057, 52
    %v2337 = vpop.permute.xlu0 %2336
    %2338 = vrot.lane.b32.xlu0 %v1987, 52
    %v2339 = vpop.permute.xlu0 %2338
    %2340 = vrot.lane.b32.xlu0 %v2058, 52
    %v2341 = vpop.permute.xlu0 %2340
    %2342 = vrot.lane.b32.xlu0 %v2059, 52
    %v2343 = vpop.permute.xlu0 %2342
    %2344 = vrot.lane.b32.xlu0 %v1989, 52
    %v2345 = vpop.permute.xlu0 %2344
    %2346 = vrot.lane.b32.xlu0 %v2060, 52
    %v2347 = vpop.permute.xlu0 %2346
    %2348 = vrot.lane.b32.xlu0 %v2061, 52
    %v2349 = vpop.permute.xlu0 %2348
    %2350 = vrot.lane.b32.xlu0 %v1991, 52
    %v2351 = vpop.permute.xlu0 %2350
    %2352 = vrot.lane.b32.xlu0 %v2062, 52
    %v2353 = vpop.permute.xlu0 %2352
    %2354 = vrot.lane.b32.xlu0 %v2063, 52
    %v2355 = vpop.permute.xlu0 %2354
    %2356 = vrot.lane.b32.xlu0 %v1993, 52
    %v2357 = vpop.permute.xlu0 %2356
    %2358 = vrot.lane.b32.xlu0 %v2064, 52
    %v2359 = vpop.permute.xlu0 %2358
    %2360 = vrot.lane.b32.xlu0 %v2065, 52
    %v2361 = vpop.permute.xlu0 %2360
    %2362 = vrot.lane.b32.xlu0 %v1995, 52
    %v2363 = vpop.permute.xlu0 %2362
    %2364 = vrot.lane.b32.xlu0 %v2066, 52
    %v2365 = vpop.permute.xlu0 %2364
    %2366 = vrot.lane.b32.xlu0 %v2067, 52
    %v2367 = vpop.permute.xlu0 %2366
    %2368 = vrot.lane.b32.xlu0 %v1997, 52
    %v2369 = vpop.permute.xlu0 %2368
    %2370 = vrot.lane.b32.xlu0 %v2068, 52
    %v2371 = vpop.permute.xlu0 %2370
    %2372 = vrot.lane.b32.xlu0 %v2069, 52
    %v2373 = vpop.permute.xlu0 %2372
    %2374 = vrot.lane.b32.xlu0 %v1999, 52
    %v2375 = vpop.permute.xlu0 %2374
    %2376 = vrot.lane.b32.xlu0 %v2070, 52
    %v2377 = vpop.permute.xlu0 %2376
    %2378 = vrot.lane.b32.xlu0 %v2071, 52
    %v2379 = vpop.permute.xlu0 %2378
    %2380 = vrot.lane.b32.xlu0 %v2001, 52
    %v2381 = vpop.permute.xlu0 %2380
    %2382 = vrot.lane.b32.xlu0 %v2072, 52
    %v2383 = vpop.permute.xlu0 %2382
    %2384 = vrot.lane.b32.xlu0 %v2073, 52
    %v2385 = vpop.permute.xlu0 %2384
    %2386 = vrot.lane.b32.xlu0 %v2003, 52
    %v2387 = vpop.permute.xlu0 %2386
    %2388 = vrot.lane.b32.xlu0 %v2074, 52
    %v2389 = vpop.permute.xlu0 %2388
    %2390 = vrot.lane.b32.xlu0 %v2075, 52
    %v2391 = vpop.permute.xlu0 %2390
    %2392 = vrot.lane.b32.xlu0 %v2005, 52
    %v2393 = vpop.permute.xlu0 %2392
    %2394 = vrot.lane.b32.xlu0 %v2076, 52
    %v2395 = vpop.permute.xlu0 %2394
    %2396 = vrot.lane.b32.xlu0 %v2077, 52
    %v2397 = vpop.permute.xlu0 %2396
    %2398 = vrot.lane.b32.xlu0 %v2007, 52
    %v2399 = vpop.permute.xlu0 %2398
    %2400 = vrot.lane.b32.xlu0 %v2078, 52
    %v2401 = vpop.permute.xlu0 %2400
    %2402 = vrot.lane.b32.xlu0 %v2079, 52
    %v2403 = vpop.permute.xlu0 %2402
    %vm2404 = vcmask 424960
    %v2405 = vsel %vm2404, %v2189, %v2191
    %v2406 = vsel %vm2404, %v2191, %v2193
    %v2407 = vsel %vm2404, %v2195, %v2197
    %v2408 = vsel %vm2404, %v2197, %v2199
    %v2409 = vsel %vm2404, %v2201, %v2203
    %v2410 = vsel %vm2404, %v2203, %v2205
    %v2411 = vsel %vm2404, %v2207, %v2209
    %v2412 = vsel %vm2404, %v2209, %v2211
    %v2413 = vsel %vm2404, %v2213, %v2215
    %v2414 = vsel %vm2404, %v2215, %v2217
    %v2415 = vsel %vm2404, %v2219, %v2221
    %v2416 = vsel %vm2404, %v2221, %v2223
    %v2417 = vsel %vm2404, %v2225, %v2227
    %v2418 = vsel %vm2404, %v2227, %v2229
    %v2419 = vsel %vm2404, %v2231, %v2233
    %v2420 = vsel %vm2404, %v2233, %v2235
    %v2421 = vsel %vm2404, %v2237, %v2239
    %v2422 = vsel %vm2404, %v2239, %v2241
    %v2423 = vsel %vm2404, %v2243, %v2245
    %v2424 = vsel %vm2404, %v2245, %v2247
    %v2425 = vsel %vm2404, %v2249, %v2251
    %v2426 = vsel %vm2404, %v2251, %v2253
    %v2427 = vsel %vm2404, %v2255, %v2257
    %v2428 = vsel %vm2404, %v2257, %v2259
    %v2429 = vsel %vm2404, %v2261, %v2263
    %v2430 = vsel %vm2404, %v2263, %v2265
    %v2431 = vsel %vm2404, %v2267, %v2269
    %v2432 = vsel %vm2404, %v2269, %v2271
    %v2433 = vsel %vm2404, %v2273, %v2275
    %v2434 = vsel %vm2404, %v2275, %v2277
    %v2435 = vsel %vm2404, %v2279, %v2281
    %v2436 = vsel %vm2404, %v2281, %v2283
    %v2437 = vsel %vm2404, %v2285, %v2287
    %v2438 = vsel %vm2404, %v2287, %v2289
    %v2439 = vsel %vm2404, %v2291, %v2293
    %v2440 = vsel %vm2404, %v2293, %v2295
    %v2441 = vsel %vm2404, %v2297, %v2299
    %v2442 = vsel %vm2404, %v2299, %v2301
    %v2443 = vsel %vm2404, %v2303, %v2305
    %v2444 = vsel %vm2404, %v2305, %v2307
    %v2445 = vsel %vm2404, %v2309, %v2311
    %v2446 = vsel %vm2404, %v2311, %v2313
    %v2447 = vsel %vm2404, %v2315, %v2317
    %v2448 = vsel %vm2404, %v2317, %v2319
    %v2449 = vsel %vm2404, %v2321, %v2323
    %v2450 = vsel %vm2404, %v2323, %v2325
    %v2451 = vsel %vm2404, %v2327, %v2329
    %v2452 = vsel %vm2404, %v2329, %v2331
    %v2453 = vsel %vm2404, %v2333, %v2335
    %v2454 = vsel %vm2404, %v2335, %v2337
    %v2455 = vsel %vm2404, %v2339, %v2341
    %v2456 = vsel %vm2404, %v2341, %v2343
    %v2457 = vsel %vm2404, %v2345, %v2347
    %v2458 = vsel %vm2404, %v2347, %v2349
    %v2459 = vsel %vm2404, %v2351, %v2353
    %v2460 = vsel %vm2404, %v2353, %v2355
    %v2461 = vsel %vm2404, %v2357, %v2359
    %v2462 = vsel %vm2404, %v2359, %v2361
    %v2463 = vsel %vm2404, %v2363, %v2365
    %v2464 = vsel %vm2404, %v2365, %v2367
    %v2465 = vsel %vm2404, %v2369, %v2371
    %v2466 = vsel %vm2404, %v2371, %v2373
    %v2467 = vsel %vm2404, %v2375, %v2377
    %v2468 = vsel %vm2404, %v2377, %v2379
    %v2469 = vsel %vm2404, %v2381, %v2383
    %v2470 = vsel %vm2404, %v2383, %v2385
    %v2471 = vsel %vm2404, %v2387, %v2389
    %v2472 = vsel %vm2404, %v2389, %v2391
    %v2473 = vsel %vm2404, %v2393, %v2395
    %v2474 = vsel %vm2404, %v2395, %v2397
    %v2475 = vsel %vm2404, %v2399, %v2401
    %v2476 = vsel %vm2404, %v2401, %v2403
    %2539 = vrot.lane.b32.xlu0 %v1808, 94
    %v2540 = vpop.permute.xlu0 %2539
    %2541 = vrot.lane.b32.xlu0 %v1813, 94
    %v2542 = vpop.permute.xlu0 %2541
    %2543 = vrot.lane.b32.xlu0 %v1818, 94
    %v2544 = vpop.permute.xlu0 %2543
    %2545 = vrot.lane.b32.xlu0 %v1823, 94
    %v2546 = vpop.permute.xlu0 %2545
    %2547 = vrot.lane.b32.xlu0 %v1828, 94
    %v2548 = vpop.permute.xlu0 %2547
    %2549 = vrot.lane.b32.xlu0 %v1833, 94
    %v2550 = vpop.permute.xlu0 %2549
    %2551 = vrot.lane.b32.xlu0 %v1838, 94
    %v2552 = vpop.permute.xlu0 %2551
    %2553 = vrot.lane.b32.xlu0 %v1843, 94
    %v2554 = vpop.permute.xlu0 %2553
    %2555 = vrot.lane.b32.xlu0 %v1848, 94
    %v2556 = vpop.permute.xlu0 %2555
    %2557 = vrot.lane.b32.xlu0 %v1853, 94
    %v2558 = vpop.permute.xlu0 %2557
    %2559 = vrot.lane.b32.xlu0 %v1858, 94
    %v2560 = vpop.permute.xlu0 %2559
    %2561 = vrot.lane.b32.xlu0 %v1863, 94
    %v2562 = vpop.permute.xlu0 %2561
    %2563 = vrot.lane.b32.xlu0 %v1868, 94
    %v2564 = vpop.permute.xlu0 %2563
    %2565 = vrot.lane.b32.xlu0 %v1873, 94
    %v2566 = vpop.permute.xlu0 %2565
    %2567 = vrot.lane.b32.xlu0 %v1878, 94
    %v2568 = vpop.permute.xlu0 %2567
    %2569 = vrot.lane.b32.xlu0 %v1883, 94
    %v2570 = vpop.permute.xlu0 %2569
    %2571 = vrot.lane.b32.xlu0 %v1888, 94
    %v2572 = vpop.permute.xlu0 %2571
    %2573 = vrot.lane.b32.xlu0 %v1893, 94
    %v2574 = vpop.permute.xlu0 %2573
    %2575 = vrot.lane.b32.xlu0 %v1898, 94
    %v2576 = vpop.permute.xlu0 %2575
    %2577 = vrot.lane.b32.xlu0 %v1903, 94
    %v2578 = vpop.permute.xlu0 %2577
    %2579 = vrot.lane.b32.xlu0 %v1908, 94
    %v2580 = vpop.permute.xlu0 %2579
    %2581 = vrot.lane.b32.xlu0 %v1913, 94
    %v2582 = vpop.permute.xlu0 %2581
    %2583 = vrot.lane.b32.xlu0 %v1918, 94
    %v2584 = vpop.permute.xlu0 %2583
    %2585 = vrot.lane.b32.xlu0 %v1923, 94
    %v2586 = vpop.permute.xlu0 %2585
    %2587 = vrot.lane.b32.xlu0 %v1928, 94
    %v2588 = vpop.permute.xlu0 %2587
    %2589 = vrot.lane.b32.xlu0 %v1933, 94
    %v2590 = vpop.permute.xlu0 %2589
    %vm2616 = vcmask 621568
    %v2617 = vsel %vm2616, %v2406, 0
    %v2619 = vsel %vm2616, %v2408, 0
    %v2621 = vsel %vm2616, %v2410, 0
    %v2623 = vsel %vm2616, %v2412, 0
    %v2625 = vsel %vm2616, %v2414, 0
    %v2627 = vsel %vm2616, %v2416, 0
    %v2629 = vsel %vm2616, %v2418, 0
    %v2631 = vsel %vm2616, %v2420, 0
    %v2633 = vsel %vm2616, %v2422, 0
    %v2635 = vsel %vm2616, %v2424, 0
    %v2637 = vsel %vm2616, %v2426, 0
    %v2639 = vsel %vm2616, %v2428, 0
    %v2641 = vsel %vm2616, %v2430, 0
    %v2643 = vsel %vm2616, %v2432, 0
    %v2645 = vsel %vm2616, %v2434, 0
    %v2647 = vsel %vm2616, %v2436, 0
    %v2649 = vsel %vm2616, %v2438, 0
    %v2651 = vsel %vm2616, %v2440, 0
    %v2653 = vsel %vm2616, %v2442, 0
    %v2655 = vsel %vm2616, %v2444, 0
    %v2657 = vsel %vm2616, %v2446, 0
    %v2659 = vsel %vm2616, %v2448, 0
    %v2661 = vsel %vm2616, %v2450, 0
    %v2663 = vsel %vm2616, %v2452, 0
    %v2665 = vsel %vm2616, %v2454, 0
    %v2667 = vsel %vm2616, %v2456, 0
    %v2669 = vsel %vm2616, %v2458, 0
    %v2671 = vsel %vm2616, %v2460, 0
    %v2673 = vsel %vm2616, %v2462, 0
    %v2675 = vsel %vm2616, %v2464, 0
    %v2677 = vsel %vm2616, %v2466, 0
    %v2679 = vsel %vm2616, %v2468, 0
    %v2681 = vsel %vm2616, %v2470, 0
    %v2683 = vsel %vm2616, %v2472, 0
    %v2685 = vsel %vm2616, %v2474, 0
    %v2687 = vsel %vm2616, %v2476, 0
    %vm2689 = vcmask 1043456
    %v2690 = vsel %vm2689, %v2590, 0
    %2692 = vmatprep.subr.mxu0 0.0
    %2693 = vmatpush1.msra.mxu0 %v2540
    %2694 = vmatprep.subr.mxu0 0.0
    %2695 = vmatpush1.msra.mxu0 %v2542
    %2696 = vmatprep.subr.mxu0 0.0
    %2697 = vmatpush1.msra.mxu0 %v2544
    %2698 = vmatprep.subr.mxu0 0.0
    %2699 = vmatpush1.msra.mxu0 %v2546
    %2700 = vmatprep.subr.mxu0 0.0
    %2701 = vmatpush1.msra.mxu0 %v2548
    %2702 = vmatprep.subr.mxu0 0.0
    %2703 = vmatpush1.msra.mxu0 %v2550
    %2704 = vmatprep.subr.mxu0 0.0
    %2705 = vmatpush1.msra.mxu0 %v2552
    %2706 = vmatprep.subr.mxu0 0.0
    %2707 = vmatpush1.msra.mxu0 %v2554
    %2708 = vmatprep.subr.mxu0 0.0
    %2709 = vmatpush1.msra.mxu0 %v2556
    %2710 = vmatprep.subr.mxu0 0.0
    %2711 = vmatpush1.msra.mxu0 %v2558
    %2712 = vmatprep.subr.mxu0 0.0
    %2713 = vmatpush1.msra.mxu0 %v2560
    %2714 = vmatprep.subr.mxu0 0.0
    %2715 = vmatpush1.msra.mxu0 %v2562
    %2716 = vmatprep.subr.mxu0 0.0
    %2717 = vmatpush1.msra.mxu0 %v2564
    %2718 = vmatprep.subr.mxu0 0.0
    %2719 = vmatpush1.msra.mxu0 %v2566
    %2720 = vmatprep.subr.mxu0 0.0
    %2721 = vmatpush1.msra.mxu0 %v2568
    %2722 = vmatprep.subr.mxu0 0.0
    %2723 = vmatpush1.msra.mxu0 %v2570
    %2724 = vmatprep.subr.mxu0 0.0
    %2725 = vmatpush1.msra.mxu0 %v2572
    %2726 = vmatprep.subr.mxu0 0.0
    %2727 = vmatpush1.msra.mxu0 %v2574
    %2728 = vmatprep.subr.mxu0 0.0
    %2729 = vmatpush1.msra.mxu0 %v2576
    %2730 = vmatprep.subr.mxu0 0.0
    %2731 = vmatpush1.msra.mxu0 %v2578
    %2732 = vmatprep.subr.mxu0 0.0
    %2733 = vmatpush1.msra.mxu0 %v2580
    %2734 = vmatprep.subr.mxu0 0.0
    %2735 = vmatpush1.msra.mxu0 %v2582
    %2736 = vmatprep.subr.mxu0 0.0
    %2737 = vmatpush1.msra.mxu0 %v2584
    %2738 = vmatprep.subr.mxu0 0.0
    %2739 = vmatpush1.msra.mxu0 %v2586
    %2740 = vmatprep.subr.mxu0 0.0
    %2741 = vmatpush1.msra.mxu0 %v2588
    %2742 = vmatprep.subr.mxu0 0.0
    %2743 = vmatpush1.msra.mxu0 %v2690
    %2744 = vmatprep.subr.mxu0 0.0
    %2745 = vmatpush1.msra.mxu0 0.0
    %2746 = vmatprep.subr.mxu0 0.0
    %2747 = vmatpush1.msra.mxu0 0.0
    %2748 = vmatprep.subr.mxu0 0.0
    %2749 = vmatpush1.msra.mxu0 0.0
    %2750 = vmatprep.subr.mxu0 0.0
    %2751 = vmatpush1.msra.mxu0 0.0
    %2752 = vmatprep.subr.mxu0 0.0
    %2753 = vmatpush1.msra.mxu0 0.0
    %2754 = vmatprep.subr.mxu0 0.0
    %2755 = vmatpush1.msra.mxu0 0.0
    %2756 = vmatprep.mubr.f32.mxu0 %v2617
    %2757 = vmatmul.mubr.f32.gmra.mrb[0].mxu0 %v2405
    %v2758 = vpop.f32.mrb[0].mxu0
    %v2759 = vadd.f32 0.0, %v2758
    %v2760 = vpop.f32.mrb[0].mxu0
    %2761 = vmatprep.mubr.f32.mxu0 %v2619
    %2762 = vmatmul.mubr.f32.gmra.mrb[0].mxu0 %v2407
    %v2763 = vpop.f32.mrb[0].mxu0
    %v2764 = vadd.f32 0.0, %v2763
    %v2765 = vpop.f32.mrb[0].mxu0
    %2766 = vmatprep.mubr.f32.mxu0 %v2621
    %2767 = vmatmul.mubr.f32.gmra.mrb[0].mxu0 %v2409
    %v2768 = vpop.f32.mrb[0].mxu0
    %v2769 = vadd.f32 0.0, %v2768
    %v2770 = vpop.f32.mrb[0].mxu0
    %2771 = vmatprep.mubr.f32.mxu0 %v2623
    %2772 = vmatmul.mubr.f32.gmra.mrb[0].mxu0 %v2411
    %v2773 = vpop.f32.mrb[0].mxu0
    %v2774 = vadd.f32 0.0, %v2773
    %v2775 = vpop.f32.mrb[0].mxu0
    %2776 = vmatprep.mubr.f32.mxu0 %v2625
    %2777 = vmatmul.mubr.f32.gmra.mrb[0].mxu0 %v2413
    %v2778 = vpop.f32.mrb[0].mxu0
    %v2779 = vadd.f32 0.0, %v2778
    %v2780 = vpop.f32.mrb[0].mxu0
    %2781 = vmatprep.mubr.f32.mxu0 %v2627
    %2782 = vmatmul.mubr.f32.gmra.mrb[0].mxu0 %v2415
    %v2783 = vpop.f32.mrb[0].mxu0
    %v2784 = vadd.f32 0.0, %v2783
    %v2785 = vpop.f32.mrb[0].mxu0
    %2786 = vmatprep.mubr.f32.mxu0 %v2629
    %2787 = vmatmul.mubr.f32.gmra.mrb[0].mxu0 %v2417
    %v2788 = vpop.f32.mrb[0].mxu0
    %v2789 = vadd.f32 0.0, %v2788
    %v2790 = vpop.f32.mrb[0].mxu0
    %2791 = vmatprep.mubr.f32.mxu0 %v2631
    %2792 = vmatmul.mubr.f32.gmra.mrb[0].mxu0 %v2419
    %v2793 = vpop.f32.mrb[0].mxu0
    %v2794 = vadd.f32 0.0, %v2793
    %v2795 = vpop.f32.mrb[0].mxu0
    %2796 = vmatprep.mubr.f32.mxu0 %v2633
    %2797 = vmatmul.mubr.f32.gmra.mrb[0].mxu0 %v2421
    %v2798 = vpop.f32.mrb[0].mxu0
    %v2799 = vadd.f32 0.0, %v2798
    %v2800 = vpop.f32.mrb[0].mxu0
    %2801 = vmatprep.mubr.f32.mxu0 %v2635
    %2802 = vmatmul.mubr.f32.gmra.mrb[0].mxu0 %v2423
    %v2803 = vpop.f32.mrb[0].mxu0
    %v2804 = vadd.f32 0.0, %v2803
    %v2805 = vpop.f32.mrb[0].mxu0
    %2806 = vmatprep.mubr.f32.mxu0 %v2637
    %2807 = vmatmul.mubr.f32.gmra.mrb[0].mxu0 %v2425
    %v2808 = vpop.f32.mrb[0].mxu0
    %v2809 = vadd.f32 0.0, %v2808
    %v2810 = vpop.f32.mrb[0].mxu0
    %2811 = vmatprep.mubr.f32.mxu0 %v2639
    %2812 = vmatmul.mubr.f32.gmra.mrb[0].mxu0 %v2427
    %v2813 = vpop.f32.mrb[0].mxu0
    %v2814 = vadd.f32 0.0, %v2813
    %v2815 = vpop.f32.mrb[0].mxu0
    %2816 = vmatprep.mubr.f32.mxu0 %v2641
    %2817 = vmatmul.mubr.f32.gmra.mrb[0].mxu0 %v2429
    %v2818 = vpop.f32.mrb[0].mxu0
    %v2819 = vadd.f32 0.0, %v2818
    %v2820 = vpop.f32.mrb[0].mxu0
    %2821 = vmatprep.mubr.f32.mxu0 %v2643
    %2822 = vmatmul.mubr.f32.gmra.mrb[0].mxu0 %v2431
    %v2823 = vpop.f32.mrb[0].mxu0
    %v2824 = vadd.f32 0.0, %v2823
    %v2825 = vpop.f32.mrb[0].mxu0
    %2826 = vmatprep.mubr.f32.mxu0 %v2645
    %2827 = vmatmul.mubr.f32.gmra.mrb[0].mxu0 %v2433
    %v2828 = vpop.f32.mrb[0].mxu0
    %v2829 = vadd.f32 0.0, %v2828
    %v2830 = vpop.f32.mrb[0].mxu0
    %2831 = vmatprep.mubr.f32.mxu0 %v2647
    %2832 = vmatmul.mubr.f32.gmra.mrb[0].mxu0 %v2435
    %v2833 = vpop.f32.mrb[0].mxu0
    %v2834 = vadd.f32 0.0, %v2833
    %v2835 = vpop.f32.mrb[0].mxu0
    %2836 = vmatprep.mubr.f32.mxu0 %v2649
    %2837 = vmatmul.mubr.f32.gmra.mrb[0].mxu0 %v2437
    %v2838 = vpop.f32.mrb[0].mxu0
    %v2839 = vadd.f32 0.0, %v2838
    %v2840 = vpop.f32.mrb[0].mxu0
    %2841 = vmatprep.mubr.f32.mxu0 %v2651
    %2842 = vmatmul.mubr.f32.gmra.mrb[0].mxu0 %v2439
    %v2843 = vpop.f32.mrb[0].mxu0
    %v2844 = vadd.f32 0.0, %v2843
    %v2845 = vpop.f32.mrb[0].mxu0
    %2846 = vmatprep.mubr.f32.mxu0 %v2653
    %2847 = vmatmul.mubr.f32.gmra.mrb[0].mxu0 %v2441
    %v2848 = vpop.f32.mrb[0].mxu0
    %v2849 = vadd.f32 0.0, %v2848
    %v2850 = vpop.f32.mrb[0].mxu0
    %2851 = vmatprep.mubr.f32.mxu0 %v2655
    %2852 = vmatmul.mubr.f32.gmra.mrb[0].mxu0 %v2443
    %v2853 = vpop.f32.mrb[0].mxu0
    %v2854 = vadd.f32 0.0, %v2853
    %v2855 = vpop.f32.mrb[0].mxu0
    %2856 = vmatprep.mubr.f32.mxu0 %v2657
    %2857 = vmatmul.mubr.f32.gmra.mrb[0].mxu0 %v2445
    %v2858 = vpop.f32.mrb[0].mxu0
    %v2859 = vadd.f32 0.0, %v2858
    %v2860 = vpop.f32.mrb[0].mxu0
    %2861 = vmatprep.mubr.f32.mxu0 %v2659
    %2862 = vmatmul.mubr.f32.gmra.mrb[0].mxu0 %v2447
    %v2863 = vpop.f32.mrb[0].mxu0
    %v2864 = vadd.f32 0.0, %v2863
    %v2865 = vpop.f32.mrb[0].mxu0
    %2866 = vmatprep.mubr.f32.mxu0 %v2661
    %2867 = vmatmul.mubr.f32.gmra.mrb[0].mxu0 %v2449
    %v2868 = vpop.f32.mrb[0].mxu0
    %v2869 = vadd.f32 0.0, %v2868
    %v2870 = vpop.f32.mrb[0].mxu0
    %2871 = vmatprep.mubr.f32.mxu0 %v2663
    %2872 = vmatmul.mubr.f32.gmra.mrb[0].mxu0 %v2451
    %v2873 = vpop.f32.mrb[0].mxu0
    %v2874 = vadd.f32 0.0, %v2873
    %v2875 = vpop.f32.mrb[0].mxu0
    %2876 = vmatprep.mubr.f32.mxu0 %v2665
    %2877 = vmatmul.mubr.f32.gmra.mrb[0].mxu0 %v2453
    %v2878 = vpop.f32.mrb[0].mxu0
    %v2879 = vadd.f32 0.0, %v2878
    %v2880 = vpop.f32.mrb[0].mxu0
    %2881 = vmatprep.mubr.f32.mxu0 %v2667
    %2882 = vmatmul.mubr.f32.gmra.mrb[0].mxu0 %v2455
    %v2883 = vpop.f32.mrb[0].mxu0
    %v2884 = vadd.f32 0.0, %v2883
    %v2885 = vpop.f32.mrb[0].mxu0
    %2886 = vmatprep.mubr.f32.mxu0 %v2669
    %2887 = vmatmul.mubr.f32.gmra.mrb[0].mxu0 %v2457
    %v2888 = vpop.f32.mrb[0].mxu0
    %v2889 = vadd.f32 0.0, %v2888
    %v2890 = vpop.f32.mrb[0].mxu0
    %2891 = vmatprep.mubr.f32.mxu0 %v2671
    %2892 = vmatmul.mubr.f32.gmra.mrb[0].mxu0 %v2459
    %v2893 = vpop.f32.mrb[0].mxu0
    %v2894 = vadd.f32 0.0, %v2893
    %v2895 = vpop.f32.mrb[0].mxu0
    %2896 = vmatprep.mubr.f32.mxu0 %v2673
    %2897 = vmatmul.mubr.f32.gmra.mrb[0].mxu0 %v2461
    %v2898 = vpop.f32.mrb[0].mxu0
    %v2899 = vadd.f32 0.0, %v2898
    %v2900 = vpop.f32.mrb[0].mxu0
    %2901 = vmatprep.mubr.f32.mxu0 %v2675
    %2902 = vmatmul.mubr.f32.gmra.mrb[0].mxu0 %v2463
    %v2903 = vpop.f32.mrb[0].mxu0
    %v2904 = vadd.f32 0.0, %v2903
    %v2905 = vpop.f32.mrb[0].mxu0
    %2906 = vmatprep.mubr.f32.mxu0 %v2677
    %2907 = vmatmul.mubr.f32.gmra.mrb[0].mxu0 %v2465
    %v2908 = vpop.f32.mrb[0].mxu0
    %v2909 = vadd.f32 0.0, %v2908
    %v2910 = vpop.f32.mrb[0].mxu0
    %2911 = vmatprep.mubr.f32.mxu0 %v2679
    %2912 = vmatmul.mubr.f32.gmra.mrb[0].mxu0 %v2467
    %v2913 = vpop.f32.mrb[0].mxu0
    %v2914 = vadd.f32 0.0, %v2913
    %v2915 = vpop.f32.mrb[0].mxu0
    %2916 = vmatprep.mubr.f32.mxu0 %v2681
    %2917 = vmatmul.mubr.f32.gmra.mrb[0].mxu0 %v2469
    %v2918 = vpop.f32.mrb[0].mxu0
    %v2919 = vadd.f32 0.0, %v2918
    %v2920 = vpop.f32.mrb[0].mxu0
    %2921 = vmatprep.mubr.f32.mxu0 %v2683
    %2922 = vmatmul.mubr.f32.gmra.mrb[0].mxu0 %v2471
    %v2923 = vpop.f32.mrb[0].mxu0
    %v2924 = vadd.f32 0.0, %v2923
    %v2925 = vpop.f32.mrb[0].mxu0
    %2926 = vmatprep.mubr.f32.mxu0 %v2685
    %2927 = vmatmul.mubr.f32.gmra.mrb[0].mxu0 %v2473
    %v2928 = vpop.f32.mrb[0].mxu0
    %v2929 = vadd.f32 0.0, %v2928
    %v2930 = vpop.f32.mrb[0].mxu0
    %2931 = vmatprep.mubr.f32.mxu0 %v2687
    %2932 = vmatmul.mubr.f32.gmra.mrb[0].mxu0 %v2475
    %v2933 = vpop.f32.mrb[0].mxu0
    %v2934 = vadd.f32 0.0, %v2933
    %v2935 = vpop.f32.mrb[0].mxu0
    %2936 = vdwg.mxu0
    %v2937 = vsel %vm2616, %v1937, 0
    %v2939 = vsel %vm2616, %v1939, 0
    %v2941 = vsel %vm2616, %v1941, 0
    %v2943 = vsel %vm2616, %v1943, 0
    %v2945 = vsel %vm2616, %v1945, 0
    %v2947 = vsel %vm2616, %v1947, 0
    %v2949 = vsel %vm2616, %v1949, 0
    %v2951 = vsel %vm2616, %v1951, 0
    %v2953 = vsel %vm2616, %v1953, 0
    %v2955 = vsel %vm2616, %v1955, 0
    %v2957 = vsel %vm2616, %v1957, 0
    %v2959 = vsel %vm2616, %v1959, 0
    %v2961 = vsel %vm2616, %v1961, 0
    %v2963 = vsel %vm2616, %v1963, 0
    %v2965 = vsel %vm2616, %v1965, 0
    %v2967 = vsel %vm2616, %v1967, 0
    %v2969 = vsel %vm2616, %v1969, 0
    %v2971 = vsel %vm2616, %v1971, 0
    %v2973 = vsel %vm2616, %v1973, 0
    %v2975 = vsel %vm2616, %v1975, 0
    %v2977 = vsel %vm2616, %v1977, 0
    %v2979 = vsel %vm2616, %v1979, 0
    %v2981 = vsel %vm2616, %v1981, 0
    %v2983 = vsel %vm2616, %v1983, 0
    %v2985 = vsel %vm2616, %v1985, 0
    %v2987 = vsel %vm2616, %v1987, 0
    %v2989 = vsel %vm2616, %v1989, 0
    %v2991 = vsel %vm2616, %v1991, 0
    %v2993 = vsel %vm2616, %v1993, 0
    %v2995 = vsel %vm2616, %v1995, 0
    %v2997 = vsel %vm2616, %v1997, 0
    %v2999 = vsel %vm2616, %v1999, 0
    %v3001 = vsel %vm2616, %v2001, 0
    %v3003 = vsel %vm2616, %v2003, 0
    %v3005 = vsel %vm2616, %v2005, 0
    %v3007 = vsel %vm2616, %v2007, 0
    %v3009 = vsel %vm2689, %v1933, 0
    %3011 = vmatprep.subr.mxu0 0.0
    %3012 = vmatpush1.msra.mxu0 %v1808
    %3013 = vmatprep.subr.mxu0 0.0
    %3014 = vmatpush1.msra.mxu0 %v1813
    %3015 = vmatprep.subr.mxu0 0.0
    %3016 = vmatpush1.msra.mxu0 %v1818
    %3017 = vmatprep.subr.mxu0 0.0
    %3018 = vmatpush1.msra.mxu0 %v1823
    %3019 = vmatprep.subr.mxu0 0.0
    %3020 = vmatpush1.msra.mxu0 %v1828
    %3021 = vmatprep.subr.mxu0 0.0
    %3022 = vmatpush1.msra.mxu0 %v1833
    %3023 = vmatprep.subr.mxu0 0.0
    %3024 = vmatpush1.msra.mxu0 %v1838
    %3025 = vmatprep.subr.mxu0 0.0
    %3026 = vmatpush1.msra.mxu0 %v1843
    %3027 = vmatprep.subr.mxu0 0.0
    %3028 = vmatpush1.msra.mxu0 %v1848
    %3029 = vmatprep.subr.mxu0 0.0
    %3030 = vmatpush1.msra.mxu0 %v1853
    %3031 = vmatprep.subr.mxu0 0.0
    %3032 = vmatpush1.msra.mxu0 %v1858
    %3033 = vmatprep.subr.mxu0 0.0
    %3034 = vmatpush1.msra.mxu0 %v1863
    %3035 = vmatprep.subr.mxu0 0.0
    %3036 = vmatpush1.msra.mxu0 %v1868
    %3037 = vmatprep.subr.mxu0 0.0
    %3038 = vmatpush1.msra.mxu0 %v1873
    %3039 = vmatprep.subr.mxu0 0.0
    %3040 = vmatpush1.msra.mxu0 %v1878
    %3041 = vmatprep.subr.mxu0 0.0
    %3042 = vmatpush1.msra.mxu0 %v1883
    %3043 = vmatprep.subr.mxu0 0.0
    %3044 = vmatpush1.msra.mxu0 %v1888
    %3045 = vmatprep.subr.mxu0 0.0
    %3046 = vmatpush1.msra.mxu0 %v1893
    %3047 = vmatprep.subr.mxu0 0.0
    %3048 = vmatpush1.msra.mxu0 %v1898
    %3049 = vmatprep.subr.mxu0 0.0
    %3050 = vmatpush1.msra.mxu0 %v1903
    %3051 = vmatprep.subr.mxu0 0.0
    %3052 = vmatpush1.msra.mxu0 %v1908
    %3053 = vmatprep.subr.mxu0 0.0
    %3054 = vmatpush1.msra.mxu0 %v1913
    %3055 = vmatprep.subr.mxu0 0.0
    %3056 = vmatpush1.msra.mxu0 %v1918
    %3057 = vmatprep.subr.mxu0 0.0
    %3058 = vmatpush1.msra.mxu0 %v1923
    %3059 = vmatprep.subr.mxu0 0.0
    %3060 = vmatpush1.msra.mxu0 %v1928
    %3061 = vmatprep.subr.mxu0 0.0
    %3062 = vmatpush1.msra.mxu0 %v3009
    %3063 = vmatprep.subr.mxu0 0.0
    %3064 = vmatpush1.msra.mxu0 0.0
    %3065 = vmatprep.subr.mxu0 0.0
    %3066 = vmatpush1.msra.mxu0 0.0
    %3067 = vmatprep.subr.mxu0 0.0
    %3068 = vmatpush1.msra.mxu0 0.0
    %3069 = vmatprep.subr.mxu0 0.0
    %3070 = vmatpush1.msra.mxu0 0.0
    %3071 = vmatprep.subr.mxu0 0.0
    %3072 = vmatpush1.msra.mxu0 0.0
    %3073 = vmatprep.subr.mxu0 0.0
    %3074 = vmatpush1.msra.mxu0 0.0
    %3075 = vmatprep.mubr.f32.mxu0 %v2937
    %3076 = vmatmul.mubr.f32.gmra.mrb[0].mxu0 %v1936
    %v3077 = vpop.f32.mrb[0].mxu0
    %v3078 = vadd.f32 %v2759, %v3077
    %v3079 = vpop.f32.mrb[0].mxu0
    %3080 = vmatprep.mubr.f32.mxu0 %v2939
    %3081 = vmatmul.mubr.f32.gmra.mrb[0].mxu0 %v1938
    %v3082 = vpop.f32.mrb[0].mxu0
    %v3083 = vadd.f32 %v2764, %v3082
    %v3084 = vpop.f32.mrb[0].mxu0
    %3085 = vmatprep.mubr.f32.mxu0 %v2941
    %3086 = vmatmul.mubr.f32.gmra.mrb[0].mxu0 %v1940
    %v3087 = vpop.f32.mrb[0].mxu0
    %v3088 = vadd.f32 %v2769, %v3087
    %v3089 = vpop.f32.mrb[0].mxu0
    %3090 = vmatprep.mubr.f32.mxu0 %v2943
    %3091 = vmatmul.mubr.f32.gmra.mrb[0].mxu0 %v1942
    %v3092 = vpop.f32.mrb[0].mxu0
    %v3093 = vadd.f32 %v2774, %v3092
    %v3094 = vpop.f32.mrb[0].mxu0
    %3095 = vmatprep.mubr.f32.mxu0 %v2945
    %3096 = vmatmul.mubr.f32.gmra.mrb[0].mxu0 %v1944
    %v3097 = vpop.f32.mrb[0].mxu0
    %v3098 = vadd.f32 %v2779, %v3097
    %v3099 = vpop.f32.mrb[0].mxu0
    %3100 = vmatprep.mubr.f32.mxu0 %v2947
    %3101 = vmatmul.mubr.f32.gmra.mrb[0].mxu0 %v1946
    %v3102 = vpop.f32.mrb[0].mxu0
    %v3103 = vadd.f32 %v2784, %v3102
    %v3104 = vpop.f32.mrb[0].mxu0
    %3105 = vmatprep.mubr.f32.mxu0 %v2949
    %3106 = vmatmul.mubr.f32.gmra.mrb[0].mxu0 %v1948
    %v3107 = vpop.f32.mrb[0].mxu0
    %v3108 = vadd.f32 %v2789, %v3107
    %v3109 = vpop.f32.mrb[0].mxu0
    %3110 = vmatprep.mubr.f32.mxu0 %v2951
    %3111 = vmatmul.mubr.f32.gmra.mrb[0].mxu0 %v1950
    %v3112 = vpop.f32.mrb[0].mxu0
    %v3113 = vadd.f32 %v2794, %v3112
    %v3114 = vpop.f32.mrb[0].mxu0
    %3115 = vmatprep.mubr.f32.mxu0 %v2953
    %3116 = vmatmul.mubr.f32.gmra.mrb[0].mxu0 %v1952
    %v3117 = vpop.f32.mrb[0].mxu0
    %v3118 = vadd.f32 %v2799, %v3117
    %v3119 = vpop.f32.mrb[0].mxu0
    %3120 = vmatprep.mubr.f32.mxu0 %v2955
    %3121 = vmatmul.mubr.f32.gmra.mrb[0].mxu0 %v1954
    %v3122 = vpop.f32.mrb[0].mxu0
    %v3123 = vadd.f32 %v2804, %v3122
    %v3124 = vpop.f32.mrb[0].mxu0
    %3125 = vmatprep.mubr.f32.mxu0 %v2957
    %3126 = vmatmul.mubr.f32.gmra.mrb[0].mxu0 %v1956
    %v3127 = vpop.f32.mrb[0].mxu0
    %v3128 = vadd.f32 %v2809, %v3127
    %v3129 = vpop.f32.mrb[0].mxu0
    %3130 = vmatprep.mubr.f32.mxu0 %v2959
    %3131 = vmatmul.mubr.f32.gmra.mrb[0].mxu0 %v1958
    %v3132 = vpop.f32.mrb[0].mxu0
    %v3133 = vadd.f32 %v2814, %v3132
    %v3134 = vpop.f32.mrb[0].mxu0
    %3135 = vmatprep.mubr.f32.mxu0 %v2961
    %3136 = vmatmul.mubr.f32.gmra.mrb[0].mxu0 %v1960
    %v3137 = vpop.f32.mrb[0].mxu0
    %v3138 = vadd.f32 %v2819, %v3137
    %v3139 = vpop.f32.mrb[0].mxu0
    %3140 = vmatprep.mubr.f32.mxu0 %v2963
    %3141 = vmatmul.mubr.f32.gmra.mrb[0].mxu0 %v1962
    %v3142 = vpop.f32.mrb[0].mxu0
    %v3143 = vadd.f32 %v2824, %v3142
    %v3144 = vpop.f32.mrb[0].mxu0
    %3145 = vmatprep.mubr.f32.mxu0 %v2965
    %3146 = vmatmul.mubr.f32.gmra.mrb[0].mxu0 %v1964
    %v3147 = vpop.f32.mrb[0].mxu0
    %v3148 = vadd.f32 %v2829, %v3147
    %v3149 = vpop.f32.mrb[0].mxu0
    %3150 = vmatprep.mubr.f32.mxu0 %v2967
    %3151 = vmatmul.mubr.f32.gmra.mrb[0].mxu0 %v1966
    %v3152 = vpop.f32.mrb[0].mxu0
    %v3153 = vadd.f32 %v2834, %v3152
    %v3154 = vpop.f32.mrb[0].mxu0
    %3155 = vmatprep.mubr.f32.mxu0 %v2969
    %3156 = vmatmul.mubr.f32.gmra.mrb[0].mxu0 %v1968
    %v3157 = vpop.f32.mrb[0].mxu0
    %v3158 = vadd.f32 %v2839, %v3157
    %v3159 = vpop.f32.mrb[0].mxu0
    %3160 = vmatprep.mubr.f32.mxu0 %v2971
    %3161 = vmatmul.mubr.f32.gmra.mrb[0].mxu0 %v1970
    %v3162 = vpop.f32.mrb[0].mxu0
    %v3163 = vadd.f32 %v2844, %v3162
    %v3164 = vpop.f32.mrb[0].mxu0
    %3165 = vmatprep.mubr.f32.mxu0 %v2973
    %3166 = vmatmul.mubr.f32.gmra.mrb[0].mxu0 %v1972
    %v3167 = vpop.f32.mrb[0].mxu0
    %v3168 = vadd.f32 %v2849, %v3167
    %v3169 = vpop.f32.mrb[0].mxu0
    %3170 = vmatprep.mubr.f32.mxu0 %v2975
    %3171 = vmatmul.mubr.f32.gmra.mrb[0].mxu0 %v1974
    %v3172 = vpop.f32.mrb[0].mxu0
    %v3173 = vadd.f32 %v2854, %v3172
    %v3174 = vpop.f32.mrb[0].mxu0
    %3175 = vmatprep.mubr.f32.mxu0 %v2977
    %3176 = vmatmul.mubr.f32.gmra.mrb[0].mxu0 %v1976
    %v3177 = vpop.f32.mrb[0].mxu0
    %v3178 = vadd.f32 %v2859, %v3177
    %v3179 = vpop.f32.mrb[0].mxu0
    %3180 = vmatprep.mubr.f32.mxu0 %v2979
    %3181 = vmatmul.mubr.f32.gmra.mrb[0].mxu0 %v1978
    %v3182 = vpop.f32.mrb[0].mxu0
    %v3183 = vadd.f32 %v2864, %v3182
    %v3184 = vpop.f32.mrb[0].mxu0
    %3185 = vmatprep.mubr.f32.mxu0 %v2981
    %3186 = vmatmul.mubr.f32.gmra.mrb[0].mxu0 %v1980
    %v3187 = vpop.f32.mrb[0].mxu0
    %v3188 = vadd.f32 %v2869, %v3187
    %v3189 = vpop.f32.mrb[0].mxu0
    %3190 = vmatprep.mubr.f32.mxu0 %v2983
    %3191 = vmatmul.mubr.f32.gmra.mrb[0].mxu0 %v1982
    %v3192 = vpop.f32.mrb[0].mxu0
    %v3193 = vadd.f32 %v2874, %v3192
    %v3194 = vpop.f32.mrb[0].mxu0
    %3195 = vmatprep.mubr.f32.mxu0 %v2985
    %3196 = vmatmul.mubr.f32.gmra.mrb[0].mxu0 %v1984
    %v3197 = vpop.f32.mrb[0].mxu0
    %v3198 = vadd.f32 %v2879, %v3197
    %v3199 = vpop.f32.mrb[0].mxu0
    %3200 = vmatprep.mubr.f32.mxu0 %v2987
    %3201 = vmatmul.mubr.f32.gmra.mrb[0].mxu0 %v1986
    %v3202 = vpop.f32.mrb[0].mxu0
    %v3203 = vadd.f32 %v2884, %v3202
    %v3204 = vpop.f32.mrb[0].mxu0
    %3205 = vmatprep.mubr.f32.mxu0 %v2989
    %3206 = vmatmul.mubr.f32.gmra.mrb[0].mxu0 %v1988
    %v3207 = vpop.f32.mrb[0].mxu0
    %v3208 = vadd.f32 %v2889, %v3207
    %v3209 = vpop.f32.mrb[0].mxu0
    %3210 = vmatprep.mubr.f32.mxu0 %v2991
    %3211 = vmatmul.mubr.f32.gmra.mrb[0].mxu0 %v1990
    %v3212 = vpop.f32.mrb[0].mxu0
    %v3213 = vadd.f32 %v2894, %v3212
    %v3214 = vpop.f32.mrb[0].mxu0
    %3215 = vmatprep.mubr.f32.mxu0 %v2993
    %3216 = vmatmul.mubr.f32.gmra.mrb[0].mxu0 %v1992
    %v3217 = vpop.f32.mrb[0].mxu0
    %v3218 = vadd.f32 %v2899, %v3217
    %v3219 = vpop.f32.mrb[0].mxu0
    %3220 = vmatprep.mubr.f32.mxu0 %v2995
    %3221 = vmatmul.mubr.f32.gmra.mrb[0].mxu0 %v1994
    %v3222 = vpop.f32.mrb[0].mxu0
    %v3223 = vadd.f32 %v2904, %v3222
    %v3224 = vpop.f32.mrb[0].mxu0
    %3225 = vmatprep.mubr.f32.mxu0 %v2997
    %3226 = vmatmul.mubr.f32.gmra.mrb[0].mxu0 %v1996
    %v3227 = vpop.f32.mrb[0].mxu0
    %v3228 = vadd.f32 %v2909, %v3227
    %v3229 = vpop.f32.mrb[0].mxu0
    %3230 = vmatprep.mubr.f32.mxu0 %v2999
    %3231 = vmatmul.mubr.f32.gmra.mrb[0].mxu0 %v1998
    %v3232 = vpop.f32.mrb[0].mxu0
    %v3233 = vadd.f32 %v2914, %v3232
    %v3234 = vpop.f32.mrb[0].mxu0
    %3235 = vmatprep.mubr.f32.mxu0 %v3001
    %3236 = vmatmul.mubr.f32.gmra.mrb[0].mxu0 %v2000
    %v3237 = vpop.f32.mrb[0].mxu0
    %v3238 = vadd.f32 %v2919, %v3237
    %v3239 = vpop.f32.mrb[0].mxu0
    %3240 = vmatprep.mubr.f32.mxu0 %v3003
    %3241 = vmatmul.mubr.f32.gmra.mrb[0].mxu0 %v2002
    %v3242 = vpop.f32.mrb[0].mxu0
    %v3243 = vadd.f32 %v2924, %v3242
    %v3244 = vpop.f32.mrb[0].mxu0
    %3245 = vmatprep.mubr.f32.mxu0 %v3005
    %3246 = vmatmul.mubr.f32.gmra.mrb[0].mxu0 %v2004
    %v3247 = vpop.f32.mrb[0].mxu0
    %v3248 = vadd.f32 %v2929, %v3247
    %v3249 = vpop.f32.mrb[0].mxu0
    %3250 = vmatprep.mubr.f32.mxu0 %v3007
    %3251 = vmatmul.mubr.f32.gmra.mrb[0].mxu0 %v2006
    %v3252 = vpop.f32.mrb[0].mxu0
    %v3253 = vadd.f32 %v2934, %v3252
    %v3254 = vpop.f32.mrb[0].mxu0
    %3255 = vdwg.mxu0
    %v3256 = vld [vmem:[%s5 + $0x18] sm:$0xff]
    %v3257 = vld [vmem:[%s5 + $0x20] sm:$0xff]
    %v3258 = vld [vmem:[%s5 + $0x40] sm:$0xff]
    %v3259 = vld [vmem:[%s5 + $0x48] sm:$0xff]
    %v3260 = vld [vmem:[%s5 + $0x68] sm:$0xff]
    %v3261 = vld [vmem:[%s5 + $0x70] sm:$0xff]
    %v3262 = vld [vmem:[%s5 + $0x90] sm:$0xff]
    %v3263 = vld [vmem:[%s5 + $0x98] sm:$0xff]
    %v3264 = vld [vmem:[%s5 + $0xb8] sm:$0xff]
    %v3265 = vld [vmem:[%s5 + $0xc0] sm:$0xff]
    %v3266 = vld [vmem:[%s5 + $0xe0] sm:$0xff]
    %v3267 = vld [vmem:[%s5 + $0xe8] sm:$0xff]
    %v3268 = vld [vmem:[%s5 + $0x108] sm:$0xff]
    %v3269 = vld [vmem:[%s5 + $0x110] sm:$0xff]
    %v3270 = vld [vmem:[%s5 + $0x130] sm:$0xff]
    %v3271 = vld [vmem:[%s5 + $0x138] sm:$0xff]
    %v3272 = vld [vmem:[%s5 + $0x158] sm:$0xff]
    %v3273 = vld [vmem:[%s5 + $0x160] sm:$0xff]
    %v3274 = vld [vmem:[%s5 + $0x180] sm:$0xff]
    %v3275 = vld [vmem:[%s5 + $0x188] sm:$0xff]
    %v3276 = vld [vmem:[%s5 + $0x1a8] sm:$0xff]
    %v3277 = vld [vmem:[%s5 + $0x1b0] sm:$0xff]
    %v3278 = vld [vmem:[%s5 + $0x1d0] sm:$0xff]
    %v3279 = vld [vmem:[%s5 + $0x1d8] sm:$0xff]
    %v3280 = vld [vmem:[%s5 + $0x1f8] sm:$0xff]
    %v3281 = vld [vmem:[%s5 + $0x200] sm:$0xff]
    %v3282 = vld [vmem:[%s5 + $0x220] sm:$0xff]
    %v3283 = vld [vmem:[%s5 + $0x228] sm:$0xff]
    %v3284 = vld [vmem:[%s5 + $0x248] sm:$0xff]
    %v3285 = vld [vmem:[%s5 + $0x250] sm:$0xff]
    %v3286 = vld [vmem:[%s5 + $0x270] sm:$0xff]
    %v3287 = vld [vmem:[%s5 + $0x278] sm:$0xff]
    %v3288 = vld [vmem:[%s5 + $0x298] sm:$0xff]
    %v3289 = vld [vmem:[%s5 + $0x2a0] sm:$0xff]
    %v3290 = vld [vmem:[%s5 + $0x2c0] sm:$0xff]
    %v3291 = vld [vmem:[%s5 + $0x2c8] sm:$0xff]
    %v3292 = vld [vmem:[%s5 + $0x2e8] sm:$0xff]
    %v3293 = vld [vmem:[%s5 + $0x2f0] sm:$0xff]
    %v3294 = vld [vmem:[%s5 + $0x310] sm:$0xff]
    %v3295 = vld [vmem:[%s5 + $0x318] sm:$0xff]
    %v3296 = vld [vmem:[%s5 + $0x338] sm:$0xff]
    %v3297 = vld [vmem:[%s5 + $0x340] sm:$0xff]
    %v3298 = vld [vmem:[%s5 + $0x360] sm:$0xff]
    %v3299 = vld [vmem:[%s5 + $0x368] sm:$0xff]
    %v3300 = vld [vmem:[%s5 + $0x388] sm:$0xff]
    %v3301 = vld [vmem:[%s5 + $0x390] sm:$0xff]
    %v3302 = vld [vmem:[%s5 + $0x3b0] sm:$0xff]
    %v3303 = vld [vmem:[%s5 + $0x3b8] sm:$0xff]
    %v3304 = vld [vmem:[%s5 + $0x3d8] sm:$0xff]
    %v3305 = vld [vmem:[%s5 + $0x3e0] sm:$0xff]
    %v3306 = vld [vmem:[%s5 + $0x400] sm:$0xff]
    %v3307 = vld [vmem:[%s5 + $0x408] sm:$0xff]
    %v3308 = vld [vmem:[%s5 + $0x428] sm:$0xff]
    %v3309 = vld [vmem:[%s5 + $0x430] sm:$0xff]
    %v3310 = vld [vmem:[%s5 + $0x450] sm:$0xff]
    %v3311 = vld [vmem:[%s5 + $0x458] sm:$0xff]
    %v3312 = vld [vmem:[%s5 + $0x478] sm:$0xff]
    %v3313 = vld [vmem:[%s5 + $0x480] sm:$0xff]
    %v3314 = vld [vmem:[%s5 + $0x4a0] sm:$0xff]
    %v3315 = vld [vmem:[%s5 + $0x4a8] sm:$0xff]
    %v3316 = vld [vmem:[%s5 + $0x4c8] sm:$0xff]
    %v3317 = vld [vmem:[%s5 + $0x4d0] sm:$0xff]
    %v3318 = vld [vmem:[%s5 + $0x4f0] sm:$0xff]
    %v3319 = vld [vmem:[%s5 + $0x4f8] sm:$0xff]
    %v3320 = vld [vmem:[%s5 + $0x518] sm:$0xff]
    %v3321 = vld [vmem:[%s5 + $0x520] sm:$0xff]
    %v3322 = vld [vmem:[%s5 + $0x540] sm:$0xff]
    %v3323 = vld [vmem:[%s5 + $0x548] sm:$0xff]
    %v3324 = vld [vmem:[%s5 + $0x568] sm:$0xff]
    %v3325 = vld [vmem:[%s5 + $0x570] sm:$0xff]
    %v3326 = vld [vmem:[%s5 + $0x590] sm:$0xff]
    %v3327 = vld [vmem:[%s5 + $0x598] sm:$0xff]
    %3400 = vrot.lane.b32.xlu0 %v3256, 104
    %v3401 = vpop.permute.xlu0 %3400
    %3402 = vrot.lane.b32.xlu0 %v3257, 104
    %v3403 = vpop.permute.xlu0 %3402
    %3404 = vrot.lane.b32.xlu0 %v3258, 104
    %v3405 = vpop.permute.xlu0 %3404
    %3406 = vrot.lane.b32.xlu0 %v3259, 104
    %v3407 = vpop.permute.xlu0 %3406
    %3408 = vrot.lane.b32.xlu0 %v3260, 104
    %v3409 = vpop.permute.xlu0 %3408
    %3410 = vrot.lane.b32.xlu0 %v3261, 104
    %v3411 = vpop.permute.xlu0 %3410
    %3412 = vrot.lane.b32.xlu0 %v3262, 104
    %v3413 = vpop.permute.xlu0 %3412
    %3414 = vrot.lane.b32.xlu0 %v3263, 104
    %v3415 = vpop.permute.xlu0 %3414
    %3416 = vrot.lane.b32.xlu0 %v3264, 104
    %v3417 = vpop.permute.xlu0 %3416
    %3418 = vrot.lane.b32.xlu0 %v3265, 104
    %v3419 = vpop.permute.xlu0 %3418
    %3420 = vrot.lane.b32.xlu0 %v3266, 104
    %v3421 = vpop.permute.xlu0 %3420
    %3422 = vrot.lane.b32.xlu0 %v3267, 104
    %v3423 = vpop.permute.xlu0 %3422
    %3424 = vrot.lane.b32.xlu0 %v3268, 104
    %v3425 = vpop.permute.xlu0 %3424
    %3426 = vrot.lane.b32.xlu0 %v3269, 104
    %v3427 = vpop.permute.xlu0 %3426
    %3428 = vrot.lane.b32.xlu0 %v3270, 104
    %v3429 = vpop.permute.xlu0 %3428
    %3430 = vrot.lane.b32.xlu0 %v3271, 104
    %v3431 = vpop.permute.xlu0 %3430
    %3432 = vrot.lane.b32.xlu0 %v3272, 104
    %v3433 = vpop.permute.xlu0 %3432
    %3434 = vrot.lane.b32.xlu0 %v3273, 104
    %v3435 = vpop.permute.xlu0 %3434
    %3436 = vrot.lane.b32.xlu0 %v3274, 104
    %v3437 = vpop.permute.xlu0 %3436
    %3438 = vrot.lane.b32.xlu0 %v3275, 104
    %v3439 = vpop.permute.xlu0 %3438
    %3440 = vrot.lane.b32.xlu0 %v3276, 104
    %v3441 = vpop.permute.xlu0 %3440
    %3442 = vrot.lane.b32.xlu0 %v3277, 104
    %v3443 = vpop.permute.xlu0 %3442
    %3444 = vrot.lane.b32.xlu0 %v3278, 104
    %v3445 = vpop.permute.xlu0 %3444
    %3446 = vrot.lane.b32.xlu0 %v3279, 104
    %v3447 = vpop.permute.xlu0 %3446
    %3448 = vrot.lane.b32.xlu0 %v3280, 104
    %v3449 = vpop.permute.xlu0 %3448
    %3450 = vrot.lane.b32.xlu0 %v3281, 104
    %v3451 = vpop.permute.xlu0 %3450
    %3452 = vrot.lane.b32.xlu0 %v3282, 104
    %v3453 = vpop.permute.xlu0 %3452
    %3454 = vrot.lane.b32.xlu0 %v3283, 104
    %v3455 = vpop.permute.xlu0 %3454
    %3456 = vrot.lane.b32.xlu0 %v3284, 104
    %v3457 = vpop.permute.xlu0 %3456
    %3458 = vrot.lane.b32.xlu0 %v3285, 104
    %v3459 = vpop.permute.xlu0 %3458
    %3460 = vrot.lane.b32.xlu0 %v3286, 104
    %v3461 = vpop.permute.xlu0 %3460
    %3462 = vrot.lane.b32.xlu0 %v3287, 104
    %v3463 = vpop.permute.xlu0 %3462
    %3464 = vrot.lane.b32.xlu0 %v3288, 104
    %v3465 = vpop.permute.xlu0 %3464
    %3466 = vrot.lane.b32.xlu0 %v3289, 104
    %v3467 = vpop.permute.xlu0 %3466
    %3468 = vrot.lane.b32.xlu0 %v3290, 104
    %v3469 = vpop.permute.xlu0 %3468
    %3470 = vrot.lane.b32.xlu0 %v3291, 104
    %v3471 = vpop.permute.xlu0 %3470
    %3472 = vrot.lane.b32.xlu0 %v3292, 104
    %v3473 = vpop.permute.xlu0 %3472
    %3474 = vrot.lane.b32.xlu0 %v3293, 104
    %v3475 = vpop.permute.xlu0 %3474
    %3476 = vrot.lane.b32.xlu0 %v3294, 104
    %v3477 = vpop.permute.xlu0 %3476
    %3478 = vrot.lane.b32.xlu0 %v3295, 104
    %v3479 = vpop.permute.xlu0 %3478
    %3480 = vrot.lane.b32.xlu0 %v3296, 104
    %v3481 = vpop.permute.xlu0 %3480
    %3482 = vrot.lane.b32.xlu0 %v3297, 104
    %v3483 = vpop.permute.xlu0 %3482
    %3484 = vrot.lane.b32.xlu0 %v3298, 104
    %v3485 = vpop.permute.xlu0 %3484
    %3486 = vrot.lane.b32.xlu0 %v3299, 104
    %v3487 = vpop.permute.xlu0 %3486
    %3488 = vrot.lane.b32.xlu0 %v3300, 104
    %v3489 = vpop.permute.xlu0 %3488
    %3490 = vrot.lane.b32.xlu0 %v3301, 104
    %v3491 = vpop.permute.xlu0 %3490
    %3492 = vrot.lane.b32.xlu0 %v3302, 104
    %v3493 = vpop.permute.xlu0 %3492
    %3494 = vrot.lane.b32.xlu0 %v3303, 104
    %v3495 = vpop.permute.xlu0 %3494
    %3496 = vrot.lane.b32.xlu0 %v3304, 104
    %v3497 = vpop.permute.xlu0 %3496
    %3498 = vrot.lane.b32.xlu0 %v3305, 104
    %v3499 = vpop.permute.xlu0 %3498
    %3500 = vrot.lane.b32.xlu0 %v3306, 104
    %v3501 = vpop.permute.xlu0 %3500
    %3502 = vrot.lane.b32.xlu0 %v3307, 104
    %v3503 = vpop.permute.xlu0 %3502
    %3504 = vrot.lane.b32.xlu0 %v3308, 104
    %v3505 = vpop.permute.xlu0 %3504
    %3506 = vrot.lane.b32.xlu0 %v3309, 104
    %v3507 = vpop.permute.xlu0 %3506
    %3508 = vrot.lane.b32.xlu0 %v3310, 104
    %v3509 = vpop.permute.xlu0 %3508
    %3510 = vrot.lane.b32.xlu0 %v3311, 104
    %v3511 = vpop.permute.xlu0 %3510
    %3512 = vrot.lane.b32.xlu0 %v3312, 104
    %v3513 = vpop.permute.xlu0 %3512
    %3514 = vrot.lane.b32.xlu0 %v3313, 104
    %v3515 = vpop.permute.xlu0 %3514
    %3516 = vrot.lane.b32.xlu0 %v3314, 104
    %v3517 = vpop.permute.xlu0 %3516
    %3518 = vrot.lane.b32.xlu0 %v3315, 104
    %v3519 = vpop.permute.xlu0 %3518
    %3520 = vrot.lane.b32.xlu0 %v3316, 104
    %v3521 = vpop.permute.xlu0 %3520
    %3522 = vrot.lane.b32.xlu0 %v3317, 104
    %v3523 = vpop.permute.xlu0 %3522
    %3524 = vrot.lane.b32.xlu0 %v3318, 104
    %v3525 = vpop.permute.xlu0 %3524
    %3526 = vrot.lane.b32.xlu0 %v3319, 104
    %v3527 = vpop.permute.xlu0 %3526
    %3528 = vrot.lane.b32.xlu0 %v3320, 104
    %v3529 = vpop.permute.xlu0 %3528
    %3530 = vrot.lane.b32.xlu0 %v3321, 104
    %v3531 = vpop.permute.xlu0 %3530
    %3532 = vrot.lane.b32.xlu0 %v3322, 104
    %v3533 = vpop.permute.xlu0 %3532
    %3534 = vrot.lane.b32.xlu0 %v3323, 104
    %v3535 = vpop.permute.xlu0 %3534
    %3536 = vrot.lane.b32.xlu0 %v3324, 104
    %v3537 = vpop.permute.xlu0 %3536
    %3538 = vrot.lane.b32.xlu0 %v3325, 104
    %v3539 = vpop.permute.xlu0 %3538
    %3540 = vrot.lane.b32.xlu0 %v3326, 104
    %v3541 = vpop.permute.xlu0 %3540
    %3542 = vrot.lane.b32.xlu0 %v3327, 104
    %v3543 = vpop.permute.xlu0 %3542
    %vm3544 = vcmask 850944
    %v3545 = vsel %vm3544, %v3401, %v3403
    %v3546 = vsel %vm3544, %v3405, %v3407
    %v3547 = vsel %vm3544, %v3409, %v3411
    %v3548 = vsel %vm3544, %v3413, %v3415
    %v3549 = vsel %vm3544, %v3417, %v3419
    %v3550 = vsel %vm3544, %v3421, %v3423
    %v3551 = vsel %vm3544, %v3425, %v3427
    %v3552 = vsel %vm3544, %v3429, %v3431
    %v3553 = vsel %vm3544, %v3433, %v3435
    %v3554 = vsel %vm3544, %v3437, %v3439
    %v3555 = vsel %vm3544, %v3441, %v3443
    %v3556 = vsel %vm3544, %v3445, %v3447
    %v3557 = vsel %vm3544, %v3449, %v3451
    %v3558 = vsel %vm3544, %v3453, %v3455
    %v3559 = vsel %vm3544, %v3457, %v3459
    %v3560 = vsel %vm3544, %v3461, %v3463
    %v3561 = vsel %vm3544, %v3465, %v3467
    %v3562 = vsel %vm3544, %v3469, %v3471
    %v3563 = vsel %vm3544, %v3473, %v3475
    %v3564 = vsel %vm3544, %v3477, %v3479
    %v3565 = vsel %vm3544, %v3481, %v3483
    %v3566 = vsel %vm3544, %v3485, %v3487
    %v3567 = vsel %vm3544, %v3489, %v3491
    %v3568 = vsel %vm3544, %v3493, %v3495
    %v3569 = vsel %vm3544, %v3497, %v3499
    %v3570 = vsel %vm3544, %v3501, %v3503
    %v3571 = vsel %vm3544, %v3505, %v3507
    %v3572 = vsel %vm3544, %v3509, %v3511
    %v3573 = vsel %vm3544, %v3513, %v3515
    %v3574 = vsel %vm3544, %v3517, %v3519
    %v3575 = vsel %vm3544, %v3521, %v3523
    %v3576 = vsel %vm3544, %v3525, %v3527
    %v3577 = vsel %vm3544, %v3529, %v3531
    %v3578 = vsel %vm3544, %v3533, %v3535
    %v3579 = vsel %vm3544, %v3537, %v3539
    %v3580 = vsel %vm3544, %v3541, %v3543
    %3617 = vrot.lane.b32.xlu0 %v1808, 60
    %v3618 = vpop.permute.xlu0 %3617
    %3619 = vrot.lane.b32.xlu0 %v1813, 60
    %v3620 = vpop.permute.xlu0 %3619
    %3621 = vrot.lane.b32.xlu0 %v1818, 60
    %v3622 = vpop.permute.xlu0 %3621
    %3623 = vrot.lane.b32.xlu0 %v1823, 60
    %v3624 = vpop.permute.xlu0 %3623
    %3625 = vrot.lane.b32.xlu0 %v1828, 60
    %v3626 = vpop.permute.xlu0 %3625
    %3627 = vrot.lane.b32.xlu0 %v1833, 60
    %v3628 = vpop.permute.xlu0 %3627
    %3629 = vrot.lane.b32.xlu0 %v1838, 60
    %v3630 = vpop.permute.xlu0 %3629
    %3631 = vrot.lane.b32.xlu0 %v1843, 60
    %v3632 = vpop.permute.xlu0 %3631
    %3633 = vrot.lane.b32.xlu0 %v1848, 60
    %v3634 = vpop.permute.xlu0 %3633
    %3635 = vrot.lane.b32.xlu0 %v1853, 60
    %v3636 = vpop.permute.xlu0 %3635
    %3637 = vrot.lane.b32.xlu0 %v1858, 60
    %v3638 = vpop.permute.xlu0 %3637
    %3639 = vrot.lane.b32.xlu0 %v1863, 60
    %v3640 = vpop.permute.xlu0 %3639
    %3641 = vrot.lane.b32.xlu0 %v1868, 60
    %v3642 = vpop.permute.xlu0 %3641
    %3643 = vrot.lane.b32.xlu0 %v1873, 60
    %v3644 = vpop.permute.xlu0 %3643
    %3645 = vrot.lane.b32.xlu0 %v1878, 60
    %v3646 = vpop.permute.xlu0 %3645
    %3647 = vrot.lane.b32.xlu0 %v1883, 60
    %v3648 = vpop.permute.xlu0 %3647
    %3649 = vrot.lane.b32.xlu0 %v1888, 60
    %v3650 = vpop.permute.xlu0 %3649
    %3651 = vrot.lane.b32.xlu0 %v1893, 60
    %v3652 = vpop.permute.xlu0 %3651
    %3653 = vrot.lane.b32.xlu0 %v1898, 60
    %v3654 = vpop.permute.xlu0 %3653
    %3655 = vrot.lane.b32.xlu0 %v1903, 60
    %v3656 = vpop.permute.xlu0 %3655
    %3657 = vrot.lane.b32.xlu0 %v1908, 60
    %v3658 = vpop.permute.xlu0 %3657
    %3659 = vrot.lane.b32.xlu0 %v1913, 60
    %v3660 = vpop.permute.xlu0 %3659
    %3661 = vrot.lane.b32.xlu0 %v1918, 60
    %v3662 = vpop.permute.xlu0 %3661
    %3663 = vrot.lane.b32.xlu0 %v1923, 60
    %v3664 = vpop.permute.xlu0 %3663
    %3665 = vrot.lane.b32.xlu0 %v1928, 60
    %v3666 = vpop.permute.xlu0 %3665
    %3667 = vrot.lane.b32.xlu0 %v1933, 60
    %v3668 = vpop.permute.xlu0 %3667
    %v3694 = vsel %vm2616, %v3403, 0
    %v3696 = vsel %vm2616, %v3407, 0
    %v3698 = vsel %vm2616, %v3411, 0
    %v3700 = vsel %vm2616, %v3415, 0
    %v3702 = vsel %vm2616, %v3419, 0
    %v3704 = vsel %vm2616, %v3423, 0
    %v3706 = vsel %vm2616, %v3427, 0
    %v3708 = vsel %vm2616, %v3431, 0
    %v3710 = vsel %vm2616, %v3435, 0
    %v3712 = vsel %vm2616, %v3439, 0
    %v3714 = vsel %vm2616, %v3443, 0
    %v3716 = vsel %vm2616, %v3447, 0
    %v3718 = vsel %vm2616, %v3451, 0
    %v3720 = vsel %vm2616, %v3455, 0
    %v3722 = vsel %vm2616, %v3459, 0
    %v3724 = vsel %vm2616, %v3463, 0
    %v3726 = vsel %vm2616, %v3467, 0
    %v3728 = vsel %vm2616, %v3471, 0
    %v3730 = vsel %vm2616, %v3475, 0
    %v3732 = vsel %vm2616, %v3479, 0
    %v3734 = vsel %vm2616, %v3483, 0
    %v3736 = vsel %vm2616, %v3487, 0
    %v3738 = vsel %vm2616, %v3491, 0
    %v3740 = vsel %vm2616, %v3495, 0
    %v3742 = vsel %vm2616, %v3499, 0
    %v3744 = vsel %vm2616, %v3503, 0
    %v3746 = vsel %vm2616, %v3507, 0
    %v3748 = vsel %vm2616, %v3511, 0
    %v3750 = vsel %vm2616, %v3515, 0
    %v3752 = vsel %vm2616, %v3519, 0
    %v3754 = vsel %vm2616, %v3523, 0
    %v3756 = vsel %vm2616, %v3527, 0
    %v3758 = vsel %vm2616, %v3531, 0
    %v3760 = vsel %vm2616, %v3535, 0
    %v3762 = vsel %vm2616, %v3539, 0
    %v3764 = vsel %vm2616, %v3543, 0
    %v3766 = vsel %vm2689, %v3668, 0
    %3768 = vmatprep.subr.mxu0 0.0
    %3769 = vmatpush1.msra.mxu0 %v3618
    %3770 = vmatprep.subr.mxu0 0.0
    %3771 = vmatpush1.msra.mxu0 %v3620
    %3772 = vmatprep.subr.mxu0 0.0
    %3773 = vmatpush1.msra.mxu0 %v3622
    %3774 = vmatprep.subr.mxu0 0.0
    %3775 = vmatpush1.msra.mxu0 %v3624
    %3776 = vmatprep.subr.mxu0 0.0
    %3777 = vmatpush1.msra.mxu0 %v3626
    %3778 = vmatprep.subr.mxu0 0.0
    %3779 = vmatpush1.msra.mxu0 %v3628
    %3780 = vmatprep.subr.mxu0 0.0
    %3781 = vmatpush1.msra.mxu0 %v3630
    %3782 = vmatprep.subr.mxu0 0.0
    %3783 = vmatpush1.msra.mxu0 %v3632
    %3784 = vmatprep.subr.mxu0 0.0
    %3785 = vmatpush1.msra.mxu0 %v3634
    %3786 = vmatprep.subr.mxu0 0.0
    %3787 = vmatpush1.msra.mxu0 %v3636
    %3788 = vmatprep.subr.mxu0 0.0
    %3789 = vmatpush1.msra.mxu0 %v3638
    %3790 = vmatprep.subr.mxu0 0.0
    %3791 = vmatpush1.msra.mxu0 %v3640
    %3792 = vmatprep.subr.mxu0 0.0
    %3793 = vmatpush1.msra.mxu0 %v3642
    %3794 = vmatprep.subr.mxu0 0.0
    %3795 = vmatpush1.msra.mxu0 %v3644
    %3796 = vmatprep.subr.mxu0 0.0
    %3797 = vmatpush1.msra.mxu0 %v3646
    %3798 = vmatprep.subr.mxu0 0.0
    %3799 = vmatpush1.msra.mxu0 %v3648
    %3800 = vmatprep.subr.mxu0 0.0
    %3801 = vmatpush1.msra.mxu0 %v3650
    %3802 = vmatprep.subr.mxu0 0.0
    %3803 = vmatpush1.msra.mxu0 %v3652
    %3804 = vmatprep.subr.mxu0 0.0
    %3805 = vmatpush1.msra.mxu0 %v3654
    %3806 = vmatprep.subr.mxu0 0.0
    %3807 = vmatpush1.msra.mxu0 %v3656
    %3808 = vmatprep.subr.mxu0 0.0
    %3809 = vmatpush1.msra.mxu0 %v3658
    %3810 = vmatprep.subr.mxu0 0.0
    %3811 = vmatpush1.msra.mxu0 %v3660
    %3812 = vmatprep.subr.mxu0 0.0
    %3813 = vmatpush1.msra.mxu0 %v3662
    %3814 = vmatprep.subr.mxu0 0.0
    %3815 = vmatpush1.msra.mxu0 %v3664
    %3816 = vmatprep.subr.mxu0 0.0
    %3817 = vmatpush1.msra.mxu0 %v3666
    %3818 = vmatprep.subr.mxu0 0.0
    %3819 = vmatpush1.msra.mxu0 %v3766
    %3820 = vmatprep.subr.mxu0 0.0
    %3821 = vmatpush1.msra.mxu0 0.0
    %3822 = vmatprep.subr.mxu0 0.0
    %3823 = vmatpush1.msra.mxu0 0.0
    %3824 = vmatprep.subr.mxu0 0.0
    %3825 = vmatpush1.msra.mxu0 0.0
    %3826 = vmatprep.subr.mxu0 0.0
    %3827 = vmatpush1.msra.mxu0 0.0
    %3828 = vmatprep.subr.mxu0 0.0
    %3829 = vmatpush1.msra.mxu0 0.0
    %3830 = vmatprep.subr.mxu0 0.0
    %3831 = vmatpush1.msra.mxu0 0.0
    %3832 = vmatprep.mubr.f32.mxu0 %v3694
    %3833 = vmatmul.mubr.f32.gmra.mrb[0].mxu0 %v3545
    %v3834 = vpop.f32.mrb[0].mxu0
    %v3835 = vadd.f32 0.0, %v3834
    %v3836 = vpop.f32.mrb[0].mxu0
    %3837 = vmatprep.mubr.f32.mxu0 %v3696
    %3838 = vmatmul.mubr.f32.gmra.mrb[0].mxu0 %v3546
    %v3839 = vpop.f32.mrb[0].mxu0
    %v3840 = vadd.f32 0.0, %v3839
    %v3841 = vpop.f32.mrb[0].mxu0
    %3842 = vmatprep.mubr.f32.mxu0 %v3698
    %3843 = vmatmul.mubr.f32.gmra.mrb[0].mxu0 %v3547
    %v3844 = vpop.f32.mrb[0].mxu0
    %v3845 = vadd.f32 0.0, %v3844
    %v3846 = vpop.f32.mrb[0].mxu0
    %3847 = vmatprep.mubr.f32.mxu0 %v3700
    %3848 = vmatmul.mubr.f32.gmra.mrb[0].mxu0 %v3548
    %v3849 = vpop.f32.mrb[0].mxu0
    %v3850 = vadd.f32 0.0, %v3849
    %v3851 = vpop.f32.mrb[0].mxu0
    %3852 = vmatprep.mubr.f32.mxu0 %v3702
    %3853 = vmatmul.mubr.f32.gmra.mrb[0].mxu0 %v3549
    %v3854 = vpop.f32.mrb[0].mxu0
    %v3855 = vadd.f32 0.0, %v3854
    %v3856 = vpop.f32.mrb[0].mxu0
    %3857 = vmatprep.mubr.f32.mxu0 %v3704
    %3858 = vmatmul.mubr.f32.gmra.mrb[0].mxu0 %v3550
    %v3859 = vpop.f32.mrb[0].mxu0
    %v3860 = vadd.f32 0.0, %v3859
    %v3861 = vpop.f32.mrb[0].mxu0
    %3862 = vmatprep.mubr.f32.mxu0 %v3706
    %3863 = vmatmul.mubr.f32.gmra.mrb[0].mxu0 %v3551
    %v3864 = vpop.f32.mrb[0].mxu0
    %v3865 = vadd.f32 0.0, %v3864
    %v3866 = vpop.f32.mrb[0].mxu0
    %3867 = vmatprep.mubr.f32.mxu0 %v3708
    %3868 = vmatmul.mubr.f32.gmra.mrb[0].mxu0 %v3552
    %v3869 = vpop.f32.mrb[0].mxu0
    %v3870 = vadd.f32 0.0, %v3869
    %v3871 = vpop.f32.mrb[0].mxu0
    %3872 = vmatprep.mubr.f32.mxu0 %v3710
    %3873 = vmatmul.mubr.f32.gmra.mrb[0].mxu0 %v3553
    %v3874 = vpop.f32.mrb[0].mxu0
    %v3875 = vadd.f32 0.0, %v3874
    %v3876 = vpop.f32.mrb[0].mxu0
    %3877 = vmatprep.mubr.f32.mxu0 %v3712
    %3878 = vmatmul.mubr.f32.gmra.mrb[0].mxu0 %v3554
    %v3879 = vpop.f32.mrb[0].mxu0
    %v3880 = vadd.f32 0.0, %v3879
    %v3881 = vpop.f32.mrb[0].mxu0
    %3882 = vmatprep.mubr.f32.mxu0 %v3714
    %3883 = vmatmul.mubr.f32.gmra.mrb[0].mxu0 %v3555
    %v3884 = vpop.f32.mrb[0].mxu0
    %v3885 = vadd.f32 0.0, %v3884
    %v3886 = vpop.f32.mrb[0].mxu0
    %3887 = vmatprep.mubr.f32.mxu0 %v3716
    %3888 = vmatmul.mubr.f32.gmra.mrb[0].mxu0 %v3556
    %v3889 = vpop.f32.mrb[0].mxu0
    %v3890 = vadd.f32 0.0, %v3889
    %v3891 = vpop.f32.mrb[0].mxu0
    %3892 = vmatprep.mubr.f32.mxu0 %v3718
    %3893 = vmatmul.mubr.f32.gmra.mrb[0].mxu0 %v3557
    %v3894 = vpop.f32.mrb[0].mxu0
    %v3895 = vadd.f32 0.0, %v3894
    %v3896 = vpop.f32.mrb[0].mxu0
    %3897 = vmatprep.mubr.f32.mxu0 %v3720
    %3898 = vmatmul.mubr.f32.gmra.mrb[0].mxu0 %v3558
    %v3899 = vpop.f32.mrb[0].mxu0
    %v3900 = vadd.f32 0.0, %v3899
    %v3901 = vpop.f32.mrb[0].mxu0
    %3902 = vmatprep.mubr.f32.mxu0 %v3722
    %3903 = vmatmul.mubr.f32.gmra.mrb[0].mxu0 %v3559
    %v3904 = vpop.f32.mrb[0].mxu0
    %v3905 = vadd.f32 0.0, %v3904
    %v3906 = vpop.f32.mrb[0].mxu0
    %3907 = vmatprep.mubr.f32.mxu0 %v3724
    %3908 = vmatmul.mubr.f32.gmra.mrb[0].mxu0 %v3560
    %v3909 = vpop.f32.mrb[0].mxu0
    %v3910 = vadd.f32 0.0, %v3909
    %v3911 = vpop.f32.mrb[0].mxu0
    %3912 = vmatprep.mubr.f32.mxu0 %v3726
    %3913 = vmatmul.mubr.f32.gmra.mrb[0].mxu0 %v3561
    %v3914 = vpop.f32.mrb[0].mxu0
    %v3915 = vadd.f32 0.0, %v3914
    %v3916 = vpop.f32.mrb[0].mxu0
    %3917 = vmatprep.mubr.f32.mxu0 %v3728
    %3918 = vmatmul.mubr.f32.gmra.mrb[0].mxu0 %v3562
    %v3919 = vpop.f32.mrb[0].mxu0
    %v3920 = vadd.f32 0.0, %v3919
    %v3921 = vpop.f32.mrb[0].mxu0
    %3922 = vmatprep.mubr.f32.mxu0 %v3730
    %3923 = vmatmul.mubr.f32.gmra.mrb[0].mxu0 %v3563
    %v3924 = vpop.f32.mrb[0].mxu0
    %v3925 = vadd.f32 0.0, %v3924
    %v3926 = vpop.f32.mrb[0].mxu0
    %3927 = vmatprep.mubr.f32.mxu0 %v3732
    %3928 = vmatmul.mubr.f32.gmra.mrb[0].mxu0 %v3564
    %v3929 = vpop.f32.mrb[0].mxu0
    %v3930 = vadd.f32 0.0, %v3929
    %v3931 = vpop.f32.mrb[0].mxu0
    %3932 = vmatprep.mubr.f32.mxu0 %v3734
    %3933 = vmatmul.mubr.f32.gmra.mrb[0].mxu0 %v3565
    %v3934 = vpop.f32.mrb[0].mxu0
    %v3935 = vadd.f32 0.0, %v3934
    %v3936 = vpop.f32.mrb[0].mxu0
    %3937 = vmatprep.mubr.f32.mxu0 %v3736
    %3938 = vmatmul.mubr.f32.gmra.mrb[0].mxu0 %v3566
    %v3939 = vpop.f32.mrb[0].mxu0
    %v3940 = vadd.f32 0.0, %v3939
    %v3941 = vpop.f32.mrb[0].mxu0
    %3942 = vmatprep.mubr.f32.mxu0 %v3738
    %3943 = vmatmul.mubr.f32.gmra.mrb[0].mxu0 %v3567
    %v3944 = vpop.f32.mrb[0].mxu0
    %v3945 = vadd.f32 0.0, %v3944
    %v3946 = vpop.f32.mrb[0].mxu0
    %3947 = vmatprep.mubr.f32.mxu0 %v3740
    %3948 = vmatmul.mubr.f32.gmra.mrb[0].mxu0 %v3568
    %v3949 = vpop.f32.mrb[0].mxu0
    %v3950 = vadd.f32 0.0, %v3949
    %v3951 = vpop.f32.mrb[0].mxu0
    %3952 = vmatprep.mubr.f32.mxu0 %v3742
    %3953 = vmatmul.mubr.f32.gmra.mrb[0].mxu0 %v3569
    %v3954 = vpop.f32.mrb[0].mxu0
    %v3955 = vadd.f32 0.0, %v3954
    %v3956 = vpop.f32.mrb[0].mxu0
    %3957 = vmatprep.mubr.f32.mxu0 %v3744
    %3958 = vmatmul.mubr.f32.gmra.mrb[0].mxu0 %v3570
    %v3959 = vpop.f32.mrb[0].mxu0
    %v3960 = vadd.f32 0.0, %v3959
    %v3961 = vpop.f32.mrb[0].mxu0
    %3962 = vmatprep.mubr.f32.mxu0 %v3746
    %3963 = vmatmul.mubr.f32.gmra.mrb[0].mxu0 %v3571
    %v3964 = vpop.f32.mrb[0].mxu0
    %v3965 = vadd.f32 0.0, %v3964
    %v3966 = vpop.f32.mrb[0].mxu0
    %3967 = vmatprep.mubr.f32.mxu0 %v3748
    %3968 = vmatmul.mubr.f32.gmra.mrb[0].mxu0 %v3572
    %v3969 = vpop.f32.mrb[0].mxu0
    %v3970 = vadd.f32 0.0, %v3969
    %v3971 = vpop.f32.mrb[0].mxu0
    %3972 = vmatprep.mubr.f32.mxu0 %v3750
    %3973 = vmatmul.mubr.f32.gmra.mrb[0].mxu0 %v3573
    %v3974 = vpop.f32.mrb[0].mxu0
    %v3975 = vadd.f32 0.0, %v3974
    %v3976 = vpop.f32.mrb[0].mxu0
    %3977 = vmatprep.mubr.f32.mxu0 %v3752
    %3978 = vmatmul.mubr.f32.gmra.mrb[0].mxu0 %v3574
    %v3979 = vpop.f32.mrb[0].mxu0
    %v3980 = vadd.f32 0.0, %v3979
    %v3981 = vpop.f32.mrb[0].mxu0
    %3982 = vmatprep.mubr.f32.mxu0 %v3754
    %3983 = vmatmul.mubr.f32.gmra.mrb[0].mxu0 %v3575
    %v3984 = vpop.f32.mrb[0].mxu0
    %v3985 = vadd.f32 0.0, %v3984
    %v3986 = vpop.f32.mrb[0].mxu0
    %3987 = vmatprep.mubr.f32.mxu0 %v3756
    %3988 = vmatmul.mubr.f32.gmra.mrb[0].mxu0 %v3576
    %v3989 = vpop.f32.mrb[0].mxu0
    %v3990 = vadd.f32 0.0, %v3989
    %v3991 = vpop.f32.mrb[0].mxu0
    %3992 = vmatprep.mubr.f32.mxu0 %v3758
    %3993 = vmatmul.mubr.f32.gmra.mrb[0].mxu0 %v3577
    %v3994 = vpop.f32.mrb[0].mxu0
    %v3995 = vadd.f32 0.0, %v3994
    %v3996 = vpop.f32.mrb[0].mxu0
    %3997 = vmatprep.mubr.f32.mxu0 %v3760
    %3998 = vmatmul.mubr.f32.gmra.mrb[0].mxu0 %v3578
    %v3999 = vpop.f32.mrb[0].mxu0
    %v4000 = vadd.f32 0.0, %v3999
    %v4001 = vpop.f32.mrb[0].mxu0
    %4002 = vmatprep.mubr.f32.mxu0 %v3762
    %4003 = vmatmul.mubr.f32.gmra.mrb[0].mxu0 %v3579
    %v4004 = vpop.f32.mrb[0].mxu0
    %v4005 = vadd.f32 0.0, %v4004
    %v4006 = vpop.f32.mrb[0].mxu0
    %4007 = vmatprep.mubr.f32.mxu0 %v3764
    %4008 = vmatmul.mubr.f32.gmra.mrb[0].mxu0 %v3580
    %v4009 = vpop.f32.mrb[0].mxu0
    %v4010 = vadd.f32 0.0, %v4009
    %v4011 = vpop.f32.mrb[0].mxu0
    %4012 = vdwg.mxu0
    %v4013 = vadd.f32 %v3078, %v3835
    %v4014 = vadd.f32 %v3083, %v3840
    %v4015 = vadd.f32 %v3088, %v3845
    %v4016 = vadd.f32 %v3093, %v3850
    %v4017 = vadd.f32 %v3098, %v3855
    %v4018 = vadd.f32 %v3103, %v3860
    %v4019 = vadd.f32 %v3108, %v3865
    %v4020 = vadd.f32 %v3113, %v3870
    %v4021 = vadd.f32 %v3118, %v3875
    %v4022 = vadd.f32 %v3123, %v3880
    %v4023 = vadd.f32 %v3128, %v3885
    %v4024 = vadd.f32 %v3133, %v3890
    %v4025 = vadd.f32 %v3138, %v3895
    %v4026 = vadd.f32 %v3143, %v3900
    %v4027 = vadd.f32 %v3148, %v3905
    %v4028 = vadd.f32 %v3153, %v3910
    %v4029 = vadd.f32 %v3158, %v3915
    %v4030 = vadd.f32 %v3163, %v3920
    %v4031 = vadd.f32 %v3168, %v3925
    %v4032 = vadd.f32 %v3173, %v3930
    %v4033 = vadd.f32 %v3178, %v3935
    %v4034 = vadd.f32 %v3183, %v3940
    %v4035 = vadd.f32 %v3188, %v3945
    %v4036 = vadd.f32 %v3193, %v3950
    %v4037 = vadd.f32 %v3198, %v3955
    %v4038 = vadd.f32 %v3203, %v3960
    %v4039 = vadd.f32 %v3208, %v3965
    %v4040 = vadd.f32 %v3213, %v3970
    %v4041 = vadd.f32 %v3218, %v3975
    %v4042 = vadd.f32 %v3223, %v3980
    %v4043 = vadd.f32 %v3228, %v3985
    %v4044 = vadd.f32 %v3233, %v3990
    %v4045 = vadd.f32 %v3238, %v3995
    %v4046 = vadd.f32 %v3243, %v4000
    %v4047 = vadd.f32 %v3248, %v4005
    %v4048 = vadd.f32 %v3253, %v4010
    %v4049 = vld [vmem:[%s6] sm:$0xff]
    %v4050 = vld [vmem:[%s6 + $0x8] sm:$0xff]
    %v4051 = vld [vmem:[%s6 + $0x10] sm:$0xff]
    %v4052 = vld [vmem:[%s6 + $0x18] sm:$0xff]
    %v4053 = vld [vmem:[%s6 + $0x20] sm:$0xff]
    %v4054 = vld [vmem:[%s6 + $0x28] sm:$0xff]
    %v4055 = vld [vmem:[%s6 + $0x30] sm:$0xff]
    %v4056 = vld [vmem:[%s6 + $0x38] sm:$0xff]
    %v4057 = vld [vmem:[%s6 + $0x40] sm:$0xff]
    %v4058 = vld [vmem:[%s6 + $0x48] sm:$0xff]
    %v4059 = vld [vmem:[%s6 + $0x50] sm:$0xff]
    %v4060 = vld [vmem:[%s6 + $0x58] sm:$0xff]
    %v4061 = vld [vmem:[%s6 + $0x60] sm:$0xff]
    %v4062 = vld [vmem:[%s6 + $0x68] sm:$0xff]
    %v4063 = vld [vmem:[%s6 + $0x70] sm:$0xff]
    %v4064 = vld [vmem:[%s6 + $0x78] sm:$0xff]
    %v4065 = vld [vmem:[%s6 + $0x80] sm:$0xff]
    %v4066 = vld [vmem:[%s6 + $0x88] sm:$0xff]
    %v4067 = vld [vmem:[%s6 + $0x90] sm:$0xff]
    %v4068 = vld [vmem:[%s6 + $0x98] sm:$0xff]
    %v4069 = vld [vmem:[%s6 + $0xa0] sm:$0xff]
    %v4070 = vld [vmem:[%s6 + $0xa8] sm:$0xff]
    %v4071 = vld [vmem:[%s6 + $0xb0] sm:$0xff]
    %v4072 = vld [vmem:[%s6 + $0xb8] sm:$0xff]
    %v4073 = vld [vmem:[%s6 + $0xc0] sm:$0xff]
    %v4074 = vld [vmem:[%s6 + $0xc8] sm:$0xff]
    %v4075 = vld [vmem:[%s6 + $0xd0] sm:$0xff]
    %v4076 = vld [vmem:[%s6 + $0xd8] sm:$0xff]
    %v4077 = vld [vmem:[%s6 + $0xe0] sm:$0xff]
    %v4078 = vld [vmem:[%s6 + $0xe8] sm:$0xff]
    %v4079 = vld [vmem:[%s6 + $0xf0] sm:$0xff]
    %v4080 = vld [vmem:[%s6 + $0xf8] sm:$0xff]
    %v4081 = vld [vmem:[%s6 + $0x100] sm:$0xff]
    %v4082 = vld [vmem:[%s6 + $0x108] sm:$0xff]
    %v4083 = vld [vmem:[%s6 + $0x110] sm:$0xff]
    %v4084 = vld [vmem:[%s6 + $0x118] sm:$0xff]
    %4086 = vset.pattern.permute.xlu0 0
    %4087 = vperm.xlu0 %4086, %v4049
    %v4088 = vpop.permute.xlu0 %4087
    %4091 = vset.pattern.permute.xlu0 0
    %4092 = vperm.xlu0 %4091, %v4050
    %v4093 = vpop.permute.xlu0 %4092
    %4096 = vset.pattern.permute.xlu0 0
    %4097 = vperm.xlu0 %4096, %v4051
    %v4098 = vpop.permute.xlu0 %4097
    %4101 = vset.pattern.permute.xlu0 0
    %4102 = vperm.xlu0 %4101, %v4052
    %v4103 = vpop.permute.xlu0 %4102
    %4106 = vset.pattern.permute.xlu0 0
    %4107 = vperm.xlu0 %4106, %v4053
    %v4108 = vpop.permute.xlu0 %4107
    %4111 = vset.pattern.permute.xlu0 0
    %4112 = vperm.xlu0 %4111, %v4054
    %v4113 = vpop.permute.xlu0 %4112
    %4116 = vset.pattern.permute.xlu0 0
    %4117 = vperm.xlu0 %4116, %v4055
    %v4118 = vpop.permute.xlu0 %4117
    %4121 = vset.pattern.permute.xlu0 0
    %4122 = vperm.xlu0 %4121, %v4056
    %v4123 = vpop.permute.xlu0 %4122
    %4126 = vset.pattern.permute.xlu0 0
    %4127 = vperm.xlu0 %4126, %v4057
    %v4128 = vpop.permute.xlu0 %4127
    %4131 = vset.pattern.permute.xlu0 0
    %4132 = vperm.xlu0 %4131, %v4058
    %v4133 = vpop.permute.xlu0 %4132
    %4136 = vset.pattern.permute.xlu0 0
    %4137 = vperm.xlu0 %4136, %v4059
    %v4138 = vpop.permute.xlu0 %4137
    %4141 = vset.pattern.permute.xlu0 0
    %4142 = vperm.xlu0 %4141, %v4060
    %v4143 = vpop.permute.xlu0 %4142
    %4146 = vset.pattern.permute.xlu0 0
    %4147 = vperm.xlu0 %4146, %v4061
    %v4148 = vpop.permute.xlu0 %4147
    %4151 = vset.pattern.permute.xlu0 0
    %4152 = vperm.xlu0 %4151, %v4062
    %v4153 = vpop.permute.xlu0 %4152
    %4156 = vset.pattern.permute.xlu0 0
    %4157 = vperm.xlu0 %4156, %v4063
    %v4158 = vpop.permute.xlu0 %4157
    %4161 = vset.pattern.permute.xlu0 0
    %4162 = vperm.xlu0 %4161, %v4064
    %v4163 = vpop.permute.xlu0 %4162
    %4166 = vset.pattern.permute.xlu0 0
    %4167 = vperm.xlu0 %4166, %v4065
    %v4168 = vpop.permute.xlu0 %4167
    %4171 = vset.pattern.permute.xlu0 0
    %4172 = vperm.xlu0 %4171, %v4066
    %v4173 = vpop.permute.xlu0 %4172
    %4176 = vset.pattern.permute.xlu0 0
    %4177 = vperm.xlu0 %4176, %v4067
    %v4178 = vpop.permute.xlu0 %4177
    %4181 = vset.pattern.permute.xlu0 0
    %4182 = vperm.xlu0 %4181, %v4068
    %v4183 = vpop.permute.xlu0 %4182
    %4186 = vset.pattern.permute.xlu0 0
    %4187 = vperm.xlu0 %4186, %v4069
    %v4188 = vpop.permute.xlu0 %4187
    %4191 = vset.pattern.permute.xlu0 0
    %4192 = vperm.xlu0 %4191, %v4070
    %v4193 = vpop.permute.xlu0 %4192
    %4196 = vset.pattern.permute.xlu0 0
    %4197 = vperm.xlu0 %4196, %v4071
    %v4198 = vpop.permute.xlu0 %4197
    %4201 = vset.pattern.permute.xlu0 0
    %4202 = vperm.xlu0 %4201, %v4072
    %v4203 = vpop.permute.xlu0 %4202
    %4206 = vset.pattern.permute.xlu0 0
    %4207 = vperm.xlu0 %4206, %v4073
    %v4208 = vpop.permute.xlu0 %4207
    %4211 = vset.pattern.permute.xlu0 0
    %4212 = vperm.xlu0 %4211, %v4074
    %v4213 = vpop.permute.xlu0 %4212
    %4216 = vset.pattern.permute.xlu0 0
    %4217 = vperm.xlu0 %4216, %v4075
    %v4218 = vpop.permute.xlu0 %4217
    %4221 = vset.pattern.permute.xlu0 0
    %4222 = vperm.xlu0 %4221, %v4076
    %v4223 = vpop.permute.xlu0 %4222
    %4226 = vset.pattern.permute.xlu0 0
    %4227 = vperm.xlu0 %4226, %v4077
    %v4228 = vpop.permute.xlu0 %4227
    %4231 = vset.pattern.permute.xlu0 0
    %4232 = vperm.xlu0 %4231, %v4078
    %v4233 = vpop.permute.xlu0 %4232
    %4236 = vset.pattern.permute.xlu0 0
    %4237 = vperm.xlu0 %4236, %v4079
    %v4238 = vpop.permute.xlu0 %4237
    %4241 = vset.pattern.permute.xlu0 0
    %4242 = vperm.xlu0 %4241, %v4080
    %v4243 = vpop.permute.xlu0 %4242
    %4246 = vset.pattern.permute.xlu0 0
    %4247 = vperm.xlu0 %4246, %v4081
    %v4248 = vpop.permute.xlu0 %4247
    %4251 = vset.pattern.permute.xlu0 0
    %4252 = vperm.xlu0 %4251, %v4082
    %v4253 = vpop.permute.xlu0 %4252
    %4256 = vset.pattern.permute.xlu0 0
    %4257 = vperm.xlu0 %4256, %v4083
    %v4258 = vpop.permute.xlu0 %4257
    %4261 = vset.pattern.permute.xlu0 0
    %4262 = vperm.xlu0 %4261, %v4084
    %v4263 = vpop.permute.xlu0 %4262
    %v4265 = vadd.f32 %v4013, %v4088
    %v4266 = vadd.f32 %v4014, %v4093
    %v4267 = vadd.f32 %v4015, %v4098
    %v4268 = vadd.f32 %v4016, %v4103
    %v4269 = vadd.f32 %v4017, %v4108
    %v4270 = vadd.f32 %v4018, %v4113
    %v4271 = vadd.f32 %v4019, %v4118
    %v4272 = vadd.f32 %v4020, %v4123
    %v4273 = vadd.f32 %v4021, %v4128
    %v4274 = vadd.f32 %v4022, %v4133
    %v4275 = vadd.f32 %v4023, %v4138
    %v4276 = vadd.f32 %v4024, %v4143
    %v4277 = vadd.f32 %v4025, %v4148
    %v4278 = vadd.f32 %v4026, %v4153
    %v4279 = vadd.f32 %v4027, %v4158
    %v4280 = vadd.f32 %v4028, %v4163
    %v4281 = vadd.f32 %v4029, %v4168
    %v4282 = vadd.f32 %v4030, %v4173
    %v4283 = vadd.f32 %v4031, %v4178
    %v4284 = vadd.f32 %v4032, %v4183
    %v4285 = vadd.f32 %v4033, %v4188
    %v4286 = vadd.f32 %v4034, %v4193
    %v4287 = vadd.f32 %v4035, %v4198
    %v4288 = vadd.f32 %v4036, %v4203
    %v4289 = vadd.f32 %v4037, %v4208
    %v4290 = vadd.f32 %v4038, %v4213
    %v4291 = vadd.f32 %v4039, %v4218
    %v4292 = vadd.f32 %v4040, %v4223
    %v4293 = vadd.f32 %v4041, %v4228
    %v4294 = vadd.f32 %v4042, %v4233
    %v4295 = vadd.f32 %v4043, %v4238
    %v4296 = vadd.f32 %v4044, %v4243
    %v4297 = vadd.f32 %v4045, %v4248
    %v4298 = vadd.f32 %v4046, %v4253
    %v4299 = vadd.f32 %v4047, %v4258
    %v4300 = vadd.f32 %v4048, %v4263
    %v4301 = vmax.f32 %v4265, 0.0
    %v4302 = vmax.f32 %v4266, 0.0
    %v4303 = vmax.f32 %v4267, 0.0
    %v4304 = vmax.f32 %v4268, 0.0
    %v4305 = vmax.f32 %v4269, 0.0
    %v4306 = vmax.f32 %v4270, 0.0
    %v4307 = vmax.f32 %v4271, 0.0
    %v4308 = vmax.f32 %v4272, 0.0
    %v4309 = vmax.f32 %v4273, 0.0
    %v4310 = vmax.f32 %v4274, 0.0
    %v4311 = vmax.f32 %v4275, 0.0
    %v4312 = vmax.f32 %v4276, 0.0
    %v4313 = vmax.f32 %v4277, 0.0
    %v4314 = vmax.f32 %v4278, 0.0
    %v4315 = vmax.f32 %v4279, 0.0
    %v4316 = vmax.f32 %v4280, 0.0
    %v4317 = vmax.f32 %v4281, 0.0
    %v4318 = vmax.f32 %v4282, 0.0
    %v4319 = vmax.f32 %v4283, 0.0
    %v4320 = vmax.f32 %v4284, 0.0
    %v4321 = vmax.f32 %v4285, 0.0
    %v4322 = vmax.f32 %v4286, 0.0
    %v4323 = vmax.f32 %v4287, 0.0
    %v4324 = vmax.f32 %v4288, 0.0
    %v4325 = vmax.f32 %v4289, 0.0
    %v4326 = vmax.f32 %v4290, 0.0
    %v4327 = vmax.f32 %v4291, 0.0
    %v4328 = vmax.f32 %v4292, 0.0
    %v4329 = vmax.f32 %v4293, 0.0
    %v4330 = vmax.f32 %v4294, 0.0
    %v4331 = vmax.f32 %v4295, 0.0
    %v4332 = vmax.f32 %v4296, 0.0
    %v4333 = vmax.f32 %v4297, 0.0
    %v4334 = vmax.f32 %v4298, 0.0
    %v4335 = vmax.f32 %v4299, 0.0
    %v4336 = vmax.f32 %v4300, 0.0
    %4337 = vset.pattern.permute.xlu0 1
    %4338 = vperm.xlu0 %4337, %v4049
    %v4339 = vpop.permute.xlu0 %4338
    %4341 = vset.pattern.permute.xlu0 1
    %4342 = vperm.xlu0 %4341, %v4050
    %v4343 = vpop.permute.xlu0 %4342
    %4345 = vset.pattern.permute.xlu0 1
    %4346 = vperm.xlu0 %4345, %v4051
    %v4347 = vpop.permute.xlu0 %4346
    %4349 = vset.pattern.permute.xlu0 1
    %4350 = vperm.xlu0 %4349, %v4052
    %v4351 = vpop.permute.xlu0 %4350
    %4353 = vset.pattern.permute.xlu0 1
    %4354 = vperm.xlu0 %4353, %v4053
    %v4355 = vpop.permute.xlu0 %4354
    %4357 = vset.pattern.permute.xlu0 1
    %4358 = vperm.xlu0 %4357, %v4054
    %v4359 = vpop.permute.xlu0 %4358
    %4361 = vset.pattern.permute.xlu0 1
    %4362 = vperm.xlu0 %4361, %v4055
    %v4363 = vpop.permute.xlu0 %4362
    %4365 = vset.pattern.permute.xlu0 1
    %4366 = vperm.xlu0 %4365, %v4056
    %v4367 = vpop.permute.xlu0 %4366
    %4369 = vset.pattern.permute.xlu0 1
    %4370 = vperm.xlu0 %4369, %v4057
    %v4371 = vpop.permute.xlu0 %4370
    %4373 = vset.pattern.permute.xlu0 1
    %4374 = vperm.xlu0 %4373, %v4058
    %v4375 = vpop.permute.xlu0 %4374
    %4377 = vset.pattern.permute.xlu0 1
    %4378 = vperm.xlu0 %4377, %v4059
    %v4379 = vpop.permute.xlu0 %4378
    %4381 = vset.pattern.permute.xlu0 1
    %4382 = vperm.xlu0 %4381, %v4060
    %v4383 = vpop.permute.xlu0 %4382
    %4385 = vset.pattern.permute.xlu0 1
    %4386 = vperm.xlu0 %4385, %v4061
    %v4387 = vpop.permute.xlu0 %4386
    %4389 = vset.pattern.permute.xlu0 1
    %4390 = vperm.xlu0 %4389, %v4062
    %v4391 = vpop.permute.xlu0 %4390
    %4393 = vset.pattern.permute.xlu0 1
    %4394 = vperm.xlu0 %4393, %v4063
    %v4395 = vpop.permute.xlu0 %4394
    %4397 = vset.pattern.permute.xlu0 1
    %4398 = vperm.xlu0 %4397, %v4064
    %v4399 = vpop.permute.xlu0 %4398
    %4401 = vset.pattern.permute.xlu0 1
    %4402 = vperm.xlu0 %4401, %v4065
    %v4403 = vpop.permute.xlu0 %4402
    %4405 = vset.pattern.permute.xlu0 1
    %4406 = vperm.xlu0 %4405, %v4066
    %v4407 = vpop.permute.xlu0 %4406
    %4409 = vset.pattern.permute.xlu0 1
    %4410 = vperm.xlu0 %4409, %v4067
    %v4411 = vpop.permute.xlu0 %4410
    %4413 = vset.pattern.permute.xlu0 1
    %4414 = vperm.xlu0 %4413, %v4068
    %v4415 = vpop.permute.xlu0 %4414
    %4417 = vset.pattern.permute.xlu0 1
    %4418 = vperm.xlu0 %4417, %v4069
    %v4419 = vpop.permute.xlu0 %4418
    %4421 = vset.pattern.permute.xlu0 1
    %4422 = vperm.xlu0 %4421, %v4070
    %v4423 = vpop.permute.xlu0 %4422
    %4425 = vset.pattern.permute.xlu0 1
    %4426 = vperm.xlu0 %4425, %v4071
    %v4427 = vpop.permute.xlu0 %4426
    %4429 = vset.pattern.permute.xlu0 1
    %4430 = vperm.xlu0 %4429, %v4072
    %v4431 = vpop.permute.xlu0 %4430
    %4433 = vset.pattern.permute.xlu0 1
    %4434 = vperm.xlu0 %4433, %v4073
    %v4435 = vpop.permute.xlu0 %4434
    %4437 = vset.pattern.permute.xlu0 1
    %4438 = vperm.xlu0 %4437, %v4074
    %v4439 = vpop.permute.xlu0 %4438
    %4441 = vset.pattern.permute.xlu0 1
    %4442 = vperm.xlu0 %4441, %v4075
    %v4443 = vpop.permute.xlu0 %4442
    %4445 = vset.pattern.permute.xlu0 1
    %4446 = vperm.xlu0 %4445, %v4076
    %v4447 = vpop.permute.xlu0 %4446
    %4449 = vset.pattern.permute.xlu0 1
    %4450 = vperm.xlu0 %4449, %v4077
    %v4451 = vpop.permute.xlu0 %4450
    %4453 = vset.pattern.permute.xlu0 1
    %4454 = vperm.xlu0 %4453, %v4078
    %v4455 = vpop.permute.xlu0 %4454
    %4457 = vset.pattern.permute.xlu0 1
    %4458 = vperm.xlu0 %4457, %v4079
    %v4459 = vpop.permute.xlu0 %4458
    %4461 = vset.pattern.permute.xlu0 1
    %4462 = vperm.xlu0 %4461, %v4080
    %v4463 = vpop.permute.xlu0 %4462
    %4465 = vset.pattern.permute.xlu0 1
    %4466 = vperm.xlu0 %4465, %v4081
    %v4467 = vpop.permute.xlu0 %4466
    %4469 = vset.pattern.permute.xlu0 1
    %4470 = vperm.xlu0 %4469, %v4082
    %v4471 = vpop.permute.xlu0 %4470
    %4473 = vset.pattern.permute.xlu0 1
    %4474 = vperm.xlu0 %4473, %v4083
    %v4475 = vpop.permute.xlu0 %4474
    %4477 = vset.pattern.permute.xlu0 1
    %4478 = vperm.xlu0 %4477, %v4084
    %v4479 = vpop.permute.xlu0 %4478
    %v4481 = vmul.f32 %v4301, %v4339
    %v4482 = vmul.f32 %v4302, %v4343
    %v4483 = vmul.f32 %v4303, %v4347
    %v4484 = vmul.f32 %v4304, %v4351
    %v4485 = vmul.f32 %v4305, %v4355
    %v4486 = vmul.f32 %v4306, %v4359
    %v4487 = vmul.f32 %v4307, %v4363
    %v4488 = vmul.f32 %v4308, %v4367
    %v4489 = vmul.f32 %v4309, %v4371
    %v4490 = vmul.f32 %v4310, %v4375
    %v4491 = vmul.f32 %v4311, %v4379
    %v4492 = vmul.f32 %v4312, %v4383
    %v4493 = vmul.f32 %v4313, %v4387
    %v4494 = vmul.f32 %v4314, %v4391
    %v4495 = vmul.f32 %v4315, %v4395
    %v4496 = vmul.f32 %v4316, %v4399
    %v4497 = vmul.f32 %v4317, %v4403
    %v4498 = vmul.f32 %v4318, %v4407
    %v4499 = vmul.f32 %v4319, %v4411
    %v4500 = vmul.f32 %v4320, %v4415
    %v4501 = vmul.f32 %v4321, %v4419
    %v4502 = vmul.f32 %v4322, %v4423
    %v4503 = vmul.f32 %v4323, %v4427
    %v4504 = vmul.f32 %v4324, %v4431
    %v4505 = vmul.f32 %v4325, %v4435
    %v4506 = vmul.f32 %v4326, %v4439
    %v4507 = vmul.f32 %v4327, %v4443
    %v4508 = vmul.f32 %v4328, %v4447
    %v4509 = vmul.f32 %v4329, %v4451
    %v4510 = vmul.f32 %v4330, %v4455
    %v4511 = vmul.f32 %v4331, %v4459
    %v4512 = vmul.f32 %v4332, %v4463
    %v4513 = vmul.f32 %v4333, %v4467
    %v4514 = vmul.f32 %v4334, %v4471
    %v4515 = vmul.f32 %v4335, %v4475
    %v4516 = vmul.f32 %v4336, %v4479
    %4517 = vset.pattern.permute.xlu0 2
    %4518 = vperm.xlu0 %4517, %v4049
    %v4519 = vpop.permute.xlu0 %4518
    %4521 = vset.pattern.permute.xlu0 2
    %4522 = vperm.xlu0 %4521, %v4050
    %v4523 = vpop.permute.xlu0 %4522
    %4525 = vset.pattern.permute.xlu0 2
    %4526 = vperm.xlu0 %4525, %v4051
    %v4527 = vpop.permute.xlu0 %4526
    %4529 = vset.pattern.permute.xlu0 2
    %4530 = vperm.xlu0 %4529, %v4052
    %v4531 = vpop.permute.xlu0 %4530
    %4533 = vset.pattern.permute.xlu0 2
    %4534 = vperm.xlu0 %4533, %v4053
    %v4535 = vpop.permute.xlu0 %4534
    %4537 = vset.pattern.permute.xlu0 2
    %4538 = vperm.xlu0 %4537, %v4054
    %v4539 = vpop.permute.xlu0 %4538
    %4541 = vset.pattern.permute.xlu0 2
    %4542 = vperm.xlu0 %4541, %v4055
    %v4543 = vpop.permute.xlu0 %4542
    %4545 = vset.pattern.permute.xlu0 2
    %4546 = vperm.xlu0 %4545, %v4056
    %v4547 = vpop.permute.xlu0 %4546
    %4549 = vset.pattern.permute.xlu0 2
    %4550 = vperm.xlu0 %4549, %v4057
    %v4551 = vpop.permute.xlu0 %4550
    %4553 = vset.pattern.permute.xlu0 2
    %4554 = vperm.xlu0 %4553, %v4058
    %v4555 = vpop.permute.xlu0 %4554
    %4557 = vset.pattern.permute.xlu0 2
    %4558 = vperm.xlu0 %4557, %v4059
    %v4559 = vpop.permute.xlu0 %4558
    %4561 = vset.pattern.permute.xlu0 2
    %4562 = vperm.xlu0 %4561, %v4060
    %v4563 = vpop.permute.xlu0 %4562
    %4565 = vset.pattern.permute.xlu0 2
    %4566 = vperm.xlu0 %4565, %v4061
    %v4567 = vpop.permute.xlu0 %4566
    %4569 = vset.pattern.permute.xlu0 2
    %4570 = vperm.xlu0 %4569, %v4062
    %v4571 = vpop.permute.xlu0 %4570
    %4573 = vset.pattern.permute.xlu0 2
    %4574 = vperm.xlu0 %4573, %v4063
    %v4575 = vpop.permute.xlu0 %4574
    %4577 = vset.pattern.permute.xlu0 2
    %4578 = vperm.xlu0 %4577, %v4064
    %v4579 = vpop.permute.xlu0 %4578
    %4581 = vset.pattern.permute.xlu0 2
    %4582 = vperm.xlu0 %4581, %v4065
    %v4583 = vpop.permute.xlu0 %4582
    %4585 = vset.pattern.permute.xlu0 2
    %4586 = vperm.xlu0 %4585, %v4066
    %v4587 = vpop.permute.xlu0 %4586
    %4589 = vset.pattern.permute.xlu0 2
    %4590 = vperm.xlu0 %4589, %v4067
    %v4591 = vpop.permute.xlu0 %4590
    %4593 = vset.pattern.permute.xlu0 2
    %4594 = vperm.xlu0 %4593, %v4068
    %v4595 = vpop.permute.xlu0 %4594
    %4597 = vset.pattern.permute.xlu0 2
    %4598 = vperm.xlu0 %4597, %v4069
    %v4599 = vpop.permute.xlu0 %4598
    %4601 = vset.pattern.permute.xlu0 2
    %4602 = vperm.xlu0 %4601, %v4070
    %v4603 = vpop.permute.xlu0 %4602
    %4605 = vset.pattern.permute.xlu0 2
    %4606 = vperm.xlu0 %4605, %v4071
    %v4607 = vpop.permute.xlu0 %4606
    %4609 = vset.pattern.permute.xlu0 2
    %4610 = vperm.xlu0 %4609, %v4072
    %v4611 = vpop.permute.xlu0 %4610
    %4613 = vset.pattern.permute.xlu0 2
    %4614 = vperm.xlu0 %4613, %v4073
    %v4615 = vpop.permute.xlu0 %4614
    %4617 = vset.pattern.permute.xlu0 2
    %4618 = vperm.xlu0 %4617, %v4074
    %v4619 = vpop.permute.xlu0 %4618
    %4621 = vset.pattern.permute.xlu0 2
    %4622 = vperm.xlu0 %4621, %v4075
    %v4623 = vpop.permute.xlu0 %4622
    %4625 = vset.pattern.permute.xlu0 2
    %4626 = vperm.xlu0 %4625, %v4076
    %v4627 = vpop.permute.xlu0 %4626
    %4629 = vset.pattern.permute.xlu0 2
    %4630 = vperm.xlu0 %4629, %v4077
    %v4631 = vpop.permute.xlu0 %4630
    %4633 = vset.pattern.permute.xlu0 2
    %4634 = vperm.xlu0 %4633, %v4078
    %v4635 = vpop.permute.xlu0 %4634
    %4637 = vset.pattern.permute.xlu0 2
    %4638 = vperm.xlu0 %4637, %v4079
    %v4639 = vpop.permute.xlu0 %4638
    %4641 = vset.pattern.permute.xlu0 2
    %4642 = vperm.xlu0 %4641, %v4080
    %v4643 = vpop.permute.xlu0 %4642
    %4645 = vset.pattern.permute.xlu0 2
    %4646 = vperm.xlu0 %4645, %v4081
    %v4647 = vpop.permute.xlu0 %4646
    %4649 = vset.pattern.permute.xlu0 2
    %4650 = vperm.xlu0 %4649, %v4082
    %v4651 = vpop.permute.xlu0 %4650
    %4653 = vset.pattern.permute.xlu0 2
    %4654 = vperm.xlu0 %4653, %v4083
    %v4655 = vpop.permute.xlu0 %4654
    %4657 = vset.pattern.permute.xlu0 2
    %4658 = vperm.xlu0 %4657, %v4084
    %v4659 = vpop.permute.xlu0 %4658
    %v4661 = vadd.f32 %v4481, %v4519
    %v4662 = vadd.f32 %v4482, %v4523
    %v4663 = vadd.f32 %v4483, %v4527
    %v4664 = vadd.f32 %v4484, %v4531
    %v4665 = vadd.f32 %v4485, %v4535
    %v4666 = vadd.f32 %v4486, %v4539
    %v4667 = vadd.f32 %v4487, %v4543
    %v4668 = vadd.f32 %v4488, %v4547
    %v4669 = vadd.f32 %v4489, %v4551
    %v4670 = vadd.f32 %v4490, %v4555
    %v4671 = vadd.f32 %v4491, %v4559
    %v4672 = vadd.f32 %v4492, %v4563
    %v4673 = vadd.f32 %v4493, %v4567
    %v4674 = vadd.f32 %v4494, %v4571
    %v4675 = vadd.f32 %v4495, %v4575
    %v4676 = vadd.f32 %v4496, %v4579
    %v4677 = vadd.f32 %v4497, %v4583
    %v4678 = vadd.f32 %v4498, %v4587
    %v4679 = vadd.f32 %v4499, %v4591
    %v4680 = vadd.f32 %v4500, %v4595
    %v4681 = vadd.f32 %v4501, %v4599
    %v4682 = vadd.f32 %v4502, %v4603
    %v4683 = vadd.f32 %v4503, %v4607
    %v4684 = vadd.f32 %v4504, %v4611
    %v4685 = vadd.f32 %v4505, %v4615
    %v4686 = vadd.f32 %v4506, %v4619
    %v4687 = vadd.f32 %v4507, %v4623
    %v4688 = vadd.f32 %v4508, %v4627
    %v4689 = vadd.f32 %v4509, %v4631
    %v4690 = vadd.f32 %v4510, %v4635
    %v4691 = vadd.f32 %v4511, %v4639
    %v4692 = vadd.f32 %v4512, %v4643
    %v4693 = vadd.f32 %v4513, %v4647
    %v4694 = vadd.f32 %v4514, %v4651
    %v4695 = vadd.f32 %v4515, %v4655
    %v4696 = vadd.f32 %v4516, %v4659
    %v4697 = vld [vmem:[%s7] sm:$0xff]
    %v4698 = vld [vmem:[%s7 + $0x8] sm:$0xff]
    %v4699 = vld [vmem:[%s7 + $0x10] sm:$0xff]
    %v4700 = vld [vmem:[%s7 + $0x18] sm:$0xff]
    %v4701 = vld [vmem:[%s7 + $0x20] sm:$0x3]
    %v4703 = vsel %vm342, %v4661, 0
    %v4706 = vsel %vm342, %v4662, 0
    %v4709 = vsel %vm342, %v4663, 0
    %v4712 = vsel %vm342, %v4664, 0
    %v4715 = vsel %vm342, %v4665, 0
    %v4718 = vsel %vm342, %v4666, 0
    %v4721 = vsel %vm342, %v4667, 0
    %v4724 = vsel %vm342, %v4668, 0
    %v4727 = vsel %vm342, %v4669, 0
    %v4730 = vsel %vm342, %v4670, 0
    %v4733 = vsel %vm342, %v4671, 0
    %v4736 = vsel %vm342, %v4672, 0
    %v4739 = vsel %vm342, %v4673, 0
    %v4742 = vsel %vm342, %v4674, 0
    %v4745 = vsel %vm342, %v4675, 0
    %v4748 = vsel %vm342, %v4676, 0
    %v4751 = vsel %vm342, %v4677, 0
    %v4754 = vsel %vm342, %v4678, 0
    %v4757 = vsel %vm342, %v4679, 0
    %v4760 = vsel %vm342, %v4680, 0
    %v4763 = vsel %vm342, %v4681, 0
    %v4766 = vsel %vm342, %v4682, 0
    %v4769 = vsel %vm342, %v4683, 0
    %v4772 = vsel %vm342, %v4684, 0
    %v4775 = vsel %vm342, %v4685, 0
    %v4778 = vsel %vm342, %v4686, 0
    %v4781 = vsel %vm342, %v4687, 0
    %v4784 = vsel %vm342, %v4688, 0
    %v4787 = vsel %vm342, %v4689, 0
    %v4790 = vsel %vm342, %v4690, 0
    %v4793 = vsel %vm342, %v4691, 0
    %v4796 = vsel %vm342, %v4692, 0
    %v4799 = vsel %vm342, %v4693, 0
    %v4802 = vsel %vm342, %v4694, 0
    %v4805 = vsel %vm342, %v4695, 0
    %v4808 = vsel %vm342, %v4696, 0
    %v4811 = vsel %vm395, %v4701, 0
    %4813 = vmatprep.subr.mxu0 0.0
    %4814 = vmatpush1.msra.mxu0 %v4697
    %4815 = vmatprep.subr.mxu0 0.0
    %4816 = vmatpush1.msra.mxu0 %v4698
    %4817 = vmatprep.subr.mxu0 0.0
    %4818 = vmatpush1.msra.mxu0 %v4699
    %4819 = vmatprep.subr.mxu0 0.0
    %4820 = vmatpush1.msra.mxu0 %v4700
    %4821 = vmatprep.subr.mxu0 0.0
    %4822 = vmatpush1.msra.mxu0 %v4811
    %4823 = vmatprep.subr.mxu0 0.0
    %4824 = vmatpush1.msra.mxu0 0.0
    %4825 = vmatprep.subr.mxu0 0.0
    %4826 = vmatpush1.msra.mxu0 0.0
    %4827 = vmatprep.subr.mxu0 0.0
    %4828 = vmatpush1.msra.mxu0 0.0
    %4829 = vmatprep.subr.mxu0 0.0
    %4830 = vmatpush1.msra.mxu0 0.0
    %4831 = vmatprep.subr.mxu0 0.0
    %4832 = vmatpush1.msra.mxu0 0.0
    %4833 = vmatprep.subr.mxu0 0.0
    %4834 = vmatpush1.msra.mxu0 0.0
    %4835 = vmatprep.subr.mxu0 0.0
    %4836 = vmatpush1.msra.mxu0 0.0
    %4837 = vmatprep.subr.mxu0 0.0
    %4838 = vmatpush1.msra.mxu0 0.0
    %4839 = vmatprep.subr.mxu0 0.0
    %4840 = vmatpush1.msra.mxu0 0.0
    %4841 = vmatprep.subr.mxu0 0.0
    %4842 = vmatpush1.msra.mxu0 0.0
    %4843 = vmatprep.subr.mxu0 0.0
    %4844 = vmatpush1.msra.mxu0 0.0
    %4845 = vmatprep.subr.mxu0 0.0
    %4846 = vmatpush1.msra.mxu0 0.0
    %4847 = vmatprep.subr.mxu0 0.0
    %4848 = vmatpush1.msra.mxu0 0.0
    %4849 = vmatprep.subr.mxu0 0.0
    %4850 = vmatpush1.msra.mxu0 0.0
    %4851 = vmatprep.subr.mxu0 0.0
    %4852 = vmatpush1.msra.mxu0 0.0
    %4853 = vmatprep.subr.mxu0 0.0
    %4854 = vmatpush1.msra.mxu0 0.0
    %4855 = vmatprep.subr.mxu0 0.0
    %4856 = vmatpush1.msra.mxu0 0.0
    %4857 = vmatprep.subr.mxu0 0.0
    %4858 = vmatpush1.msra.mxu0 0.0
    %4859 = vmatprep.subr.mxu0 0.0
    %4860 = vmatpush1.msra.mxu0 0.0
    %4861 = vmatprep.subr.mxu0 0.0
    %4862 = vmatpush1.msra.mxu0 0.0
    %4863 = vmatprep.subr.mxu0 0.0
    %4864 = vmatpush1.msra.mxu0 0.0
    %4865 = vmatprep.subr.mxu0 0.0
    %4866 = vmatpush1.msra.mxu0 0.0
    %4867 = vmatprep.subr.mxu0 0.0
    %4868 = vmatpush1.msra.mxu0 0.0
    %4869 = vmatprep.subr.mxu0 0.0
    %4870 = vmatpush1.msra.mxu0 0.0
    %4871 = vmatprep.subr.mxu0 0.0
    %4872 = vmatpush1.msra.mxu0 0.0
    %4873 = vmatprep.subr.mxu0 0.0
    %4874 = vmatpush1.msra.mxu0 0.0
    %4875 = vmatprep.subr.mxu0 0.0
    %4876 = vmatpush1.msra.mxu0 0.0
    %4877 = vmatprep.mubr.f32.mxu0 0.0
    %4878 = vmatmul.mubr.f32.gmra.mrb[0].mxu0 %v4703
    %v4879 = vpop.f32.mrb[0].mxu0
    %v4880 = vadd.f32 0.0, %v4879
    %v4881 = vpop.f32.mrb[0].mxu0
    %4882 = vmatprep.mubr.f32.mxu0 0.0
    %4883 = vmatmul.mubr.f32.gmra.mrb[0].mxu0 %v4706
    %v4884 = vpop.f32.mrb[0].mxu0
    %v4885 = vadd.f32 0.0, %v4884
    %v4886 = vpop.f32.mrb[0].mxu0
    %4887 = vmatprep.mubr.f32.mxu0 0.0
    %4888 = vmatmul.mubr.f32.gmra.mrb[0].mxu0 %v4709
    %v4889 = vpop.f32.mrb[0].mxu0
    %v4890 = vadd.f32 0.0, %v4889
    %v4891 = vpop.f32.mrb[0].mxu0
    %4892 = vmatprep.mubr.f32.mxu0 0.0
    %4893 = vmatmul.mubr.f32.gmra.mrb[0].mxu0 %v4712
    %v4894 = vpop.f32.mrb[0].mxu0
    %v4895 = vadd.f32 0.0, %v4894
    %v4896 = vpop.f32.mrb[0].mxu0
    %4897 = vmatprep.mubr.f32.mxu0 0.0
    %4898 = vmatmul.mubr.f32.gmra.mrb[0].mxu0 %v4715
    %v4899 = vpop.f32.mrb[0].mxu0
    %v4900 = vadd.f32 0.0, %v4899
    %v4901 = vpop.f32.mrb[0].mxu0
    %4902 = vmatprep.mubr.f32.mxu0 0.0
    %4903 = vmatmul.mubr.f32.gmra.mrb[0].mxu0 %v4718
    %v4904 = vpop.f32.mrb[0].mxu0
    %v4905 = vadd.f32 0.0, %v4904
    %v4906 = vpop.f32.mrb[0].mxu0
    %4907 = vmatprep.mubr.f32.mxu0 0.0
    %4908 = vmatmul.mubr.f32.gmra.mrb[0].mxu0 %v4721
    %v4909 = vpop.f32.mrb[0].mxu0
    %v4910 = vadd.f32 0.0, %v4909
    %v4911 = vpop.f32.mrb[0].mxu0
    %4912 = vmatprep.mubr.f32.mxu0 0.0
    %4913 = vmatmul.mubr.f32.gmra.mrb[0].mxu0 %v4724
    %v4914 = vpop.f32.mrb[0].mxu0
    %v4915 = vadd.f32 0.0, %v4914
    %v4916 = vpop.f32.mrb[0].mxu0
    %4917 = vmatprep.mubr.f32.mxu0 0.0
    %4918 = vmatmul.mubr.f32.gmra.mrb[0].mxu0 %v4727
    %v4919 = vpop.f32.mrb[0].mxu0
    %v4920 = vadd.f32 0.0, %v4919
    %v4921 = vpop.f32.mrb[0].mxu0
    %4922 = vmatprep.mubr.f32.mxu0 0.0
    %4923 = vmatmul.mubr.f32.gmra.mrb[0].mxu0 %v4730
    %v4924 = vpop.f32.mrb[0].mxu0
    %v4925 = vadd.f32 0.0, %v4924
    %v4926 = vpop.f32.mrb[0].mxu0
    %4927 = vmatprep.mubr.f32.mxu0 0.0
    %4928 = vmatmul.mubr.f32.gmra.mrb[0].mxu0 %v4733
    %v4929 = vpop.f32.mrb[0].mxu0
    %v4930 = vadd.f32 0.0, %v4929
    %v4931 = vpop.f32.mrb[0].mxu0
    %4932 = vmatprep.mubr.f32.mxu0 0.0
    %4933 = vmatmul.mubr.f32.gmra.mrb[0].mxu0 %v4736
    %v4934 = vpop.f32.mrb[0].mxu0
    %v4935 = vadd.f32 0.0, %v4934
    %v4936 = vpop.f32.mrb[0].mxu0
    %4937 = vmatprep.mubr.f32.mxu0 0.0
    %4938 = vmatmul.mubr.f32.gmra.mrb[0].mxu0 %v4739
    %v4939 = vpop.f32.mrb[0].mxu0
    %v4940 = vadd.f32 0.0, %v4939
    %v4941 = vpop.f32.mrb[0].mxu0
    %4942 = vmatprep.mubr.f32.mxu0 0.0
    %4943 = vmatmul.mubr.f32.gmra.mrb[0].mxu0 %v4742
    %v4944 = vpop.f32.mrb[0].mxu0
    %v4945 = vadd.f32 0.0, %v4944
    %v4946 = vpop.f32.mrb[0].mxu0
    %4947 = vmatprep.mubr.f32.mxu0 0.0
    %4948 = vmatmul.mubr.f32.gmra.mrb[0].mxu0 %v4745
    %v4949 = vpop.f32.mrb[0].mxu0
    %v4950 = vadd.f32 0.0, %v4949
    %v4951 = vpop.f32.mrb[0].mxu0
    %4952 = vmatprep.mubr.f32.mxu0 0.0
    %4953 = vmatmul.mubr.f32.gmra.mrb[0].mxu0 %v4748
    %v4954 = vpop.f32.mrb[0].mxu0
    %v4955 = vadd.f32 0.0, %v4954
    %v4956 = vpop.f32.mrb[0].mxu0
    %4957 = vmatprep.mubr.f32.mxu0 0.0
    %4958 = vmatmul.mubr.f32.gmra.mrb[0].mxu0 %v4751
    %v4959 = vpop.f32.mrb[0].mxu0
    %v4960 = vadd.f32 0.0, %v4959
    %v4961 = vpop.f32.mrb[0].mxu0
    %4962 = vmatprep.mubr.f32.mxu0 0.0
    %4963 = vmatmul.mubr.f32.gmra.mrb[0].mxu0 %v4754
    %v4964 = vpop.f32.mrb[0].mxu0
    %v4965 = vadd.f32 0.0, %v4964
    %v4966 = vpop.f32.mrb[0].mxu0
    %4967 = vmatprep.mubr.f32.mxu0 0.0
    %4968 = vmatmul.mubr.f32.gmra.mrb[0].mxu0 %v4757
    %v4969 = vpop.f32.mrb[0].mxu0
    %v4970 = vadd.f32 0.0, %v4969
    %v4971 = vpop.f32.mrb[0].mxu0
    %4972 = vmatprep.mubr.f32.mxu0 0.0
    %4973 = vmatmul.mubr.f32.gmra.mrb[0].mxu0 %v4760
    %v4974 = vpop.f32.mrb[0].mxu0
    %v4975 = vadd.f32 0.0, %v4974
    %v4976 = vpop.f32.mrb[0].mxu0
    %4977 = vmatprep.mubr.f32.mxu0 0.0
    %4978 = vmatmul.mubr.f32.gmra.mrb[0].mxu0 %v4763
    %v4979 = vpop.f32.mrb[0].mxu0
    %v4980 = vadd.f32 0.0, %v4979
    %v4981 = vpop.f32.mrb[0].mxu0
    %4982 = vmatprep.mubr.f32.mxu0 0.0
    %4983 = vmatmul.mubr.f32.gmra.mrb[0].mxu0 %v4766
    %v4984 = vpop.f32.mrb[0].mxu0
    %v4985 = vadd.f32 0.0, %v4984
    %v4986 = vpop.f32.mrb[0].mxu0
    %4987 = vmatprep.mubr.f32.mxu0 0.0
    %4988 = vmatmul.mubr.f32.gmra.mrb[0].mxu0 %v4769
    %v4989 = vpop.f32.mrb[0].mxu0
    %v4990 = vadd.f32 0.0, %v4989
    %v4991 = vpop.f32.mrb[0].mxu0
    %4992 = vmatprep.mubr.f32.mxu0 0.0
    %4993 = vmatmul.mubr.f32.gmra.mrb[0].mxu0 %v4772
    %v4994 = vpop.f32.mrb[0].mxu0
    %v4995 = vadd.f32 0.0, %v4994
    %v4996 = vpop.f32.mrb[0].mxu0
    %4997 = vmatprep.mubr.f32.mxu0 0.0
    %4998 = vmatmul.mubr.f32.gmra.mrb[0].mxu0 %v4775
    %v4999 = vpop.f32.mrb[0].mxu0
    %v5000 = vadd.f32 0.0, %v4999
    %v5001 = vpop.f32.mrb[0].mxu0
    %5002 = vmatprep.mubr.f32.mxu0 0.0
    %5003 = vmatmul.mubr.f32.gmra.mrb[0].mxu0 %v4778
    %v5004 = vpop.f32.mrb[0].mxu0
    %v5005 = vadd.f32 0.0, %v5004
    %v5006 = vpop.f32.mrb[0].mxu0
    %5007 = vmatprep.mubr.f32.mxu0 0.0
    %5008 = vmatmul.mubr.f32.gmra.mrb[0].mxu0 %v4781
    %v5009 = vpop.f32.mrb[0].mxu0
    %v5010 = vadd.f32 0.0, %v5009
    %v5011 = vpop.f32.mrb[0].mxu0
    %5012 = vmatprep.mubr.f32.mxu0 0.0
    %5013 = vmatmul.mubr.f32.gmra.mrb[0].mxu0 %v4784
    %v5014 = vpop.f32.mrb[0].mxu0
    %v5015 = vadd.f32 0.0, %v5014
    %v5016 = vpop.f32.mrb[0].mxu0
    %5017 = vmatprep.mubr.f32.mxu0 0.0
    %5018 = vmatmul.mubr.f32.gmra.mrb[0].mxu0 %v4787
    %v5019 = vpop.f32.mrb[0].mxu0
    %v5020 = vadd.f32 0.0, %v5019
    %v5021 = vpop.f32.mrb[0].mxu0
    %5022 = vmatprep.mubr.f32.mxu0 0.0
    %5023 = vmatmul.mubr.f32.gmra.mrb[0].mxu0 %v4790
    %v5024 = vpop.f32.mrb[0].mxu0
    %v5025 = vadd.f32 0.0, %v5024
    %v5026 = vpop.f32.mrb[0].mxu0
    %5027 = vmatprep.mubr.f32.mxu0 0.0
    %5028 = vmatmul.mubr.f32.gmra.mrb[0].mxu0 %v4793
    %v5029 = vpop.f32.mrb[0].mxu0
    %v5030 = vadd.f32 0.0, %v5029
    %v5031 = vpop.f32.mrb[0].mxu0
    %5032 = vmatprep.mubr.f32.mxu0 0.0
    %5033 = vmatmul.mubr.f32.gmra.mrb[0].mxu0 %v4796
    %v5034 = vpop.f32.mrb[0].mxu0
    %v5035 = vadd.f32 0.0, %v5034
    %v5036 = vpop.f32.mrb[0].mxu0
    %5037 = vmatprep.mubr.f32.mxu0 0.0
    %5038 = vmatmul.mubr.f32.gmra.mrb[0].mxu0 %v4799
    %v5039 = vpop.f32.mrb[0].mxu0
    %v5040 = vadd.f32 0.0, %v5039
    %v5041 = vpop.f32.mrb[0].mxu0
    %5042 = vmatprep.mubr.f32.mxu0 0.0
    %5043 = vmatmul.mubr.f32.gmra.mrb[0].mxu0 %v4802
    %v5044 = vpop.f32.mrb[0].mxu0
    %v5045 = vadd.f32 0.0, %v5044
    %v5046 = vpop.f32.mrb[0].mxu0
    %5047 = vmatprep.mubr.f32.mxu0 0.0
    %5048 = vmatmul.mubr.f32.gmra.mrb[0].mxu0 %v4805
    %v5049 = vpop.f32.mrb[0].mxu0
    %v5050 = vadd.f32 0.0, %v5049
    %v5051 = vpop.f32.mrb[0].mxu0
    %5052 = vmatprep.mubr.f32.mxu0 0.0
    %5053 = vmatmul.mubr.f32.gmra.mrb[0].mxu0 %v4808
    %v5054 = vpop.f32.mrb[0].mxu0
    %v5055 = vadd.f32 0.0, %v5054
    %v5056 = vpop.f32.mrb[0].mxu0
    %5057 = vdwg.mxu0
    %v5058 = vld [vmem:[%s8] sm:$0xff]
    %v5059 = vld [vmem:[%s8 + $0x8] sm:$0xff]
    %v5060 = vld [vmem:[%s8 + $0x10] sm:$0xff]
    %v5061 = vld [vmem:[%s8 + $0x48] sm:$0xff]
    %v5062 = vld [vmem:[%s8 + $0x50] sm:$0xff]
    %v5063 = vld [vmem:[%s8 + $0x58] sm:$0xff]
    %v5064 = vld [vmem:[%s8 + $0x90] sm:$0xff]
    %v5065 = vld [vmem:[%s8 + $0x98] sm:$0xff]
    %v5066 = vld [vmem:[%s8 + $0xa0] sm:$0xff]
    %v5067 = vld [vmem:[%s8 + $0xd8] sm:$0xff]
    %v5068 = vld [vmem:[%s8 + $0xe0] sm:$0xff]
    %v5069 = vld [vmem:[%s8 + $0xe8] sm:$0xff]
    %v5070 = vld [vmem:[%s8 + $0x120] sm:$0xff]
    %v5071 = vld [vmem:[%s8 + $0x128] sm:$0xff]
    %v5072 = vld [vmem:[%s8 + $0x130] sm:$0xff]
    %v5073 = vld [vmem:[%s8 + $0x168] sm:$0xff]
    %v5074 = vld [vmem:[%s8 + $0x170] sm:$0xff]
    %v5075 = vld [vmem:[%s8 + $0x178] sm:$0xff]
    %v5076 = vld [vmem:[%s8 + $0x1b0] sm:$0xff]
    %v5077 = vld [vmem:[%s8 + $0x1b8] sm:$0xff]
    %v5078 = vld [vmem:[%s8 + $0x1c0] sm:$0xff]
    %v5079 = vld [vmem:[%s8 + $0x1f8] sm:$0xff]
    %v5080 = vld [vmem:[%s8 + $0x200] sm:$0xff]
    %v5081 = vld [vmem:[%s8 + $0x208] sm:$0xff]
    %v5082 = vld [vmem:[%s8 + $0x18] sm:$0xff]
    %v5083 = vld [vmem:[%s8 + $0x20] sm:$0xff]
    %v5084 = vld [vmem:[%s8 + $0x60] sm:$0xff]
    %v5085 = vld [vmem:[%s8 + $0x68] sm:$0xff]
    %v5086 = vld [vmem:[%s8 + $0xa8] sm:$0xff]
    %v5087 = vld [vmem:[%s8 + $0xb0] sm:$0xff]
    %v5088 = vld [vmem:[%s8 + $0xf0] sm:$0xff]
    %v5089 = vld [vmem:[%s8 + $0xf8] sm:$0xff]
    %v5090 = vld [vmem:[%s8 + $0x138] sm:$0xff]
    %v5091 = vld [vmem:[%s8 + $0x140] sm:$0xff]
    %v5092 = vld [vmem:[%s8 + $0x180] sm:$0xff]
    %v5093 = vld [vmem:[%s8 + $0x188] sm:$0xff]
    %v5094 = vld [vmem:[%s8 + $0x1c8] sm:$0xff]
    %v5095 = vld [vmem:[%s8 + $0x1d0] sm:$0xff]
    %v5096 = vld [vmem:[%s8 + $0x210] sm:$0xff]
    %v5097 = vld [vmem:[%s8 + $0x218] sm:$0xff]
    %5122 = vrot.lane.b32.xlu0 %v5060, 96
    %v5123 = vpop.permute.xlu0 %5122
    %5124 = vrot.lane.b32.xlu0 %v5082, 96
    %v5125 = vpop.permute.xlu0 %5124
    %5126 = vrot.lane.b32.xlu0 %v5083, 96
    %v5127 = vpop.permute.xlu0 %5126
    %5128 = vrot.lane.b32.xlu0 %v5063, 96
    %v5129 = vpop.permute.xlu0 %5128
    %5130 = vrot.lane.b32.xlu0 %v5084, 96
    %v5131 = vpop.permute.xlu0 %5130
    %5132 = vrot.lane.b32.xlu0 %v5085, 96
    %v5133 = vpop.permute.xlu0 %5132
    %5134 = vrot.lane.b32.xlu0 %v5066, 96
    %v5135 = vpop.permute.xlu0 %5134
    %5136 = vrot.lane.b32.xlu0 %v5086, 96
    %v5137 = vpop.permute.xlu0 %5136
    %5138 = vrot.lane.b32.xlu0 %v5087, 96
    %v5139 = vpop.permute.xlu0 %5138
    %5140 = vrot.lane.b32.xlu0 %v5069, 96
    %v5141 = vpop.permute.xlu0 %5140
    %5142 = vrot.lane.b32.xlu0 %v5088, 96
    %v5143 = vpop.permute.xlu0 %5142
    %5144 = vrot.lane.b32.xlu0 %v5089, 96
    %v5145 = vpop.permute.xlu0 %5144
    %5146 = vrot.lane.b32.xlu0 %v5072, 96
    %v5147 = vpop.permute.xlu0 %5146
    %5148 = vrot.lane.b32.xlu0 %v5090, 96
    %v5149 = vpop.permute.xlu0 %5148
    %5150 = vrot.lane.b32.xlu0 %v5091, 96
    %v5151 = vpop.permute.xlu0 %5150
    %5152 = vrot.lane.b32.xlu0 %v5075, 96
    %v5153 = vpop.permute.xlu0 %5152
    %5154 = vrot.lane.b32.xlu0 %v5092, 96
    %v5155 = vpop.permute.xlu0 %5154
    %5156 = vrot.lane.b32.xlu0 %v5093, 96
    %v5157 = vpop.permute.xlu0 %5156
    %5158 = vrot.lane.b32.xlu0 %v5078, 96
    %v5159 = vpop.permute.xlu0 %5158
    %5160 = vrot.lane.b32.xlu0 %v5094, 96
    %v5161 = vpop.permute.xlu0 %5160
    %5162 = vrot.lane.b32.xlu0 %v5095, 96
    %v5163 = vpop.permute.xlu0 %5162
    %5164 = vrot.lane.b32.xlu0 %v5081, 96
    %v5165 = vpop.permute.xlu0 %5164
    %5166 = vrot.lane.b32.xlu0 %v5096, 96
    %v5167 = vpop.permute.xlu0 %5166
    %5168 = vrot.lane.b32.xlu0 %v5097, 96
    %v5169 = vpop.permute.xlu0 %5168
    %vm5170 = vcmask 785408
    %v5171 = vsel %vm5170, %v5123, %v5125
    %v5172 = vsel %vm5170, %v5125, %v5127
    %v5173 = vsel %vm5170, %v5129, %v5131
    %v5174 = vsel %vm5170, %v5131, %v5133
    %v5175 = vsel %vm5170, %v5135, %v5137
    %v5176 = vsel %vm5170, %v5137, %v5139
    %v5177 = vsel %vm5170, %v5141, %v5143
    %v5178 = vsel %vm5170, %v5143, %v5145
    %v5179 = vsel %vm5170, %v5147, %v5149
    %v5180 = vsel %vm5170, %v5149, %v5151
    %v5181 = vsel %vm5170, %v5153, %v5155
    %v5182 = vsel %vm5170, %v5155, %v5157
    %v5183 = vsel %vm5170, %v5159, %v5161
    %v5184 = vsel %vm5170, %v5161, %v5163
    %v5185 = vsel %vm5170, %v5165, %v5167
    %v5186 = vsel %vm5170, %v5167, %v5169
    %5239 = vrot.lane.b32.xlu0 %v4880, 111
    %v5240 = vpop.permute.xlu0 %5239
    %5241 = vrot.lane.b32.xlu0 %v4885, 111
    %v5242 = vpop.permute.xlu0 %5241
    %5243 = vrot.lane.b32.xlu0 %v4890, 111
    %v5244 = vpop.permute.xlu0 %5243
    %5245 = vrot.lane.b32.xlu0 %v4895, 111
    %v5246 = vpop.permute.xlu0 %5245
    %5247 = vrot.lane.b32.xlu0 %v4900, 111
    %v5248 = vpop.permute.xlu0 %5247
    %5249 = vrot.lane.b32.xlu0 %v4905, 111
    %v5250 = vpop.permute.xlu0 %5249
    %5251 = vrot.lane.b32.xlu0 %v4910, 111
    %v5252 = vpop.permute.xlu0 %5251
    %5253 = vrot.lane.b32.xlu0 %v4915, 111
    %v5254 = vpop.permute.xlu0 %5253
    %5255 = vrot.lane.b32.xlu0 %v4920, 111
    %v5256 = vpop.permute.xlu0 %5255
    %5257 = vrot.lane.b32.xlu0 %v4925, 111
    %v5258 = vpop.permute.xlu0 %5257
    %5259 = vrot.lane.b32.xlu0 %v4930, 111
    %v5260 = vpop.permute.xlu0 %5259
    %5261 = vrot.lane.b32.xlu0 %v4935, 111
    %v5262 = vpop.permute.xlu0 %5261
    %5263 = vrot.lane.b32.xlu0 %v4940, 111
    %v5264 = vpop.permute.xlu0 %5263
    %5265 = vrot.lane.b32.xlu0 %v4945, 111
    %v5266 = vpop.permute.xlu0 %5265
    %5267 = vrot.lane.b32.xlu0 %v4950, 111
    %v5268 = vpop.permute.xlu0 %5267
    %5269 = vrot.lane.b32.xlu0 %v4955, 111
    %v5270 = vpop.permute.xlu0 %5269
    %5271 = vrot.lane.b32.xlu0 %v4960, 111
    %v5272 = vpop.permute.xlu0 %5271
    %5273 = vrot.lane.b32.xlu0 %v4965, 111
    %v5274 = vpop.permute.xlu0 %5273
    %5275 = vrot.lane.b32.xlu0 %v4970, 111
    %v5276 = vpop.permute.xlu0 %5275
    %5277 = vrot.lane.b32.xlu0 %v4975, 111
    %v5278 = vpop.permute.xlu0 %5277
    %5279 = vrot.lane.b32.xlu0 %v4980, 111
    %v5280 = vpop.permute.xlu0 %5279
    %5281 = vrot.lane.b32.xlu0 %v4985, 111
    %v5282 = vpop.permute.xlu0 %5281
    %5283 = vrot.lane.b32.xlu0 %v4990, 111
    %v5284 = vpop.permute.xlu0 %5283
    %5285 = vrot.lane.b32.xlu0 %v4995, 111
    %v5286 = vpop.permute.xlu0 %5285
    %5287 = vrot.lane.b32.xlu0 %v5000, 111
    %v5288 = vpop.permute.xlu0 %5287
    %5289 = vrot.lane.b32.xlu0 %v5005, 111
    %v5290 = vpop.permute.xlu0 %5289
    %5291 = vrot.lane.b32.xlu0 %v5010, 111
    %v5292 = vpop.permute.xlu0 %5291
    %5293 = vrot.lane.b32.xlu0 %v5015, 111
    %v5294 = vpop.permute.xlu0 %5293
    %5295 = vrot.lane.b32.xlu0 %v5020, 111
    %v5296 = vpop.permute.xlu0 %5295
    %5297 = vrot.lane.b32.xlu0 %v5025, 111
    %v5298 = vpop.permute.xlu0 %5297
    %5299 = vrot.lane.b32.xlu0 %v5030, 111
    %v5300 = vpop.permute.xlu0 %5299
    %5301 = vrot.lane.b32.xlu0 %v5035, 111
    %v5302 = vpop.permute.xlu0 %5301
    %5303 = vrot.lane.b32.xlu0 %v5040, 111
    %v5304 = vpop.permute.xlu0 %5303
    %5305 = vrot.lane.b32.xlu0 %v5045, 111
    %v5306 = vpop.permute.xlu0 %5305
    %5307 = vrot.lane.b32.xlu0 %v5050, 111
    %v5308 = vpop.permute.xlu0 %5307
    %5309 = vrot.lane.b32.xlu0 %v5055, 111
    %v5310 = vpop.permute.xlu0 %5309
    %vm5347 = vcmask 261120
    %v5348 = vsel %vm5347, %v5127, 0
    %v5350 = vsel %vm5347, %v5133, 0
    %v5352 = vsel %vm5347, %v5139, 0
    %v5354 = vsel %vm5347, %v5145, 0
    %v5356 = vsel %vm5347, %v5151, 0
    %v5358 = vsel %vm5347, %v5157, 0
    %v5360 = vsel %vm5347, %v5163, 0
    %v5362 = vsel %vm5347, %v5169, 0
    %5364 = vmatprep.subr.mxu0 0.0
    %5365 = vmatpush1.msra.mxu0 %v5240
    %5366 = vmatprep.subr.mxu0 0.0
    %5367 = vmatpush1.msra.mxu0 %v5242
    %5368 = vmatprep.subr.mxu0 0.0
    %5369 = vmatpush1.msra.mxu0 %v5244
    %5370 = vmatprep.subr.mxu0 0.0
    %5371 = vmatpush1.msra.mxu0 %v5246
    %5372 = vmatprep.subr.mxu0 0.0
    %5373 = vmatpush1.msra.mxu0 %v5248
    %5374 = vmatprep.subr.mxu0 0.0
    %5375 = vmatpush1.msra.mxu0 %v5250
    %5376 = vmatprep.subr.mxu0 0.0
    %5377 = vmatpush1.msra.mxu0 %v5252
    %5378 = vmatprep.subr.mxu0 0.0
    %5379 = vmatpush1.msra.mxu0 %v5254
    %5380 = vmatprep.subr.mxu0 0.0
    %5381 = vmatpush1.msra.mxu0 %v5256
    %5382 = vmatprep.subr.mxu0 0.0
    %5383 = vmatpush1.msra.mxu0 %v5258
    %5384 = vmatprep.subr.mxu0 0.0
    %5385 = vmatpush1.msra.mxu0 %v5260
    %5386 = vmatprep.subr.mxu0 0.0
    %5387 = vmatpush1.msra.mxu0 %v5262
    %5388 = vmatprep.subr.mxu0 0.0
    %5389 = vmatpush1.msra.mxu0 %v5264
    %5390 = vmatprep.subr.mxu0 0.0
    %5391 = vmatpush1.msra.mxu0 %v5266
    %5392 = vmatprep.subr.mxu0 0.0
    %5393 = vmatpush1.msra.mxu0 %v5268
    %5394 = vmatprep.subr.mxu0 0.0
    %5395 = vmatpush1.msra.mxu0 %v5270
    %5396 = vmatprep.subr.mxu0 0.0
    %5397 = vmatpush1.msra.mxu0 %v5272
    %5398 = vmatprep.subr.mxu0 0.0
    %5399 = vmatpush1.msra.mxu0 %v5274
    %5400 = vmatprep.subr.mxu0 0.0
    %5401 = vmatpush1.msra.mxu0 %v5276
    %5402 = vmatprep.subr.mxu0 0.0
    %5403 = vmatpush1.msra.mxu0 %v5278
    %5404 = vmatprep.subr.mxu0 0.0
    %5405 = vmatpush1.msra.mxu0 %v5280
    %5406 = vmatprep.subr.mxu0 0.0
    %5407 = vmatpush1.msra.mxu0 %v5282
    %5408 = vmatprep.subr.mxu0 0.0
    %5409 = vmatpush1.msra.mxu0 %v5284
    %5410 = vmatprep.subr.mxu0 0.0
    %5411 = vmatpush1.msra.mxu0 %v5286
    %5412 = vmatprep.subr.mxu0 0.0
    %5413 = vmatpush1.msra.mxu0 %v5288
    %5414 = vmatprep.subr.mxu0 0.0
    %5415 = vmatpush1.msra.mxu0 %v5290
    %5416 = vmatprep.subr.mxu0 0.0
    %5417 = vmatpush1.msra.mxu0 %v5292
    %5418 = vmatprep.subr.mxu0 0.0
    %5419 = vmatpush1.msra.mxu0 %v5294
    %5420 = vmatprep.subr.mxu0 0.0
    %5421 = vmatpush1.msra.mxu0 %v5296
    %5422 = vmatprep.subr.mxu0 0.0
    %5423 = vmatpush1.msra.mxu0 %v5298
    %5424 = vmatprep.subr.mxu0 0.0
    %5425 = vmatpush1.msra.mxu0 %v5300
    %5426 = vmatprep.subr.mxu0 0.0
    %5427 = vmatpush1.msra.mxu0 %v5302
    %5428 = vmatprep.mubr.f32.mxu0 %v5172
    %5429 = vmatmul.mubr.f32.gmra.mrb[0].mxu0 %v5171
    %v5430 = vpop.f32.mrb[0].mxu0
    %v5431 = vadd.f32 0.0, %v5430
    %v5432 = vpop.f32.mrb[0].mxu0
    %5433 = vmatprep.mubr.f32.mxu0 %v5174
    %5434 = vmatmul.mubr.f32.gmra.mrb[0].mxu0 %v5173
    %v5435 = vpop.f32.mrb[0].mxu0
    %v5436 = vadd.f32 0.0, %v5435
    %v5437 = vpop.f32.mrb[0].mxu0
    %5438 = vmatprep.mubr.f32.mxu0 %v5176
    %5439 = vmatmul.mubr.f32.gmra.mrb[0].mxu0 %v5175
    %v5440 = vpop.f32.mrb[0].mxu0
    %v5441 = vadd.f32 0.0, %v5440
    %v5442 = vpop.f32.mrb[0].mxu0
    %5443 = vmatprep.mubr.f32.mxu0 %v5178
    %5444 = vmatmul.mubr.f32.gmra.mrb[0].mxu0 %v5177
    %v5445 = vpop.f32.mrb[0].mxu0
    %v5446 = vadd.f32 0.0, %v5445
    %v5447 = vpop.f32.mrb[0].mxu0
    %5448 = vmatprep.mubr.f32.mxu0 %v5180
    %5449 = vmatmul.mubr.f32.gmra.mrb[0].mxu0 %v5179
    %v5450 = vpop.f32.mrb[0].mxu0
    %v5451 = vadd.f32 0.0, %v5450
    %v5452 = vpop.f32.mrb[0].mxu0
    %5453 = vmatprep.mubr.f32.mxu0 %v5182
    %5454 = vmatmul.mubr.f32.gmra.mrb[0].mxu0 %v5181
    %v5455 = vpop.f32.mrb[0].mxu0
    %v5456 = vadd.f32 0.0, %v5455
    %v5457 = vpop.f32.mrb[0].mxu0
    %5458 = vmatprep.mubr.f32.mxu0 %v5184
    %5459 = vmatmul.mubr.f32.gmra.mrb[0].mxu0 %v5183
    %v5460 = vpop.f32.mrb[0].mxu0
    %v5461 = vadd.f32 0.0, %v5460
    %v5462 = vpop.f32.mrb[0].mxu0
    %5463 = vmatprep.mubr.f32.mxu0 %v5186
    %5464 = vmatmul.mubr.f32.gmra.mrb[0].mxu0 %v5185
    %v5465 = vpop.f32.mrb[0].mxu0
    %v5466 = vadd.f32 0.0, %v5465
    %v5467 = vpop.f32.mrb[0].mxu0
    %5468 = vdwg.mxu0
    %5469 = vmatprep.subr.mxu0 0.0
    %5470 = vmatpush1.msra.mxu0 %v5304
    %5471 = vmatprep.subr.mxu0 0.0
    %5472 = vmatpush1.msra.mxu0 %v5306
    %5473 = vmatprep.subr.mxu0 0.0
    %5474 = vmatpush1.msra.mxu0 %v5308
    %5475 = vmatprep.subr.mxu0 0.0
    %5476 = vmatpush1.msra.mxu0 %v5310
    %5477 = vmatprep.subr.mxu0 0.0
    %5478 = vmatpush1.msra.mxu0 0.0
    %5479 = vmatprep.subr.mxu0 0.0
    %5480 = vmatpush1.msra.mxu0 0.0
    %5481 = vmatprep.subr.mxu0 0.0
    %5482 = vmatpush1.msra.mxu0 0.0
    %5483 = vmatprep.subr.mxu0 0.0
    %5484 = vmatpush1.msra.mxu0 0.0
    %5485 = vmatprep.subr.mxu0 0.0
    %5486 = vmatpush1.msra.mxu0 0.0
    %5487 = vmatprep.subr.mxu0 0.0
    %5488 = vmatpush1.msra.mxu0 0.0
    %5489 = vmatprep.subr.mxu0 0.0
    %5490 = vmatpush1.msra.mxu0 0.0
    %5491 = vmatprep.subr.mxu0 0.0
    %5492 = vmatpush1.msra.mxu0 0.0
    %5493 = vmatprep.subr.mxu0 0.0
    %5494 = vmatpush1.msra.mxu0 0.0
    %5495 = vmatprep.subr.mxu0 0.0
    %5496 = vmatpush1.msra.mxu0 0.0
    %5497 = vmatprep.subr.mxu0 0.0
    %5498 = vmatpush1.msra.mxu0 0.0
    %5499 = vmatprep.subr.mxu0 0.0
    %5500 = vmatpush1.msra.mxu0 0.0
    %5501 = vmatprep.subr.mxu0 0.0
    %5502 = vmatpush1.msra.mxu0 0.0
    %5503 = vmatprep.subr.mxu0 0.0
    %5504 = vmatpush1.msra.mxu0 0.0
    %5505 = vmatprep.subr.mxu0 0.0
    %5506 = vmatpush1.msra.mxu0 0.0
    %5507 = vmatprep.subr.mxu0 0.0
    %5508 = vmatpush1.msra.mxu0 0.0
    %5509 = vmatprep.subr.mxu0 0.0
    %5510 = vmatpush1.msra.mxu0 0.0
    %5511 = vmatprep.subr.mxu0 0.0
    %5512 = vmatpush1.msra.mxu0 0.0
    %5513 = vmatprep.subr.mxu0 0.0
    %5514 = vmatpush1.msra.mxu0 0.0
    %5515 = vmatprep.subr.mxu0 0.0
    %5516 = vmatpush1.msra.mxu0 0.0
    %5517 = vmatprep.subr.mxu0 0.0
    %5518 = vmatpush1.msra.mxu0 0.0
    %5519 = vmatprep.subr.mxu0 0.0
    %5520 = vmatpush1.msra.mxu0 0.0
    %5521 = vmatprep.subr.mxu0 0.0
    %5522 = vmatpush1.msra.mxu0 0.0
    %5523 = vmatprep.subr.mxu0 0.0
    %5524 = vmatpush1.msra.mxu0 0.0
    %5525 = vmatprep.subr.mxu0 0.0
    %5526 = vmatpush1.msra.mxu0 0.0
    %5527 = vmatprep.subr.mxu0 0.0
    %5528 = vmatpush1.msra.mxu0 0.0
    %5529 = vmatprep.subr.mxu0 0.0
    %5530 = vmatpush1.msra.mxu0 0.0
    %5531 = vmatprep.subr.mxu0 0.0
    %5532 = vmatpush1.msra.mxu0 0.0
    %5533 = vmatprep.mubr.f32.mxu0 0.0
    %5534 = vmatmul.mubr.f32.gmra.mrb[0].mxu0 %v5348
    %v5535 = vpop.f32.mrb[0].mxu0
    %v5536 = vadd.f32 %v5431, %v5535
    %v5537 = vpop.f32.mrb[0].mxu0
    %5538 = vmatprep.mubr.f32.mxu0 0.0
    %5539 = vmatmul.mubr.f32.gmra.mrb[0].mxu0 %v5350
    %v5540 = vpop.f32.mrb[0].mxu0
    %v5541 = vadd.f32 %v5436, %v5540
    %v5542 = vpop.f32.mrb[0].mxu0
    %5543 = vmatprep.mubr.f32.mxu0 0.0
    %5544 = vmatmul.mubr.f32.gmra.mrb[0].mxu0 %v5352
    %v5545 = vpop.f32.mrb[0].mxu0
    %v5546 = vadd.f32 %v5441, %v5545
    %v5547 = vpop.f32.mrb[0].mxu0
    %5548 = vmatprep.mubr.f32.mxu0 0.0
    %5549 = vmatmul.mubr.f32.gmra.mrb[0].mxu0 %v5354
    %v5550 = vpop.f32.mrb[0].mxu0
    %v5551 = vadd.f32 %v5446, %v5550
    %v5552 = vpop.f32.mrb[0].mxu0
    %5553 = vmatprep.mubr.f32.mxu0 0.0
    %5554 = vmatmul.mubr.f32.gmra.mrb[0].mxu0 %v5356
    %v5555 = vpop.f32.mrb[0].mxu0
    %v5556 = vadd.f32 %v5451, %v5555
    %v5557 = vpop.f32.mrb[0].mxu0
    %5558 = vmatprep.mubr.f32.mxu0 0.0
    %5559 = vmatmul.mubr.f32.gmra.mrb[0].mxu0 %v5358
    %v5560 = vpop.f32.mrb[0].mxu0
    %v5561 = vadd.f32 %v5456, %v5560
    %v5562 = vpop.f32.mrb[0].mxu0
    %5563 = vmatprep.mubr.f32.mxu0 0.0
    %5564 = vmatmul.mubr.f32.gmra.mrb[0].mxu0 %v5360
    %v5565 = vpop.f32.mrb[0].mxu0
    %v5566 = vadd.f32 %v5461, %v5565
    %v5567 = vpop.f32.mrb[0].mxu0
    %5568 = vmatprep.mubr.f32.mxu0 0.0
    %5569 = vmatmul.mubr.f32.gmra.mrb[0].mxu0 %v5362
    %v5570 = vpop.f32.mrb[0].mxu0
    %v5571 = vadd.f32 %v5466, %v5570
    %v5572 = vpop.f32.mrb[0].mxu0
    %5573 = vdwg.mxu0
    %v5574 = vsel %vm5347, %v5060, 0
    %v5576 = vsel %vm5347, %v5063, 0
    %v5578 = vsel %vm5347, %v5066, 0
    %v5580 = vsel %vm5347, %v5069, 0
    %v5582 = vsel %vm5347, %v5072, 0
    %v5584 = vsel %vm5347, %v5075, 0
    %v5586 = vsel %vm5347, %v5078, 0
    %v5588 = vsel %vm5347, %v5081, 0
    %5590 = vmatprep.subr.mxu0 0.0
    %5591 = vmatpush1.msra.mxu0 %v4880
    %5592 = vmatprep.subr.mxu0 0.0
    %5593 = vmatpush1.msra.mxu0 %v4885
    %5594 = vmatprep.subr.mxu0 0.0
    %5595 = vmatpush1.msra.mxu0 %v4890
    %5596 = vmatprep.subr.mxu0 0.0
    %5597 = vmatpush1.msra.mxu0 %v4895
    %5598 = vmatprep.subr.mxu0 0.0
    %5599 = vmatpush1.msra.mxu0 %v4900
    %5600 = vmatprep.subr.mxu0 0.0
    %5601 = vmatpush1.msra.mxu0 %v4905
    %5602 = vmatprep.subr.mxu0 0.0
    %5603 = vmatpush1.msra.mxu0 %v4910
    %5604 = vmatprep.subr.mxu0 0.0
    %5605 = vmatpush1.msra.mxu0 %v4915
    %5606 = vmatprep.subr.mxu0 0.0
    %5607 = vmatpush1.msra.mxu0 %v4920
    %5608 = vmatprep.subr.mxu0 0.0
    %5609 = vmatpush1.msra.mxu0 %v4925
    %5610 = vmatprep.subr.mxu0 0.0
    %5611 = vmatpush1.msra.mxu0 %v4930
    %5612 = vmatprep.subr.mxu0 0.0
    %5613 = vmatpush1.msra.mxu0 %v4935
    %5614 = vmatprep.subr.mxu0 0.0
    %5615 = vmatpush1.msra.mxu0 %v4940
    %5616 = vmatprep.subr.mxu0 0.0
    %5617 = vmatpush1.msra.mxu0 %v4945
    %5618 = vmatprep.subr.mxu0 0.0
    %5619 = vmatpush1.msra.mxu0 %v4950
    %5620 = vmatprep.subr.mxu0 0.0
    %5621 = vmatpush1.msra.mxu0 %v4955
    %5622 = vmatprep.subr.mxu0 0.0
    %5623 = vmatpush1.msra.mxu0 %v4960
    %5624 = vmatprep.subr.mxu0 0.0
    %5625 = vmatpush1.msra.mxu0 %v4965
    %5626 = vmatprep.subr.mxu0 0.0
    %5627 = vmatpush1.msra.mxu0 %v4970
    %5628 = vmatprep.subr.mxu0 0.0
    %5629 = vmatpush1.msra.mxu0 %v4975
    %5630 = vmatprep.subr.mxu0 0.0
    %5631 = vmatpush1.msra.mxu0 %v4980
    %5632 = vmatprep.subr.mxu0 0.0
    %5633 = vmatpush1.msra.mxu0 %v4985
    %5634 = vmatprep.subr.mxu0 0.0
    %5635 = vmatpush1.msra.mxu0 %v4990
    %5636 = vmatprep.subr.mxu0 0.0
    %5637 = vmatpush1.msra.mxu0 %v4995
    %5638 = vmatprep.subr.mxu0 0.0
    %5639 = vmatpush1.msra.mxu0 %v5000
    %5640 = vmatprep.subr.mxu0 0.0
    %5641 = vmatpush1.msra.mxu0 %v5005
    %5642 = vmatprep.subr.mxu0 0.0
    %5643 = vmatpush1.msra.mxu0 %v5010
    %5644 = vmatprep.subr.mxu0 0.0
    %5645 = vmatpush1.msra.mxu0 %v5015
    %5646 = vmatprep.subr.mxu0 0.0
    %5647 = vmatpush1.msra.mxu0 %v5020
    %5648 = vmatprep.subr.mxu0 0.0
    %5649 = vmatpush1.msra.mxu0 %v5025
    %5650 = vmatprep.subr.mxu0 0.0
    %5651 = vmatpush1.msra.mxu0 %v5030
    %5652 = vmatprep.subr.mxu0 0.0
    %5653 = vmatpush1.msra.mxu0 %v5035
    %5654 = vmatprep.mubr.f32.mxu0 %v5059
    %5655 = vmatmul.mubr.f32.gmra.mrb[0].mxu0 %v5058
    %v5656 = vpop.f32.mrb[0].mxu0
    %v5657 = vadd.f32 %v5536, %v5656
    %v5658 = vpop.f32.mrb[0].mxu0
    %5659 = vmatprep.mubr.f32.mxu0 %v5062
    %5660 = vmatmul.mubr.f32.gmra.mrb[0].mxu0 %v5061
    %v5661 = vpop.f32.mrb[0].mxu0
    %v5662 = vadd.f32 %v5541, %v5661
    %v5663 = vpop.f32.mrb[0].mxu0
    %5664 = vmatprep.mubr.f32.mxu0 %v5065
    %5665 = vmatmul.mubr.f32.gmra.mrb[0].mxu0 %v5064
    %v5666 = vpop.f32.mrb[0].mxu0
    %v5667 = vadd.f32 %v5546, %v5666
    %v5668 = vpop.f32.mrb[0].mxu0
    %5669 = vmatprep.mubr.f32.mxu0 %v5068
    %5670 = vmatmul.mubr.f32.gmra.mrb[0].mxu0 %v5067
    %v5671 = vpop.f32.mrb[0].mxu0
    %v5672 = vadd.f32 %v5551, %v5671
    %v5673 = vpop.f32.mrb[0].mxu0
    %5674 = vmatprep.mubr.f32.mxu0 %v5071
    %5675 = vmatmul.mubr.f32.gmra.mrb[0].mxu0 %v5070
    %v5676 = vpop.f32.mrb[0].mxu0
    %v5677 = vadd.f32 %v5556, %v5676
    %v5678 = vpop.f32.mrb[0].mxu0
    %5679 = vmatprep.mubr.f32.mxu0 %v5074
    %5680 = vmatmul.mubr.f32.gmra.mrb[0].mxu0 %v5073
    %v5681 = vpop.f32.mrb[0].mxu0
    %v5682 = vadd.f32 %v5561, %v5681
    %v5683 = vpop.f32.mrb[0].mxu0
    %5684 = vmatprep.mubr.f32.mxu0 %v5077
    %5685 = vmatmul.mubr.f32.gmra.mrb[0].mxu0 %v5076
    %v5686 = vpop.f32.mrb[0].mxu0
    %v5687 = vadd.f32 %v5566, %v5686
    %v5688 = vpop.f32.mrb[0].mxu0
    %5689 = vmatprep.mubr.f32.mxu0 %v5080
    %5690 = vmatmul.mubr.f32.gmra.mrb[0].mxu0 %v5079
    %v5691 = vpop.f32.mrb[0].mxu0
    %v5692 = vadd.f32 %v5571, %v5691
    %v5693 = vpop.f32.mrb[0].mxu0
    %5694 = vdwg.mxu0
    %5695 = vmatprep.subr.mxu0 0.0
    %5696 = vmatpush1.msra.mxu0 %v5040
    %5697 = vmatprep.subr.mxu0 0.0
    %5698 = vmatpush1.msra.mxu0 %v5045
    %5699 = vmatprep.subr.mxu0 0.0
    %5700 = vmatpush1.msra.mxu0 %v5050
    %5701 = vmatprep.subr.mxu0 0.0
    %5702 = vmatpush1.msra.mxu0 %v5055
    %5703 = vmatprep.subr.mxu0 0.0
    %5704 = vmatpush1.msra.mxu0 0.0
    %5705 = vmatprep.subr.mxu0 0.0
    %5706 = vmatpush1.msra.mxu0 0.0
    %5707 = vmatprep.subr.mxu0 0.0
    %5708 = vmatpush1.msra.mxu0 0.0
    %5709 = vmatprep.subr.mxu0 0.0
    %5710 = vmatpush1.msra.mxu0 0.0
    %5711 = vmatprep.subr.mxu0 0.0
    %5712 = vmatpush1.msra.mxu0 0.0
    %5713 = vmatprep.subr.mxu0 0.0
    %5714 = vmatpush1.msra.mxu0 0.0
    %5715 = vmatprep.subr.mxu0 0.0
    %5716 = vmatpush1.msra.mxu0 0.0
    %5717 = vmatprep.subr.mxu0 0.0
    %5718 = vmatpush1.msra.mxu0 0.0
    %5719 = vmatprep.subr.mxu0 0.0
    %5720 = vmatpush1.msra.mxu0 0.0
    %5721 = vmatprep.subr.mxu0 0.0
    %5722 = vmatpush1.msra.mxu0 0.0
    %5723 = vmatprep.subr.mxu0 0.0
    %5724 = vmatpush1.msra.mxu0 0.0
    %5725 = vmatprep.subr.mxu0 0.0
    %5726 = vmatpush1.msra.mxu0 0.0
    %5727 = vmatprep.subr.mxu0 0.0
    %5728 = vmatpush1.msra.mxu0 0.0
    %5729 = vmatprep.subr.mxu0 0.0
    %5730 = vmatpush1.msra.mxu0 0.0
    %5731 = vmatprep.subr.mxu0 0.0
    %5732 = vmatpush1.msra.mxu0 0.0
    %5733 = vmatprep.subr.mxu0 0.0
    %5734 = vmatpush1.msra.mxu0 0.0
    %5735 = vmatprep.subr.mxu0 0.0
    %5736 = vmatpush1.msra.mxu0 0.0
    %5737 = vmatprep.subr.mxu0 0.0
    %5738 = vmatpush1.msra.mxu0 0.0
    %5739 = vmatprep.subr.mxu0 0.0
    %5740 = vmatpush1.msra.mxu0 0.0
    %5741 = vmatprep.subr.mxu0 0.0
    %5742 = vmatpush1.msra.mxu0 0.0
    %5743 = vmatprep.subr.mxu0 0.0
    %5744 = vmatpush1.msra.mxu0 0.0
    %5745 = vmatprep.subr.mxu0 0.0
    %5746 = vmatpush1.msra.mxu0 0.0
    %5747 = vmatprep.subr.mxu0 0.0
    %5748 = vmatpush1.msra.mxu0 0.0
    %5749 = vmatprep.subr.mxu0 0.0
    %5750 = vmatpush1.msra.mxu0 0.0
    %5751 = vmatprep.subr.mxu0 0.0
    %5752 = vmatpush1.msra.mxu0 0.0
    %5753 = vmatprep.subr.mxu0 0.0
    %5754 = vmatpush1.msra.mxu0 0.0
    %5755 = vmatprep.subr.mxu0 0.0
    %5756 = vmatpush1.msra.mxu0 0.0
    %5757 = vmatprep.subr.mxu0 0.0
    %5758 = vmatpush1.msra.mxu0 0.0
    %5759 = vmatprep.mubr.f32.mxu0 0.0
    %5760 = vmatmul.mubr.f32.gmra.mrb[0].mxu0 %v5574
    %v5761 = vpop.f32.mrb[0].mxu0
    %v5762 = vadd.f32 %v5657, %v5761
    %v5763 = vpop.f32.mrb[0].mxu0
    %5764 = vmatprep.mubr.f32.mxu0 0.0
    %5765 = vmatmul.mubr.f32.gmra.mrb[0].mxu0 %v5576
    %v5766 = vpop.f32.mrb[0].mxu0
    %v5767 = vadd.f32 %v5662, %v5766
    %v5768 = vpop.f32.mrb[0].mxu0
    %5769 = vmatprep.mubr.f32.mxu0 0.0
    %5770 = vmatmul.mubr.f32.gmra.mrb[0].mxu0 %v5578
    %v5771 = vpop.f32.mrb[0].mxu0
    %v5772 = vadd.f32 %v5667, %v5771
    %v5773 = vpop.f32.mrb[0].mxu0
    %5774 = vmatprep.mubr.f32.mxu0 0.0
    %5775 = vmatmul.mubr.f32.gmra.mrb[0].mxu0 %v5580
    %v5776 = vpop.f32.mrb[0].mxu0
    %v5777 = vadd.f32 %v5672, %v5776
    %v5778 = vpop.f32.mrb[0].mxu0
    %5779 = vmatprep.mubr.f32.mxu0 0.0
    %5780 = vmatmul.mubr.f32.gmra.mrb[0].mxu0 %v5582
    %v5781 = vpop.f32.mrb[0].mxu0
    %v5782 = vadd.f32 %v5677, %v5781
    %v5783 = vpop.f32.mrb[0].mxu0
    %5784 = vmatprep.mubr.f32.mxu0 0.0
    %5785 = vmatmul.mubr.f32.gmra.mrb[0].mxu0 %v5584
    %v5786 = vpop.f32.mrb[0].mxu0
    %v5787 = vadd.f32 %v5682, %v5786
    %v5788 = vpop.f32.mrb[0].mxu0
    %5789 = vmatprep.mubr.f32.mxu0 0.0
    %5790 = vmatmul.mubr.f32.gmra.mrb[0].mxu0 %v5586
    %v5791 = vpop.f32.mrb[0].mxu0
    %v5792 = vadd.f32 %v5687, %v5791
    %v5793 = vpop.f32.mrb[0].mxu0
    %5794 = vmatprep.mubr.f32.mxu0 0.0
    %5795 = vmatmul.mubr.f32.gmra.mrb[0].mxu0 %v5588
    %v5796 = vpop.f32.mrb[0].mxu0
    %v5797 = vadd.f32 %v5692, %v5796
    %v5798 = vpop.f32.mrb[0].mxu0
    %5799 = vdwg.mxu0
    %v5800 = vld [vmem:[%s8 + $0x20] sm:$0xff]
    %v5801 = vld [vmem:[%s8 + $0x28] sm:$0xff]
    %v5802 = vld [vmem:[%s8 + $0x30] sm:$0xff]
    %v5803 = vld [vmem:[%s8 + $0x68] sm:$0xff]
    %v5804 = vld [vmem:[%s8 + $0x70] sm:$0xff]
    %v5805 = vld [vmem:[%s8 + $0x78] sm:$0xff]
    %v5806 = vld [vmem:[%s8 + $0xb0] sm:$0xff]
    %v5807 = vld [vmem:[%s8 + $0xb8] sm:$0xff]
    %v5808 = vld [vmem:[%s8 + $0xc0] sm:$0xff]
    %v5809 = vld [vmem:[%s8 + $0xf8] sm:$0xff]
    %v5810 = vld [vmem:[%s8 + $0x100] sm:$0xff]
    %v5811 = vld [vmem:[%s8 + $0x108] sm:$0xff]
    %v5812 = vld [vmem:[%s8 + $0x140] sm:$0xff]
    %v5813 = vld [vmem:[%s8 + $0x148] sm:$0xff]
    %v5814 = vld [vmem:[%s8 + $0x150] sm:$0xff]
    %v5815 = vld [vmem:[%s8 + $0x188] sm:$0xff]
    %v5816 = vld [vmem:[%s8 + $0x190] sm:$0xff]
    %v5817 = vld [vmem:[%s8 + $0x198] sm:$0xff]
    %v5818 = vld [vmem:[%s8 + $0x1d0] sm:$0xff]
    %v5819 = vld [vmem:[%s8 + $0x1d8] sm:$0xff]
    %v5820 = vld [vmem:[%s8 + $0x1e0] sm:$0xff]
    %v5821 = vld [vmem:[%s8 + $0x218] sm:$0xff]
    %v5822 = vld [vmem:[%s8 + $0x220] sm:$0xff]
    %v5823 = vld [vmem:[%s8 + $0x228] sm:$0xff]
    %5848 = vrot.lane.b32.xlu0 %v5800, 64
    %v5849 = vpop.permute.xlu0 %5848
    %5850 = vrot.lane.b32.xlu0 %v5801, 64
    %v5851 = vpop.permute.xlu0 %5850
    %5852 = vrot.lane.b32.xlu0 %v5802, 64
    %v5853 = vpop.permute.xlu0 %5852
    %5854 = vrot.lane.b32.xlu0 %v5803, 64
    %v5855 = vpop.permute.xlu0 %5854
    %5856 = vrot.lane.b32.xlu0 %v5804, 64
    %v5857 = vpop.permute.xlu0 %5856
    %5858 = vrot.lane.b32.xlu0 %v5805, 64
    %v5859 = vpop.permute.xlu0 %5858
    %5860 = vrot.lane.b32.xlu0 %v5806, 64
    %v5861 = vpop.permute.xlu0 %5860
    %5862 = vrot.lane.b32.xlu0 %v5807, 64
    %v5863 = vpop.permute.xlu0 %5862
    %5864 = vrot.lane.b32.xlu0 %v5808, 64
    %v5865 = vpop.permute.xlu0 %5864
    %5866 = vrot.lane.b32.xlu0 %v5809, 64
    %v5867 = vpop.permute.xlu0 %5866
    %5868 = vrot.lane.b32.xlu0 %v5810, 64
    %v5869 = vpop.permute.xlu0 %5868
    %5870 = vrot.lane.b32.xlu0 %v5811, 64
    %v5871 = vpop.permute.xlu0 %5870
    %5872 = vrot.lane.b32.xlu0 %v5812, 64
    %v5873 = vpop.permute.xlu0 %5872
    %5874 = vrot.lane.b32.xlu0 %v5813, 64
    %v5875 = vpop.permute.xlu0 %5874
    %5876 = vrot.lane.b32.xlu0 %v5814, 64
    %v5877 = vpop.permute.xlu0 %5876
    %5878 = vrot.lane.b32.xlu0 %v5815, 64
    %v5879 = vpop.permute.xlu0 %5878
    %5880 = vrot.lane.b32.xlu0 %v5816, 64
    %v5881 = vpop.permute.xlu0 %5880
    %5882 = vrot.lane.b32.xlu0 %v5817, 64
    %v5883 = vpop.permute.xlu0 %5882
    %5884 = vrot.lane.b32.xlu0 %v5818, 64
    %v5885 = vpop.permute.xlu0 %5884
    %5886 = vrot.lane.b32.xlu0 %v5819, 64
    %v5887 = vpop.permute.xlu0 %5886
    %5888 = vrot.lane.b32.xlu0 %v5820, 64
    %v5889 = vpop.permute.xlu0 %5888
    %5890 = vrot.lane.b32.xlu0 %v5821, 64
    %v5891 = vpop.permute.xlu0 %5890
    %5892 = vrot.lane.b32.xlu0 %v5822, 64
    %v5893 = vpop.permute.xlu0 %5892
    %5894 = vrot.lane.b32.xlu0 %v5823, 64
    %v5895 = vpop.permute.xlu0 %5894
    %vm5896 = vcmask 523264
    %v5897 = vsel %vm5896, %v5849, %v5851
    %v5898 = vsel %vm5896, %v5851, %v5853
    %v5899 = vsel %vm5896, %v5855, %v5857
    %v5900 = vsel %vm5896, %v5857, %v5859
    %v5901 = vsel %vm5896, %v5861, %v5863
    %v5902 = vsel %vm5896, %v5863, %v5865
    %v5903 = vsel %vm5896, %v5867, %v5869
    %v5904 = vsel %vm5896, %v5869, %v5871
    %v5905 = vsel %vm5896, %v5873, %v5875
    %v5906 = vsel %vm5896, %v5875, %v5877
    %v5907 = vsel %vm5896, %v5879, %v5881
    %v5908 = vsel %vm5896, %v5881, %v5883
    %v5909 = vsel %vm5896, %v5885, %v5887
    %v5910 = vsel %vm5896, %v5887, %v5889
    %v5911 = vsel %vm5896, %v5891, %v5893
    %v5912 = vsel %vm5896, %v5893, %v5895
    %5929 = vrot.lane.b32.xlu0 %v4880, 94
    %v5930 = vpop.permute.xlu0 %5929
    %5931 = vrot.lane.b32.xlu0 %v4885, 94
    %v5932 = vpop.permute.xlu0 %5931
    %5933 = vrot.lane.b32.xlu0 %v4890, 94
    %v5934 = vpop.permute.xlu0 %5933
    %5935 = vrot.lane.b32.xlu0 %v4895, 94
    %v5936 = vpop.permute.xlu0 %5935
    %5937 = vrot.lane.b32.xlu0 %v4900, 94
    %v5938 = vpop.permute.xlu0 %5937
    %5939 = vrot.lane.b32.xlu0 %v4905, 94
    %v5940 = vpop.permute.xlu0 %5939
    %5941 = vrot.lane.b32.xlu0 %v4910, 94
    %v5942 = vpop.permute.xlu0 %5941
    %5943 = vrot.lane.b32.xlu0 %v4915, 94
    %v5944 = vpop.permute.xlu0 %5943
    %5945 = vrot.lane.b32.xlu0 %v4920, 94
    %v5946 = vpop.permute.xlu0 %5945
    %5947 = vrot.lane.b32.xlu0 %v4925, 94
    %v5948 = vpop.permute.xlu0 %5947
    %5949 = vrot.lane.b32.xlu0 %v4930, 94
    %v5950 = vpop.permute.xlu0 %5949
    %5951 = vrot.lane.b32.xlu0 %v4935, 94
    %v5952 = vpop.permute.xlu0 %5951
    %5953 = vrot.lane.b32.xlu0 %v4940, 94
    %v5954 = vpop.permute.xlu0 %5953
    %5955 = vrot.lane.b32.xlu0 %v4945, 94
    %v5956 = vpop.permute.xlu0 %5955
    %5957 = vrot.lane.b32.xlu0 %v4950, 94
    %v5958 = vpop.permute.xlu0 %5957
    %5959 = vrot.lane.b32.xlu0 %v4955, 94
    %v5960 = vpop.permute.xlu0 %5959
    %5961 = vrot.lane.b32.xlu0 %v4960, 94
    %v5962 = vpop.permute.xlu0 %5961
    %5963 = vrot.lane.b32.xlu0 %v4965, 94
    %v5964 = vpop.permute.xlu0 %5963
    %5965 = vrot.lane.b32.xlu0 %v4970, 94
    %v5966 = vpop.permute.xlu0 %5965
    %5967 = vrot.lane.b32.xlu0 %v4975, 94
    %v5968 = vpop.permute.xlu0 %5967
    %5969 = vrot.lane.b32.xlu0 %v4980, 94
    %v5970 = vpop.permute.xlu0 %5969
    %5971 = vrot.lane.b32.xlu0 %v4985, 94
    %v5972 = vpop.permute.xlu0 %5971
    %5973 = vrot.lane.b32.xlu0 %v4990, 94
    %v5974 = vpop.permute.xlu0 %5973
    %5975 = vrot.lane.b32.xlu0 %v4995, 94
    %v5976 = vpop.permute.xlu0 %5975
    %5977 = vrot.lane.b32.xlu0 %v5000, 94
    %v5978 = vpop.permute.xlu0 %5977
    %5979 = vrot.lane.b32.xlu0 %v5005, 94
    %v5980 = vpop.permute.xlu0 %5979
    %5981 = vrot.lane.b32.xlu0 %v5010, 94
    %v5982 = vpop.permute.xlu0 %5981
    %5983 = vrot.lane.b32.xlu0 %v5015, 94
    %v5984 = vpop.permute.xlu0 %5983
    %5985 = vrot.lane.b32.xlu0 %v5020, 94
    %v5986 = vpop.permute.xlu0 %5985
    %5987 = vrot.lane.b32.xlu0 %v5025, 94
    %v5988 = vpop.permute.xlu0 %5987
    %5989 = vrot.lane.b32.xlu0 %v5030, 94
    %v5990 = vpop.permute.xlu0 %5989
    %5991 = vrot.lane.b32.xlu0 %v5035, 94
    %v5992 = vpop.permute.xlu0 %5991
    %5993 = vrot.lane.b32.xlu0 %v5040, 94
    %v5994 = vpop.permute.xlu0 %5993
    %5995 = vrot.lane.b32.xlu0 %v5045, 94
    %v5996 = vpop.permute.xlu0 %5995
    %5997 = vrot.lane.b32.xlu0 %v5050, 94
    %v5998 = vpop.permute.xlu0 %5997
    %5999 = vrot.lane.b32.xlu0 %v5055, 94
    %v6000 = vpop.permute.xlu0 %5999
    %v6037 = vsel %vm5347, %v5853, 0
    %v6039 = vsel %vm5347, %v5859, 0
    %v6041 = vsel %vm5347, %v5865, 0
    %v6043 = vsel %vm5347, %v5871, 0
    %v6045 = vsel %vm5347, %v5877, 0
    %v6047 = vsel %vm5347, %v5883, 0
    %v6049 = vsel %vm5347, %v5889, 0
    %v6051 = vsel %vm5347, %v5895, 0
    %6053 = vmatprep.subr.mxu0 0.0
    %6054 = vmatpush1.msra.mxu0 %v5930
    %6055 = vmatprep.subr.mxu0 0.0
    %6056 = vmatpush1.msra.mxu0 %v5932
    %6057 = vmatprep.subr.mxu0 0.0
    %6058 = vmatpush1.msra.mxu0 %v5934
    %6059 = vmatprep.subr.mxu0 0.0
    %6060 = vmatpush1.msra.mxu0 %v5936
    %6061 = vmatprep.subr.mxu0 0.0
    %6062 = vmatpush1.msra.mxu0 %v5938
    %6063 = vmatprep.subr.mxu0 0.0
    %6064 = vmatpush1.msra.mxu0 %v5940
    %6065 = vmatprep.subr.mxu0 0.0
    %6066 = vmatpush1.msra.mxu0 %v5942
    %6067 = vmatprep.subr.mxu0 0.0
    %6068 = vmatpush1.msra.mxu0 %v5944
    %6069 = vmatprep.subr.mxu0 0.0
    %6070 = vmatpush1.msra.mxu0 %v5946
    %6071 = vmatprep.subr.mxu0 0.0
    %6072 = vmatpush1.msra.mxu0 %v5948
    %6073 = vmatprep.subr.mxu0 0.0
    %6074 = vmatpush1.msra.mxu0 %v5950
    %6075 = vmatprep.subr.mxu0 0.0
    %6076 = vmatpush1.msra.mxu0 %v5952
    %6077 = vmatprep.subr.mxu0 0.0
    %6078 = vmatpush1.msra.mxu0 %v5954
    %6079 = vmatprep.subr.mxu0 0.0
    %6080 = vmatpush1.msra.mxu0 %v5956
    %6081 = vmatprep.subr.mxu0 0.0
    %6082 = vmatpush1.msra.mxu0 %v5958
    %6083 = vmatprep.subr.mxu0 0.0
    %6084 = vmatpush1.msra.mxu0 %v5960
    %6085 = vmatprep.subr.mxu0 0.0
    %6086 = vmatpush1.msra.mxu0 %v5962
    %6087 = vmatprep.subr.mxu0 0.0
    %6088 = vmatpush1.msra.mxu0 %v5964
    %6089 = vmatprep.subr.mxu0 0.0
    %6090 = vmatpush1.msra.mxu0 %v5966
    %6091 = vmatprep.subr.mxu0 0.0
    %6092 = vmatpush1.msra.mxu0 %v5968
    %6093 = vmatprep.subr.mxu0 0.0
    %6094 = vmatpush1.msra.mxu0 %v5970
    %6095 = vmatprep.subr.mxu0 0.0
    %6096 = vmatpush1.msra.mxu0 %v5972
    %6097 = vmatprep.subr.mxu0 0.0
    %6098 = vmatpush1.msra.mxu0 %v5974
    %6099 = vmatprep.subr.mxu0 0.0
    %6100 = vmatpush1.msra.mxu0 %v5976
    %6101 = vmatprep.subr.mxu0 0.0
    %6102 = vmatpush1.msra.mxu0 %v5978
    %6103 = vmatprep.subr.mxu0 0.0
    %6104 = vmatpush1.msra.mxu0 %v5980
    %6105 = vmatprep.subr.mxu0 0.0
    %6106 = vmatpush1.msra.mxu0 %v5982
    %6107 = vmatprep.subr.mxu0 0.0
    %6108 = vmatpush1.msra.mxu0 %v5984
    %6109 = vmatprep.subr.mxu0 0.0
    %6110 = vmatpush1.msra.mxu0 %v5986
    %6111 = vmatprep.subr.mxu0 0.0
    %6112 = vmatpush1.msra.mxu0 %v5988
    %6113 = vmatprep.subr.mxu0 0.0
    %6114 = vmatpush1.msra.mxu0 %v5990
    %6115 = vmatprep.subr.mxu0 0.0
    %6116 = vmatpush1.msra.mxu0 %v5992
    %6117 = vmatprep.mubr.f32.mxu0 %v5898
    %6118 = vmatmul.mubr.f32.gmra.mrb[0].mxu0 %v5897
    %v6119 = vpop.f32.mrb[0].mxu0
    %v6120 = vadd.f32 0.0, %v6119
    %v6121 = vpop.f32.mrb[0].mxu0
    %6122 = vmatprep.mubr.f32.mxu0 %v5900
    %6123 = vmatmul.mubr.f32.gmra.mrb[0].mxu0 %v5899
    %v6124 = vpop.f32.mrb[0].mxu0
    %v6125 = vadd.f32 0.0, %v6124
    %v6126 = vpop.f32.mrb[0].mxu0
    %6127 = vmatprep.mubr.f32.mxu0 %v5902
    %6128 = vmatmul.mubr.f32.gmra.mrb[0].mxu0 %v5901
    %v6129 = vpop.f32.mrb[0].mxu0
    %v6130 = vadd.f32 0.0, %v6129
    %v6131 = vpop.f32.mrb[0].mxu0
    %6132 = vmatprep.mubr.f32.mxu0 %v5904
    %6133 = vmatmul.mubr.f32.gmra.mrb[0].mxu0 %v5903
    %v6134 = vpop.f32.mrb[0].mxu0
    %v6135 = vadd.f32 0.0, %v6134
    %v6136 = vpop.f32.mrb[0].mxu0
    %6137 = vmatprep.mubr.f32.mxu0 %v5906
    %6138 = vmatmul.mubr.f32.gmra.mrb[0].mxu0 %v5905
    %v6139 = vpop.f32.mrb[0].mxu0
    %v6140 = vadd.f32 0.0, %v6139
    %v6141 = vpop.f32.mrb[0].mxu0
    %6142 = vmatprep.mubr.f32.mxu0 %v5908
    %6143 = vmatmul.mubr.f32.gmra.mrb[0].mxu0 %v5907
    %v6144 = vpop.f32.mrb[0].mxu0
    %v6145 = vadd.f32 0.0, %v6144
    %v6146 = vpop.f32.mrb[0].mxu0
    %6147 = vmatprep.mubr.f32.mxu0 %v5910
    %6148 = vmatmul.mubr.f32.gmra.mrb[0].mxu0 %v5909
    %v6149 = vpop.f32.mrb[0].mxu0
    %v6150 = vadd.f32 0.0, %v6149
    %v6151 = vpop.f32.mrb[0].mxu0
    %6152 = vmatprep.mubr.f32.mxu0 %v5912
    %6153 = vmatmul.mubr.f32.gmra.mrb[0].mxu0 %v5911
    %v6154 = vpop.f32.mrb[0].mxu0
    %v6155 = vadd.f32 0.0, %v6154
    %v6156 = vpop.f32.mrb[0].mxu0
    %6157 = vdwg.mxu0
    %6158 = vmatprep.subr.mxu0 0.0
    %6159 = vmatpush1.msra.mxu0 %v5994
    %6160 = vmatprep.subr.mxu0 0.0
    %6161 = vmatpush1.msra.mxu0 %v5996
    %6162 = vmatprep.subr.mxu0 0.0
    %6163 = vmatpush1.msra.mxu0 %v5998
    %6164 = vmatprep.subr.mxu0 0.0
    %6165 = vmatpush1.msra.mxu0 %v6000
    %6166 = vmatprep.subr.mxu0 0.0
    %6167 = vmatpush1.msra.mxu0 0.0
    %6168 = vmatprep.subr.mxu0 0.0
    %6169 = vmatpush1.msra.mxu0 0.0
    %6170 = vmatprep.subr.mxu0 0.0
    %6171 = vmatpush1.msra.mxu0 0.0
    %6172 = vmatprep.subr.mxu0 0.0
    %6173 = vmatpush1.msra.mxu0 0.0
    %6174 = vmatprep.subr.mxu0 0.0
    %6175 = vmatpush1.msra.mxu0 0.0
    %6176 = vmatprep.subr.mxu0 0.0
    %6177 = vmatpush1.msra.mxu0 0.0
    %6178 = vmatprep.subr.mxu0 0.0
    %6179 = vmatpush1.msra.mxu0 0.0
    %6180 = vmatprep.subr.mxu0 0.0
    %6181 = vmatpush1.msra.mxu0 0.0
    %6182 = vmatprep.subr.mxu0 0.0
    %6183 = vmatpush1.msra.mxu0 0.0
    %6184 = vmatprep.subr.mxu0 0.0
    %6185 = vmatpush1.msra.mxu0 0.0
    %6186 = vmatprep.subr.mxu0 0.0
    %6187 = vmatpush1.msra.mxu0 0.0
    %6188 = vmatprep.subr.mxu0 0.0
    %6189 = vmatpush1.msra.mxu0 0.0
    %6190 = vmatprep.subr.mxu0 0.0
    %6191 = vmatpush1.msra.mxu0 0.0
    %6192 = vmatprep.subr.mxu0 0.0
    %6193 = vmatpush1.msra.mxu0 0.0
    %6194 = vmatprep.subr.mxu0 0.0
    %6195 = vmatpush1.msra.mxu0 0.0
    %6196 = vmatprep.subr.mxu0 0.0
    %6197 = vmatpush1.msra.mxu0 0.0
    %6198 = vmatprep.subr.mxu0 0.0
    %6199 = vmatpush1.msra.mxu0 0.0
    %6200 = vmatprep.subr.mxu0 0.0
    %6201 = vmatpush1.msra.mxu0 0.0
    %6202 = vmatprep.subr.mxu0 0.0
    %6203 = vmatpush1.msra.mxu0 0.0
    %6204 = vmatprep.subr.mxu0 0.0
    %6205 = vmatpush1.msra.mxu0 0.0
    %6206 = vmatprep.subr.mxu0 0.0
    %6207 = vmatpush1.msra.mxu0 0.0
    %6208 = vmatprep.subr.mxu0 0.0
    %6209 = vmatpush1.msra.mxu0 0.0
    %6210 = vmatprep.subr.mxu0 0.0
    %6211 = vmatpush1.msra.mxu0 0.0
    %6212 = vmatprep.subr.mxu0 0.0
    %6213 = vmatpush1.msra.mxu0 0.0
    %6214 = vmatprep.subr.mxu0 0.0
    %6215 = vmatpush1.msra.mxu0 0.0
    %6216 = vmatprep.subr.mxu0 0.0
    %6217 = vmatpush1.msra.mxu0 0.0
    %6218 = vmatprep.subr.mxu0 0.0
    %6219 = vmatpush1.msra.mxu0 0.0
    %6220 = vmatprep.subr.mxu0 0.0
    %6221 = vmatpush1.msra.mxu0 0.0
    %6222 = vmatprep.mubr.f32.mxu0 0.0
    %6223 = vmatmul.mubr.f32.gmra.mrb[0].mxu0 %v6037
    %v6224 = vpop.f32.mrb[0].mxu0
    %v6225 = vadd.f32 %v6120, %v6224
    %v6226 = vpop.f32.mrb[0].mxu0
    %6227 = vmatprep.mubr.f32.mxu0 0.0
    %6228 = vmatmul.mubr.f32.gmra.mrb[0].mxu0 %v6039
    %v6229 = vpop.f32.mrb[0].mxu0
    %v6230 = vadd.f32 %v6125, %v6229
    %v6231 = vpop.f32.mrb[0].mxu0
    %6232 = vmatprep.mubr.f32.mxu0 0.0
    %6233 = vmatmul.mubr.f32.gmra.mrb[0].mxu0 %v6041
    %v6234 = vpop.f32.mrb[0].mxu0
    %v6235 = vadd.f32 %v6130, %v6234
    %v6236 = vpop.f32.mrb[0].mxu0
    %6237 = vmatprep.mubr.f32.mxu0 0.0
    %6238 = vmatmul.mubr.f32.gmra.mrb[0].mxu0 %v6043
    %v6239 = vpop.f32.mrb[0].mxu0
    %v6240 = vadd.f32 %v6135, %v6239
    %v6241 = vpop.f32.mrb[0].mxu0
    %6242 = vmatprep.mubr.f32.mxu0 0.0
    %6243 = vmatmul.mubr.f32.gmra.mrb[0].mxu0 %v6045
    %v6244 = vpop.f32.mrb[0].mxu0
    %v6245 = vadd.f32 %v6140, %v6244
    %v6246 = vpop.f32.mrb[0].mxu0
    %6247 = vmatprep.mubr.f32.mxu0 0.0
    %6248 = vmatmul.mubr.f32.gmra.mrb[0].mxu0 %v6047
    %v6249 = vpop.f32.mrb[0].mxu0
    %v6250 = vadd.f32 %v6145, %v6249
    %v6251 = vpop.f32.mrb[0].mxu0
    %6252 = vmatprep.mubr.f32.mxu0 0.0
    %6253 = vmatmul.mubr.f32.gmra.mrb[0].mxu0 %v6049
    %v6254 = vpop.f32.mrb[0].mxu0
    %v6255 = vadd.f32 %v6150, %v6254
    %v6256 = vpop.f32.mrb[0].mxu0
    %6257 = vmatprep.mubr.f32.mxu0 0.0
    %6258 = vmatmul.mubr.f32.gmra.mrb[0].mxu0 %v6051
    %v6259 = vpop.f32.mrb[0].mxu0
    %v6260 = vadd.f32 %v6155, %v6259
    %v6261 = vpop.f32.mrb[0].mxu0
    %6262 = vdwg.mxu0
    %v6263 = vadd.f32 %v5762, %v6225
    %v6264 = vadd.f32 %v5767, %v6230
    %v6265 = vadd.f32 %v5772, %v6235
    %v6266 = vadd.f32 %v5777, %v6240
    %v6267 = vadd.f32 %v5782, %v6245
    %v6268 = vadd.f32 %v5787, %v6250
    %v6269 = vadd.f32 %v5792, %v6255
    %v6270 = vadd.f32 %v5797, %v6260
    %v6271 = vld [vmem:[%s8 + $0x30] sm:$0xff]
    %v6272 = vld [vmem:[%s8 + $0x38] sm:$0xff]
    %v6273 = vld [vmem:[%s8 + $0x40] sm:$0xff]
    %v6274 = vld [vmem:[%s8 + $0x78] sm:$0xff]
    %v6275 = vld [vmem:[%s8 + $0x80] sm:$0xff]
    %v6276 = vld [vmem:[%s8 + $0x88] sm:$0xff]
    %v6277 = vld [vmem:[%s8 + $0xc0] sm:$0xff]
    %v6278 = vld [vmem:[%s8 + $0xc8] sm:$0xff]
    %v6279 = vld [vmem:[%s8 + $0xd0] sm:$0xff]
    %v6280 = vld [vmem:[%s8 + $0x108] sm:$0xff]
    %v6281 = vld [vmem:[%s8 + $0x110] sm:$0xff]
    %v6282 = vld [vmem:[%s8 + $0x118] sm:$0xff]
    %v6283 = vld [vmem:[%s8 + $0x150] sm:$0xff]
    %v6284 = vld [vmem:[%s8 + $0x158] sm:$0xff]
    %v6285 = vld [vmem:[%s8 + $0x160] sm:$0xff]
    %v6286 = vld [vmem:[%s8 + $0x198] sm:$0xff]
    %v6287 = vld [vmem:[%s8 + $0x1a0] sm:$0xff]
    %v6288 = vld [vmem:[%s8 + $0x1a8] sm:$0xff]
    %v6289 = vld [vmem:[%s8 + $0x1e0] sm:$0xff]
    %v6290 = vld [vmem:[%s8 + $0x1e8] sm:$0xff]
    %v6291 = vld [vmem:[%s8 + $0x1f0] sm:$0xff]
    %v6292 = vld [vmem:[%s8 + $0x228] sm:$0xff]
    %v6293 = vld [vmem:[%s8 + $0x230] sm:$0xff]
    %v6294 = vld [vmem:[%s8 + $0x238] sm:$0xff]
    %6319 = vrot.lane.b32.xlu0 %v6271, 32
    %v6320 = vpop.permute.xlu0 %6319
    %6321 = vrot.lane.b32.xlu0 %v6272, 32
    %v6322 = vpop.permute.xlu0 %6321
    %6323 = vrot.lane.b32.xlu0 %v6273, 32
    %v6324 = vpop.permute.xlu0 %6323
    %6325 = vrot.lane.b32.xlu0 %v6274, 32
    %v6326 = vpop.permute.xlu0 %6325
    %6327 = vrot.lane.b32.xlu0 %v6275, 32
    %v6328 = vpop.permute.xlu0 %6327
    %6329 = vrot.lane.b32.xlu0 %v6276, 32
    %v6330 = vpop.permute.xlu0 %6329
    %6331 = vrot.lane.b32.xlu0 %v6277, 32
    %v6332 = vpop.permute.xlu0 %6331
    %6333 = vrot.lane.b32.xlu0 %v6278, 32
    %v6334 = vpop.permute.xlu0 %6333
    %6335 = vrot.lane.b32.xlu0 %v6279, 32
    %v6336 = vpop.permute.xlu0 %6335
    %6337 = vrot.lane.b32.xlu0 %v6280, 32
    %v6338 = vpop.permute.xlu0 %6337
    %6339 = vrot.lane.b32.xlu0 %v6281, 32
    %v6340 = vpop.permute.xlu0 %6339
    %6341 = vrot.lane.b32.xlu0 %v6282, 32
    %v6342 = vpop.permute.xlu0 %6341
    %6343 = vrot.lane.b32.xlu0 %v6283, 32
    %v6344 = vpop.permute.xlu0 %6343
    %6345 = vrot.lane.b32.xlu0 %v6284, 32
    %v6346 = vpop.permute.xlu0 %6345
    %6347 = vrot.lane.b32.xlu0 %v6285, 32
    %v6348 = vpop.permute.xlu0 %6347
    %6349 = vrot.lane.b32.xlu0 %v6286, 32
    %v6350 = vpop.permute.xlu0 %6349
    %6351 = vrot.lane.b32.xlu0 %v6287, 32
    %v6352 = vpop.permute.xlu0 %6351
    %6353 = vrot.lane.b32.xlu0 %v6288, 32
    %v6354 = vpop.permute.xlu0 %6353
    %6355 = vrot.lane.b32.xlu0 %v6289, 32
    %v6356 = vpop.permute.xlu0 %6355
    %6357 = vrot.lane.b32.xlu0 %v6290, 32
    %v6358 = vpop.permute.xlu0 %6357
    %6359 = vrot.lane.b32.xlu0 %v6291, 32
    %v6360 = vpop.permute.xlu0 %6359
    %6361 = vrot.lane.b32.xlu0 %v6292, 32
    %v6362 = vpop.permute.xlu0 %6361
    %6363 = vrot.lane.b32.xlu0 %v6293, 32
    %v6364 = vpop.permute.xlu0 %6363
    %6365 = vrot.lane.b32.xlu0 %v6294, 32
    %v6366 = vpop.permute.xlu0 %6365
    %v6367 = vsel %vm5347, %v6320, %v6322
    %v6368 = vsel %vm5347, %v6322, %v6324
    %v6369 = vsel %vm5347, %v6326, %v6328
    %v6370 = vsel %vm5347, %v6328, %v6330
    %v6371 = vsel %vm5347, %v6332, %v6334
    %v6372 = vsel %vm5347, %v6334, %v6336
    %v6373 = vsel %vm5347, %v6338, %v6340
    %v6374 = vsel %vm5347, %v6340, %v6342
    %v6375 = vsel %vm5347, %v6344, %v6346
    %v6376 = vsel %vm5347, %v6346, %v6348
    %v6377 = vsel %vm5347, %v6350, %v6352
    %v6378 = vsel %vm5347, %v6352, %v6354
    %v6379 = vsel %vm5347, %v6356, %v6358
    %v6380 = vsel %vm5347, %v6358, %v6360
    %v6381 = vsel %vm5347, %v6362, %v6364
    %v6382 = vsel %vm5347, %v6364, %v6366
    %6399 = vrot.lane.b32.xlu0 %v4880, 77
    %v6400 = vpop.permute.xlu0 %6399
    %6401 = vrot.lane.b32.xlu0 %v4885, 77
    %v6402 = vpop.permute.xlu0 %6401
    %6403 = vrot.lane.b32.xlu0 %v4890, 77
    %v6404 = vpop.permute.xlu0 %6403
    %6405 = vrot.lane.b32.xlu0 %v4895, 77
    %v6406 = vpop.permute.xlu0 %6405
    %6407 = vrot.lane.b32.xlu0 %v4900, 77
    %v6408 = vpop.permute.xlu0 %6407
    %6409 = vrot.lane.b32.xlu0 %v4905, 77
    %v6410 = vpop.permute.xlu0 %6409
    %6411 = vrot.lane.b32.xlu0 %v4910, 77
    %v6412 = vpop.permute.xlu0 %6411
    %6413 = vrot.lane.b32.xlu0 %v4915, 77
    %v6414 = vpop.permute.xlu0 %6413
    %6415 = vrot.lane.b32.xlu0 %v4920, 77
    %v6416 = vpop.permute.xlu0 %6415
    %6417 = vrot.lane.b32.xlu0 %v4925, 77
    %v6418 = vpop.permute.xlu0 %6417
    %6419 = vrot.lane.b32.xlu0 %v4930, 77
    %v6420 = vpop.permute.xlu0 %6419
    %6421 = vrot.lane.b32.xlu0 %v4935, 77
    %v6422 = vpop.permute.xlu0 %6421
    %6423 = vrot.lane.b32.xlu0 %v4940, 77
    %v6424 = vpop.permute.xlu0 %6423
    %6425 = vrot.lane.b32.xlu0 %v4945, 77
    %v6426 = vpop.permute.xlu0 %6425
    %6427 = vrot.lane.b32.xlu0 %v4950, 77
    %v6428 = vpop.permute.xlu0 %6427
    %6429 = vrot.lane.b32.xlu0 %v4955, 77
    %v6430 = vpop.permute.xlu0 %6429
    %6431 = vrot.lane.b32.xlu0 %v4960, 77
    %v6432 = vpop.permute.xlu0 %6431
    %6433 = vrot.lane.b32.xlu0 %v4965, 77
    %v6434 = vpop.permute.xlu0 %6433
    %6435 = vrot.lane.b32.xlu0 %v4970, 77
    %v6436 = vpop.permute.xlu0 %6435
    %6437 = vrot.lane.b32.xlu0 %v4975, 77
    %v6438 = vpop.permute.xlu0 %6437
    %6439 = vrot.lane.b32.xlu0 %v4980, 77
    %v6440 = vpop.permute.xlu0 %6439
    %6441 = vrot.lane.b32.xlu0 %v4985, 77
    %v6442 = vpop.permute.xlu0 %6441
    %6443 = vrot.lane.b32.xlu0 %v4990, 77
    %v6444 = vpop.permute.xlu0 %6443
    %6445 = vrot.lane.b32.xlu0 %v4995, 77
    %v6446 = vpop.permute.xlu0 %6445
    %6447 = vrot.lane.b32.xlu0 %v5000, 77
    %v6448 = vpop.permute.xlu0 %6447
    %6449 = vrot.lane.b32.xlu0 %v5005, 77
    %v6450 = vpop.permute.xlu0 %6449
    %6451 = vrot.lane.b32.xlu0 %v5010, 77
    %v6452 = vpop.permute.xlu0 %6451
    %6453 = vrot.lane.b32.xlu0 %v5015, 77
    %v6454 = vpop.permute.xlu0 %6453
    %6455 = vrot.lane.b32.xlu0 %v5020, 77
    %v6456 = vpop.permute.xlu0 %6455
    %6457 = vrot.lane.b32.xlu0 %v5025, 77
    %v6458 = vpop.permute.xlu0 %6457
    %6459 = vrot.lane.b32.xlu0 %v5030, 77
    %v6460 = vpop.permute.xlu0 %6459
    %6461 = vrot.lane.b32.xlu0 %v5035, 77
    %v6462 = vpop.permute.xlu0 %6461
    %6463 = vrot.lane.b32.xlu0 %v5040, 77
    %v6464 = vpop.permute.xlu0 %6463
    %6465 = vrot.lane.b32.xlu0 %v5045, 77
    %v6466 = vpop.permute.xlu0 %6465
    %6467 = vrot.lane.b32.xlu0 %v5050, 77
    %v6468 = vpop.permute.xlu0 %6467
    %6469 = vrot.lane.b32.xlu0 %v5055, 77
    %v6470 = vpop.permute.xlu0 %6469
    %v6507 = vsel %vm5347, %v6324, 0
    %v6509 = vsel %vm5347, %v6330, 0
    %v6511 = vsel %vm5347, %v6336, 0
    %v6513 = vsel %vm5347, %v6342, 0
    %v6515 = vsel %vm5347, %v6348, 0
    %v6517 = vsel %vm5347, %v6354, 0
    %v6519 = vsel %vm5347, %v6360, 0
    %v6521 = vsel %vm5347, %v6366, 0
    %6523 = vmatprep.subr.mxu0 0.0
    %6524 = vmatpush1.msra.mxu0 %v6400
    %6525 = vmatprep.subr.mxu0 0.0
    %6526 = vmatpush1.msra.mxu0 %v6402
    %6527 = vmatprep.subr.mxu0 0.0
    %6528 = vmatpush1.msra.mxu0 %v6404
    %6529 = vmatprep.subr.mxu0 0.0
    %6530 = vmatpush1.msra.mxu0 %v6406
    %6531 = vmatprep.subr.mxu0 0.0
    %6532 = vmatpush1.msra.mxu0 %v6408
    %6533 = vmatprep.subr.mxu0 0.0
    %6534 = vmatpush1.msra.mxu0 %v6410
    %6535 = vmatprep.subr.mxu0 0.0
    %6536 = vmatpush1.msra.mxu0 %v6412
    %6537 = vmatprep.subr.mxu0 0.0
    %6538 = vmatpush1.msra.mxu0 %v6414
    %6539 = vmatprep.subr.mxu0 0.0
    %6540 = vmatpush1.msra.mxu0 %v6416
    %6541 = vmatprep.subr.mxu0 0.0
    %6542 = vmatpush1.msra.mxu0 %v6418
    %6543 = vmatprep.subr.mxu0 0.0
    %6544 = vmatpush1.msra.mxu0 %v6420
    %6545 = vmatprep.subr.mxu0 0.0
    %6546 = vmatpush1.msra.mxu0 %v6422
    %6547 = vmatprep.subr.mxu0 0.0
    %6548 = vmatpush1.msra.mxu0 %v6424
    %6549 = vmatprep.subr.mxu0 0.0
    %6550 = vmatpush1.msra.mxu0 %v6426
    %6551 = vmatprep.subr.mxu0 0.0
    %6552 = vmatpush1.msra.mxu0 %v6428
    %6553 = vmatprep.subr.mxu0 0.0
    %6554 = vmatpush1.msra.mxu0 %v6430
    %6555 = vmatprep.subr.mxu0 0.0
    %6556 = vmatpush1.msra.mxu0 %v6432
    %6557 = vmatprep.subr.mxu0 0.0
    %6558 = vmatpush1.msra.mxu0 %v6434
    %6559 = vmatprep.subr.mxu0 0.0
    %6560 = vmatpush1.msra.mxu0 %v6436
    %6561 = vmatprep.subr.mxu0 0.0
    %6562 = vmatpush1.msra.mxu0 %v6438
    %6563 = vmatprep.subr.mxu0 0.0
    %6564 = vmatpush1.msra.mxu0 %v6440
    %6565 = vmatprep.subr.mxu0 0.0
    %6566 = vmatpush1.msra.mxu0 %v6442
    %6567 = vmatprep.subr.mxu0 0.0
    %6568 = vmatpush1.msra.mxu0 %v6444
    %6569 = vmatprep.subr.mxu0 0.0
    %6570 = vmatpush1.msra.mxu0 %v6446
    %6571 = vmatprep.subr.mxu0 0.0
    %6572 = vmatpush1.msra.mxu0 %v6448
    %6573 = vmatprep.subr.mxu0 0.0
    %6574 = vmatpush1.msra.mxu0 %v6450
    %6575 = vmatprep.subr.mxu0 0.0
    %6576 = vmatpush1.msra.mxu0 %v6452
    %6577 = vmatprep.subr.mxu0 0.0
    %6578 = vmatpush1.msra.mxu0 %v6454
    %6579 = vmatprep.subr.mxu0 0.0
    %6580 = vmatpush1.msra.mxu0 %v6456
    %6581 = vmatprep.subr.mxu0 0.0
    %6582 = vmatpush1.msra.mxu0 %v6458
    %6583 = vmatprep.subr.mxu0 0.0
    %6584 = vmatpush1.msra.mxu0 %v6460
    %6585 = vmatprep.subr.mxu0 0.0
    %6586 = vmatpush1.msra.mxu0 %v6462
    %6587 = vmatprep.mubr.f32.mxu0 %v6368
    %6588 = vmatmul.mubr.f32.gmra.mrb[0].mxu0 %v6367
    %v6589 = vpop.f32.mrb[0].mxu0
    %v6590 = vadd.f32 0.0, %v6589
    %v6591 = vpop.f32.mrb[0].mxu0
    %6592 = vmatprep.mubr.f32.mxu0 %v6370
    %6593 = vmatmul.mubr.f32.gmra.mrb[0].mxu0 %v6369
    %v6594 = vpop.f32.mrb[0].mxu0
    %v6595 = vadd.f32 0.0, %v6594
    %v6596 = vpop.f32.mrb[0].mxu0
    %6597 = vmatprep.mubr.f32.mxu0 %v6372
    %6598 = vmatmul.mubr.f32.gmra.mrb[0].mxu0 %v6371
    %v6599 = vpop.f32.mrb[0].mxu0
    %v6600 = vadd.f32 0.0, %v6599
    %v6601 = vpop.f32.mrb[0].mxu0
    %6602 = vmatprep.mubr.f32.mxu0 %v6374
    %6603 = vmatmul.mubr.f32.gmra.mrb[0].mxu0 %v6373
    %v6604 = vpop.f32.mrb[0].mxu0
    %v6605 = vadd.f32 0.0, %v6604
    %v6606 = vpop.f32.mrb[0].mxu0
    %6607 = vmatprep.mubr.f32.mxu0 %v6376
    %6608 = vmatmul.mubr.f32.gmra.mrb[0].mxu0 %v6375
    %v6609 = vpop.f32.mrb[0].mxu0
    %v6610 = vadd.f32 0.0, %v6609
    %v6611 = vpop.f32.mrb[0].mxu0
    %6612 = vmatprep.mubr.f32.mxu0 %v6378
    %6613 = vmatmul.mubr.f32.gmra.mrb[0].mxu0 %v6377
    %v6614 = vpop.f32.mrb[0].mxu0
    %v6615 = vadd.f32 0.0, %v6614
    %v6616 = vpop.f32.mrb[0].mxu0
    %6617 = vmatprep.mubr.f32.mxu0 %v6380
    %6618 = vmatmul.mubr.f32.gmra.mrb[0].mxu0 %v6379
    %v6619 = vpop.f32.mrb[0].mxu0
    %v6620 = vadd.f32 0.0, %v6619
    %v6621 = vpop.f32.mrb[0].mxu0
    %6622 = vmatprep.mubr.f32.mxu0 %v6382
    %6623 = vmatmul.mubr.f32.gmra.mrb[0].mxu0 %v6381
    %v6624 = vpop.f32.mrb[0].mxu0
    %v6625 = vadd.f32 0.0, %v6624
    %v6626 = vpop.f32.mrb[0].mxu0
    %6627 = vdwg.mxu0
    %6628 = vmatprep.subr.mxu0 0.0
    %6629 = vmatpush1.msra.mxu0 %v6464
    %6630 = vmatprep.subr.mxu0 0.0
    %6631 = vmatpush1.msra.mxu0 %v6466
    %6632 = vmatprep.subr.mxu0 0.0
    %6633 = vmatpush1.msra.mxu0 %v6468
    %6634 = vmatprep.subr.mxu0 0.0
    %6635 = vmatpush1.msra.mxu0 %v6470
    %6636 = vmatprep.subr.mxu0 0.0
    %6637 = vmatpush1.msra.mxu0 0.0
    %6638 = vmatprep.subr.mxu0 0.0
    %6639 = vmatpush1.msra.mxu0 0.0
    %6640 = vmatprep.subr.mxu0 0.0
    %6641 = vmatpush1.msra.mxu0 0.0
    %6642 = vmatprep.subr.mxu0 0.0
    %6643 = vmatpush1.msra.mxu0 0.0
    %6644 = vmatprep.subr.mxu0 0.0
    %6645 = vmatpush1.msra.mxu0 0.0
    %6646 = vmatprep.subr.mxu0 0.0
    %6647 = vmatpush1.msra.mxu0 0.0
    %6648 = vmatprep.subr.mxu0 0.0
    %6649 = vmatpush1.msra.mxu0 0.0
    %6650 = vmatprep.subr.mxu0 0.0
    %6651 = vmatpush1.msra.mxu0 0.0
    %6652 = vmatprep.subr.mxu0 0.0
    %6653 = vmatpush1.msra.mxu0 0.0
    %6654 = vmatprep.subr.mxu0 0.0
    %6655 = vmatpush1.msra.mxu0 0.0
    %6656 = vmatprep.subr.mxu0 0.0
    %6657 = vmatpush1.msra.mxu0 0.0
    %6658 = vmatprep.subr.mxu0 0.0
    %6659 = vmatpush1.msra.mxu0 0.0
    %6660 = vmatprep.subr.mxu0 0.0
    %6661 = vmatpush1.msra.mxu0 0.0
    %6662 = vmatprep.subr.mxu0 0.0
    %6663 = vmatpush1.msra.mxu0 0.0
    %6664 = vmatprep.subr.mxu0 0.0
    %6665 = vmatpush1.msra.mxu0 0.0
    %6666 = vmatprep.subr.mxu0 0.0
    %6667 = vmatpush1.msra.mxu0 0.0
    %6668 = vmatprep.subr.mxu0 0.0
    %6669 = vmatpush1.msra.mxu0 0.0
    %6670 = vmatprep.subr.mxu0 0.0
    %6671 = vmatpush1.msra.mxu0 0.0
    %6672 = vmatprep.subr.mxu0 0.0
    %6673 = vmatpush1.msra.mxu0 0.0
    %6674 = vmatprep.subr.mxu0 0.0
    %6675 = vmatpush1.msra.mxu0 0.0
    %6676 = vmatprep.subr.mxu0 0.0
    %6677 = vmatpush1.msra.mxu0 0.0
    %6678 = vmatprep.subr.mxu0 0.0
    %6679 = vmatpush1.msra.mxu0 0.0
    %6680 = vmatprep.subr.mxu0 0.0
    %6681 = vmatpush1.msra.mxu0 0.0
    %6682 = vmatprep.subr.mxu0 0.0
    %6683 = vmatpush1.msra.mxu0 0.0
    %6684 = vmatprep.subr.mxu0 0.0
    %6685 = vmatpush1.msra.mxu0 0.0
    %6686 = vmatprep.subr.mxu0 0.0
    %6687 = vmatpush1.msra.mxu0 0.0
    %6688 = vmatprep.subr.mxu0 0.0
    %6689 = vmatpush1.msra.mxu0 0.0
    %6690 = vmatprep.subr.mxu0 0.0
    %6691 = vmatpush1.msra.mxu0 0.0
    %6692 = vmatprep.mubr.f32.mxu0 0.0
    %6693 = vmatmul.mubr.f32.gmra.mrb[0].mxu0 %v6507
    %v6694 = vpop.f32.mrb[0].mxu0
    %v6695 = vadd.f32 %v6590, %v6694
    %v6696 = vpop.f32.mrb[0].mxu0
    %6697 = vmatprep.mubr.f32.mxu0 0.0
    %6698 = vmatmul.mubr.f32.gmra.mrb[0].mxu0 %v6509
    %v6699 = vpop.f32.mrb[0].mxu0
    %v6700 = vadd.f32 %v6595, %v6699
    %v6701 = vpop.f32.mrb[0].mxu0
    %6702 = vmatprep.mubr.f32.mxu0 0.0
    %6703 = vmatmul.mubr.f32.gmra.mrb[0].mxu0 %v6511
    %v6704 = vpop.f32.mrb[0].mxu0
    %v6705 = vadd.f32 %v6600, %v6704
    %v6706 = vpop.f32.mrb[0].mxu0
    %6707 = vmatprep.mubr.f32.mxu0 0.0
    %6708 = vmatmul.mubr.f32.gmra.mrb[0].mxu0 %v6513
    %v6709 = vpop.f32.mrb[0].mxu0
    %v6710 = vadd.f32 %v6605, %v6709
    %v6711 = vpop.f32.mrb[0].mxu0
    %6712 = vmatprep.mubr.f32.mxu0 0.0
    %6713 = vmatmul.mubr.f32.gmra.mrb[0].mxu0 %v6515
    %v6714 = vpop.f32.mrb[0].mxu0
    %v6715 = vadd.f32 %v6610, %v6714
    %v6716 = vpop.f32.mrb[0].mxu0
    %6717 = vmatprep.mubr.f32.mxu0 0.0
    %6718 = vmatmul.mubr.f32.gmra.mrb[0].mxu0 %v6517
    %v6719 = vpop.f32.mrb[0].mxu0
    %v6720 = vadd.f32 %v6615, %v6719
    %v6721 = vpop.f32.mrb[0].mxu0
    %6722 = vmatprep.mubr.f32.mxu0 0.0
    %6723 = vmatmul.mubr.f32.gmra.mrb[0].mxu0 %v6519
    %v6724 = vpop.f32.mrb[0].mxu0
    %v6725 = vadd.f32 %v6620, %v6724
    %v6726 = vpop.f32.mrb[0].mxu0
    %6727 = vmatprep.mubr.f32.mxu0 0.0
    %6728 = vmatmul.mubr.f32.gmra.mrb[0].mxu0 %v6521
    %v6729 = vpop.f32.mrb[0].mxu0
    %v6730 = vadd.f32 %v6625, %v6729
    %v6731 = vpop.f32.mrb[0].mxu0
    %6732 = vdwg.mxu0
    %v6733 = vadd.f32 %v6263, %v6695
    %v6734 = vadd.f32 %v6264, %v6700
    %v6735 = vadd.f32 %v6265, %v6705
    %v6736 = vadd.f32 %v6266, %v6710
    %v6737 = vadd.f32 %v6267, %v6715
    %v6738 = vadd.f32 %v6268, %v6720
    %v6739 = vadd.f32 %v6269, %v6725
    %v6740 = vadd.f32 %v6270, %v6730
    %v6741 = vld [vmem:[%s9] sm:$0xff]
    %v6742 = vld [vmem:[%s9 + $0x8] sm:$0xff]
    %v6743 = vld [vmem:[%s9 + $0x10] sm:$0xff]
    %v6744 = vld [vmem:[%s9 + $0x18] sm:$0xff]
    %v6745 = vld [vmem:[%s9 + $0x20] sm:$0xff]
    %v6746 = vld [vmem:[%s9 + $0x28] sm:$0xff]
    %v6747 = vld [vmem:[%s9 + $0x30] sm:$0xff]
    %v6748 = vld [vmem:[%s9 + $0x38] sm:$0xff]
    %6750 = vset.pattern.permute.xlu0 0
    %6751 = vperm.xlu0 %6750, %v6741
    %v6752 = vpop.permute.xlu0 %6751
    %6755 = vset.pattern.permute.xlu0 0
    %6756 = vperm.xlu0 %6755, %v6742
    %v6757 = vpop.permute.xlu0 %6756
    %6760 = vset.pattern.permute.xlu0 0
    %6761 = vperm.xlu0 %6760, %v6743
    %v6762 = vpop.permute.xlu0 %6761
    %6765 = vset.pattern.permute.xlu0 0
    %6766 = vperm.xlu0 %6765, %v6744
    %v6767 = vpop.permute.xlu0 %6766
    %6770 = vset.pattern.permute.xlu0 0
    %6771 = vperm.xlu0 %6770, %v6745
    %v6772 = vpop.permute.xlu0 %6771
    %6775 = vset.pattern.permute.xlu0 0
    %6776 = vperm.xlu0 %6775, %v6746
    %v6777 = vpop.permute.xlu0 %6776
    %6780 = vset.pattern.permute.xlu0 0
    %6781 = vperm.xlu0 %6780, %v6747
    %v6782 = vpop.permute.xlu0 %6781
    %6785 = vset.pattern.permute.xlu0 0
    %6786 = vperm.xlu0 %6785, %v6748
    %v6787 = vpop.permute.xlu0 %6786
    %v6789 = vadd.f32 %v6733, %v6752
    %v6790 = vadd.f32 %v6734, %v6757
    %v6791 = vadd.f32 %v6735, %v6762
    %v6792 = vadd.f32 %v6736, %v6767
    %v6793 = vadd.f32 %v6737, %v6772
    %v6794 = vadd.f32 %v6738, %v6777
    %v6795 = vadd.f32 %v6739, %v6782
    %v6796 = vadd.f32 %v6740, %v6787
    %v6797 = vmax.f32 %v6789, 0.0
    %v6798 = vmax.f32 %v6790, 0.0
    %v6799 = vmax.f32 %v6791, 0.0
    %v6800 = vmax.f32 %v6792, 0.0
    %v6801 = vmax.f32 %v6793, 0.0
    %v6802 = vmax.f32 %v6794, 0.0
    %v6803 = vmax.f32 %v6795, 0.0
    %v6804 = vmax.f32 %v6796, 0.0
    %6805 = vset.pattern.permute.xlu0 1
    %6806 = vperm.xlu0 %6805, %v6741
    %v6807 = vpop.permute.xlu0 %6806
    %6809 = vset.pattern.permute.xlu0 1
    %6810 = vperm.xlu0 %6809, %v6742
    %v6811 = vpop.permute.xlu0 %6810
    %6813 = vset.pattern.permute.xlu0 1
    %6814 = vperm.xlu0 %6813, %v6743
    %v6815 = vpop.permute.xlu0 %6814
    %6817 = vset.pattern.permute.xlu0 1
    %6818 = vperm.xlu0 %6817, %v6744
    %v6819 = vpop.permute.xlu0 %6818
    %6821 = vset.pattern.permute.xlu0 1
    %6822 = vperm.xlu0 %6821, %v6745
    %v6823 = vpop.permute.xlu0 %6822
    %6825 = vset.pattern.permute.xlu0 1
    %6826 = vperm.xlu0 %6825, %v6746
    %v6827 = vpop.permute.xlu0 %6826
    %6829 = vset.pattern.permute.xlu0 1
    %6830 = vperm.xlu0 %6829, %v6747
    %v6831 = vpop.permute.xlu0 %6830
    %6833 = vset.pattern.permute.xlu0 1
    %6834 = vperm.xlu0 %6833, %v6748
    %v6835 = vpop.permute.xlu0 %6834
    %v6837 = vmul.f32 %v6797, %v6807
    %v6838 = vmul.f32 %v6798, %v6811
    %v6839 = vmul.f32 %v6799, %v6815
    %v6840 = vmul.f32 %v6800, %v6819
    %v6841 = vmul.f32 %v6801, %v6823
    %v6842 = vmul.f32 %v6802, %v6827
    %v6843 = vmul.f32 %v6803, %v6831
    %v6844 = vmul.f32 %v6804, %v6835
    %6845 = vset.pattern.permute.xlu0 2
    %6846 = vperm.xlu0 %6845, %v6741
    %v6847 = vpop.permute.xlu0 %6846
    %6849 = vset.pattern.permute.xlu0 2
    %6850 = vperm.xlu0 %6849, %v6742
    %v6851 = vpop.permute.xlu0 %6850
    %6853 = vset.pattern.permute.xlu0 2
    %6854 = vperm.xlu0 %6853, %v6743
    %v6855 = vpop.permute.xlu0 %6854
    %6857 = vset.pattern.permute.xlu0 2
    %6858 = vperm.xlu0 %6857, %v6744
    %v6859 = vpop.permute.xlu0 %6858
    %6861 = vset.pattern.permute.xlu0 2
    %6862 = vperm.xlu0 %6861, %v6745
    %v6863 = vpop.permute.xlu0 %6862
    %6865 = vset.pattern.permute.xlu0 2
    %6866 = vperm.xlu0 %6865, %v6746
    %v6867 = vpop.permute.xlu0 %6866
    %6869 = vset.pattern.permute.xlu0 2
    %6870 = vperm.xlu0 %6869, %v6747
    %v6871 = vpop.permute.xlu0 %6870
    %6873 = vset.pattern.permute.xlu0 2
    %6874 = vperm.xlu0 %6873, %v6748
    %v6875 = vpop.permute.xlu0 %6874
    %v6877 = vadd.f32 %v6837, %v6847
    %v6878 = vadd.f32 %v6838, %v6851
    %v6879 = vadd.f32 %v6839, %v6855
    %v6880 = vadd.f32 %v6840, %v6859
    %v6881 = vadd.f32 %v6841, %v6863
    %v6882 = vadd.f32 %v6842, %v6867
    %v6883 = vadd.f32 %v6843, %v6871
    %v6884 = vadd.f32 %v6844, %v6875
    %v6885 = vld [vmem:[%s10] sm:$0xff]
    %v6886 = vld [vmem:[%s10 + $0x8] sm:$0xff]
    %v6887 = vld [vmem:[%s10 + $0x10] sm:$0x1]
    %vm6888 = vcmask 138240
    %v6890 = vsel %vm6888, %v6877, 0
    %v6893 = vsel %vm6888, %v6878, 0
    %v6896 = vsel %vm6888, %v6879, 0
    %v6899 = vsel %vm6888, %v6880, 0
    %v6902 = vsel %vm6888, %v6881, 0
    %v6905 = vsel %vm6888, %v6882, 0
    %v6908 = vsel %vm6888, %v6883, 0
    %v6911 = vsel %vm6888, %v6884, 0
    %vm6913 = vcmask 1040384
    %v6915 = vsel %vm6913, %v6887, 0
    %6917 = vmatprep.subr.mxu0 0.0
    %6918 = vmatpush1.msra.mxu0 %v6885
    %6919 = vmatprep.subr.mxu0 0.0
    %6920 = vmatpush1.msra.mxu0 %v6886
    %6921 = vmatprep.subr.mxu0 0.0
    %6922 = vmatpush1.msra.mxu0 %v6915
    %6923 = vmatprep.subr.mxu0 0.0
    %6924 = vmatpush1.msra.mxu0 0.0
    %6925 = vmatprep.subr.mxu0 0.0
    %6926 = vmatpush1.msra.mxu0 0.0
    %6927 = vmatprep.subr.mxu0 0.0
    %6928 = vmatpush1.msra.mxu0 0.0
    %6929 = vmatprep.subr.mxu0 0.0
    %6930 = vmatpush1.msra.mxu0 0.0
    %6931 = vmatprep.subr.mxu0 0.0
    %6932 = vmatpush1.msra.mxu0 0.0
    %6933 = vmatprep.subr.mxu0 0.0
    %6934 = vmatpush1.msra.mxu0 0.0
    %6935 = vmatprep.subr.mxu0 0.0
    %6936 = vmatpush1.msra.mxu0 0.0
    %6937 = vmatprep.subr.mxu0 0.0
    %6938 = vmatpush1.msra.mxu0 0.0
    %6939 = vmatprep.subr.mxu0 0.0
    %6940 = vmatpush1.msra.mxu0 0.0
    %6941 = vmatprep.subr.mxu0 0.0
    %6942 = vmatpush1.msra.mxu0 0.0
    %6943 = vmatprep.subr.mxu0 0.0
    %6944 = vmatpush1.msra.mxu0 0.0
    %6945 = vmatprep.subr.mxu0 0.0
    %6946 = vmatpush1.msra.mxu0 0.0
    %6947 = vmatprep.subr.mxu0 0.0
    %6948 = vmatpush1.msra.mxu0 0.0
    %6949 = vmatprep.subr.mxu0 0.0
    %6950 = vmatpush1.msra.mxu0 0.0
    %6951 = vmatprep.subr.mxu0 0.0
    %6952 = vmatpush1.msra.mxu0 0.0
    %6953 = vmatprep.subr.mxu0 0.0
    %6954 = vmatpush1.msra.mxu0 0.0
    %6955 = vmatprep.subr.mxu0 0.0
    %6956 = vmatpush1.msra.mxu0 0.0
    %6957 = vmatprep.subr.mxu0 0.0
    %6958 = vmatpush1.msra.mxu0 0.0
    %6959 = vmatprep.subr.mxu0 0.0
    %6960 = vmatpush1.msra.mxu0 0.0
    %6961 = vmatprep.subr.mxu0 0.0
    %6962 = vmatpush1.msra.mxu0 0.0
    %6963 = vmatprep.subr.mxu0 0.0
    %6964 = vmatpush1.msra.mxu0 0.0
    %6965 = vmatprep.subr.mxu0 0.0
    %6966 = vmatpush1.msra.mxu0 0.0
    %6967 = vmatprep.subr.mxu0 0.0
    %6968 = vmatpush1.msra.mxu0 0.0
    %6969 = vmatprep.subr.mxu0 0.0
    %6970 = vmatpush1.msra.mxu0 0.0
    %6971 = vmatprep.subr.mxu0 0.0
    %6972 = vmatpush1.msra.mxu0 0.0
    %6973 = vmatprep.subr.mxu0 0.0
    %6974 = vmatpush1.msra.mxu0 0.0
    %6975 = vmatprep.subr.mxu0 0.0
    %6976 = vmatpush1.msra.mxu0 0.0
    %6977 = vmatprep.subr.mxu0 0.0
    %6978 = vmatpush1.msra.mxu0 0.0
    %6979 = vmatprep.subr.mxu0 0.0
    %6980 = vmatpush1.msra.mxu0 0.0
    %6981 = vmatprep.mubr.f32.mxu0 0.0
    %6982 = vmatmul.mubr.f32.gmra.mrb[0].mxu0 %v6890
    %v6983 = vpop.f32.mrb[0].mxu0
    %v6984 = vadd.f32 0.0, %v6983
    %v6985 = vpop.f32.mrb[0].mxu0
    %6986 = vmatprep.mubr.f32.mxu0 0.0
    %6987 = vmatmul.mubr.f32.gmra.mrb[0].mxu0 %v6893
    %v6988 = vpop.f32.mrb[0].mxu0
    %v6989 = vadd.f32 0.0, %v6988
    %v6990 = vpop.f32.mrb[0].mxu0
    %6991 = vmatprep.mubr.f32.mxu0 0.0
    %6992 = vmatmul.mubr.f32.gmra.mrb[0].mxu0 %v6896
    %v6993 = vpop.f32.mrb[0].mxu0
    %v6994 = vadd.f32 0.0, %v6993
    %v6995 = vpop.f32.mrb[0].mxu0
    %6996 = vmatprep.mubr.f32.mxu0 0.0
    %6997 = vmatmul.mubr.f32.gmra.mrb[0].mxu0 %v6899
    %v6998 = vpop.f32.mrb[0].mxu0
    %v6999 = vadd.f32 0.0, %v6998
    %v7000 = vpop.f32.mrb[0].mxu0
    %7001 = vmatprep.mubr.f32.mxu0 0.0
    %7002 = vmatmul.mubr.f32.gmra.mrb[0].mxu0 %v6902
    %v7003 = vpop.f32.mrb[0].mxu0
    %v7004 = vadd.f32 0.0, %v7003
    %v7005 = vpop.f32.mrb[0].mxu0
    %7006 = vmatprep.mubr.f32.mxu0 0.0
    %7007 = vmatmul.mubr.f32.gmra.mrb[0].mxu0 %v6905
    %v7008 = vpop.f32.mrb[0].mxu0
    %v7009 = vadd.f32 0.0, %v7008
    %v7010 = vpop.f32.mrb[0].mxu0
    %7011 = vmatprep.mubr.f32.mxu0 0.0
    %7012 = vmatmul.mubr.f32.gmra.mrb[0].mxu0 %v6908
    %v7013 = vpop.f32.mrb[0].mxu0
    %v7014 = vadd.f32 0.0, %v7013
    %v7015 = vpop.f32.mrb[0].mxu0
    %7016 = vmatprep.mubr.f32.mxu0 0.0
    %7017 = vmatmul.mubr.f32.gmra.mrb[0].mxu0 %v6911
    %v7018 = vpop.f32.mrb[0].mxu0
    %v7019 = vadd.f32 0.0, %v7018
    %v7020 = vpop.f32.mrb[0].mxu0
    %7021 = vdwg.mxu0
    %v7022 = vld [vmem:[%s11] sm:$0xf]
    %7024 = vrot.lane.b32.xlu0 %v7022, 64
    %v7025 = vpop.permute.xlu0 %7024
    %7034 = vrot.lane.b32.xlu0 %v6984, 119
    %v7035 = vpop.permute.xlu0 %7034
    %7036 = vrot.lane.b32.xlu0 %v6989, 119
    %v7037 = vpop.permute.xlu0 %7036
    %7038 = vrot.lane.b32.xlu0 %v6994, 119
    %v7039 = vpop.permute.xlu0 %7038
    %7040 = vrot.lane.b32.xlu0 %v6999, 119
    %v7041 = vpop.permute.xlu0 %7040
    %7042 = vrot.lane.b32.xlu0 %v7004, 119
    %v7043 = vpop.permute.xlu0 %7042
    %7044 = vrot.lane.b32.xlu0 %v7009, 119
    %v7045 = vpop.permute.xlu0 %7044
    %7046 = vrot.lane.b32.xlu0 %v7014, 119
    %v7047 = vpop.permute.xlu0 %7046
    %7048 = vrot.lane.b32.xlu0 %v7019, 119
    %v7049 = vpop.permute.xlu0 %7048
    %v7058 = vsel %vm5896, %v7025, 0
    %7060 = vmatprep.subr.mxu0 0.0
    %7061 = vmatpush1.msra.mxu0 %v7035
    %7062 = vmatprep.subr.mxu0 0.0
    %7063 = vmatpush1.msra.mxu0 %v7037
    %7064 = vmatprep.subr.mxu0 0.0
    %7065 = vmatpush1.msra.mxu0 %v7039
    %7066 = vmatprep.subr.mxu0 0.0
    %7067 = vmatpush1.msra.mxu0 %v7041
    %7068 = vmatprep.subr.mxu0 0.0
    %7069 = vmatpush1.msra.mxu0 %v7043
    %7070 = vmatprep.subr.mxu0 0.0
    %7071 = vmatpush1.msra.mxu0 %v7045
    %7072 = vmatprep.subr.mxu0 0.0
    %7073 = vmatpush1.msra.mxu0 %v7047
    %7074 = vmatprep.subr.mxu0 0.0
    %7075 = vmatpush1.msra.mxu0 %v7049
    %7076 = vmatprep.subr.mxu0 0.0
    %7077 = vmatpush1.msra.mxu0 0.0
    %7078 = vmatprep.subr.mxu0 0.0
    %7079 = vmatpush1.msra.mxu0 0.0
    %7080 = vmatprep.subr.mxu0 0.0
    %7081 = vmatpush1.msra.mxu0 0.0
    %7082 = vmatprep.subr.mxu0 0.0
    %7083 = vmatpush1.msra.mxu0 0.0
    %7084 = vmatprep.subr.mxu0 0.0
    %7085 = vmatpush1.msra.mxu0 0.0
    %7086 = vmatprep.subr.mxu0 0.0
    %7087 = vmatpush1.msra.mxu0 0.0
    %7088 = vmatprep.subr.mxu0 0.0
    %7089 = vmatpush1.msra.mxu0 0.0
    %7090 = vmatprep.subr.mxu0 0.0
    %7091 = vmatpush1.msra.mxu0 0.0
    %7092 = vmatprep.subr.mxu0 0.0
    %7093 = vmatpush1.msra.mxu0 0.0
    %7094 = vmatprep.subr.mxu0 0.0
    %7095 = vmatpush1.msra.mxu0 0.0
    %7096 = vmatprep.subr.mxu0 0.0
    %7097 = vmatpush1.msra.mxu0 0.0
    %7098 = vmatprep.subr.mxu0 0.0
    %7099 = vmatpush1.msra.mxu0 0.0
    %7100 = vmatprep.subr.mxu0 0.0
    %7101 = vmatpush1.msra.mxu0 0.0
    %7102 = vmatprep.subr.mxu0 0.0
    %7103 = vmatpush1.msra.mxu0 0.0
    %7104 = vmatprep.subr.mxu0 0.0
    %7105 = vmatpush1.msra.mxu0 0.0
    %7106 = vmatprep.subr.mxu0 0.0
    %7107 = vmatpush1.msra.mxu0 0.0
    %7108 = vmatprep.subr.mxu0 0.0
    %7109 = vmatpush1.msra.mxu0 0.0
    %7110 = vmatprep.subr.mxu0 0.0
    %7111 = vmatpush1.msra.mxu0 0.0
    %7112 = vmatprep.subr.mxu0 0.0
    %7113 = vmatpush1.msra.mxu0 0.0
    %7114 = vmatprep.subr.mxu0 0.0
    %7115 = vmatpush1.msra.mxu0 0.0
    %7116 = vmatprep.subr.mxu0 0.0
    %7117 = vmatpush1.msra.mxu0 0.0
    %7118 = vmatprep.subr.mxu0 0.0
    %7119 = vmatpush1.msra.mxu0 0.0
    %7120 = vmatprep.subr.mxu0 0.0
    %7121 = vmatpush1.msra.mxu0 0.0
    %7122 = vmatprep.subr.mxu0 0.0
    %7123 = vmatpush1.msra.mxu0 0.0
    %7124 = vmatprep.mubr.f32.mxu0 0.0
    %7125 = vmatmul.mubr.f32.gmra.mrb[0].mxu0 %v7058
    %v7126 = vpop.f32.mrb[0].mxu0
    %v7127 = vadd.f32 0.0, %v7126
    %v7128 = vpop.f32.mrb[0].mxu0
    %7129 = vdwg.mxu0
    %v7130 = vsel %vm5896, %v7022, 0
    %7132 = vmatprep.subr.mxu0 0.0
    %7133 = vmatpush1.msra.mxu0 %v6984
    %7134 = vmatprep.subr.mxu0 0.0
    %7135 = vmatpush1.msra.mxu0 %v6989
    %7136 = vmatprep.subr.mxu0 0.0
    %7137 = vmatpush1.msra.mxu0 %v6994
    %7138 = vmatprep.subr.mxu0 0.0
    %7139 = vmatpush1.msra.mxu0 %v6999
    %7140 = vmatprep.subr.mxu0 0.0
    %7141 = vmatpush1.msra.mxu0 %v7004
    %7142 = vmatprep.subr.mxu0 0.0
    %7143 = vmatpush1.msra.mxu0 %v7009
    %7144 = vmatprep.subr.mxu0 0.0
    %7145 = vmatpush1.msra.mxu0 %v7014
    %7146 = vmatprep.subr.mxu0 0.0
    %7147 = vmatpush1.msra.mxu0 %v7019
    %7148 = vmatprep.subr.mxu0 0.0
    %7149 = vmatpush1.msra.mxu0 0.0
    %7150 = vmatprep.subr.mxu0 0.0
    %7151 = vmatpush1.msra.mxu0 0.0
    %7152 = vmatprep.subr.mxu0 0.0
    %7153 = vmatpush1.msra.mxu0 0.0
    %7154 = vmatprep.subr.mxu0 0.0
    %7155 = vmatpush1.msra.mxu0 0.0
    %7156 = vmatprep.subr.mxu0 0.0
    %7157 = vmatpush1.msra.mxu0 0.0
    %7158 = vmatprep.subr.mxu0 0.0
    %7159 = vmatpush1.msra.mxu0 0.0
    %7160 = vmatprep.subr.mxu0 0.0
    %7161 = vmatpush1.msra.mxu0 0.0
    %7162 = vmatprep.subr.mxu0 0.0
    %7163 = vmatpush1.msra.mxu0 0.0
    %7164 = vmatprep.subr.mxu0 0.0
    %7165 = vmatpush1.msra.mxu0 0.0
    %7166 = vmatprep.subr.mxu0 0.0
    %7167 = vmatpush1.msra.mxu0 0.0
    %7168 = vmatprep.subr.mxu0 0.0
    %7169 = vmatpush1.msra.mxu0 0.0
    %7170 = vmatprep.subr.mxu0 0.0
    %7171 = vmatpush1.msra.mxu0 0.0
    %7172 = vmatprep.subr.mxu0 0.0
    %7173 = vmatpush1.msra.mxu0 0.0
    %7174 = vmatprep.subr.mxu0 0.0
    %7175 = vmatpush1.msra.mxu0 0.0
    %7176 = vmatprep.subr.mxu0 0.0
    %7177 = vmatpush1.msra.mxu0 0.0
    %7178 = vmatprep.subr.mxu0 0.0
    %7179 = vmatpush1.msra.mxu0 0.0
    %7180 = vmatprep.subr.mxu0 0.0
    %7181 = vmatpush1.msra.mxu0 0.0
    %7182 = vmatprep.subr.mxu0 0.0
    %7183 = vmatpush1.msra.mxu0 0.0
    %7184 = vmatprep.subr.mxu0 0.0
    %7185 = vmatpush1.msra.mxu0 0.0
    %7186 = vmatprep.subr.mxu0 0.0
    %7187 = vmatpush1.msra.mxu0 0.0
    %7188 = vmatprep.subr.mxu0 0.0
    %7189 = vmatpush1.msra.mxu0 0.0
    %7190 = vmatprep.subr.mxu0 0.0
    %7191 = vmatpush1.msra.mxu0 0.0
    %7192 = vmatprep.subr.mxu0 0.0
    %7193 = vmatpush1.msra.mxu0 0.0
    %7194 = vmatprep.subr.mxu0 0.0
    %7195 = vmatpush1.msra.mxu0 0.0
    %7196 = vmatprep.mubr.f32.mxu0 0.0
    %7197 = vmatmul.mubr.f32.gmra.mrb[0].mxu0 %v7130
    %v7198 = vpop.f32.mrb[0].mxu0
    %v7199 = vadd.f32 %v7127, %v7198
    %v7200 = vpop.f32.mrb[0].mxu0
    %7201 = vdwg.mxu0
    %v7202 = vld [vmem:[%s11 + $0x4] sm:$0xf]
    %7203 = vrot.lane.b32.xlu0 %v6984, 110
    %v7204 = vpop.permute.xlu0 %7203
    %7205 = vrot.lane.b32.xlu0 %v6989, 110
    %v7206 = vpop.permute.xlu0 %7205
    %7207 = vrot.lane.b32.xlu0 %v6994, 110
    %v7208 = vpop.permute.xlu0 %7207
    %7209 = vrot.lane.b32.xlu0 %v6999, 110
    %v7210 = vpop.permute.xlu0 %7209
    %7211 = vrot.lane.b32.xlu0 %v7004, 110
    %v7212 = vpop.permute.xlu0 %7211
    %7213 = vrot.lane.b32.xlu0 %v7009, 110
    %v7214 = vpop.permute.xlu0 %7213
    %7215 = vrot.lane.b32.xlu0 %v7014, 110
    %v7216 = vpop.permute.xlu0 %7215
    %7217 = vrot.lane.b32.xlu0 %v7019, 110
    %v7218 = vpop.permute.xlu0 %7217
    %v7228 = vsel %vm5896, %v7202, 0
    %7230 = vmatprep.subr.mxu0 0.0
    %7231 = vmatpush1.msra.mxu0 %v7204
    %7232 = vmatprep.subr.mxu0 0.0
    %7233 = vmatpush1.msra.mxu0 %v7206
    %7234 = vmatprep.subr.mxu0 0.0
    %7235 = vmatpush1.msra.mxu0 %v7208
    %7236 = vmatprep.subr.mxu0 0.0
    %7237 = vmatpush1.msra.mxu0 %v7210
    %7238 = vmatprep.subr.mxu0 0.0
    %7239 = vmatpush1.msra.mxu0 %v7212
    %7240 = vmatprep.subr.mxu0 0.0
    %7241 = vmatpush1.msra.mxu0 %v7214
    %7242 = vmatprep.subr.mxu0 0.0
    %7243 = vmatpush1.msra.mxu0 %v7216
    %7244 = vmatprep.subr.mxu0 0.0
    %7245 = vmatpush1.msra.mxu0 %v7218
    %7246 = vmatprep.subr.mxu0 0.0
    %7247 = vmatpush1.msra.mxu0 0.0
    %7248 = vmatprep.subr.mxu0 0.0
    %7249 = vmatpush1.msra.mxu0 0.0
    %7250 = vmatprep.subr.mxu0 0.0
    %7251 = vmatpush1.msra.mxu0 0.0
    %7252 = vmatprep.subr.mxu0 0.0
    %7253 = vmatpush1.msra.mxu0 0.0
    %7254 = vmatprep.subr.mxu0 0.0
    %7255 = vmatpush1.msra.mxu0 0.0
    %7256 = vmatprep.subr.mxu0 0.0
    %7257 = vmatpush1.msra.mxu0 0.0
    %7258 = vmatprep.subr.mxu0 0.0
    %7259 = vmatpush1.msra.mxu0 0.0
    %7260 = vmatprep.subr.mxu0 0.0
    %7261 = vmatpush1.msra.mxu0 0.0
    %7262 = vmatprep.subr.mxu0 0.0
    %7263 = vmatpush1.msra.mxu0 0.0
    %7264 = vmatprep.subr.mxu0 0.0
    %7265 = vmatpush1.msra.mxu0 0.0
    %7266 = vmatprep.subr.mxu0 0.0
    %7267 = vmatpush1.msra.mxu0 0.0
    %7268 = vmatprep.subr.mxu0 0.0
    %7269 = vmatpush1.msra.mxu0 0.0
    %7270 = vmatprep.subr.mxu0 0.0
    %7271 = vmatpush1.msra.mxu0 0.0
    %7272 = vmatprep.subr.mxu0 0.0
    %7273 = vmatpush1.msra.mxu0 0.0
    %7274 = vmatprep.subr.mxu0 0.0
    %7275 = vmatpush1.msra.mxu0 0.0
    %7276 = vmatprep.subr.mxu0 0.0
    %7277 = vmatpush1.msra.mxu0 0.0
    %7278 = vmatprep.subr.mxu0 0.0
    %7279 = vmatpush1.msra.mxu0 0.0
    %7280 = vmatprep.subr.mxu0 0.0
    %7281 = vmatpush1.msra.mxu0 0.0
    %7282 = vmatprep.subr.mxu0 0.0
    %7283 = vmatpush1.msra.mxu0 0.0
    %7284 = vmatprep.subr.mxu0 0.0
    %7285 = vmatpush1.msra.mxu0 0.0
    %7286 = vmatprep.subr.mxu0 0.0
    %7287 = vmatpush1.msra.mxu0 0.0
    %7288 = vmatprep.subr.mxu0 0.0
    %7289 = vmatpush1.msra.mxu0 0.0
    %7290 = vmatprep.subr.mxu0 0.0
    %7291 = vmatpush1.msra.mxu0 0.0
    %7292 = vmatprep.subr.mxu0 0.0
    %7293 = vmatpush1.msra.mxu0 0.0
    %7294 = vmatprep.mubr.f32.mxu0 0.0
    %7295 = vmatmul.mubr.f32.gmra.mrb[0].mxu0 %v7228
    %v7296 = vpop.f32.mrb[0].mxu0
    %v7297 = vadd.f32 0.0, %v7296
    %v7298 = vpop.f32.mrb[0].mxu0
    %7299 = vdwg.mxu0
    %v7300 = vadd.f32 %v7199, %v7297
    %v7301 = vld [vmem:[%s12] sm:$0xf]
    %7303 = vset.pattern.permute.xlu0 0
    %7304 = vperm.xlu0 %7303, %v7301
    %v7305 = vpop.permute.xlu0 %7304
    %v7307 = vadd.f32 %v7300, %v7305
    %vm7308 = vcmp.ge.f32.partialorder %v7307, 0.0
    %v7309 = vmul.f32 %v7307, 0.3
    %v7310 = vsel %vm7308, %v7307, %v7309
    %7311 = vset.pattern.permute.xlu0 1
    %7312 = vperm.xlu0 %7311, %v7301
    %v7313 = vpop.permute.xlu0 %7312
    %v7315 = vmul.f32 %v7310, %v7313
    %7316 = vset.pattern.permute.xlu0 2
    %7317 = vperm.xlu0 %7316, %v7301
    %v7318 = vpop.permute.xlu0 %7317
    %v7320 = vadd.f32 %v7315, %v7318
    %vm7321 = vcmask 65536
    %7322 = vst.msk [vmem:[#allocation2] sm:$0x1] %vm7321, %v7320
    %7324 = vrot.lane.b32.xlu0 %v7320, 9
    %v7325 = vpop.permute.xlu0 %7324
    %vm7327 = vcmask 140361
    %7328 = vst.msk [vmem:[#allocation2 - $0x1] sm:$0x2] %vm7327, %v7325
    %vm7329 = vcmask 67586
    %7330 = vst.msk [vmem:[#allocation2 - $0x1] sm:$0x4] %vm7329, %v7320
    %vm7331 = vcmask 142411
    %7332 = vst.msk [vmem:[#allocation2 - $0x2] sm:$0x8] %vm7331, %v7325
    %v7333 = vld [vmem:[#allocation2] sm:$0x3]
    %v7334 = vld [vmem:[%s13] sm:$0xff]
    %v7335 = vld [vmem:[%s13 + $0x8] sm:$0xff]
    %v7336 = vld [vmem:[%s13 + $0x10] sm:$0x3]
    %v7337 = vld [vmem:[%s14] sm:$0x1]
    %v7339 = vlaneseq
    %v7340 = vshrl.u32 %v7339, 7
    %v7341 = vsub.s32 0, %v7340
    %v7342 = vrot.slane %v7337, %v7341
    %vm7344 = vcmask 146432
    %v7346 = vsel %vm7344, %v7333, 0
    %v7349 = vsel %vm395, %v7336, 0
    %7351 = vmatprep.subr.mxu0 0.0
    %7352 = vmatpush1.msra.mxu0 %v7334
    %7353 = vmatprep.subr.mxu0 0.0
    %7354 = vmatpush1.msra.mxu0 %v7335
    %7355 = vmatprep.subr.mxu0 0.0
    %7356 = vmatpush1.msra.mxu0 %v7349
    %7357 = vmatprep.subr.mxu0 0.0
    %7358 = vmatpush1.msra.mxu0 0.0
    %7359 = vmatprep.subr.mxu0 0.0
    %7360 = vmatpush1.msra.mxu0 0.0
    %7361 = vmatprep.subr.mxu0 0.0
    %7362 = vmatpush1.msra.mxu0 0.0
    %7363 = vmatprep.subr.mxu0 0.0
    %7364 = vmatpush1.msra.mxu0 0.0
    %7365 = vmatprep.subr.mxu0 0.0
    %7366 = vmatpush1.msra.mxu0 0.0
    %7367 = vmatprep.subr.mxu0 0.0
    %7368 = vmatpush1.msra.mxu0 0.0
    %7369 = vmatprep.subr.mxu0 0.0
    %7370 = vmatpush1.msra.mxu0 0.0
    %7371 = vmatprep.subr.mxu0 0.0
    %7372 = vmatpush1.msra.mxu0 0.0
    %7373 = vmatprep.subr.mxu0 0.0
    %7374 = vmatpush1.msra.mxu0 0.0
    %7375 = vmatprep.subr.mxu0 0.0
    %7376 = vmatpush1.msra.mxu0 0.0
    %7377 = vmatprep.subr.mxu0 0.0
    %7378 = vmatpush1.msra.mxu0 0.0
    %7379 = vmatprep.subr.mxu0 0.0
    %7380 = vmatpush1.msra.mxu0 0.0
    %7381 = vmatprep.subr.mxu0 0.0
    %7382 = vmatpush1.msra.mxu0 0.0
    %7383 = vmatprep.subr.mxu0 0.0
    %7384 = vmatpush1.msra.mxu0 0.0
    %7385 = vmatprep.subr.mxu0 0.0
    %7386 = vmatpush1.msra.mxu0 0.0
    %7387 = vmatprep.subr.mxu0 0.0
    %7388 = vmatpush1.msra.mxu0 0.0
    %7389 = vmatprep.subr.mxu0 0.0
    %7390 = vmatpush1.msra.mxu0 0.0
    %7391 = vmatprep.subr.mxu0 0.0
    %7392 = vmatpush1.msra.mxu0 0.0
    %7393 = vmatprep.subr.mxu0 0.0
    %7394 = vmatpush1.msra.mxu0 0.0
    %7395 = vmatprep.subr.mxu0 0.0
    %7396 = vmatpush1.msra.mxu0 0.0
    %7397 = vmatprep.subr.mxu0 0.0
    %7398 = vmatpush1.msra.mxu0 0.0
    %7399 = vmatprep.subr.mxu0 0.0
    %7400 = vmatpush1.msra.mxu0 0.0
    %7401 = vmatprep.subr.mxu0 0.0
    %7402 = vmatpush1.msra.mxu0 0.0
    %7403 = vmatprep.subr.mxu0 0.0
    %7404 = vmatpush1.msra.mxu0 0.0
    %7405 = vmatprep.subr.mxu0 0.0
    %7406 = vmatpush1.msra.mxu0 0.0
    %7407 = vmatprep.subr.mxu0 0.0
    %7408 = vmatpush1.msra.mxu0 0.0
    %7409 = vmatprep.subr.mxu0 0.0
    %7410 = vmatpush1.msra.mxu0 0.0
    %7411 = vmatprep.subr.mxu0 0.0
    %7412 = vmatpush1.msra.mxu0 0.0
    %7413 = vmatprep.subr.mxu0 0.0
    %7414 = vmatpush1.msra.mxu0 0.0
    %7415 = vmatprep.mubr.f32.mxu0 0.0
    %7416 = vmatmul.mubr.f32.gmra.mrb[0].mxu0 %v7346
    %v7417 = vpop.f32.mrb[0].mxu0
    %v7418 = vadd.f32 %v7342, %v7417
    %v7419 = vpop.f32.mrb[0].mxu0
    %7420 = vdwg.mxu0
    %vm7421 = vcmp.ge.f32.partialorder %v7418, 0.0
    %v7422 = vmul.f32 %v7418, 0.3
    %v7423 = vsel %vm7421, %v7418, %v7422
    %v7424 = vld [vmem:[%s15] sm:$0xff]
    %v7425 = vld [vmem:[%s15 + $0x8] sm:$0x3]
    %v7426 = vld [vmem:[%s16] sm:$0x1]
    %v7428 = vlaneseq
    %v7429 = vshrl.u32 %v7428, 7
    %v7430 = vsub.s32 0, %v7429
    %v7431 = vrot.slane %v7426, %v7430
    %vm7433 = vcmask 80896
    %v7435 = vsel %vm7433, %v7423, 0
    %v7438 = vsel %vm395, %v7425, 0
    %7440 = vmatprep.subr.mxu0 0.0
    %7441 = vmatpush1.msra.mxu0 %v7424
    %7442 = vmatprep.subr.mxu0 0.0
    %7443 = vmatpush1.msra.mxu0 %v7438
    %7444 = vmatprep.subr.mxu0 0.0
    %7445 = vmatpush1.msra.mxu0 0.0
    %7446 = vmatprep.subr.mxu0 0.0
    %7447 = vmatpush1.msra.mxu0 0.0
    %7448 = vmatprep.subr.mxu0 0.0
    %7449 = vmatpush1.msra.mxu0 0.0
    %7450 = vmatprep.subr.mxu0 0.0
    %7451 = vmatpush1.msra.mxu0 0.0
    %7452 = vmatprep.subr.mxu0 0.0
    %7453 = vmatpush1.msra.mxu0 0.0
    %7454 = vmatprep.subr.mxu0 0.0
    %7455 = vmatpush1.msra.mxu0 0.0
    %7456 = vmatprep.subr.mxu0 0.0
    %7457 = vmatpush1.msra.mxu0 0.0
    %7458 = vmatprep.subr.mxu0 0.0
    %7459 = vmatpush1.msra.mxu0 0.0
    %7460 = vmatprep.subr.mxu0 0.0
    %7461 = vmatpush1.msra.mxu0 0.0
    %7462 = vmatprep.subr.mxu0 0.0
    %7463 = vmatpush1.msra.mxu0 0.0
    %7464 = vmatprep.subr.mxu0 0.0
    %7465 = vmatpush1.msra.mxu0 0.0
    %7466 = vmatprep.subr.mxu0 0.0
    %7467 = vmatpush1.msra.mxu0 0.0
    %7468 = vmatprep.subr.mxu0 0.0
    %7469 = vmatpush1.msra.mxu0 0.0
    %7470 = vmatprep.subr.mxu0 0.0
    %7471 = vmatpush1.msra.mxu0 0.0
    %7472 = vmatprep.subr.mxu0 0.0
    %7473 = vmatpush1.msra.mxu0 0.0
    %7474 = vmatprep.subr.mxu0 0.0
    %7475 = vmatpush1.msra.mxu0 0.0
    %7476 = vmatprep.subr.mxu0 0.0
    %7477 = vmatpush1.msra.mxu0 0.0
    %7478 = vmatprep.subr.mxu0 0.0
    %7479 = vmatpush1.msra.mxu0 0.0
    %7480 = vmatprep.subr.mxu0 0.0
    %7481 = vmatpush1.msra.mxu0 0.0
    %7482 = vmatprep.subr.mxu0 0.0
    %7483 = vmatpush1.msra.mxu0 0.0
    %7484 = vmatprep.subr.mxu0 0.0
    %7485 = vmatpush1.msra.mxu0 0.0
    %7486 = vmatprep.subr.mxu0 0.0
    %7487 = vmatpush1.msra.mxu0 0.0
    %7488 = vmatprep.subr.mxu0 0.0
    %7489 = vmatpush1.msra.mxu0 0.0
    %7490 = vmatprep.subr.mxu0 0.0
    %7491 = vmatpush1.msra.mxu0 0.0
    %7492 = vmatprep.subr.mxu0 0.0
    %7493 = vmatpush1.msra.mxu0 0.0
    %7494 = vmatprep.subr.mxu0 0.0
    %7495 = vmatpush1.msra.mxu0 0.0
    %7496 = vmatprep.subr.mxu0 0.0
    %7497 = vmatpush1.msra.mxu0 0.0
    %7498 = vmatprep.subr.mxu0 0.0
    %7499 = vmatpush1.msra.mxu0 0.0
    %7500 = vmatprep.subr.mxu0 0.0
    %7501 = vmatpush1.msra.mxu0 0.0
    %7502 = vmatprep.subr.mxu0 0.0
    %7503 = vmatpush1.msra.mxu0 0.0
    %7504 = vmatprep.mubr.f32.mxu0 0.0
    %7505 = vmatmul.mubr.f32.gmra.mrb[0].mxu0 %v7435
    %v7506 = vpop.f32.mrb[0].mxu0
    %v7507 = vadd.f32 %v7431, %v7506
    %v7508 = vpop.f32.mrb[0].mxu0
    %7509 = vdwg.mxu0
    %vm7510 = vcmask 17408
    %7511 = vst.msk [vmem:[#allocation3] sm:$0x3] %vm7510, %v7507
    // Predicated region
    $region70: #{forward.3} parent=1 // pred_check
      _
    $region71: #{forward.3} parent=1 // pred_check_branch
      %7513 = sbr.rel (0) target = $region73
    $region72: #{forward.3} parent=1 // pred_region
      %s7515 = ssub.s32 32, 32
      %7516 = vsyncadd [#allocation4], %s7515
      %s7518 = sshll.u32 [#allocation3], 4
      %s7519 = int_to_ptr.vmem [resolvable:$true] %s7518
      %7521 = dma.vmem_to_hbm [thread:$0]  %s7519, 32, %s17, [#allocation4]
    $region73: #{forward.3} parent=1 // pred_fallthru
      _
    // Predicated region
    $region74: #{forward.3} parent=1 // pred_check
      _
    $region75: #{forward.3} parent=1 // pred_check_branch
      %7523 = sbr.rel (0) target = $region77
    $region76: #{forward.3} parent=1 // pred_region
      %7524 = dma.done [#allocation4], 32
    $region77: #{forward.3} parent=1 // pred_fallthru
      _
    %7525 = vsyncpa [#allocation4], 1

</llo_original>
